<compile_context>
chip_gen: v6e
topology: v6e:2x2x1
jax: 0.10.0
libtpu: 0.0.40
codegen_flags: <defaults>
</compile_context>

<pallas_src>
import jax
import jax.numpy as jnp
from jax.experimental import pallas as pl
from jax.experimental.pallas import tpu as pltpu


# ------------------------------- Pallas kernel -------------------------------

def _inception_a_res_kernel(xq_ref, w1_ref, s1_ref, w2_ref, s2_ref, wr_ref, sr_ref,
                            o_ref, midq_ref, actq_ref):
    """Fully fused InceptionA_1_1_res forward for one image.

    xq_ref : (4, OH+1, OW+1, Cin) f32   parity-split, zero-padded input
             xq[2a+b, i, j, c] == xpad[2i+a, 2j+b, c]
    w1_ref : (9, Cin, C1) bf16          stage-1 taps, columns [b11|b33|stack1|bp]
                                        (1x1 convs live only at the centre tap)
    s1_ref : (1, C1) f32                folded-BN shifts for stage 1
    w2_ref : (9, n_mid, cq) bf16        branch3x3stack.conv2 taps
    s2_ref : (1, cq) f32
    wr_ref : (Cin, out_ch) f32          resbranch1x1 weight (kept f32 for accuracy)
    sr_ref : (1, out_ch) f32
    o_ref  : (OH, OW, out_ch) f32       pooled concat + residual
    midq_ref : (4, OH+1, OW+1, n_mid) bf16  padded parity-split `mid` scratch
    actq_ref : (4, OH+1, OW+1, 4*cq)  f32   padded parity-split pre-pool scratch
    """
    OH, OW, out_ch = o_ref.shape
    Cin = xq_ref.shape[-1]
    n_mid = w2_ref.shape[1]
    cq = w2_ref.shape[2]
    C1 = w1_ref.shape[2]
    M = OH * OW
    groups = ((0, 0), (0, 1), (1, 0), (1, 1))

    # Zero the padded parity scratches (only the borders actually need the zeros;
    # interiors are overwritten below).  Zero padding == -inf padding for the
    # max-pooled channels (they are ReLU outputs >= 0) and matches AvgPool2d's
    # default count_include_pad=True together with the /9 below.
    midq_ref[...] = jnp.zeros(midq_ref.shape, midq_ref.dtype)
    actq_ref[...] = jnp.zeros(actq_ref.shape, actq_ref.dtype)

    def shifted_slabs(planes, dtype):
        # planes[2a+b]: (OH+1, OW+1, C) parity plane of a zero-padded activation.
        # slab[(ai,qi,aj,qj)][u*OW+v, :] = Zpad[2*(u+qi)+ai, 2*(v+qj)+aj, :]
        slabs = {}
        for ai in range(2):
            for aj in range(2):
                pln = planes[2 * ai + aj]
                for qi in range(2):
                    for qj in range(2):
                        s = pln[qi:qi + OH, qj:qj + OW, :]
                        slabs[(ai, qi, aj, qj)] = s.reshape(M, s.shape[-1]).astype(dtype)
        return slabs

    xplanes = [xq_ref[p] for p in range(4)]            # f32 (OH+1, OW+1, Cin)
    xs = shifted_slabs(xplanes, jnp.bfloat16)          # 16 bf16 (M, Cin) slabs

    # ---- stage 1: [branch1x1 | branch3x3 | branch3x3stack.conv1 | branchpool.conv]
    # per output-parity group (r = 2u+ra, s = 2v+sa): 9 shifted MXU matmuls,
    # f32 accumulation, +shift, ReLU (every stage-1 column takes ReLU).
    for ra, sa in groups:
        acc = jnp.zeros((M, C1), jnp.float32)
        for di in range(3):
            qi, ai = divmod(ra + di, 2)
            for dj in range(3):
                qj, aj = divmod(sa + dj, 2)
                acc = acc + jnp.dot(xs[(ai, qi, aj, qj)], w1_ref[di * 3 + dj],
                                    preferred_element_type=jnp.float32)
        y = jnp.maximum(acc + s1_ref[...], 0.0).reshape(OH, OW, C1)
        p = 2 * (1 - ra) + (1 - sa)
        # concat is done at store time into the padded parity-split scratch,
        # final channel order [b11 | b33 | c33s | bp]:
        actq_ref[p, ra:ra + OH, sa:sa + OW, 0:2 * cq] = y[:, :, 0:2 * cq]
        actq_ref[p, ra:ra + OH, sa:sa + OW, 3 * cq:4 * cq] = y[:, :, 2 * cq + n_mid:]
        midq_ref[p, ra:ra + OH, sa:sa + OW, :] = (
            y[:, :, 2 * cq:2 * cq + n_mid].astype(midq_ref.dtype))

    # ---- stage 2: branch3x3stack.conv2 over the padded parity-split mid (VMEM only)
    mplanes = [midq_ref[p] for p in range(4)]
    ms = shifted_slabs(mplanes, jnp.bfloat16)
    for ra, sa in groups:
        acc = jnp.zeros((M, cq), jnp.float32)
        for di in range(3):
            qi, ai = divmod(ra + di, 2)
            for dj in range(3):
                qj, aj = divmod(sa + dj, 2)
                acc = acc + jnp.dot(ms[(ai, qi, aj, qj)], w2_ref[di * 3 + dj],
                                    preferred_element_type=jnp.float32)
        c = jnp.maximum(acc + s2_ref[...], 0.0).reshape(OH, OW, cq)
        p = 2 * (1 - ra) + (1 - sa)
        actq_ref[p, ra:ra + OH, sa:sa + OW, 2 * cq:3 * cq] = c

    # ---- fused MaxPool/AvgPool(3, s2, p1): padded rows {2i, 2i+1, 2i+2} map to
    # (parity, shift) in {(0,0), (1,0), (0,1)}; all window taps are contiguous slices.
    aplanes = [actq_ref[p] for p in range(4)]
    sel = ((0, 0), (1, 0), (0, 1))
    mx = None
    sm = None
    for ia, da in sel:
        for ib, db in sel:
            s = aplanes[2 * ia + ib][da:da + OH, db:db + OW, :]
            mx = s if mx is None else jnp.maximum(mx, s)
            sm = s if sm is None else sm + s
    ch = jax.lax.broadcasted_iota(jnp.int32, mx.shape, 2)
    pooled = jnp.where(ch < 3 * cq, mx, sm * (1.0 / 9.0))

    # ---- resbranch1x1: 1x1 stride-2 conv (+BN, no ReLU) on x[::2, ::2] in f32.
    # Parity plane (1,1) of the padded input is exactly x[2i, 2j].
    xres = xplanes[3][0:OH, 0:OW, :].reshape(M, Cin)
    res = jnp.dot(xres, wr_ref[...], preferred_element_type=jnp.float32) + sr_ref[...]
    o_ref[...] = pooled + res.reshape(OH, OW, out_ch)


# ----------------------------- parameter packing -----------------------------

def _fold_bn(gamma, beta, mean, var, eps=1e-5):
    # inference-mode BatchNorm folded to an affine (scale, shift)
    scale = gamma * jax.lax.rsqrt(var + eps)
    return scale, beta - mean * scale


def _taps_3x3(w_oihw, scale):
    # (Cout, Cin, 3, 3) -> (9, Cin, Cout), tap index = di*3 + dj, BN scale folded in.
    w = jnp.transpose(w_oihw, (2, 3, 1, 0)) * scale[None, None, None, :]
    return w.reshape(9, w.shape[2], w.shape[3])


def _taps_1x1_center(w_oihw, scale, cin):
    # (Cout, Cin, 1, 1) -> (9, Cin, Cout) with the 1x1 weight only at the centre tap.
    cout = w_oihw.shape[0]
    wc = jnp.transpose(w_oihw[:, :, 0, 0]) * scale[None, :]
    return jnp.zeros((9, cin, cout), jnp.float32).at[4].set(wc)


def prepare_params(p):
    """One-time BN folding / branch fusion / bf16 packing (kept out of the forward trace)."""
    in_ch = p["b11_w"].shape[1]
    s11, t11 = _fold_bn(*p["b11_bn"])
    s33, t33 = _fold_bn(*p["b33_bn"])
    ss1, ts1 = _fold_bn(*p["b33s_bn1"])
    ss2, ts2 = _fold_bn(*p["b33s_bn2"])
    sbp, tbp = _fold_bn(*p["bp_bn"])
    srs, trs = _fold_bn(*p["res_bn"])
    # stage-1 columns: [branch1x1 (cq) | branch3x3 (cq) | stack.conv1 (32) | branchpool (cq)]
    w1 = jnp.concatenate([
        _taps_1x1_center(p["b11_w"], s11, in_ch),
        _taps_3x3(p["b33_w"], s33),
        _taps_3x3(p["b33s_w1"], ss1),
        _taps_1x1_center(p["bp_w"], sbp, in_ch),
    ], axis=-1)
    s1 = jnp.concatenate([t11, t33, ts1, tbp])
    w2 = _taps_3x3(p["b33s_w2"], ss2)
    wr = jnp.transpose(p["res_w"][:, :, 0, 0]) * srs[None, :]
    return {
        "w1": w1.astype(jnp.bfloat16),
        "s1": s1.reshape(1, -1).astype(jnp.float32),
        "w2": w2.astype(jnp.bfloat16),
        "s2": ts2.reshape(1, -1).astype(jnp.float32),
        "wr": wr.astype(jnp.float32),   # residual kept in f32 for accuracy
        "sr": trs.reshape(1, -1).astype(jnp.float32),
    }


# ------------------------------- forward pass --------------------------------

def inception_a_1_1_res_forward(x_nchw, w):
    x = jnp.transpose(x_nchw, (0, 2, 3, 1)).astype(jnp.float32)     # NCHW -> NHWC
    N, H, W, Cin = x.shape
    assert H % 2 == 0 and W % 2 == 0  # TODO(synk): odd spatial sizes need ragged parity planes
    OH, OW = H // 2, W // 2
    cq = w["w2"].shape[2]
    n_mid = w["w2"].shape[1]
    out_ch = w["wr"].shape[1]
    assert out_ch == 4 * cq

    # Pad + parity-split the INPUT (smallest tensor) once in XLA:
    #   xq[n, 2a+b, i, j, c] = xpad[n, 2i+a, 2j+b, c]
    xpad = jnp.pad(x, ((0, 0), (1, 1), (1, 1), (0, 0)))
    xq = xpad.reshape(N, OH + 1, 2, OW + 1, 2, Cin)
    xq = xq.transpose(0, 2, 4, 1, 3, 5).reshape(N, 4, OH + 1, OW + 1, Cin)

    out = pl.pallas_call(
        _inception_a_res_kernel,
        out_shape=jax.ShapeDtypeStruct((N, OH, OW, out_ch), jnp.float32),
        grid=(N,),
        in_specs=[
            pl.BlockSpec((None, 4, OH + 1, OW + 1, Cin), lambda n: (n, 0, 0, 0, 0)),
            pl.BlockSpec((9, Cin, 3 * cq + n_mid), lambda n: (0, 0, 0)),
            pl.BlockSpec((1, 3 * cq + n_mid), lambda n: (0, 0)),
            pl.BlockSpec((9, n_mid, cq), lambda n: (0, 0, 0)),
            pl.BlockSpec((1, cq), lambda n: (0, 0)),
            pl.BlockSpec((Cin, out_ch), lambda n: (0, 0)),
            pl.BlockSpec((1, out_ch), lambda n: (0, 0)),
        ],
        out_specs=pl.BlockSpec((None, OH, OW, out_ch), lambda n: (n, 0, 0, 0)),
        scratch_shapes=[
            pltpu.VMEM((4, OH + 1, OW + 1, n_mid), jnp.bfloat16),
            pltpu.VMEM((4, OH + 1, OW + 1, 4 * cq), jnp.float32),
        ],
        compiler_params=pltpu.CompilerParams(
            dimension_semantics=("parallel",)),
    )(xq, w["w1"], w["s1"], w["w2"], w["s2"], w["wr"], w["sr"])
    return jnp.transpose(out, (0, 3, 1, 2))                          # NHWC -> NCHW


# ------------------------------ parameters (demo) -----------------------------

def init_params(key, in_ch, out_ch):
    cq = int(out_ch * 0.25)
    ks = jax.random.split(key, 12)

    def conv_w(k, cout, cin, kh, kw):
        fan_in = cin * kh * kw
        return jax.random.normal(k, (cout, cin, kh, kw), jnp.float32) / jnp.sqrt(fan_in)

    def bn(k, c):
        k1, k2, k3, k4 = jax.random.split(k, 4)
        gamma = 1.0 + 0.1 * jax.random.normal(k1, (c,), jnp.float32)
        beta = 0.1 * jax.random.normal(k2, (c,), jnp.float32)
        mean = 0.1 * jax.random.normal(k3, (c,), jnp.float32)
        var = jnp.abs(jax.random.normal(k4, (c,), jnp.float32)) + 0.5
        return (gamma, beta, mean, var)

    p = {}
    p["b33s_w1"] = conv_w(ks[0], 32, in_ch, 3, 3);      p["b33s_bn1"] = bn(ks[1], 32)
    p["b33s_w2"] = conv_w(ks[2], cq, 32, 3, 3);         p["b33s_bn2"] = bn(ks[3], cq)
    p["b33_w"]   = conv_w(ks[4], cq, in_ch, 3, 3);      p["b33_bn"]   = bn(ks[5], cq)
    p["b11_w"]   = conv_w(ks[6], cq, in_ch, 1, 1);      p["b11_bn"]   = bn(ks[7], cq)
    p["bp_w"]    = conv_w(ks[8], cq, in_ch, 1, 1);      p["bp_bn"]    = bn(ks[9], cq)
    p["res_w"]   = conv_w(ks[10], out_ch, in_ch, 1, 1); p["res_bn"]   = bn(ks[11], out_ch)
    return p


# ------------------------- pure-XLA reference (check) ------------------------

def _reference_forward(x, p):
    """f32 XLA reference with the same (inference-mode BN) semantics."""
    def conv(x, w, stride, pad):
        return jax.lax.conv_general_dilated(
            x, w, (stride, stride), [(pad, pad), (pad, pad)],
            dimension_numbers=("NCHW", "OIHW", "NCHW"))

    def bn(x, bn_params):
        scale, shift = _fold_bn(*bn_params)
        return x * scale[None, :, None, None] + shift[None, :, None, None]

    def cbr(x, w, bn_params, pad):
        return jax.nn.relu(bn(conv(x, w, 1, pad), bn_params))

    def maxpool(x):
        return jax.lax.reduce_window(
            x, -jnp.inf, jax.lax.max, (1, 1, 3, 3), (1, 1, 2, 2),
            [(0, 0), (0, 0), (1, 1), (1, 1)])

    def avgpool(x):
        s = jax.lax.reduce_window(
            x, 0.0, jax.lax.add, (1, 1, 3, 3), (1, 1, 2, 2),
            [(0, 0), (0, 0), (1, 1), (1, 1)])
        return s / 9.0

    b33s = maxpool(cbr(cbr(x, p["b33s_w1"], p["b33s_bn1"], 1),
                       p["b33s_w2"], p["b33s_bn2"], 1))
    b33 = maxpool(cbr(x, p["b33_w"], p["b33_bn"], 1))
    b11 = maxpool(cbr(x, p["b11_w"], p["b11_bn"], 0))
    bp = avgpool(cbr(x, p["bp_w"], p["bp_bn"], 0))
    res = bn(conv(x, p["res_w"], 2, 0), p["res_bn"])
    return jnp.concatenate([b11, b33, b33s, bp], axis=1) + res


if __name__ == "__main__":
    key = jax.random.PRNGKey(0)
    kx, kp = jax.random.split(key)
    N, Cin, H, W = 2, 4, 16, 16
    Cout = 32   # output_channels; each branch produces Cout*0.25 = 8 channels

    x = jax.random.normal(kx, (N, Cin, H, W), jnp.float32)
    params = init_params(kp, Cin, Cout)
    packed = prepare_params(params)        # one-time weight fold/pack, outside the jit

    fwd = jax.jit(inception_a_1_1_res_forward)
    y = fwd(x, packed)
    jax.block_until_ready(y)
    assert y.shape == (N, Cout, H // 2, W // 2), y.shape
    assert y.dtype == jnp.float32

    # sanity check vs the f32 XLA reference (matmul operands are bf16, residual f32)
    y_ref = jax.jit(_reference_forward)(x, params)
    max_err = float(jnp.max(jnp.abs(y - y_ref)))
    assert max_err < 0.1, f"mismatch vs reference: {max_err}"

    print("KERNEL_OK")
</pallas_src>

<mosaic_0001>
module attributes {stable_mosaic.version = 11 : i64} {
  func.func @_inception_a_res_kernel(%arg0: i32, %arg1: memref<1x4x9x9x4xf32, #tpu.memory_space<vmem>>, %arg2: memref<9x4x56xbf16, #tpu.memory_space<vmem>>, %arg3: memref<1x56xf32, #tpu.memory_space<vmem>>, %arg4: memref<9x32x8xbf16, #tpu.memory_space<vmem>>, %arg5: memref<1x8xf32, #tpu.memory_space<vmem>>, %arg6: memref<4x32xf32, #tpu.memory_space<vmem>>, %arg7: memref<1x32xf32, #tpu.memory_space<vmem>>, %arg8: memref<1x8x8x32xf32, #tpu.memory_space<vmem>>, %arg9: memref<4x9x9x32xbf16, #tpu.memory_space<vmem>>, %arg10: memref<4x9x9x32xf32, #tpu.memory_space<vmem>>) attributes {dimension_semantics = [#tpu.dimension_semantics<parallel>], iteration_bounds = array<i64: 2>, scalar_prefetch = 0 : i64, scratch_operands = 2 : i64, tpu.core_type = #tpu.core_type<tc>, window_params = [{transform_indices = @transform_0, window_bounds = array<i64: 1, 4, 9, 9, 4>}, {pipeline_mode = #tpu.pipeline_mode<synchronous>, transform_indices = @transform_1, window_bounds = array<i64: 9, 4, 56>}, {pipeline_mode = #tpu.pipeline_mode<synchronous>, transform_indices = @transform_2, window_bounds = array<i64: 1, 56>}, {pipeline_mode = #tpu.pipeline_mode<synchronous>, transform_indices = @transform_3, window_bounds = array<i64: 9, 32, 8>}, {pipeline_mode = #tpu.pipeline_mode<synchronous>, transform_indices = @transform_4, window_bounds = array<i64: 1, 8>}, {pipeline_mode = #tpu.pipeline_mode<synchronous>, transform_indices = @transform_5, window_bounds = array<i64: 4, 32>}, {pipeline_mode = #tpu.pipeline_mode<synchronous>, transform_indices = @transform_6, window_bounds = array<i64: 1, 32>}, {transform_indices = @transform_7, window_bounds = array<i64: 1, 8, 8, 32>}]} {
    %cst = arith.constant 0.000000e+00 : bf16
    %0 = vector.broadcast %cst : bf16 to vector<4x9x9x32xbf16>
    %c0 = arith.constant 0 : index
    %c0_0 = arith.constant 0 : index
    %c0_1 = arith.constant 0 : index
    %c0_2 = arith.constant 0 : index
    %1 = vector.load %arg9[%c0, %c0_0, %c0_1, %c0_2] : memref<4x9x9x32xbf16, #tpu.memory_space<vmem>>, vector<4x9x9x32xbf16>
    tpu.vector_store %arg9[%c0, %c0_0, %c0_1, %c0_2], %0 {strides = array<i32>} : memref<4x9x9x32xbf16, #tpu.memory_space<vmem>>, vector<4x9x9x32xbf16>,
    %cst_3 = arith.constant 0.000000e+00 : f32
    %2 = vector.broadcast %cst_3 : f32 to vector<4x9x9x32xf32>
    %c0_4 = arith.constant 0 : index
    %c0_5 = arith.constant 0 : index
    %c0_6 = arith.constant 0 : index
    %c0_7 = arith.constant 0 : index
    %3 = vector.load %arg10[%c0_4, %c0_5, %c0_6, %c0_7] : memref<4x9x9x32xf32, #tpu.memory_space<vmem>>, vector<4x9x9x32xf32>
    tpu.vector_store %arg10[%c0_4, %c0_5, %c0_6, %c0_7], %2 {strides = array<i32>} : memref<4x9x9x32xf32, #tpu.memory_space<vmem>>, vector<4x9x9x32xf32>,
    %c0_8 = arith.constant 0 : index
    %c0_9 = arith.constant 0 : index
    %c0_10 = arith.constant 0 : index
    %c0_11 = arith.constant 0 : index
    %c0_12 = arith.constant 0 : index
    %4 = vector.load %arg1[%c0_8, %c0_9, %c0_10, %c0_11, %c0_12] : memref<1x4x9x9x4xf32, #tpu.memory_space<vmem>>, vector<1x1x9x9x4xf32>
    %5 = vector.shape_cast %4 : vector<1x1x9x9x4xf32> to vector<9x9x4xf32>
    %c0_13 = arith.constant 0 : index
    %c1 = arith.constant 1 : index
    %c0_14 = arith.constant 0 : index
    %c0_15 = arith.constant 0 : index
    %c0_16 = arith.constant 0 : index
    %6 = vector.load %arg1[%c0_13, %c1, %c0_14, %c0_15, %c0_16] : memref<1x4x9x9x4xf32, #tpu.memory_space<vmem>>, vector<1x1x9x9x4xf32>
    %7 = vector.shape_cast %6 : vector<1x1x9x9x4xf32> to vector<9x9x4xf32>
    %c0_17 = arith.constant 0 : index
    %c2 = arith.constant 2 : index
    %c0_18 = arith.constant 0 : index
    %c0_19 = arith.constant 0 : index
    %c0_20 = arith.constant 0 : index
    %8 = vector.load %arg1[%c0_17, %c2, %c0_18, %c0_19, %c0_20] : memref<1x4x9x9x4xf32, #tpu.memory_space<vmem>>, vector<1x1x9x9x4xf32>
    %9 = vector.shape_cast %8 : vector<1x1x9x9x4xf32> to vector<9x9x4xf32>
    %c0_21 = arith.constant 0 : index
    %c3 = arith.constant 3 : index
    %c0_22 = arith.constant 0 : index
    %c0_23 = arith.constant 0 : index
    %c0_24 = arith.constant 0 : index
    %10 = vector.load %arg1[%c0_21, %c3, %c0_22, %c0_23, %c0_24] : memref<1x4x9x9x4xf32, #tpu.memory_space<vmem>>, vector<1x1x9x9x4xf32>
    %11 = vector.shape_cast %10 : vector<1x1x9x9x4xf32> to vector<9x9x4xf32>
    %12 = vector.extract_strided_slice %5 {offsets = [0, 0, 0], sizes = [8, 8, 4], strides = [1, 1, 1]} : vector<9x9x4xf32> to vector<8x8x4xf32>
    %13 = vector.shape_cast %12 : vector<8x8x4xf32> to vector<64x4xf32>
    %14 = arith.truncf %13 : vector<64x4xf32> to vector<64x4xbf16>
    %15 = vector.extract_strided_slice %5 {offsets = [0, 1, 0], sizes = [8, 8, 4], strides = [1, 1, 1]} : vector<9x9x4xf32> to vector<8x8x4xf32>
    %16 = vector.shape_cast %15 : vector<8x8x4xf32> to vector<64x4xf32>
    %17 = arith.truncf %16 : vector<64x4xf32> to vector<64x4xbf16>
    %18 = vector.extract_strided_slice %5 {offsets = [1, 0, 0], sizes = [8, 8, 4], strides = [1, 1, 1]} : vector<9x9x4xf32> to vector<8x8x4xf32>
    %19 = vector.shape_cast %18 : vector<8x8x4xf32> to vector<64x4xf32>
    %20 = arith.truncf %19 : vector<64x4xf32> to vector<64x4xbf16>
    %21 = vector.extract_strided_slice %5 {offsets = [1, 1, 0], sizes = [8, 8, 4], strides = [1, 1, 1]} : vector<9x9x4xf32> to vector<8x8x4xf32>
    %22 = vector.shape_cast %21 : vector<8x8x4xf32> to vector<64x4xf32>
    %23 = arith.truncf %22 : vector<64x4xf32> to vector<64x4xbf16>
    %24 = vector.extract_strided_slice %7 {offsets = [0, 0, 0], sizes = [8, 8, 4], strides = [1, 1, 1]} : vector<9x9x4xf32> to vector<8x8x4xf32>
    %25 = vector.shape_cast %24 : vector<8x8x4xf32> to vector<64x4xf32>
    %26 = arith.truncf %25 : vector<64x4xf32> to vector<64x4xbf16>
    %27 = vector.extract_strided_slice %7 {offsets = [0, 1, 0], sizes = [8, 8, 4], strides = [1, 1, 1]} : vector<9x9x4xf32> to vector<8x8x4xf32>
    %28 = vector.shape_cast %27 : vector<8x8x4xf32> to vector<64x4xf32>
    %29 = arith.truncf %28 : vector<64x4xf32> to vector<64x4xbf16>
    %30 = vector.extract_strided_slice %7 {offsets = [1, 0, 0], sizes = [8, 8, 4], strides = [1, 1, 1]} : vector<9x9x4xf32> to vector<8x8x4xf32>
    %31 = vector.shape_cast %30 : vector<8x8x4xf32> to vector<64x4xf32>
    %32 = arith.truncf %31 : vector<64x4xf32> to vector<64x4xbf16>
    %33 = vector.extract_strided_slice %7 {offsets = [1, 1, 0], sizes = [8, 8, 4], strides = [1, 1, 1]} : vector<9x9x4xf32> to vector<8x8x4xf32>
    %34 = vector.shape_cast %33 : vector<8x8x4xf32> to vector<64x4xf32>
    %35 = arith.truncf %34 : vector<64x4xf32> to vector<64x4xbf16>
    %36 = vector.extract_strided_slice %9 {offsets = [0, 0, 0], sizes = [8, 8, 4], strides = [1, 1, 1]} : vector<9x9x4xf32> to vector<8x8x4xf32>
    %37 = vector.shape_cast %36 : vector<8x8x4xf32> to vector<64x4xf32>
    %38 = arith.truncf %37 : vector<64x4xf32> to vector<64x4xbf16>
    %39 = vector.extract_strided_slice %9 {offsets = [0, 1, 0], sizes = [8, 8, 4], strides = [1, 1, 1]} : vector<9x9x4xf32> to vector<8x8x4xf32>
    %40 = vector.shape_cast %39 : vector<8x8x4xf32> to vector<64x4xf32>
    %41 = arith.truncf %40 : vector<64x4xf32> to vector<64x4xbf16>
    %42 = vector.extract_strided_slice %9 {offsets = [1, 0, 0], sizes = [8, 8, 4], strides = [1, 1, 1]} : vector<9x9x4xf32> to vector<8x8x4xf32>
    %43 = vector.shape_cast %42 : vector<8x8x4xf32> to vector<64x4xf32>
    %44 = arith.truncf %43 : vector<64x4xf32> to vector<64x4xbf16>
    %45 = vector.extract_strided_slice %9 {offsets = [1, 1, 0], sizes = [8, 8, 4], strides = [1, 1, 1]} : vector<9x9x4xf32> to vector<8x8x4xf32>
    %46 = vector.shape_cast %45 : vector<8x8x4xf32> to vector<64x4xf32>
    %47 = arith.truncf %46 : vector<64x4xf32> to vector<64x4xbf16>
    %48 = vector.extract_strided_slice %11 {offsets = [0, 0, 0], sizes = [8, 8, 4], strides = [1, 1, 1]} : vector<9x9x4xf32> to vector<8x8x4xf32>
    %49 = vector.shape_cast %48 : vector<8x8x4xf32> to vector<64x4xf32>
    %50 = arith.truncf %49 : vector<64x4xf32> to vector<64x4xbf16>
    %51 = vector.extract_strided_slice %11 {offsets = [0, 1, 0], sizes = [8, 8, 4], strides = [1, 1, 1]} : vector<9x9x4xf32> to vector<8x8x4xf32>
    %52 = vector.shape_cast %51 : vector<8x8x4xf32> to vector<64x4xf32>
    %53 = arith.truncf %52 : vector<64x4xf32> to vector<64x4xbf16>
    %54 = vector.extract_strided_slice %11 {offsets = [1, 0, 0], sizes = [8, 8, 4], strides = [1, 1, 1]} : vector<9x9x4xf32> to vector<8x8x4xf32>
    %55 = vector.shape_cast %54 : vector<8x8x4xf32> to vector<64x4xf32>
    %56 = arith.truncf %55 : vector<64x4xf32> to vector<64x4xbf16>
    %57 = vector.extract_strided_slice %11 {offsets = [1, 1, 0], sizes = [8, 8, 4], strides = [1, 1, 1]} : vector<9x9x4xf32> to vector<8x8x4xf32>
    %58 = vector.shape_cast %57 : vector<8x8x4xf32> to vector<64x4xf32>
    %59 = arith.truncf %58 : vector<64x4xf32> to vector<64x4xbf16>
    %cst_25 = arith.constant 0.000000e+00 : f32
    %60 = vector.broadcast %cst_25 : f32 to vector<64x56xf32>
    %c0_26 = arith.constant 0 : index
    %c0_27 = arith.constant 0 : index
    %c0_28 = arith.constant 0 : index
    %61 = vector.load %arg2[%c0_26, %c0_27, %c0_28] : memref<9x4x56xbf16, #tpu.memory_space<vmem>>, vector<1x4x56xbf16>
    %62 = vector.shape_cast %61 : vector<1x4x56xbf16> to vector<4x56xbf16>
    %cst_29 = arith.constant dense<0.000000e+00> : vector<64x56xf32>
    %63 = tpu.matmul %14, %62, %cst_29 {dimension_numbers = #tpu.dot_dimension_numbers<[1], [0], [0], [1], [0, 0, 1, 1], [], []>} : vector<64x4xbf16>, vector<4x56xbf16>, vector<64x56xf32> -> vector<64x56xf32>
    %64 = arith.addf %60, %63 : vector<64x56xf32>
    %c1_30 = arith.constant 1 : index
    %c0_31 = arith.constant 0 : index
    %c0_32 = arith.constant 0 : index
    %65 = vector.load %arg2[%c1_30, %c0_31, %c0_32] : memref<9x4x56xbf16, #tpu.memory_space<vmem>>, vector<1x4x56xbf16>
    %66 = vector.shape_cast %65 : vector<1x4x56xbf16> to vector<4x56xbf16>
    %cst_33 = arith.constant dense<0.000000e+00> : vector<64x56xf32>
    %67 = tpu.matmul %26, %66, %cst_33 {dimension_numbers = #tpu.dot_dimension_numbers<[1], [0], [0], [1], [0, 0, 1, 1], [], []>} : vector<64x4xbf16>, vector<4x56xbf16>, vector<64x56xf32> -> vector<64x56xf32>
    %68 = arith.addf %64, %67 : vector<64x56xf32>
    %c2_34 = arith.constant 2 : index
    %c0_35 = arith.constant 0 : index
    %c0_36 = arith.constant 0 : index
    %69 = vector.load %arg2[%c2_34, %c0_35, %c0_36] : memref<9x4x56xbf16, #tpu.memory_space<vmem>>, vector<1x4x56xbf16>
    %70 = vector.shape_cast %69 : vector<1x4x56xbf16> to vector<4x56xbf16>
    %cst_37 = arith.constant dense<0.000000e+00> : vector<64x56xf32>
    %71 = tpu.matmul %17, %70, %cst_37 {dimension_numbers = #tpu.dot_dimension_numbers<[1], [0], [0], [1], [0, 0, 1, 1], [], []>} : vector<64x4xbf16>, vector<4x56xbf16>, vector<64x56xf32> -> vector<64x56xf32>
    %72 = arith.addf %68, %71 : vector<64x56xf32>
    %c3_38 = arith.constant 3 : index
    %c0_39 = arith.constant 0 : index
    %c0_40 = arith.constant 0 : index
    %73 = vector.load %arg2[%c3_38, %c0_39, %c0_40] : memref<9x4x56xbf16, #tpu.memory_space<vmem>>, vector<1x4x56xbf16>
    %74 = vector.shape_cast %73 : vector<1x4x56xbf16> to vector<4x56xbf16>
    %cst_41 = arith.constant dense<0.000000e+00> : vector<64x56xf32>
    %75 = tpu.matmul %38, %74, %cst_41 {dimension_numbers = #tpu.dot_dimension_numbers<[1], [0], [0], [1], [0, 0, 1, 1], [], []>} : vector<64x4xbf16>, vector<4x56xbf16>, vector<64x56xf32> -> vector<64x56xf32>
    %76 = arith.addf %72, %75 : vector<64x56xf32>
    %c4 = arith.constant 4 : index
    %c0_42 = arith.constant 0 : index
    %c0_43 = arith.constant 0 : index
    %77 = vector.load %arg2[%c4, %c0_42, %c0_43] : memref<9x4x56xbf16, #tpu.memory_space<vmem>>, vector<1x4x56xbf16>
    %78 = vector.shape_cast %77 : vector<1x4x56xbf16> to vector<4x56xbf16>
    %cst_44 = arith.constant dense<0.000000e+00> : vector<64x56xf32>
    %79 = tpu.matmul %50, %78, %cst_44 {dimension_numbers = #tpu.dot_dimension_numbers<[1], [0], [0], [1], [0, 0, 1, 1], [], []>} : vector<64x4xbf16>, vector<4x56xbf16>, vector<64x56xf32> -> vector<64x56xf32>
    %80 = arith.addf %76, %79 : vector<64x56xf32>
    %c5 = arith.constant 5 : index
    %c0_45 = arith.constant 0 : index
    %c0_46 = arith.constant 0 : index
    %81 = vector.load %arg2[%c5, %c0_45, %c0_46] : memref<9x4x56xbf16, #tpu.memory_space<vmem>>, vector<1x4x56xbf16>
    %82 = vector.shape_cast %81 : vector<1x4x56xbf16> to vector<4x56xbf16>
    %cst_47 = arith.constant dense<0.000000e+00> : vector<64x56xf32>
    %83 = tpu.matmul %41, %82, %cst_47 {dimension_numbers = #tpu.dot_dimension_numbers<[1], [0], [0], [1], [0, 0, 1, 1], [], []>} : vector<64x4xbf16>, vector<4x56xbf16>, vector<64x56xf32> -> vector<64x56xf32>
    %84 = arith.addf %80, %83 : vector<64x56xf32>
    %c6 = arith.constant 6 : index
    %c0_48 = arith.constant 0 : index
    %c0_49 = arith.constant 0 : index
    %85 = vector.load %arg2[%c6, %c0_48, %c0_49] : memref<9x4x56xbf16, #tpu.memory_space<vmem>>, vector<1x4x56xbf16>
    %86 = vector.shape_cast %85 : vector<1x4x56xbf16> to vector<4x56xbf16>
    %cst_50 = arith.constant dense<0.000000e+00> : vector<64x56xf32>
    %87 = tpu.matmul %20, %86, %cst_50 {dimension_numbers = #tpu.dot_dimension_numbers<[1], [0], [0], [1], [0, 0, 1, 1], [], []>} : vector<64x4xbf16>, vector<4x56xbf16>, vector<64x56xf32> -> vector<64x56xf32>
    %88 = arith.addf %84, %87 : vector<64x56xf32>
    %c7 = arith.constant 7 : index
    %c0_51 = arith.constant 0 : index
    %c0_52 = arith.constant 0 : index
    %89 = vector.load %arg2[%c7, %c0_51, %c0_52] : memref<9x4x56xbf16, #tpu.memory_space<vmem>>, vector<1x4x56xbf16>
    %90 = vector.shape_cast %89 : vector<1x4x56xbf16> to vector<4x56xbf16>
    %cst_53 = arith.constant dense<0.000000e+00> : vector<64x56xf32>
    %91 = tpu.matmul %32, %90, %cst_53 {dimension_numbers = #tpu.dot_dimension_numbers<[1], [0], [0], [1], [0, 0, 1, 1], [], []>} : vector<64x4xbf16>, vector<4x56xbf16>, vector<64x56xf32> -> vector<64x56xf32>
    %92 = arith.addf %88, %91 : vector<64x56xf32>
    %c8 = arith.constant 8 : index
    %c0_54 = arith.constant 0 : index
    %c0_55 = arith.constant 0 : index
    %93 = vector.load %arg2[%c8, %c0_54, %c0_55] : memref<9x4x56xbf16, #tpu.memory_space<vmem>>, vector<1x4x56xbf16>
    %94 = vector.shape_cast %93 : vector<1x4x56xbf16> to vector<4x56xbf16>
    %cst_56 = arith.constant dense<0.000000e+00> : vector<64x56xf32>
    %95 = tpu.matmul %23, %94, %cst_56 {dimension_numbers = #tpu.dot_dimension_numbers<[1], [0], [0], [1], [0, 0, 1, 1], [], []>} : vector<64x4xbf16>, vector<4x56xbf16>, vector<64x56xf32> -> vector<64x56xf32>
    %96 = arith.addf %92, %95 : vector<64x56xf32>
    %c0_57 = arith.constant 0 : index
    %c0_58 = arith.constant 0 : index
    %97 = vector.load %arg3[%c0_57, %c0_58] : memref<1x56xf32, #tpu.memory_space<vmem>>, vector<1x56xf32>
    %98 = vector.broadcast %97 : vector<1x56xf32> to vector<64x56xf32>
    %99 = arith.addf %96, %98 : vector<64x56xf32>
    %cst_59 = arith.constant 0.000000e+00 : f32
    %100 = vector.broadcast %cst_59 : f32 to vector<64x56xf32>
    %101 = arith.maximumf %99, %100 : vector<64x56xf32>
    %102 = vector.shape_cast %101 : vector<64x56xf32> to vector<8x8x56xf32>
    %103 = vector.extract_strided_slice %102 {offsets = [0, 0, 0], sizes = [8, 8, 16], strides = [1, 1, 1]} : vector<8x8x56xf32> to vector<8x8x16xf32>
    %c3_60 = arith.constant 3 : index
    %c0_61 = arith.constant 0 : index
    %c0_62 = arith.constant 0 : index
    %c0_63 = arith.constant 0 : index
    %104 = vector.load %arg10[%c3_60, %c0_61, %c0_62, %c0_63] : memref<4x9x9x32xf32, #tpu.memory_space<vmem>>, vector<1x8x8x16xf32>
    %105 = vector.shape_cast %104 : vector<1x8x8x16xf32> to vector<8x8x16xf32>
    %106 = vector.shape_cast %103 : vector<8x8x16xf32> to vector<1x8x8x16xf32>
    tpu.vector_store %arg10[%c3_60, %c0_61, %c0_62, %c0_63], %106 {strides = array<i32>} : memref<4x9x9x32xf32, #tpu.memory_space<vmem>>, vector<1x8x8x16xf32>,
    %107 = vector.extract_strided_slice %102 {offsets = [0, 0, 48], sizes = [8, 8, 8], strides = [1, 1, 1]} : vector<8x8x56xf32> to vector<8x8x8xf32>
    %c3_64 = arith.constant 3 : index
    %c0_65 = arith.constant 0 : index
    %c0_66 = arith.constant 0 : index
    %c24 = arith.constant 24 : index
    %108 = vector.load %arg10[%c3_64, %c0_65, %c0_66, %c24] : memref<4x9x9x32xf32, #tpu.memory_space<vmem>>, vector<1x8x8x8xf32>
    %109 = vector.shape_cast %108 : vector<1x8x8x8xf32> to vector<8x8x8xf32>
    %110 = vector.shape_cast %107 : vector<8x8x8xf32> to vector<1x8x8x8xf32>
    tpu.vector_store %arg10[%c3_64, %c0_65, %c0_66, %c24], %110 {strides = array<i32>} : memref<4x9x9x32xf32, #tpu.memory_space<vmem>>, vector<1x8x8x8xf32>,
    %111 = vector.extract_strided_slice %102 {offsets = [0, 0, 16], sizes = [8, 8, 32], strides = [1, 1, 1]} : vector<8x8x56xf32> to vector<8x8x32xf32>
    %112 = arith.truncf %111 : vector<8x8x32xf32> to vector<8x8x32xbf16>
    %c3_67 = arith.constant 3 : index
    %c0_68 = arith.constant 0 : index
    %c0_69 = arith.constant 0 : index
    %c0_70 = arith.constant 0 : index
    %113 = vector.load %arg9[%c3_67, %c0_68, %c0_69, %c0_70] : memref<4x9x9x32xbf16, #tpu.memory_space<vmem>>, vector<1x8x8x32xbf16>
    %114 = vector.shape_cast %113 : vector<1x8x8x32xbf16> to vector<8x8x32xbf16>
    %115 = vector.shape_cast %112 : vector<8x8x32xbf16> to vector<1x8x8x32xbf16>
    tpu.vector_store %arg9[%c3_67, %c0_68, %c0_69, %c0_70], %115 {strides = array<i32>} : memref<4x9x9x32xbf16, #tpu.memory_space<vmem>>, vector<1x8x8x32xbf16>,
    %cst_71 = arith.constant 0.000000e+00 : f32
    %116 = vector.broadcast %cst_71 : f32 to vector<64x56xf32>
    %c0_72 = arith.constant 0 : index
    %c0_73 = arith.constant 0 : index
    %c0_74 = arith.constant 0 : index
    %117 = vector.load %arg2[%c0_72, %c0_73, %c0_74] : memref<9x4x56xbf16, #tpu.memory_space<vmem>>, vector<1x4x56xbf16>
    %118 = vector.shape_cast %117 : vector<1x4x56xbf16> to vector<4x56xbf16>
    %cst_75 = arith.constant dense<0.000000e+00> : vector<64x56xf32>
    %119 = tpu.matmul %26, %118, %cst_75 {dimension_numbers = #tpu.dot_dimension_numbers<[1], [0], [0], [1], [0, 0, 1, 1], [], []>} : vector<64x4xbf16>, vector<4x56xbf16>, vector<64x56xf32> -> vector<64x56xf32>
    %120 = arith.addf %116, %119 : vector<64x56xf32>
    %c1_76 = arith.constant 1 : index
    %c0_77 = arith.constant 0 : index
    %c0_78 = arith.constant 0 : index
    %121 = vector.load %arg2[%c1_76, %c0_77, %c0_78] : memref<9x4x56xbf16, #tpu.memory_space<vmem>>, vector<1x4x56xbf16>
    %122 = vector.shape_cast %121 : vector<1x4x56xbf16> to vector<4x56xbf16>
    %cst_79 = arith.constant dense<0.000000e+00> : vector<64x56xf32>
    %123 = tpu.matmul %17, %122, %cst_79 {dimension_numbers = #tpu.dot_dimension_numbers<[1], [0], [0], [1], [0, 0, 1, 1], [], []>} : vector<64x4xbf16>, vector<4x56xbf16>, vector<64x56xf32> -> vector<64x56xf32>
    %124 = arith.addf %120, %123 : vector<64x56xf32>
    %c2_80 = arith.constant 2 : index
    %c0_81 = arith.constant 0 : index
    %c0_82 = arith.constant 0 : index
    %125 = vector.load %arg2[%c2_80, %c0_81, %c0_82] : memref<9x4x56xbf16, #tpu.memory_space<vmem>>, vector<1x4x56xbf16>
    %126 = vector.shape_cast %125 : vector<1x4x56xbf16> to vector<4x56xbf16>
    %cst_83 = arith.constant dense<0.000000e+00> : vector<64x56xf32>
    %127 = tpu.matmul %29, %126, %cst_83 {dimension_numbers = #tpu.dot_dimension_numbers<[1], [0], [0], [1], [0, 0, 1, 1], [], []>} : vector<64x4xbf16>, vector<4x56xbf16>, vector<64x56xf32> -> vector<64x56xf32>
    %128 = arith.addf %124, %127 : vector<64x56xf32>
    %c3_84 = arith.constant 3 : index
    %c0_85 = arith.constant 0 : index
    %c0_86 = arith.constant 0 : index
    %129 = vector.load %arg2[%c3_84, %c0_85, %c0_86] : memref<9x4x56xbf16, #tpu.memory_space<vmem>>, vector<1x4x56xbf16>
    %130 = vector.shape_cast %129 : vector<1x4x56xbf16> to vector<4x56xbf16>
    %cst_87 = arith.constant dense<0.000000e+00> : vector<64x56xf32>
    %131 = tpu.matmul %50, %130, %cst_87 {dimension_numbers = #tpu.dot_dimension_numbers<[1], [0], [0], [1], [0, 0, 1, 1], [], []>} : vector<64x4xbf16>, vector<4x56xbf16>, vector<64x56xf32> -> vector<64x56xf32>
    %132 = arith.addf %128, %131 : vector<64x56xf32>
    %c4_88 = arith.constant 4 : index
    %c0_89 = arith.constant 0 : index
    %c0_90 = arith.constant 0 : index
    %133 = vector.load %arg2[%c4_88, %c0_89, %c0_90] : memref<9x4x56xbf16, #tpu.memory_space<vmem>>, vector<1x4x56xbf16>
    %134 = vector.shape_cast %133 : vector<1x4x56xbf16> to vector<4x56xbf16>
    %cst_91 = arith.constant dense<0.000000e+00> : vector<64x56xf32>
    %135 = tpu.matmul %41, %134, %cst_91 {dimension_numbers = #tpu.dot_dimension_numbers<[1], [0], [0], [1], [0, 0, 1, 1], [], []>} : vector<64x4xbf16>, vector<4x56xbf16>, vector<64x56xf32> -> vector<64x56xf32>
    %136 = arith.addf %132, %135 : vector<64x56xf32>
    %c5_92 = arith.constant 5 : index
    %c0_93 = arith.constant 0 : index
    %c0_94 = arith.constant 0 : index
    %137 = vector.load %arg2[%c5_92, %c0_93, %c0_94] : memref<9x4x56xbf16, #tpu.memory_space<vmem>>, vector<1x4x56xbf16>
    %138 = vector.shape_cast %137 : vector<1x4x56xbf16> to vector<4x56xbf16>
    %cst_95 = arith.constant dense<0.000000e+00> : vector<64x56xf32>
    %139 = tpu.matmul %53, %138, %cst_95 {dimension_numbers = #tpu.dot_dimension_numbers<[1], [0], [0], [1], [0, 0, 1, 1], [], []>} : vector<64x4xbf16>, vector<4x56xbf16>, vector<64x56xf32> -> vector<64x56xf32>
    %140 = arith.addf %136, %139 : vector<64x56xf32>
    %c6_96 = arith.constant 6 : index
    %c0_97 = arith.constant 0 : index
    %c0_98 = arith.constant 0 : index
    %141 = vector.load %arg2[%c6_96, %c0_97, %c0_98] : memref<9x4x56xbf16, #tpu.memory_space<vmem>>, vector<1x4x56xbf16>
    %142 = vector.shape_cast %141 : vector<1x4x56xbf16> to vector<4x56xbf16>
    %cst_99 = arith.constant dense<0.000000e+00> : vector<64x56xf32>
    %143 = tpu.matmul %32, %142, %cst_99 {dimension_numbers = #tpu.dot_dimension_numbers<[1], [0], [0], [1], [0, 0, 1, 1], [], []>} : vector<64x4xbf16>, vector<4x56xbf16>, vector<64x56xf32> -> vector<64x56xf32>
    %144 = arith.addf %140, %143 : vector<64x56xf32>
    %c7_100 = arith.constant 7 : index
    %c0_101 = arith.constant 0 : index
    %c0_102 = arith.constant 0 : index
    %145 = vector.load %arg2[%c7_100, %c0_101, %c0_102] : memref<9x4x56xbf16, #tpu.memory_space<vmem>>, vector<1x4x56xbf16>
    %146 = vector.shape_cast %145 : vector<1x4x56xbf16> to vector<4x56xbf16>
    %cst_103 = arith.constant dense<0.000000e+00> : vector<64x56xf32>
    %147 = tpu.matmul %23, %146, %cst_103 {dimension_numbers = #tpu.dot_dimension_numbers<[1], [0], [0], [1], [0, 0, 1, 1], [], []>} : vector<64x4xbf16>, vector<4x56xbf16>, vector<64x56xf32> -> vector<64x56xf32>
    %148 = arith.addf %144, %147 : vector<64x56xf32>
    %c8_104 = arith.constant 8 : index
    %c0_105 = arith.constant 0 : index
    %c0_106 = arith.constant 0 : index
    %149 = vector.load %arg2[%c8_104, %c0_105, %c0_106] : memref<9x4x56xbf16, #tpu.memory_space<vmem>>, vector<1x4x56xbf16>
    %150 = vector.shape_cast %149 : vector<1x4x56xbf16> to vector<4x56xbf16>
    %cst_107 = arith.constant dense<0.000000e+00> : vector<64x56xf32>
    %151 = tpu.matmul %35, %150, %cst_107 {dimension_numbers = #tpu.dot_dimension_numbers<[1], [0], [0], [1], [0, 0, 1, 1], [], []>} : vector<64x4xbf16>, vector<4x56xbf16>, vector<64x56xf32> -> vector<64x56xf32>
    %152 = arith.addf %148, %151 : vector<64x56xf32>
    %c0_108 = arith.constant 0 : index
    %c0_109 = arith.constant 0 : index
    %153 = vector.load %arg3[%c0_108, %c0_109] : memref<1x56xf32, #tpu.memory_space<vmem>>, vector<1x56xf32>
    %154 = vector.broadcast %153 : vector<1x56xf32> to vector<64x56xf32>
    %155 = arith.addf %152, %154 : vector<64x56xf32>
    %cst_110 = arith.constant 0.000000e+00 : f32
    %156 = vector.broadcast %cst_110 : f32 to vector<64x56xf32>
    %157 = arith.maximumf %155, %156 : vector<64x56xf32>
    %158 = vector.shape_cast %157 : vector<64x56xf32> to vector<8x8x56xf32>
    %159 = vector.extract_strided_slice %158 {offsets = [0, 0, 0], sizes = [8, 8, 16], strides = [1, 1, 1]} : vector<8x8x56xf32> to vector<8x8x16xf32>
    %c2_111 = arith.constant 2 : index
    %c0_112 = arith.constant 0 : index
    %c1_113 = arith.constant 1 : index
    %c0_114 = arith.constant 0 : index
    %160 = vector.load %arg10[%c2_111, %c0_112, %c1_113, %c0_114] : memref<4x9x9x32xf32, #tpu.memory_space<vmem>>, vector<1x8x8x16xf32>
    %161 = vector.shape_cast %160 : vector<1x8x8x16xf32> to vector<8x8x16xf32>
    %162 = vector.shape_cast %159 : vector<8x8x16xf32> to vector<1x8x8x16xf32>
    tpu.vector_store %arg10[%c2_111, %c0_112, %c1_113, %c0_114], %162 {strides = array<i32>} : memref<4x9x9x32xf32, #tpu.memory_space<vmem>>, vector<1x8x8x16xf32>,
    %163 = vector.extract_strided_slice %158 {offsets = [0, 0, 48], sizes = [8, 8, 8], strides = [1, 1, 1]} : vector<8x8x56xf32> to vector<8x8x8xf32>
    %c2_115 = arith.constant 2 : index
    %c0_116 = arith.constant 0 : index
    %c1_117 = arith.constant 1 : index
    %c24_118 = arith.constant 24 : index
    %164 = vector.load %arg10[%c2_115, %c0_116, %c1_117, %c24_118] : memref<4x9x9x32xf32, #tpu.memory_space<vmem>>, vector<1x8x8x8xf32>
    %165 = vector.shape_cast %164 : vector<1x8x8x8xf32> to vector<8x8x8xf32>
    %166 = vector.shape_cast %163 : vector<8x8x8xf32> to vector<1x8x8x8xf32>
    tpu.vector_store %arg10[%c2_115, %c0_116, %c1_117, %c24_118], %166 {strides = array<i32>} : memref<4x9x9x32xf32, #tpu.memory_space<vmem>>, vector<1x8x8x8xf32>,
    %167 = vector.extract_strided_slice %158 {offsets = [0, 0, 16], sizes = [8, 8, 32], strides = [1, 1, 1]} : vector<8x8x56xf32> to vector<8x8x32xf32>
    %168 = arith.truncf %167 : vector<8x8x32xf32> to vector<8x8x32xbf16>
    %c2_119 = arith.constant 2 : index
    %c0_120 = arith.constant 0 : index
    %c1_121 = arith.constant 1 : index
    %c0_122 = arith.constant 0 : index
    %169 = vector.load %arg9[%c2_119, %c0_120, %c1_121, %c0_122] : memref<4x9x9x32xbf16, #tpu.memory_space<vmem>>, vector<1x8x8x32xbf16>
    %170 = vector.shape_cast %169 : vector<1x8x8x32xbf16> to vector<8x8x32xbf16>
    %171 = vector.shape_cast %168 : vector<8x8x32xbf16> to vector<1x8x8x32xbf16>
    tpu.vector_store %arg9[%c2_119, %c0_120, %c1_121, %c0_122], %171 {strides = array<i32>} : memref<4x9x9x32xbf16, #tpu.memory_space<vmem>>, vector<1x8x8x32xbf16>,
    %cst_123 = arith.constant 0.000000e+00 : f32
    %172 = vector.broadcast %cst_123 : f32 to vector<64x56xf32>
    %c0_124 = arith.constant 0 : index
    %c0_125 = arith.constant 0 : index
    %c0_126 = arith.constant 0 : index
    %173 = vector.load %arg2[%c0_124, %c0_125, %c0_126] : memref<9x4x56xbf16, #tpu.memory_space<vmem>>, vector<1x4x56xbf16>
    %174 = vector.shape_cast %173 : vector<1x4x56xbf16> to vector<4x56xbf16>
    %cst_127 = arith.constant dense<0.000000e+00> : vector<64x56xf32>
    %175 = tpu.matmul %38, %174, %cst_127 {dimension_numbers = #tpu.dot_dimension_numbers<[1], [0], [0], [1], [0, 0, 1, 1], [], []>} : vector<64x4xbf16>, vector<4x56xbf16>, vector<64x56xf32> -> vector<64x56xf32>
    %176 = arith.addf %172, %175 : vector<64x56xf32>
    %c1_128 = arith.constant 1 : index
    %c0_129 = arith.constant 0 : index
    %c0_130 = arith.constant 0 : index
    %177 = vector.load %arg2[%c1_128, %c0_129, %c0_130] : memref<9x4x56xbf16, #tpu.memory_space<vmem>>, vector<1x4x56xbf16>
    %178 = vector.shape_cast %177 : vector<1x4x56xbf16> to vector<4x56xbf16>
    %cst_131 = arith.constant dense<0.000000e+00> : vector<64x56xf32>
    %179 = tpu.matmul %50, %178, %cst_131 {dimension_numbers = #tpu.dot_dimension_numbers<[1], [0], [0], [1], [0, 0, 1, 1], [], []>} : vector<64x4xbf16>, vector<4x56xbf16>, vector<64x56xf32> -> vector<64x56xf32>
    %180 = arith.addf %176, %179 : vector<64x56xf32>
    %c2_132 = arith.constant 2 : index
    %c0_133 = arith.constant 0 : index
    %c0_134 = arith.constant 0 : index
    %181 = vector.load %arg2[%c2_132, %c0_133, %c0_134] : memref<9x4x56xbf16, #tpu.memory_space<vmem>>, vector<1x4x56xbf16>
    %182 = vector.shape_cast %181 : vector<1x4x56xbf16> to vector<4x56xbf16>
    %cst_135 = arith.constant dense<0.000000e+00> : vector<64x56xf32>
    %183 = tpu.matmul %41, %182, %cst_135 {dimension_numbers = #tpu.dot_dimension_numbers<[1], [0], [0], [1], [0, 0, 1, 1], [], []>} : vector<64x4xbf16>, vector<4x56xbf16>, vector<64x56xf32> -> vector<64x56xf32>
    %184 = arith.addf %180, %183 : vector<64x56xf32>
    %c3_136 = arith.constant 3 : index
    %c0_137 = arith.constant 0 : index
    %c0_138 = arith.constant 0 : index
    %185 = vector.load %arg2[%c3_136, %c0_137, %c0_138] : memref<9x4x56xbf16, #tpu.memory_space<vmem>>, vector<1x4x56xbf16>
    %186 = vector.shape_cast %185 : vector<1x4x56xbf16> to vector<4x56xbf16>
    %cst_139 = arith.constant dense<0.000000e+00> : vector<64x56xf32>
    %187 = tpu.matmul %20, %186, %cst_139 {dimension_numbers = #tpu.dot_dimension_numbers<[1], [0], [0], [1], [0, 0, 1, 1], [], []>} : vector<64x4xbf16>, vector<4x56xbf16>, vector<64x56xf32> -> vector<64x56xf32>
    %188 = arith.addf %184, %187 : vector<64x56xf32>
    %c4_140 = arith.constant 4 : index
    %c0_141 = arith.constant 0 : index
    %c0_142 = arith.constant 0 : index
    %189 = vector.load %arg2[%c4_140, %c0_141, %c0_142] : memref<9x4x56xbf16, #tpu.memory_space<vmem>>, vector<1x4x56xbf16>
    %190 = vector.shape_cast %189 : vector<1x4x56xbf16> to vector<4x56xbf16>
    %cst_143 = arith.constant dense<0.000000e+00> : vector<64x56xf32>
    %191 = tpu.matmul %32, %190, %cst_143 {dimension_numbers = #tpu.dot_dimension_numbers<[1], [0], [0], [1], [0, 0, 1, 1], [], []>} : vector<64x4xbf16>, vector<4x56xbf16>, vector<64x56xf32> -> vector<64x56xf32>
    %192 = arith.addf %188, %191 : vector<64x56xf32>
    %c5_144 = arith.constant 5 : index
    %c0_145 = arith.constant 0 : index
    %c0_146 = arith.constant 0 : index
    %193 = vector.load %arg2[%c5_144, %c0_145, %c0_146] : memref<9x4x56xbf16, #tpu.memory_space<vmem>>, vector<1x4x56xbf16>
    %194 = vector.shape_cast %193 : vector<1x4x56xbf16> to vector<4x56xbf16>
    %cst_147 = arith.constant dense<0.000000e+00> : vector<64x56xf32>
    %195 = tpu.matmul %23, %194, %cst_147 {dimension_numbers = #tpu.dot_dimension_numbers<[1], [0], [0], [1], [0, 0, 1, 1], [], []>} : vector<64x4xbf16>, vector<4x56xbf16>, vector<64x56xf32> -> vector<64x56xf32>
    %196 = arith.addf %192, %195 : vector<64x56xf32>
    %c6_148 = arith.constant 6 : index
    %c0_149 = arith.constant 0 : index
    %c0_150 = arith.constant 0 : index
    %197 = vector.load %arg2[%c6_148, %c0_149, %c0_150] : memref<9x4x56xbf16, #tpu.memory_space<vmem>>, vector<1x4x56xbf16>
    %198 = vector.shape_cast %197 : vector<1x4x56xbf16> to vector<4x56xbf16>
    %cst_151 = arith.constant dense<0.000000e+00> : vector<64x56xf32>
    %199 = tpu.matmul %44, %198, %cst_151 {dimension_numbers = #tpu.dot_dimension_numbers<[1], [0], [0], [1], [0, 0, 1, 1], [], []>} : vector<64x4xbf16>, vector<4x56xbf16>, vector<64x56xf32> -> vector<64x56xf32>
    %200 = arith.addf %196, %199 : vector<64x56xf32>
    %c7_152 = arith.constant 7 : index
    %c0_153 = arith.constant 0 : index
    %c0_154 = arith.constant 0 : index
    %201 = vector.load %arg2[%c7_152, %c0_153, %c0_154] : memref<9x4x56xbf16, #tpu.memory_space<vmem>>, vector<1x4x56xbf16>
    %202 = vector.shape_cast %201 : vector<1x4x56xbf16> to vector<4x56xbf16>
    %cst_155 = arith.constant dense<0.000000e+00> : vector<64x56xf32>
    %203 = tpu.matmul %56, %202, %cst_155 {dimension_numbers = #tpu.dot_dimension_numbers<[1], [0], [0], [1], [0, 0, 1, 1], [], []>} : vector<64x4xbf16>, vector<4x56xbf16>, vector<64x56xf32> -> vector<64x56xf32>
    %204 = arith.addf %200, %203 : vector<64x56xf32>
    %c8_156 = arith.constant 8 : index
    %c0_157 = arith.constant 0 : index
    %c0_158 = arith.constant 0 : index
    %205 = vector.load %arg2[%c8_156, %c0_157, %c0_158] : memref<9x4x56xbf16, #tpu.memory_space<vmem>>, vector<1x4x56xbf16>
    %206 = vector.shape_cast %205 : vector<1x4x56xbf16> to vector<4x56xbf16>
    %cst_159 = arith.constant dense<0.000000e+00> : vector<64x56xf32>
    %207 = tpu.matmul %47, %206, %cst_159 {dimension_numbers = #tpu.dot_dimension_numbers<[1], [0], [0], [1], [0, 0, 1, 1], [], []>} : vector<64x4xbf16>, vector<4x56xbf16>, vector<64x56xf32> -> vector<64x56xf32>
    %208 = arith.addf %204, %207 : vector<64x56xf32>
    %c0_160 = arith.constant 0 : index
    %c0_161 = arith.constant 0 : index
    %209 = vector.load %arg3[%c0_160, %c0_161] : memref<1x56xf32, #tpu.memory_space<vmem>>, vector<1x56xf32>
    %210 = vector.broadcast %209 : vector<1x56xf32> to vector<64x56xf32>
    %211 = arith.addf %208, %210 : vector<64x56xf32>
    %cst_162 = arith.constant 0.000000e+00 : f32
    %212 = vector.broadcast %cst_162 : f32 to vector<64x56xf32>
    %213 = arith.maximumf %211, %212 : vector<64x56xf32>
    %214 = vector.shape_cast %213 : vector<64x56xf32> to vector<8x8x56xf32>
    %215 = vector.extract_strided_slice %214 {offsets = [0, 0, 0], sizes = [8, 8, 16], strides = [1, 1, 1]} : vector<8x8x56xf32> to vector<8x8x16xf32>
    %c1_163 = arith.constant 1 : index
    %c1_164 = arith.constant 1 : index
    %c0_165 = arith.constant 0 : index
    %c0_166 = arith.constant 0 : index
    %216 = vector.load %arg10[%c1_163, %c1_164, %c0_165, %c0_166] : memref<4x9x9x32xf32, #tpu.memory_space<vmem>>, vector<1x8x8x16xf32>
    %217 = vector.shape_cast %216 : vector<1x8x8x16xf32> to vector<8x8x16xf32>
    %218 = vector.shape_cast %215 : vector<8x8x16xf32> to vector<1x8x8x16xf32>
    tpu.vector_store %arg10[%c1_163, %c1_164, %c0_165, %c0_166], %218 {strides = array<i32>} : memref<4x9x9x32xf32, #tpu.memory_space<vmem>>, vector<1x8x8x16xf32>,
    %219 = vector.extract_strided_slice %214 {offsets = [0, 0, 48], sizes = [8, 8, 8], strides = [1, 1, 1]} : vector<8x8x56xf32> to vector<8x8x8xf32>
    %c1_167 = arith.constant 1 : index
    %c1_168 = arith.constant 1 : index
    %c0_169 = arith.constant 0 : index
    %c24_170 = arith.constant 24 : index
    %220 = vector.load %arg10[%c1_167, %c1_168, %c0_169, %c24_170] : memref<4x9x9x32xf32, #tpu.memory_space<vmem>>, vector<1x8x8x8xf32>
    %221 = vector.shape_cast %220 : vector<1x8x8x8xf32> to vector<8x8x8xf32>
    %222 = vector.shape_cast %219 : vector<8x8x8xf32> to vector<1x8x8x8xf32>
    tpu.vector_store %arg10[%c1_167, %c1_168, %c0_169, %c24_170], %222 {strides = array<i32>} : memref<4x9x9x32xf32, #tpu.memory_space<vmem>>, vector<1x8x8x8xf32>,
    %223 = vector.extract_strided_slice %214 {offsets = [0, 0, 16], sizes = [8, 8, 32], strides = [1, 1, 1]} : vector<8x8x56xf32> to vector<8x8x32xf32>
    %224 = arith.truncf %223 : vector<8x8x32xf32> to vector<8x8x32xbf16>
    %c1_171 = arith.constant 1 : index
    %c1_172 = arith.constant 1 : index
    %c0_173 = arith.constant 0 : index
    %c0_174 = arith.constant 0 : index
    %225 = vector.load %arg9[%c1_171, %c1_172, %c0_173, %c0_174] : memref<4x9x9x32xbf16, #tpu.memory_space<vmem>>, vector<1x8x8x32xbf16>
    %226 = vector.shape_cast %225 : vector<1x8x8x32xbf16> to vector<8x8x32xbf16>
    %227 = vector.shape_cast %224 : vector<8x8x32xbf16> to vector<1x8x8x32xbf16>
    tpu.vector_store %arg9[%c1_171, %c1_172, %c0_173, %c0_174], %227 {strides = array<i32>} : memref<4x9x9x32xbf16, #tpu.memory_space<vmem>>, vector<1x8x8x32xbf16>,
    %cst_175 = arith.constant 0.000000e+00 : f32
    %228 = vector.broadcast %cst_175 : f32 to vector<64x56xf32>
    %c0_176 = arith.constant 0 : index
    %c0_177 = arith.constant 0 : index
    %c0_178 = arith.constant 0 : index
    %229 = vector.load %arg2[%c0_176, %c0_177, %c0_178] : memref<9x4x56xbf16, #tpu.memory_space<vmem>>, vector<1x4x56xbf16>
    %230 = vector.shape_cast %229 : vector<1x4x56xbf16> to vector<4x56xbf16>
    %cst_179 = arith.constant dense<0.000000e+00> : vector<64x56xf32>
    %231 = tpu.matmul %50, %230, %cst_179 {dimension_numbers = #tpu.dot_dimension_numbers<[1], [0], [0], [1], [0, 0, 1, 1], [], []>} : vector<64x4xbf16>, vector<4x56xbf16>, vector<64x56xf32> -> vector<64x56xf32>
    %232 = arith.addf %228, %231 : vector<64x56xf32>
    %c1_180 = arith.constant 1 : index
    %c0_181 = arith.constant 0 : index
    %c0_182 = arith.constant 0 : index
    %233 = vector.load %arg2[%c1_180, %c0_181, %c0_182] : memref<9x4x56xbf16, #tpu.memory_space<vmem>>, vector<1x4x56xbf16>
    %234 = vector.shape_cast %233 : vector<1x4x56xbf16> to vector<4x56xbf16>
    %cst_183 = arith.constant dense<0.000000e+00> : vector<64x56xf32>
    %235 = tpu.matmul %41, %234, %cst_183 {dimension_numbers = #tpu.dot_dimension_numbers<[1], [0], [0], [1], [0, 0, 1, 1], [], []>} : vector<64x4xbf16>, vector<4x56xbf16>, vector<64x56xf32> -> vector<64x56xf32>
    %236 = arith.addf %232, %235 : vector<64x56xf32>
    %c2_184 = arith.constant 2 : index
    %c0_185 = arith.constant 0 : index
    %c0_186 = arith.constant 0 : index
    %237 = vector.load %arg2[%c2_184, %c0_185, %c0_186] : memref<9x4x56xbf16, #tpu.memory_space<vmem>>, vector<1x4x56xbf16>
    %238 = vector.shape_cast %237 : vector<1x4x56xbf16> to vector<4x56xbf16>
    %cst_187 = arith.constant dense<0.000000e+00> : vector<64x56xf32>
    %239 = tpu.matmul %53, %238, %cst_187 {dimension_numbers = #tpu.dot_dimension_numbers<[1], [0], [0], [1], [0, 0, 1, 1], [], []>} : vector<64x4xbf16>, vector<4x56xbf16>, vector<64x56xf32> -> vector<64x56xf32>
    %240 = arith.addf %236, %239 : vector<64x56xf32>
    %c3_188 = arith.constant 3 : index
    %c0_189 = arith.constant 0 : index
    %c0_190 = arith.constant 0 : index
    %241 = vector.load %arg2[%c3_188, %c0_189, %c0_190] : memref<9x4x56xbf16, #tpu.memory_space<vmem>>, vector<1x4x56xbf16>
    %242 = vector.shape_cast %241 : vector<1x4x56xbf16> to vector<4x56xbf16>
    %cst_191 = arith.constant dense<0.000000e+00> : vector<64x56xf32>
    %243 = tpu.matmul %32, %242, %cst_191 {dimension_numbers = #tpu.dot_dimension_numbers<[1], [0], [0], [1], [0, 0, 1, 1], [], []>} : vector<64x4xbf16>, vector<4x56xbf16>, vector<64x56xf32> -> vector<64x56xf32>
    %244 = arith.addf %240, %243 : vector<64x56xf32>
    %c4_192 = arith.constant 4 : index
    %c0_193 = arith.constant 0 : index
    %c0_194 = arith.constant 0 : index
    %245 = vector.load %arg2[%c4_192, %c0_193, %c0_194] : memref<9x4x56xbf16, #tpu.memory_space<vmem>>, vector<1x4x56xbf16>
    %246 = vector.shape_cast %245 : vector<1x4x56xbf16> to vector<4x56xbf16>
    %cst_195 = arith.constant dense<0.000000e+00> : vector<64x56xf32>
    %247 = tpu.matmul %23, %246, %cst_195 {dimension_numbers = #tpu.dot_dimension_numbers<[1], [0], [0], [1], [0, 0, 1, 1], [], []>} : vector<64x4xbf16>, vector<4x56xbf16>, vector<64x56xf32> -> vector<64x56xf32>
    %248 = arith.addf %244, %247 : vector<64x56xf32>
    %c5_196 = arith.constant 5 : index
    %c0_197 = arith.constant 0 : index
    %c0_198 = arith.constant 0 : index
    %249 = vector.load %arg2[%c5_196, %c0_197, %c0_198] : memref<9x4x56xbf16, #tpu.memory_space<vmem>>, vector<1x4x56xbf16>
    %250 = vector.shape_cast %249 : vector<1x4x56xbf16> to vector<4x56xbf16>
    %cst_199 = arith.constant dense<0.000000e+00> : vector<64x56xf32>
    %251 = tpu.matmul %35, %250, %cst_199 {dimension_numbers = #tpu.dot_dimension_numbers<[1], [0], [0], [1], [0, 0, 1, 1], [], []>} : vector<64x4xbf16>, vector<4x56xbf16>, vector<64x56xf32> -> vector<64x56xf32>
    %252 = arith.addf %248, %251 : vector<64x56xf32>
    %c6_200 = arith.constant 6 : index
    %c0_201 = arith.constant 0 : index
    %c0_202 = arith.constant 0 : index
    %253 = vector.load %arg2[%c6_200, %c0_201, %c0_202] : memref<9x4x56xbf16, #tpu.memory_space<vmem>>, vector<1x4x56xbf16>
    %254 = vector.shape_cast %253 : vector<1x4x56xbf16> to vector<4x56xbf16>
    %cst_203 = arith.constant dense<0.000000e+00> : vector<64x56xf32>
    %255 = tpu.matmul %56, %254, %cst_203 {dimension_numbers = #tpu.dot_dimension_numbers<[1], [0], [0], [1], [0, 0, 1, 1], [], []>} : vector<64x4xbf16>, vector<4x56xbf16>, vector<64x56xf32> -> vector<64x56xf32>
    %256 = arith.addf %252, %255 : vector<64x56xf32>
    %c7_204 = arith.constant 7 : index
    %c0_205 = arith.constant 0 : index
    %c0_206 = arith.constant 0 : index
    %257 = vector.load %arg2[%c7_204, %c0_205, %c0_206] : memref<9x4x56xbf16, #tpu.memory_space<vmem>>, vector<1x4x56xbf16>
    %258 = vector.shape_cast %257 : vector<1x4x56xbf16> to vector<4x56xbf16>
    %cst_207 = arith.constant dense<0.000000e+00> : vector<64x56xf32>
    %259 = tpu.matmul %47, %258, %cst_207 {dimension_numbers = #tpu.dot_dimension_numbers<[1], [0], [0], [1], [0, 0, 1, 1], [], []>} : vector<64x4xbf16>, vector<4x56xbf16>, vector<64x56xf32> -> vector<64x56xf32>
    %260 = arith.addf %256, %259 : vector<64x56xf32>
    %c8_208 = arith.constant 8 : index
    %c0_209 = arith.constant 0 : index
    %c0_210 = arith.constant 0 : index
    %261 = vector.load %arg2[%c8_208, %c0_209, %c0_210] : memref<9x4x56xbf16, #tpu.memory_space<vmem>>, vector<1x4x56xbf16>
    %262 = vector.shape_cast %261 : vector<1x4x56xbf16> to vector<4x56xbf16>
    %cst_211 = arith.constant dense<0.000000e+00> : vector<64x56xf32>
    %263 = tpu.matmul %59, %262, %cst_211 {dimension_numbers = #tpu.dot_dimension_numbers<[1], [0], [0], [1], [0, 0, 1, 1], [], []>} : vector<64x4xbf16>, vector<4x56xbf16>, vector<64x56xf32> -> vector<64x56xf32>
    %264 = arith.addf %260, %263 : vector<64x56xf32>
    %c0_212 = arith.constant 0 : index
    %c0_213 = arith.constant 0 : index
    %265 = vector.load %arg3[%c0_212, %c0_213] : memref<1x56xf32, #tpu.memory_space<vmem>>, vector<1x56xf32>
    %266 = vector.broadcast %265 : vector<1x56xf32> to vector<64x56xf32>
    %267 = arith.addf %264, %266 : vector<64x56xf32>
    %cst_214 = arith.constant 0.000000e+00 : f32
    %268 = vector.broadcast %cst_214 : f32 to vector<64x56xf32>
    %269 = arith.maximumf %267, %268 : vector<64x56xf32>
    %270 = vector.shape_cast %269 : vector<64x56xf32> to vector<8x8x56xf32>
    %271 = vector.extract_strided_slice %270 {offsets = [0, 0, 0], sizes = [8, 8, 16], strides = [1, 1, 1]} : vector<8x8x56xf32> to vector<8x8x16xf32>
    %c0_215 = arith.constant 0 : index
    %c1_216 = arith.constant 1 : index
    %c1_217 = arith.constant 1 : index
    %c0_218 = arith.constant 0 : index
    %272 = vector.load %arg10[%c0_215, %c1_216, %c1_217, %c0_218] : memref<4x9x9x32xf32, #tpu.memory_space<vmem>>, vector<1x8x8x16xf32>
    %273 = vector.shape_cast %272 : vector<1x8x8x16xf32> to vector<8x8x16xf32>
    %274 = vector.shape_cast %271 : vector<8x8x16xf32> to vector<1x8x8x16xf32>
    tpu.vector_store %arg10[%c0_215, %c1_216, %c1_217, %c0_218], %274 {strides = array<i32>} : memref<4x9x9x32xf32, #tpu.memory_space<vmem>>, vector<1x8x8x16xf32>,
    %275 = vector.extract_strided_slice %270 {offsets = [0, 0, 48], sizes = [8, 8, 8], strides = [1, 1, 1]} : vector<8x8x56xf32> to vector<8x8x8xf32>
    %c0_219 = arith.constant 0 : index
    %c1_220 = arith.constant 1 : index
    %c1_221 = arith.constant 1 : index
    %c24_222 = arith.constant 24 : index
    %276 = vector.load %arg10[%c0_219, %c1_220, %c1_221, %c24_222] : memref<4x9x9x32xf32, #tpu.memory_space<vmem>>, vector<1x8x8x8xf32>
    %277 = vector.shape_cast %276 : vector<1x8x8x8xf32> to vector<8x8x8xf32>
    %278 = vector.shape_cast %275 : vector<8x8x8xf32> to vector<1x8x8x8xf32>
    tpu.vector_store %arg10[%c0_219, %c1_220, %c1_221, %c24_222], %278 {strides = array<i32>} : memref<4x9x9x32xf32, #tpu.memory_space<vmem>>, vector<1x8x8x8xf32>,
    %279 = vector.extract_strided_slice %270 {offsets = [0, 0, 16], sizes = [8, 8, 32], strides = [1, 1, 1]} : vector<8x8x56xf32> to vector<8x8x32xf32>
    %280 = arith.truncf %279 : vector<8x8x32xf32> to vector<8x8x32xbf16>
    %c0_223 = arith.constant 0 : index
    %c1_224 = arith.constant 1 : index
    %c1_225 = arith.constant 1 : index
    %c0_226 = arith.constant 0 : index
    %281 = vector.load %arg9[%c0_223, %c1_224, %c1_225, %c0_226] : memref<4x9x9x32xbf16, #tpu.memory_space<vmem>>, vector<1x8x8x32xbf16>
    %282 = vector.shape_cast %281 : vector<1x8x8x32xbf16> to vector<8x8x32xbf16>
    %283 = vector.shape_cast %280 : vector<8x8x32xbf16> to vector<1x8x8x32xbf16>
    tpu.vector_store %arg9[%c0_223, %c1_224, %c1_225, %c0_226], %283 {strides = array<i32>} : memref<4x9x9x32xbf16, #tpu.memory_space<vmem>>, vector<1x8x8x32xbf16>,
    %c0_227 = arith.constant 0 : index
    %c0_228 = arith.constant 0 : index
    %c0_229 = arith.constant 0 : index
    %c0_230 = arith.constant 0 : index
    %284 = vector.load %arg9[%c0_227, %c0_228, %c0_229, %c0_230] : memref<4x9x9x32xbf16, #tpu.memory_space<vmem>>, vector<1x9x9x32xbf16>
    %285 = vector.shape_cast %284 : vector<1x9x9x32xbf16> to vector<9x9x32xbf16>
    %c1_231 = arith.constant 1 : index
    %c0_232 = arith.constant 0 : index
    %c0_233 = arith.constant 0 : index
    %c0_234 = arith.constant 0 : index
    %286 = vector.load %arg9[%c1_231, %c0_232, %c0_233, %c0_234] : memref<4x9x9x32xbf16, #tpu.memory_space<vmem>>, vector<1x9x9x32xbf16>
    %287 = vector.shape_cast %286 : vector<1x9x9x32xbf16> to vector<9x9x32xbf16>
    %c2_235 = arith.constant 2 : index
    %c0_236 = arith.constant 0 : index
    %c0_237 = arith.constant 0 : index
    %c0_238 = arith.constant 0 : index
    %288 = vector.load %arg9[%c2_235, %c0_236, %c0_237, %c0_238] : memref<4x9x9x32xbf16, #tpu.memory_space<vmem>>, vector<1x9x9x32xbf16>
    %289 = vector.shape_cast %288 : vector<1x9x9x32xbf16> to vector<9x9x32xbf16>
    %c3_239 = arith.constant 3 : index
    %c0_240 = arith.constant 0 : index
    %c0_241 = arith.constant 0 : index
    %c0_242 = arith.constant 0 : index
    %290 = vector.load %arg9[%c3_239, %c0_240, %c0_241, %c0_242] : memref<4x9x9x32xbf16, #tpu.memory_space<vmem>>, vector<1x9x9x32xbf16>
    %291 = vector.shape_cast %290 : vector<1x9x9x32xbf16> to vector<9x9x32xbf16>
    %292 = vector.extract_strided_slice %285 {offsets = [0, 0, 0], sizes = [8, 8, 32], strides = [1, 1, 1]} : vector<9x9x32xbf16> to vector<8x8x32xbf16>
    %293 = vector.shape_cast %292 : vector<8x8x32xbf16> to vector<64x32xbf16>
    %294 = vector.extract_strided_slice %285 {offsets = [0, 1, 0], sizes = [8, 8, 32], strides = [1, 1, 1]} : vector<9x9x32xbf16> to vector<8x8x32xbf16>
    %295 = vector.shape_cast %294 : vector<8x8x32xbf16> to vector<64x32xbf16>
    %296 = vector.extract_strided_slice %285 {offsets = [1, 0, 0], sizes = [8, 8, 32], strides = [1, 1, 1]} : vector<9x9x32xbf16> to vector<8x8x32xbf16>
    %297 = vector.shape_cast %296 : vector<8x8x32xbf16> to vector<64x32xbf16>
    %298 = vector.extract_strided_slice %285 {offsets = [1, 1, 0], sizes = [8, 8, 32], strides = [1, 1, 1]} : vector<9x9x32xbf16> to vector<8x8x32xbf16>
    %299 = vector.shape_cast %298 : vector<8x8x32xbf16> to vector<64x32xbf16>
    %300 = vector.extract_strided_slice %287 {offsets = [0, 0, 0], sizes = [8, 8, 32], strides = [1, 1, 1]} : vector<9x9x32xbf16> to vector<8x8x32xbf16>
    %301 = vector.shape_cast %300 : vector<8x8x32xbf16> to vector<64x32xbf16>
    %302 = vector.extract_strided_slice %287 {offsets = [0, 1, 0], sizes = [8, 8, 32], strides = [1, 1, 1]} : vector<9x9x32xbf16> to vector<8x8x32xbf16>
    %303 = vector.shape_cast %302 : vector<8x8x32xbf16> to vector<64x32xbf16>
    %304 = vector.extract_strided_slice %287 {offsets = [1, 0, 0], sizes = [8, 8, 32], strides = [1, 1, 1]} : vector<9x9x32xbf16> to vector<8x8x32xbf16>
    %305 = vector.shape_cast %304 : vector<8x8x32xbf16> to vector<64x32xbf16>
    %306 = vector.extract_strided_slice %287 {offsets = [1, 1, 0], sizes = [8, 8, 32], strides = [1, 1, 1]} : vector<9x9x32xbf16> to vector<8x8x32xbf16>
    %307 = vector.shape_cast %306 : vector<8x8x32xbf16> to vector<64x32xbf16>
    %308 = vector.extract_strided_slice %289 {offsets = [0, 0, 0], sizes = [8, 8, 32], strides = [1, 1, 1]} : vector<9x9x32xbf16> to vector<8x8x32xbf16>
    %309 = vector.shape_cast %308 : vector<8x8x32xbf16> to vector<64x32xbf16>
    %310 = vector.extract_strided_slice %289 {offsets = [0, 1, 0], sizes = [8, 8, 32], strides = [1, 1, 1]} : vector<9x9x32xbf16> to vector<8x8x32xbf16>
    %311 = vector.shape_cast %310 : vector<8x8x32xbf16> to vector<64x32xbf16>
    %312 = vector.extract_strided_slice %289 {offsets = [1, 0, 0], sizes = [8, 8, 32], strides = [1, 1, 1]} : vector<9x9x32xbf16> to vector<8x8x32xbf16>
    %313 = vector.shape_cast %312 : vector<8x8x32xbf16> to vector<64x32xbf16>
    %314 = vector.extract_strided_slice %289 {offsets = [1, 1, 0], sizes = [8, 8, 32], strides = [1, 1, 1]} : vector<9x9x32xbf16> to vector<8x8x32xbf16>
    %315 = vector.shape_cast %314 : vector<8x8x32xbf16> to vector<64x32xbf16>
    %316 = vector.extract_strided_slice %291 {offsets = [0, 0, 0], sizes = [8, 8, 32], strides = [1, 1, 1]} : vector<9x9x32xbf16> to vector<8x8x32xbf16>
    %317 = vector.shape_cast %316 : vector<8x8x32xbf16> to vector<64x32xbf16>
    %318 = vector.extract_strided_slice %291 {offsets = [0, 1, 0], sizes = [8, 8, 32], strides = [1, 1, 1]} : vector<9x9x32xbf16> to vector<8x8x32xbf16>
    %319 = vector.shape_cast %318 : vector<8x8x32xbf16> to vector<64x32xbf16>
    %320 = vector.extract_strided_slice %291 {offsets = [1, 0, 0], sizes = [8, 8, 32], strides = [1, 1, 1]} : vector<9x9x32xbf16> to vector<8x8x32xbf16>
    %321 = vector.shape_cast %320 : vector<8x8x32xbf16> to vector<64x32xbf16>
    %322 = vector.extract_strided_slice %291 {offsets = [1, 1, 0], sizes = [8, 8, 32], strides = [1, 1, 1]} : vector<9x9x32xbf16> to vector<8x8x32xbf16>
    %323 = vector.shape_cast %322 : vector<8x8x32xbf16> to vector<64x32xbf16>
    %cst_243 = arith.constant 0.000000e+00 : f32
    %324 = vector.broadcast %cst_243 : f32 to vector<64x8xf32>
    %c0_244 = arith.constant 0 : index
    %c0_245 = arith.constant 0 : index
    %c0_246 = arith.constant 0 : index
    %325 = vector.load %arg4[%c0_244, %c0_245, %c0_246] : memref<9x32x8xbf16, #tpu.memory_space<vmem>>, vector<1x32x8xbf16>
    %326 = vector.shape_cast %325 : vector<1x32x8xbf16> to vector<32x8xbf16>
    %cst_247 = arith.constant dense<0.000000e+00> : vector<64x8xf32>
    %327 = tpu.matmul %293, %326, %cst_247 {dimension_numbers = #tpu.dot_dimension_numbers<[1], [0], [0], [1], [0, 0, 1, 1], [], []>} : vector<64x32xbf16>, vector<32x8xbf16>, vector<64x8xf32> -> vector<64x8xf32>
    %328 = arith.addf %324, %327 : vector<64x8xf32>
    %c1_248 = arith.constant 1 : index
    %c0_249 = arith.constant 0 : index
    %c0_250 = arith.constant 0 : index
    %329 = vector.load %arg4[%c1_248, %c0_249, %c0_250] : memref<9x32x8xbf16, #tpu.memory_space<vmem>>, vector<1x32x8xbf16>
    %330 = vector.shape_cast %329 : vector<1x32x8xbf16> to vector<32x8xbf16>
    %cst_251 = arith.constant dense<0.000000e+00> : vector<64x8xf32>
    %331 = tpu.matmul %301, %330, %cst_251 {dimension_numbers = #tpu.dot_dimension_numbers<[1], [0], [0], [1], [0, 0, 1, 1], [], []>} : vector<64x32xbf16>, vector<32x8xbf16>, vector<64x8xf32> -> vector<64x8xf32>
    %332 = arith.addf %328, %331 : vector<64x8xf32>
    %c2_252 = arith.constant 2 : index
    %c0_253 = arith.constant 0 : index
    %c0_254 = arith.constant 0 : index
    %333 = vector.load %arg4[%c2_252, %c0_253, %c0_254] : memref<9x32x8xbf16, #tpu.memory_space<vmem>>, vector<1x32x8xbf16>
    %334 = vector.shape_cast %333 : vector<1x32x8xbf16> to vector<32x8xbf16>
    %cst_255 = arith.constant dense<0.000000e+00> : vector<64x8xf32>
    %335 = tpu.matmul %295, %334, %cst_255 {dimension_numbers = #tpu.dot_dimension_numbers<[1], [0], [0], [1], [0, 0, 1, 1], [], []>} : vector<64x32xbf16>, vector<32x8xbf16>, vector<64x8xf32> -> vector<64x8xf32>
    %336 = arith.addf %332, %335 : vector<64x8xf32>
    %c3_256 = arith.constant 3 : index
    %c0_257 = arith.constant 0 : index
    %c0_258 = arith.constant 0 : index
    %337 = vector.load %arg4[%c3_256, %c0_257, %c0_258] : memref<9x32x8xbf16, #tpu.memory_space<vmem>>, vector<1x32x8xbf16>
    %338 = vector.shape_cast %337 : vector<1x32x8xbf16> to vector<32x8xbf16>
    %cst_259 = arith.constant dense<0.000000e+00> : vector<64x8xf32>
    %339 = tpu.matmul %309, %338, %cst_259 {dimension_numbers = #tpu.dot_dimension_numbers<[1], [0], [0], [1], [0, 0, 1, 1], [], []>} : vector<64x32xbf16>, vector<32x8xbf16>, vector<64x8xf32> -> vector<64x8xf32>
    %340 = arith.addf %336, %339 : vector<64x8xf32>
    %c4_260 = arith.constant 4 : index
    %c0_261 = arith.constant 0 : index
    %c0_262 = arith.constant 0 : index
    %341 = vector.load %arg4[%c4_260, %c0_261, %c0_262] : memref<9x32x8xbf16, #tpu.memory_space<vmem>>, vector<1x32x8xbf16>
    %342 = vector.shape_cast %341 : vector<1x32x8xbf16> to vector<32x8xbf16>
    %cst_263 = arith.constant dense<0.000000e+00> : vector<64x8xf32>
    %343 = tpu.matmul %317, %342, %cst_263 {dimension_numbers = #tpu.dot_dimension_numbers<[1], [0], [0], [1], [0, 0, 1, 1], [], []>} : vector<64x32xbf16>, vector<32x8xbf16>, vector<64x8xf32> -> vector<64x8xf32>
    %344 = arith.addf %340, %343 : vector<64x8xf32>
    %c5_264 = arith.constant 5 : index
    %c0_265 = arith.constant 0 : index
    %c0_266 = arith.constant 0 : index
    %345 = vector.load %arg4[%c5_264, %c0_265, %c0_266] : memref<9x32x8xbf16, #tpu.memory_space<vmem>>, vector<1x32x8xbf16>
    %346 = vector.shape_cast %345 : vector<1x32x8xbf16> to vector<32x8xbf16>
    %cst_267 = arith.constant dense<0.000000e+00> : vector<64x8xf32>
    %347 = tpu.matmul %311, %346, %cst_267 {dimension_numbers = #tpu.dot_dimension_numbers<[1], [0], [0], [1], [0, 0, 1, 1], [], []>} : vector<64x32xbf16>, vector<32x8xbf16>, vector<64x8xf32> -> vector<64x8xf32>
    %348 = arith.addf %344, %347 : vector<64x8xf32>
    %c6_268 = arith.constant 6 : index
    %c0_269 = arith.constant 0 : index
    %c0_270 = arith.constant 0 : index
    %349 = vector.load %arg4[%c6_268, %c0_269, %c0_270] : memref<9x32x8xbf16, #tpu.memory_space<vmem>>, vector<1x32x8xbf16>
    %350 = vector.shape_cast %349 : vector<1x32x8xbf16> to vector<32x8xbf16>
    %cst_271 = arith.constant dense<0.000000e+00> : vector<64x8xf32>
    %351 = tpu.matmul %297, %350, %cst_271 {dimension_numbers = #tpu.dot_dimension_numbers<[1], [0], [0], [1], [0, 0, 1, 1], [], []>} : vector<64x32xbf16>, vector<32x8xbf16>, vector<64x8xf32> -> vector<64x8xf32>
    %352 = arith.addf %348, %351 : vector<64x8xf32>
    %c7_272 = arith.constant 7 : index
    %c0_273 = arith.constant 0 : index
    %c0_274 = arith.constant 0 : index
    %353 = vector.load %arg4[%c7_272, %c0_273, %c0_274] : memref<9x32x8xbf16, #tpu.memory_space<vmem>>, vector<1x32x8xbf16>
    %354 = vector.shape_cast %353 : vector<1x32x8xbf16> to vector<32x8xbf16>
    %cst_275 = arith.constant dense<0.000000e+00> : vector<64x8xf32>
    %355 = tpu.matmul %305, %354, %cst_275 {dimension_numbers = #tpu.dot_dimension_numbers<[1], [0], [0], [1], [0, 0, 1, 1], [], []>} : vector<64x32xbf16>, vector<32x8xbf16>, vector<64x8xf32> -> vector<64x8xf32>
    %356 = arith.addf %352, %355 : vector<64x8xf32>
    %c8_276 = arith.constant 8 : index
    %c0_277 = arith.constant 0 : index
    %c0_278 = arith.constant 0 : index
    %357 = vector.load %arg4[%c8_276, %c0_277, %c0_278] : memref<9x32x8xbf16, #tpu.memory_space<vmem>>, vector<1x32x8xbf16>
    %358 = vector.shape_cast %357 : vector<1x32x8xbf16> to vector<32x8xbf16>
    %cst_279 = arith.constant dense<0.000000e+00> : vector<64x8xf32>
    %359 = tpu.matmul %299, %358, %cst_279 {dimension_numbers = #tpu.dot_dimension_numbers<[1], [0], [0], [1], [0, 0, 1, 1], [], []>} : vector<64x32xbf16>, vector<32x8xbf16>, vector<64x8xf32> -> vector<64x8xf32>
    %360 = arith.addf %356, %359 : vector<64x8xf32>
    %c0_280 = arith.constant 0 : index
    %c0_281 = arith.constant 0 : index
    %361 = vector.load %arg5[%c0_280, %c0_281] : memref<1x8xf32, #tpu.memory_space<vmem>>, vector<1x8xf32>
    %362 = vector.broadcast %361 : vector<1x8xf32> to vector<64x8xf32>
    %363 = arith.addf %360, %362 : vector<64x8xf32>
    %cst_282 = arith.constant 0.000000e+00 : f32
    %364 = vector.broadcast %cst_282 : f32 to vector<64x8xf32>
    %365 = arith.maximumf %363, %364 : vector<64x8xf32>
    %366 = vector.shape_cast %365 : vector<64x8xf32> to vector<8x8x8xf32>
    %c3_283 = arith.constant 3 : index
    %c0_284 = arith.constant 0 : index
    %c0_285 = arith.constant 0 : index
    %c16 = arith.constant 16 : index
    %367 = vector.load %arg10[%c3_283, %c0_284, %c0_285, %c16] : memref<4x9x9x32xf32, #tpu.memory_space<vmem>>, vector<1x8x8x8xf32>
    %368 = vector.shape_cast %367 : vector<1x8x8x8xf32> to vector<8x8x8xf32>
    %369 = vector.shape_cast %366 : vector<8x8x8xf32> to vector<1x8x8x8xf32>
    tpu.vector_store %arg10[%c3_283, %c0_284, %c0_285, %c16], %369 {strides = array<i32>} : memref<4x9x9x32xf32, #tpu.memory_space<vmem>>, vector<1x8x8x8xf32>,
    %cst_286 = arith.constant 0.000000e+00 : f32
    %370 = vector.broadcast %cst_286 : f32 to vector<64x8xf32>
    %c0_287 = arith.constant 0 : index
    %c0_288 = arith.constant 0 : index
    %c0_289 = arith.constant 0 : index
    %371 = vector.load %arg4[%c0_287, %c0_288, %c0_289] : memref<9x32x8xbf16, #tpu.memory_space<vmem>>, vector<1x32x8xbf16>
    %372 = vector.shape_cast %371 : vector<1x32x8xbf16> to vector<32x8xbf16>
    %cst_290 = arith.constant dense<0.000000e+00> : vector<64x8xf32>
    %373 = tpu.matmul %301, %372, %cst_290 {dimension_numbers = #tpu.dot_dimension_numbers<[1], [0], [0], [1], [0, 0, 1, 1], [], []>} : vector<64x32xbf16>, vector<32x8xbf16>, vector<64x8xf32> -> vector<64x8xf32>
    %374 = arith.addf %370, %373 : vector<64x8xf32>
    %c1_291 = arith.constant 1 : index
    %c0_292 = arith.constant 0 : index
    %c0_293 = arith.constant 0 : index
    %375 = vector.load %arg4[%c1_291, %c0_292, %c0_293] : memref<9x32x8xbf16, #tpu.memory_space<vmem>>, vector<1x32x8xbf16>
    %376 = vector.shape_cast %375 : vector<1x32x8xbf16> to vector<32x8xbf16>
    %cst_294 = arith.constant dense<0.000000e+00> : vector<64x8xf32>
    %377 = tpu.matmul %295, %376, %cst_294 {dimension_numbers = #tpu.dot_dimension_numbers<[1], [0], [0], [1], [0, 0, 1, 1], [], []>} : vector<64x32xbf16>, vector<32x8xbf16>, vector<64x8xf32> -> vector<64x8xf32>
    %378 = arith.addf %374, %377 : vector<64x8xf32>
    %c2_295 = arith.constant 2 : index
    %c0_296 = arith.constant 0 : index
    %c0_297 = arith.constant 0 : index
    %379 = vector.load %arg4[%c2_295, %c0_296, %c0_297] : memref<9x32x8xbf16, #tpu.memory_space<vmem>>, vector<1x32x8xbf16>
    %380 = vector.shape_cast %379 : vector<1x32x8xbf16> to vector<32x8xbf16>
    %cst_298 = arith.constant dense<0.000000e+00> : vector<64x8xf32>
    %381 = tpu.matmul %303, %380, %cst_298 {dimension_numbers = #tpu.dot_dimension_numbers<[1], [0], [0], [1], [0, 0, 1, 1], [], []>} : vector<64x32xbf16>, vector<32x8xbf16>, vector<64x8xf32> -> vector<64x8xf32>
    %382 = arith.addf %378, %381 : vector<64x8xf32>
    %c3_299 = arith.constant 3 : index
    %c0_300 = arith.constant 0 : index
    %c0_301 = arith.constant 0 : index
    %383 = vector.load %arg4[%c3_299, %c0_300, %c0_301] : memref<9x32x8xbf16, #tpu.memory_space<vmem>>, vector<1x32x8xbf16>
    %384 = vector.shape_cast %383 : vector<1x32x8xbf16> to vector<32x8xbf16>
    %cst_302 = arith.constant dense<0.000000e+00> : vector<64x8xf32>
    %385 = tpu.matmul %317, %384, %cst_302 {dimension_numbers = #tpu.dot_dimension_numbers<[1], [0], [0], [1], [0, 0, 1, 1], [], []>} : vector<64x32xbf16>, vector<32x8xbf16>, vector<64x8xf32> -> vector<64x8xf32>
    %386 = arith.addf %382, %385 : vector<64x8xf32>
    %c4_303 = arith.constant 4 : index
    %c0_304 = arith.constant 0 : index
    %c0_305 = arith.constant 0 : index
    %387 = vector.load %arg4[%c4_303, %c0_304, %c0_305] : memref<9x32x8xbf16, #tpu.memory_space<vmem>>, vector<1x32x8xbf16>
    %388 = vector.shape_cast %387 : vector<1x32x8xbf16> to vector<32x8xbf16>
    %cst_306 = arith.constant dense<0.000000e+00> : vector<64x8xf32>
    %389 = tpu.matmul %311, %388, %cst_306 {dimension_numbers = #tpu.dot_dimension_numbers<[1], [0], [0], [1], [0, 0, 1, 1], [], []>} : vector<64x32xbf16>, vector<32x8xbf16>, vector<64x8xf32> -> vector<64x8xf32>
    %390 = arith.addf %386, %389 : vector<64x8xf32>
    %c5_307 = arith.constant 5 : index
    %c0_308 = arith.constant 0 : index
    %c0_309 = arith.constant 0 : index
    %391 = vector.load %arg4[%c5_307, %c0_308, %c0_309] : memref<9x32x8xbf16, #tpu.memory_space<vmem>>, vector<1x32x8xbf16>
    %392 = vector.shape_cast %391 : vector<1x32x8xbf16> to vector<32x8xbf16>
    %cst_310 = arith.constant dense<0.000000e+00> : vector<64x8xf32>
    %393 = tpu.matmul %319, %392, %cst_310 {dimension_numbers = #tpu.dot_dimension_numbers<[1], [0], [0], [1], [0, 0, 1, 1], [], []>} : vector<64x32xbf16>, vector<32x8xbf16>, vector<64x8xf32> -> vector<64x8xf32>
    %394 = arith.addf %390, %393 : vector<64x8xf32>
    %c6_311 = arith.constant 6 : index
    %c0_312 = arith.constant 0 : index
    %c0_313 = arith.constant 0 : index
    %395 = vector.load %arg4[%c6_311, %c0_312, %c0_313] : memref<9x32x8xbf16, #tpu.memory_space<vmem>>, vector<1x32x8xbf16>
    %396 = vector.shape_cast %395 : vector<1x32x8xbf16> to vector<32x8xbf16>
    %cst_314 = arith.constant dense<0.000000e+00> : vector<64x8xf32>
    %397 = tpu.matmul %305, %396, %cst_314 {dimension_numbers = #tpu.dot_dimension_numbers<[1], [0], [0], [1], [0, 0, 1, 1], [], []>} : vector<64x32xbf16>, vector<32x8xbf16>, vector<64x8xf32> -> vector<64x8xf32>
    %398 = arith.addf %394, %397 : vector<64x8xf32>
    %c7_315 = arith.constant 7 : index
    %c0_316 = arith.constant 0 : index
    %c0_317 = arith.constant 0 : index
    %399 = vector.load %arg4[%c7_315, %c0_316, %c0_317] : memref<9x32x8xbf16, #tpu.memory_space<vmem>>, vector<1x32x8xbf16>
    %400 = vector.shape_cast %399 : vector<1x32x8xbf16> to vector<32x8xbf16>
    %cst_318 = arith.constant dense<0.000000e+00> : vector<64x8xf32>
    %401 = tpu.matmul %299, %400, %cst_318 {dimension_numbers = #tpu.dot_dimension_numbers<[1], [0], [0], [1], [0, 0, 1, 1], [], []>} : vector<64x32xbf16>, vector<32x8xbf16>, vector<64x8xf32> -> vector<64x8xf32>
    %402 = arith.addf %398, %401 : vector<64x8xf32>
    %c8_319 = arith.constant 8 : index
    %c0_320 = arith.constant 0 : index
    %c0_321 = arith.constant 0 : index
    %403 = vector.load %arg4[%c8_319, %c0_320, %c0_321] : memref<9x32x8xbf16, #tpu.memory_space<vmem>>, vector<1x32x8xbf16>
    %404 = vector.shape_cast %403 : vector<1x32x8xbf16> to vector<32x8xbf16>
    %cst_322 = arith.constant dense<0.000000e+00> : vector<64x8xf32>
    %405 = tpu.matmul %307, %404, %cst_322 {dimension_numbers = #tpu.dot_dimension_numbers<[1], [0], [0], [1], [0, 0, 1, 1], [], []>} : vector<64x32xbf16>, vector<32x8xbf16>, vector<64x8xf32> -> vector<64x8xf32>
    %406 = arith.addf %402, %405 : vector<64x8xf32>
    %c0_323 = arith.constant 0 : index
    %c0_324 = arith.constant 0 : index
    %407 = vector.load %arg5[%c0_323, %c0_324] : memref<1x8xf32, #tpu.memory_space<vmem>>, vector<1x8xf32>
    %408 = vector.broadcast %407 : vector<1x8xf32> to vector<64x8xf32>
    %409 = arith.addf %406, %408 : vector<64x8xf32>
    %cst_325 = arith.constant 0.000000e+00 : f32
    %410 = vector.broadcast %cst_325 : f32 to vector<64x8xf32>
    %411 = arith.maximumf %409, %410 : vector<64x8xf32>
    %412 = vector.shape_cast %411 : vector<64x8xf32> to vector<8x8x8xf32>
    %c2_326 = arith.constant 2 : index
    %c0_327 = arith.constant 0 : index
    %c1_328 = arith.constant 1 : index
    %c16_329 = arith.constant 16 : index
    %413 = vector.load %arg10[%c2_326, %c0_327, %c1_328, %c16_329] : memref<4x9x9x32xf32, #tpu.memory_space<vmem>>, vector<1x8x8x8xf32>
    %414 = vector.shape_cast %413 : vector<1x8x8x8xf32> to vector<8x8x8xf32>
    %415 = vector.shape_cast %412 : vector<8x8x8xf32> to vector<1x8x8x8xf32>
    tpu.vector_store %arg10[%c2_326, %c0_327, %c1_328, %c16_329], %415 {strides = array<i32>} : memref<4x9x9x32xf32, #tpu.memory_space<vmem>>, vector<1x8x8x8xf32>,
    %cst_330 = arith.constant 0.000000e+00 : f32
    %416 = vector.broadcast %cst_330 : f32 to vector<64x8xf32>
    %c0_331 = arith.constant 0 : index
    %c0_332 = arith.constant 0 : index
    %c0_333 = arith.constant 0 : index
    %417 = vector.load %arg4[%c0_331, %c0_332, %c0_333] : memref<9x32x8xbf16, #tpu.memory_space<vmem>>, vector<1x32x8xbf16>
    %418 = vector.shape_cast %417 : vector<1x32x8xbf16> to vector<32x8xbf16>
    %cst_334 = arith.constant dense<0.000000e+00> : vector<64x8xf32>
    %419 = tpu.matmul %309, %418, %cst_334 {dimension_numbers = #tpu.dot_dimension_numbers<[1], [0], [0], [1], [0, 0, 1, 1], [], []>} : vector<64x32xbf16>, vector<32x8xbf16>, vector<64x8xf32> -> vector<64x8xf32>
    %420 = arith.addf %416, %419 : vector<64x8xf32>
    %c1_335 = arith.constant 1 : index
    %c0_336 = arith.constant 0 : index
    %c0_337 = arith.constant 0 : index
    %421 = vector.load %arg4[%c1_335, %c0_336, %c0_337] : memref<9x32x8xbf16, #tpu.memory_space<vmem>>, vector<1x32x8xbf16>
    %422 = vector.shape_cast %421 : vector<1x32x8xbf16> to vector<32x8xbf16>
    %cst_338 = arith.constant dense<0.000000e+00> : vector<64x8xf32>
    %423 = tpu.matmul %317, %422, %cst_338 {dimension_numbers = #tpu.dot_dimension_numbers<[1], [0], [0], [1], [0, 0, 1, 1], [], []>} : vector<64x32xbf16>, vector<32x8xbf16>, vector<64x8xf32> -> vector<64x8xf32>
    %424 = arith.addf %420, %423 : vector<64x8xf32>
    %c2_339 = arith.constant 2 : index
    %c0_340 = arith.constant 0 : index
    %c0_341 = arith.constant 0 : index
    %425 = vector.load %arg4[%c2_339, %c0_340, %c0_341] : memref<9x32x8xbf16, #tpu.memory_space<vmem>>, vector<1x32x8xbf16>
    %426 = vector.shape_cast %425 : vector<1x32x8xbf16> to vector<32x8xbf16>
    %cst_342 = arith.constant dense<0.000000e+00> : vector<64x8xf32>
    %427 = tpu.matmul %311, %426, %cst_342 {dimension_numbers = #tpu.dot_dimension_numbers<[1], [0], [0], [1], [0, 0, 1, 1], [], []>} : vector<64x32xbf16>, vector<32x8xbf16>, vector<64x8xf32> -> vector<64x8xf32>
    %428 = arith.addf %424, %427 : vector<64x8xf32>
    %c3_343 = arith.constant 3 : index
    %c0_344 = arith.constant 0 : index
    %c0_345 = arith.constant 0 : index
    %429 = vector.load %arg4[%c3_343, %c0_344, %c0_345] : memref<9x32x8xbf16, #tpu.memory_space<vmem>>, vector<1x32x8xbf16>
    %430 = vector.shape_cast %429 : vector<1x32x8xbf16> to vector<32x8xbf16>
    %cst_346 = arith.constant dense<0.000000e+00> : vector<64x8xf32>
    %431 = tpu.matmul %297, %430, %cst_346 {dimension_numbers = #tpu.dot_dimension_numbers<[1], [0], [0], [1], [0, 0, 1, 1], [], []>} : vector<64x32xbf16>, vector<32x8xbf16>, vector<64x8xf32> -> vector<64x8xf32>
    %432 = arith.addf %428, %431 : vector<64x8xf32>
    %c4_347 = arith.constant 4 : index
    %c0_348 = arith.constant 0 : index
    %c0_349 = arith.constant 0 : index
    %433 = vector.load %arg4[%c4_347, %c0_348, %c0_349] : memref<9x32x8xbf16, #tpu.memory_space<vmem>>, vector<1x32x8xbf16>
    %434 = vector.shape_cast %433 : vector<1x32x8xbf16> to vector<32x8xbf16>
    %cst_350 = arith.constant dense<0.000000e+00> : vector<64x8xf32>
    %435 = tpu.matmul %305, %434, %cst_350 {dimension_numbers = #tpu.dot_dimension_numbers<[1], [0], [0], [1], [0, 0, 1, 1], [], []>} : vector<64x32xbf16>, vector<32x8xbf16>, vector<64x8xf32> -> vector<64x8xf32>
    %436 = arith.addf %432, %435 : vector<64x8xf32>
    %c5_351 = arith.constant 5 : index
    %c0_352 = arith.constant 0 : index
    %c0_353 = arith.constant 0 : index
    %437 = vector.load %arg4[%c5_351, %c0_352, %c0_353] : memref<9x32x8xbf16, #tpu.memory_space<vmem>>, vector<1x32x8xbf16>
    %438 = vector.shape_cast %437 : vector<1x32x8xbf16> to vector<32x8xbf16>
    %cst_354 = arith.constant dense<0.000000e+00> : vector<64x8xf32>
    %439 = tpu.matmul %299, %438, %cst_354 {dimension_numbers = #tpu.dot_dimension_numbers<[1], [0], [0], [1], [0, 0, 1, 1], [], []>} : vector<64x32xbf16>, vector<32x8xbf16>, vector<64x8xf32> -> vector<64x8xf32>
    %440 = arith.addf %436, %439 : vector<64x8xf32>
    %c6_355 = arith.constant 6 : index
    %c0_356 = arith.constant 0 : index
    %c0_357 = arith.constant 0 : index
    %441 = vector.load %arg4[%c6_355, %c0_356, %c0_357] : memref<9x32x8xbf16, #tpu.memory_space<vmem>>, vector<1x32x8xbf16>
    %442 = vector.shape_cast %441 : vector<1x32x8xbf16> to vector<32x8xbf16>
    %cst_358 = arith.constant dense<0.000000e+00> : vector<64x8xf32>
    %443 = tpu.matmul %313, %442, %cst_358 {dimension_numbers = #tpu.dot_dimension_numbers<[1], [0], [0], [1], [0, 0, 1, 1], [], []>} : vector<64x32xbf16>, vector<32x8xbf16>, vector<64x8xf32> -> vector<64x8xf32>
    %444 = arith.addf %440, %443 : vector<64x8xf32>
    %c7_359 = arith.constant 7 : index
    %c0_360 = arith.constant 0 : index
    %c0_361 = arith.constant 0 : index
    %445 = vector.load %arg4[%c7_359, %c0_360, %c0_361] : memref<9x32x8xbf16, #tpu.memory_space<vmem>>, vector<1x32x8xbf16>
    %446 = vector.shape_cast %445 : vector<1x32x8xbf16> to vector<32x8xbf16>
    %cst_362 = arith.constant dense<0.000000e+00> : vector<64x8xf32>
    %447 = tpu.matmul %321, %446, %cst_362 {dimension_numbers = #tpu.dot_dimension_numbers<[1], [0], [0], [1], [0, 0, 1, 1], [], []>} : vector<64x32xbf16>, vector<32x8xbf16>, vector<64x8xf32> -> vector<64x8xf32>
    %448 = arith.addf %444, %447 : vector<64x8xf32>
    %c8_363 = arith.constant 8 : index
    %c0_364 = arith.constant 0 : index
    %c0_365 = arith.constant 0 : index
    %449 = vector.load %arg4[%c8_363, %c0_364, %c0_365] : memref<9x32x8xbf16, #tpu.memory_space<vmem>>, vector<1x32x8xbf16>
    %450 = vector.shape_cast %449 : vector<1x32x8xbf16> to vector<32x8xbf16>
    %cst_366 = arith.constant dense<0.000000e+00> : vector<64x8xf32>
    %451 = tpu.matmul %315, %450, %cst_366 {dimension_numbers = #tpu.dot_dimension_numbers<[1], [0], [0], [1], [0, 0, 1, 1], [], []>} : vector<64x32xbf16>, vector<32x8xbf16>, vector<64x8xf32> -> vector<64x8xf32>
    %452 = arith.addf %448, %451 : vector<64x8xf32>
    %c0_367 = arith.constant 0 : index
    %c0_368 = arith.constant 0 : index
    %453 = vector.load %arg5[%c0_367, %c0_368] : memref<1x8xf32, #tpu.memory_space<vmem>>, vector<1x8xf32>
    %454 = vector.broadcast %453 : vector<1x8xf32> to vector<64x8xf32>
    %455 = arith.addf %452, %454 : vector<64x8xf32>
    %cst_369 = arith.constant 0.000000e+00 : f32
    %456 = vector.broadcast %cst_369 : f32 to vector<64x8xf32>
    %457 = arith.maximumf %455, %456 : vector<64x8xf32>
    %458 = vector.shape_cast %457 : vector<64x8xf32> to vector<8x8x8xf32>
    %c1_370 = arith.constant 1 : index
    %c1_371 = arith.constant 1 : index
    %c0_372 = arith.constant 0 : index
    %c16_373 = arith.constant 16 : index
    %459 = vector.load %arg10[%c1_370, %c1_371, %c0_372, %c16_373] : memref<4x9x9x32xf32, #tpu.memory_space<vmem>>, vector<1x8x8x8xf32>
    %460 = vector.shape_cast %459 : vector<1x8x8x8xf32> to vector<8x8x8xf32>
    %461 = vector.shape_cast %458 : vector<8x8x8xf32> to vector<1x8x8x8xf32>
    tpu.vector_store %arg10[%c1_370, %c1_371, %c0_372, %c16_373], %461 {strides = array<i32>} : memref<4x9x9x32xf32, #tpu.memory_space<vmem>>, vector<1x8x8x8xf32>,
    %cst_374 = arith.constant 0.000000e+00 : f32
    %462 = vector.broadcast %cst_374 : f32 to vector<64x8xf32>
    %c0_375 = arith.constant 0 : index
    %c0_376 = arith.constant 0 : index
    %c0_377 = arith.constant 0 : index
    %463 = vector.load %arg4[%c0_375, %c0_376, %c0_377] : memref<9x32x8xbf16, #tpu.memory_space<vmem>>, vector<1x32x8xbf16>
    %464 = vector.shape_cast %463 : vector<1x32x8xbf16> to vector<32x8xbf16>
    %cst_378 = arith.constant dense<0.000000e+00> : vector<64x8xf32>
    %465 = tpu.matmul %317, %464, %cst_378 {dimension_numbers = #tpu.dot_dimension_numbers<[1], [0], [0], [1], [0, 0, 1, 1], [], []>} : vector<64x32xbf16>, vector<32x8xbf16>, vector<64x8xf32> -> vector<64x8xf32>
    %466 = arith.addf %462, %465 : vector<64x8xf32>
    %c1_379 = arith.constant 1 : index
    %c0_380 = arith.constant 0 : index
    %c0_381 = arith.constant 0 : index
    %467 = vector.load %arg4[%c1_379, %c0_380, %c0_381] : memref<9x32x8xbf16, #tpu.memory_space<vmem>>, vector<1x32x8xbf16>
    %468 = vector.shape_cast %467 : vector<1x32x8xbf16> to vector<32x8xbf16>
    %cst_382 = arith.constant dense<0.000000e+00> : vector<64x8xf32>
    %469 = tpu.matmul %311, %468, %cst_382 {dimension_numbers = #tpu.dot_dimension_numbers<[1], [0], [0], [1], [0, 0, 1, 1], [], []>} : vector<64x32xbf16>, vector<32x8xbf16>, vector<64x8xf32> -> vector<64x8xf32>
    %470 = arith.addf %466, %469 : vector<64x8xf32>
    %c2_383 = arith.constant 2 : index
    %c0_384 = arith.constant 0 : index
    %c0_385 = arith.constant 0 : index
    %471 = vector.load %arg4[%c2_383, %c0_384, %c0_385] : memref<9x32x8xbf16, #tpu.memory_space<vmem>>, vector<1x32x8xbf16>
    %472 = vector.shape_cast %471 : vector<1x32x8xbf16> to vector<32x8xbf16>
    %cst_386 = arith.constant dense<0.000000e+00> : vector<64x8xf32>
    %473 = tpu.matmul %319, %472, %cst_386 {dimension_numbers = #tpu.dot_dimension_numbers<[1], [0], [0], [1], [0, 0, 1, 1], [], []>} : vector<64x32xbf16>, vector<32x8xbf16>, vector<64x8xf32> -> vector<64x8xf32>
    %474 = arith.addf %470, %473 : vector<64x8xf32>
    %c3_387 = arith.constant 3 : index
    %c0_388 = arith.constant 0 : index
    %c0_389 = arith.constant 0 : index
    %475 = vector.load %arg4[%c3_387, %c0_388, %c0_389] : memref<9x32x8xbf16, #tpu.memory_space<vmem>>, vector<1x32x8xbf16>
    %476 = vector.shape_cast %475 : vector<1x32x8xbf16> to vector<32x8xbf16>
    %cst_390 = arith.constant dense<0.000000e+00> : vector<64x8xf32>
    %477 = tpu.matmul %305, %476, %cst_390 {dimension_numbers = #tpu.dot_dimension_numbers<[1], [0], [0], [1], [0, 0, 1, 1], [], []>} : vector<64x32xbf16>, vector<32x8xbf16>, vector<64x8xf32> -> vector<64x8xf32>
    %478 = arith.addf %474, %477 : vector<64x8xf32>
    %c4_391 = arith.constant 4 : index
    %c0_392 = arith.constant 0 : index
    %c0_393 = arith.constant 0 : index
    %479 = vector.load %arg4[%c4_391, %c0_392, %c0_393] : memref<9x32x8xbf16, #tpu.memory_space<vmem>>, vector<1x32x8xbf16>
    %480 = vector.shape_cast %479 : vector<1x32x8xbf16> to vector<32x8xbf16>
    %cst_394 = arith.constant dense<0.000000e+00> : vector<64x8xf32>
    %481 = tpu.matmul %299, %480, %cst_394 {dimension_numbers = #tpu.dot_dimension_numbers<[1], [0], [0], [1], [0, 0, 1, 1], [], []>} : vector<64x32xbf16>, vector<32x8xbf16>, vector<64x8xf32> -> vector<64x8xf32>
    %482 = arith.addf %478, %481 : vector<64x8xf32>
    %c5_395 = arith.constant 5 : index
    %c0_396 = arith.constant 0 : index
    %c0_397 = arith.constant 0 : index
    %483 = vector.load %arg4[%c5_395, %c0_396, %c0_397] : memref<9x32x8xbf16, #tpu.memory_space<vmem>>, vector<1x32x8xbf16>
    %484 = vector.shape_cast %483 : vector<1x32x8xbf16> to vector<32x8xbf16>
    %cst_398 = arith.constant dense<0.000000e+00> : vector<64x8xf32>
    %485 = tpu.matmul %307, %484, %cst_398 {dimension_numbers = #tpu.dot_dimension_numbers<[1], [0], [0], [1], [0, 0, 1, 1], [], []>} : vector<64x32xbf16>, vector<32x8xbf16>, vector<64x8xf32> -> vector<64x8xf32>
    %486 = arith.addf %482, %485 : vector<64x8xf32>
    %c6_399 = arith.constant 6 : index
    %c0_400 = arith.constant 0 : index
    %c0_401 = arith.constant 0 : index
    %487 = vector.load %arg4[%c6_399, %c0_400, %c0_401] : memref<9x32x8xbf16, #tpu.memory_space<vmem>>, vector<1x32x8xbf16>
    %488 = vector.shape_cast %487 : vector<1x32x8xbf16> to vector<32x8xbf16>
    %cst_402 = arith.constant dense<0.000000e+00> : vector<64x8xf32>
    %489 = tpu.matmul %321, %488, %cst_402 {dimension_numbers = #tpu.dot_dimension_numbers<[1], [0], [0], [1], [0, 0, 1, 1], [], []>} : vector<64x32xbf16>, vector<32x8xbf16>, vector<64x8xf32> -> vector<64x8xf32>
    %490 = arith.addf %486, %489 : vector<64x8xf32>
    %c7_403 = arith.constant 7 : index
    %c0_404 = arith.constant 0 : index
    %c0_405 = arith.constant 0 : index
    %491 = vector.load %arg4[%c7_403, %c0_404, %c0_405] : memref<9x32x8xbf16, #tpu.memory_space<vmem>>, vector<1x32x8xbf16>
    %492 = vector.shape_cast %491 : vector<1x32x8xbf16> to vector<32x8xbf16>
    %cst_406 = arith.constant dense<0.000000e+00> : vector<64x8xf32>
    %493 = tpu.matmul %315, %492, %cst_406 {dimension_numbers = #tpu.dot_dimension_numbers<[1], [0], [0], [1], [0, 0, 1, 1], [], []>} : vector<64x32xbf16>, vector<32x8xbf16>, vector<64x8xf32> -> vector<64x8xf32>
    %494 = arith.addf %490, %493 : vector<64x8xf32>
    %c8_407 = arith.constant 8 : index
    %c0_408 = arith.constant 0 : index
    %c0_409 = arith.constant 0 : index
    %495 = vector.load %arg4[%c8_407, %c0_408, %c0_409] : memref<9x32x8xbf16, #tpu.memory_space<vmem>>, vector<1x32x8xbf16>
    %496 = vector.shape_cast %495 : vector<1x32x8xbf16> to vector<32x8xbf16>
    %cst_410 = arith.constant dense<0.000000e+00> : vector<64x8xf32>
    %497 = tpu.matmul %323, %496, %cst_410 {dimension_numbers = #tpu.dot_dimension_numbers<[1], [0], [0], [1], [0, 0, 1, 1], [], []>} : vector<64x32xbf16>, vector<32x8xbf16>, vector<64x8xf32> -> vector<64x8xf32>
    %498 = arith.addf %494, %497 : vector<64x8xf32>
    %c0_411 = arith.constant 0 : index
    %c0_412 = arith.constant 0 : index
    %499 = vector.load %arg5[%c0_411, %c0_412] : memref<1x8xf32, #tpu.memory_space<vmem>>, vector<1x8xf32>
    %500 = vector.broadcast %499 : vector<1x8xf32> to vector<64x8xf32>
    %501 = arith.addf %498, %500 : vector<64x8xf32>
    %cst_413 = arith.constant 0.000000e+00 : f32
    %502 = vector.broadcast %cst_413 : f32 to vector<64x8xf32>
    %503 = arith.maximumf %501, %502 : vector<64x8xf32>
    %504 = vector.shape_cast %503 : vector<64x8xf32> to vector<8x8x8xf32>
    %c0_414 = arith.constant 0 : index
    %c1_415 = arith.constant 1 : index
    %c1_416 = arith.constant 1 : index
    %c16_417 = arith.constant 16 : index
    %505 = vector.load %arg10[%c0_414, %c1_415, %c1_416, %c16_417] : memref<4x9x9x32xf32, #tpu.memory_space<vmem>>, vector<1x8x8x8xf32>
    %506 = vector.shape_cast %505 : vector<1x8x8x8xf32> to vector<8x8x8xf32>
    %507 = vector.shape_cast %504 : vector<8x8x8xf32> to vector<1x8x8x8xf32>
    tpu.vector_store %arg10[%c0_414, %c1_415, %c1_416, %c16_417], %507 {strides = array<i32>} : memref<4x9x9x32xf32, #tpu.memory_space<vmem>>, vector<1x8x8x8xf32>,
    %c0_418 = arith.constant 0 : index
    %c0_419 = arith.constant 0 : index
    %c0_420 = arith.constant 0 : index
    %c0_421 = arith.constant 0 : index
    %508 = vector.load %arg10[%c0_418, %c0_419, %c0_420, %c0_421] : memref<4x9x9x32xf32, #tpu.memory_space<vmem>>, vector<1x9x9x32xf32>
    %509 = vector.shape_cast %508 : vector<1x9x9x32xf32> to vector<9x9x32xf32>
    %c1_422 = arith.constant 1 : index
    %c0_423 = arith.constant 0 : index
    %c0_424 = arith.constant 0 : index
    %c0_425 = arith.constant 0 : index
    %510 = vector.load %arg10[%c1_422, %c0_423, %c0_424, %c0_425] : memref<4x9x9x32xf32, #tpu.memory_space<vmem>>, vector<1x9x9x32xf32>
    %511 = vector.shape_cast %510 : vector<1x9x9x32xf32> to vector<9x9x32xf32>
    %c2_426 = arith.constant 2 : index
    %c0_427 = arith.constant 0 : index
    %c0_428 = arith.constant 0 : index
    %c0_429 = arith.constant 0 : index
    %512 = vector.load %arg10[%c2_426, %c0_427, %c0_428, %c0_429] : memref<4x9x9x32xf32, #tpu.memory_space<vmem>>, vector<1x9x9x32xf32>
    %513 = vector.shape_cast %512 : vector<1x9x9x32xf32> to vector<9x9x32xf32>
    %c3_430 = arith.constant 3 : index
    %c0_431 = arith.constant 0 : index
    %c0_432 = arith.constant 0 : index
    %c0_433 = arith.constant 0 : index
    %514 = vector.load %arg10[%c3_430, %c0_431, %c0_432, %c0_433] : memref<4x9x9x32xf32, #tpu.memory_space<vmem>>, vector<1x9x9x32xf32>
    %515 = vector.shape_cast %514 : vector<1x9x9x32xf32> to vector<9x9x32xf32>
    %516 = vector.extract_strided_slice %509 {offsets = [0, 0, 0], sizes = [8, 8, 32], strides = [1, 1, 1]} : vector<9x9x32xf32> to vector<8x8x32xf32>
    %517 = vector.extract_strided_slice %511 {offsets = [0, 0, 0], sizes = [8, 8, 32], strides = [1, 1, 1]} : vector<9x9x32xf32> to vector<8x8x32xf32>
    %518 = arith.maximumf %516, %517 : vector<8x8x32xf32>
    %519 = arith.addf %516, %517 : vector<8x8x32xf32>
    %520 = vector.extract_strided_slice %509 {offsets = [0, 1, 0], sizes = [8, 8, 32], strides = [1, 1, 1]} : vector<9x9x32xf32> to vector<8x8x32xf32>
    %521 = arith.maximumf %518, %520 : vector<8x8x32xf32>
    %522 = arith.addf %519, %520 : vector<8x8x32xf32>
    %523 = vector.extract_strided_slice %513 {offsets = [0, 0, 0], sizes = [8, 8, 32], strides = [1, 1, 1]} : vector<9x9x32xf32> to vector<8x8x32xf32>
    %524 = arith.maximumf %521, %523 : vector<8x8x32xf32>
    %525 = arith.addf %522, %523 : vector<8x8x32xf32>
    %526 = vector.extract_strided_slice %515 {offsets = [0, 0, 0], sizes = [8, 8, 32], strides = [1, 1, 1]} : vector<9x9x32xf32> to vector<8x8x32xf32>
    %527 = arith.maximumf %524, %526 : vector<8x8x32xf32>
    %528 = arith.addf %525, %526 : vector<8x8x32xf32>
    %529 = vector.extract_strided_slice %513 {offsets = [0, 1, 0], sizes = [8, 8, 32], strides = [1, 1, 1]} : vector<9x9x32xf32> to vector<8x8x32xf32>
    %530 = arith.maximumf %527, %529 : vector<8x8x32xf32>
    %531 = arith.addf %528, %529 : vector<8x8x32xf32>
    %532 = vector.extract_strided_slice %509 {offsets = [1, 0, 0], sizes = [8, 8, 32], strides = [1, 1, 1]} : vector<9x9x32xf32> to vector<8x8x32xf32>
    %533 = arith.maximumf %530, %532 : vector<8x8x32xf32>
    %534 = arith.addf %531, %532 : vector<8x8x32xf32>
    %535 = vector.extract_strided_slice %511 {offsets = [1, 0, 0], sizes = [8, 8, 32], strides = [1, 1, 1]} : vector<9x9x32xf32> to vector<8x8x32xf32>
    %536 = arith.maximumf %533, %535 : vector<8x8x32xf32>
    %537 = arith.addf %534, %535 : vector<8x8x32xf32>
    %538 = vector.extract_strided_slice %509 {offsets = [1, 1, 0], sizes = [8, 8, 32], strides = [1, 1, 1]} : vector<9x9x32xf32> to vector<8x8x32xf32>
    %539 = arith.maximumf %536, %538 : vector<8x8x32xf32>
    %540 = arith.addf %537, %538 : vector<8x8x32xf32>
    %541 = tpu.iota {dimensions = array<i32: 2>} : vector<8x8x32xi32>
    %c24_i32 = arith.constant 24 : i32
    %542 = vector.broadcast %c24_i32 : i32 to vector<8x8x32xi32>
    %543 = arith.cmpi slt, %541, %542 : vector<8x8x32xi32>
    %cst_434 = arith.constant 0.111111112 : f32
    %544 = vector.broadcast %cst_434 : f32 to vector<8x8x32xf32>
    %545 = arith.mulf %540, %544 : vector<8x8x32xf32>
    %546 = arith.select %543, %539, %545 : vector<8x8x32xi1>, vector<8x8x32xf32>
    %547 = vector.extract_strided_slice %11 {offsets = [0, 0, 0], sizes = [8, 8, 4], strides = [1, 1, 1]} : vector<9x9x4xf32> to vector<8x8x4xf32>
    %548 = vector.shape_cast %547 : vector<8x8x4xf32> to vector<64x4xf32>
    %c0_435 = arith.constant 0 : index
    %c0_436 = arith.constant 0 : index
    %549 = vector.load %arg6[%c0_435, %c0_436] : memref<4x32xf32, #tpu.memory_space<vmem>>, vector<4x32xf32>
    %cst_437 = arith.constant dense<0.000000e+00> : vector<64x32xf32>
    %550 = tpu.matmul %548, %549, %cst_437 {dimension_numbers = #tpu.dot_dimension_numbers<[1], [0], [0], [1], [0, 0, 1, 1], [], []>} : vector<64x4xf32>, vector<4x32xf32>, vector<64x32xf32> -> vector<64x32xf32>
    %c0_438 = arith.constant 0 : index
    %c0_439 = arith.constant 0 : index
    %551 = vector.load %arg7[%c0_438, %c0_439] : memref<1x32xf32, #tpu.memory_space<vmem>>, vector<1x32xf32>
    %552 = vector.broadcast %551 : vector<1x32xf32> to vector<64x32xf32>
    %553 = arith.addf %550, %552 : vector<64x32xf32>
    %554 = vector.shape_cast %553 : vector<64x32xf32> to vector<8x8x32xf32>
    %555 = arith.addf %546, %554 : vector<8x8x32xf32>
    %c0_440 = arith.constant 0 : index
    %c0_441 = arith.constant 0 : index
    %c0_442 = arith.constant 0 : index
    %c0_443 = arith.constant 0 : index
    %556 = vector.load %arg8[%c0_440, %c0_441, %c0_442, %c0_443] : memref<1x8x8x32xf32, #tpu.memory_space<vmem>>, vector<1x8x8x32xf32>
    %557 = vector.shape_cast %556 : vector<1x8x8x32xf32> to vector<8x8x32xf32>
    %558 = vector.shape_cast %555 : vector<8x8x32xf32> to vector<1x8x8x32xf32>
    tpu.vector_store %arg8[%c0_440, %c0_441, %c0_442, %c0_443], %558 {strides = array<i32>} : memref<1x8x8x32xf32, #tpu.memory_space<vmem>>, vector<1x8x8x32xf32>,
    return
  }
  func.func @transform_0(%arg0: i32) -> (i32, i32, i32, i32, i32) {
    %c0_i32 = arith.constant 0 : i32
    %c0_i32_0 = arith.constant 0 : i32
    %c0_i32_1 = arith.constant 0 : i32
    %c0_i32_2 = arith.constant 0 : i32
    %c0_i32_3 = arith.constant 0 : i32
    return %arg0, %c0_i32, %c0_i32_0, %c0_i32_1, %c0_i32_2 : i32, i32, i32, i32, i32
  }
  func.func @transform_1(%arg0: i32) -> (i32, i32, i32) {
    %c0_i32 = arith.constant 0 : i32
    %c0_i32_0 = arith.constant 0 : i32
    %c0_i32_1 = arith.constant 0 : i32
    %c0_i32_2 = arith.constant 0 : i32
    return %c0_i32, %c0_i32_0, %c0_i32_1 : i32, i32, i32
  }
  func.func @transform_2(%arg0: i32) -> (i32, i32) {
    %c0_i32 = arith.constant 0 : i32
    %c0_i32_0 = arith.constant 0 : i32
    %c0_i32_1 = arith.constant 0 : i32
    return %c0_i32, %c0_i32_0 : i32, i32
  }
  func.func @transform_3(%arg0: i32) -> (i32, i32, i32) {
    %c0_i32 = arith.constant 0 : i32
    %c0_i32_0 = arith.constant 0 : i32
    %c0_i32_1 = arith.constant 0 : i32
    %c0_i32_2 = arith.constant 0 : i32
    return %c0_i32, %c0_i32_0, %c0_i32_1 : i32, i32, i32
  }
  func.func @transform_4(%arg0: i32) -> (i32, i32) {
    %c0_i32 = arith.constant 0 : i32
    %c0_i32_0 = arith.constant 0 : i32
    %c0_i32_1 = arith.constant 0 : i32
    return %c0_i32, %c0_i32_0 : i32, i32
  }
  func.func @transform_5(%arg0: i32) -> (i32, i32) {
    %c0_i32 = arith.constant 0 : i32
    %c0_i32_0 = arith.constant 0 : i32
    %c0_i32_1 = arith.constant 0 : i32
    return %c0_i32, %c0_i32_0 : i32, i32
  }
  func.func @transform_6(%arg0: i32) -> (i32, i32) {
    %c0_i32 = arith.constant 0 : i32
    %c0_i32_0 = arith.constant 0 : i32
    %c0_i32_1 = arith.constant 0 : i32
    return %c0_i32, %c0_i32_0 : i32, i32
  }
  func.func @transform_7(%arg0: i32) -> (i32, i32, i32, i32) {
    %c0_i32 = arith.constant 0 : i32
    %c0_i32_0 = arith.constant 0 : i32
    %c0_i32_1 = arith.constant 0 : i32
    %c0_i32_2 = arith.constant 0 : i32
    return %arg0, %c0_i32, %c0_i32_0, %c0_i32_1 : i32, i32, i32, i32
  }
}

</mosaic_0001>

<llo_original>
// kernel: inception_a_1_1_res_forward.1
$region0: #{inception_a_1_1_res_forward.1}
  #allocation0 [shape = 'u32[]', space=smem, size = 0x4, offset = 0x4, fixed_abs, tag = 'smem constant byte address 0x4 - core index']
  #allocation1 [shape = 'u32[144,128]{1,0:T(1,128)}', space=vmem, size = 0x12000, scoped, tag = 'internal scratch']
  #allocation2 [shape = 'bf16[4,9,9,32]{3,2,1,0:T(8,128)(2,1)}', space=vmem, size = 0x24000, scoped, tag = 'scratch operand']
  #allocation3 [shape = 'f32[4,9,9,32]{3,2,1,0:T(8,128)}', space=vmem, size = 0x48000, scoped, tag = 'scratch operand']
  %s0 = inlined_call_operand.vmem [shape: f32[2,4,9,9,4], index: 0, kind: input, shape index: {}]
  %s1 = inlined_call_operand.vmem [shape: bf16[9,4,56], index: 1, kind: input, shape index: {}]
  %s2 = inlined_call_operand.vmem [shape: f32[1,56], index: 2, kind: input, shape index: {}]
  %s3 = inlined_call_operand.vmem [shape: bf16[9,32,8], index: 3, kind: input, shape index: {}]
  %s4 = inlined_call_operand.vmem [shape: f32[1,8], index: 4, kind: input, shape index: {}]
  %s5 = inlined_call_operand.vmem [shape: f32[4,32], index: 5, kind: input, shape index: {}]
  %s6 = inlined_call_operand.vmem [shape: f32[1,32], index: 6, kind: input, shape index: {}]
  %s7 = inlined_call_operand.hbm [shape: f32[2,8,8,32], index: 7, kind: output, shape index: {}]
  %s8 = sld [smem:[#allocation0]]
  $region61: #{inception_a_1_1_res_forward.1} parent=0
    _
  %s10 = ssub.s32 1, %s8
  %s11 = scalar_select 0, %s10, %s8
  $region1: #{inception_a_1_1_res_forward.1} parent=0
    #allocation4 [shape = 'u8[65536]{0}', space=vmem, size = 0x10000, scoped, tag = 'output window, operand 0']
    #allocation5 [shape = 's32[2]{0}', space=sflag, size = 0x8, scoped, tag = 'scoped memory for inception_a_1_1_res_forward.1']
    %12 = vsyncpa [#allocation5], 0
    %s13 = scalar_lea.sflag [#allocation5], 1
    %14 = vsyncpa %s13, 0
    loop: start=0, step=1, limit=4
    $region2: #{inception_a_1_1_res_forward.1} parent=1 // loop_pre_header
      _
    $region3: #{inception_a_1_1_res_forward.1} parent=1 // loop_header
      %s16 = sphi 0, %s20
      %p17 = scmp.ge.s32.totalorder %s16, 4
      %s26 = sphi 0, %s28
      %s29 = sphi 0, %s26
      %s30 = sphi 0, %s29
      %s46 = sphi 0, %s30
      %s50 = sphi 0, %s50
      %s52 = sphi 0, %s50
      %s53 = sphi 0, %s52
      %s67 = sphi 0, %s53
      %s71 = sphi 0, %s71
      %s73 = sphi 0, %s71
      %s74 = sphi 0, %s73
      %s88 = sphi 0, %s74
      %s92 = sphi 0, %s92
      %s94 = sphi 0, %s92
      %s95 = sphi 0, %s94
      %s109 = sphi 0, %s95
      %s113 = sphi 0, %s113
      %s115 = sphi 0, %s113
      %s116 = sphi 0, %s115
      %s130 = sphi 0, %s116
      %s134 = sphi 0, %s134
      %s136 = sphi 0, %s134
      %s137 = sphi 0, %s136
      %s151 = sphi 0, %s137
      %s155 = sphi 0, %s155
      %s157 = sphi 0, %s155
      %s158 = sphi 0, %s157
      %s172 = sphi 0, %s158
      %s178 = sphi 0, %s180
      %s181 = sphi 0, %s178
      %s182 = sphi 0, %s181
      %s198 = sphi 0, %s182
    $region4: #{inception_a_1_1_res_forward.1} parent=1 // loop_header_branch
      %19 = sbr.rel (%p17) target = $region8
    $region5: #{inception_a_1_1_res_forward.1} parent=1 // loop_body
      %s21 = ssub.s32 %s16, 1
      %s22 = ssub.s32 %s16, 2
      %s23 = sadd.s32 %s16, 1
      %s24 = ssub.s32 %s16, %s23
      %p25 = scmp.eq.s32.totalorder %s24, 0
      %s27 = sadd.s32 %s26, 1
      %s28 = scalar_select %p25, %s26, %s27
      %p31 = pneg %p25
      %p32 = scmp.eq.s32.totalorder %s16, 1
      %p33 = por %p31, %p32
      %p34 = scmp.ne.s32.totalorder %s26, %s29
      %p35 = scmp.eq.s32.totalorder %s16, 0
      %p36 = por %p34, %p35
      %p37 = scmp.ne.s32.totalorder %s26, %s29
      %p38 = scmp.eq.s32.totalorder %s21, 1
      %p39 = por %p37, %p38
      %p40 = scmp.ne.s32.totalorder %s29, %s30
      %p41 = scmp.eq.s32.totalorder %s21, 0
      %p42 = por %p40, %p41
      %p43 = scmp.ne.s32.totalorder %s29, %s30
      %p44 = scmp.eq.s32.totalorder %s22, 1
      %p45 = por %p43, %p44
      %p47 = scmp.ne.s32.totalorder %s30, %s46
      %p48 = scmp.eq.s32.totalorder %s22, 0
      %p49 = por %p47, %p48
      %s51 = sadd.s32 %s50, 1
      %p54 = scmp.eq.s32.totalorder %s16, 1
      %p55 = scmp.ne.s32.totalorder %s50, %s52
      %p56 = scmp.eq.s32.totalorder %s16, 0
      %p57 = por %p55, %p56
      %p58 = scmp.ne.s32.totalorder %s50, %s52
      %p59 = scmp.eq.s32.totalorder %s21, 1
      %p60 = por %p58, %p59
      %p61 = scmp.ne.s32.totalorder %s52, %s53
      %p62 = scmp.eq.s32.totalorder %s21, 0
      %p63 = por %p61, %p62
      %p64 = scmp.ne.s32.totalorder %s52, %s53
      %p65 = scmp.eq.s32.totalorder %s22, 1
      %p66 = por %p64, %p65
      %p68 = scmp.ne.s32.totalorder %s53, %s67
      %p69 = scmp.eq.s32.totalorder %s22, 0
      %p70 = por %p68, %p69
      %s72 = sadd.s32 %s71, 1
      %p75 = scmp.eq.s32.totalorder %s16, 1
      %p76 = scmp.ne.s32.totalorder %s71, %s73
      %p77 = scmp.eq.s32.totalorder %s16, 0
      %p78 = por %p76, %p77
      %p79 = scmp.ne.s32.totalorder %s71, %s73
      %p80 = scmp.eq.s32.totalorder %s21, 1
      %p81 = por %p79, %p80
      %p82 = scmp.ne.s32.totalorder %s73, %s74
      %p83 = scmp.eq.s32.totalorder %s21, 0
      %p84 = por %p82, %p83
      %p85 = scmp.ne.s32.totalorder %s73, %s74
      %p86 = scmp.eq.s32.totalorder %s22, 1
      %p87 = por %p85, %p86
      %p89 = scmp.ne.s32.totalorder %s74, %s88
      %p90 = scmp.eq.s32.totalorder %s22, 0
      %p91 = por %p89, %p90
      %s93 = sadd.s32 %s92, 1
      %p96 = scmp.eq.s32.totalorder %s16, 1
      %p97 = scmp.ne.s32.totalorder %s92, %s94
      %p98 = scmp.eq.s32.totalorder %s16, 0
      %p99 = por %p97, %p98
      %p100 = scmp.ne.s32.totalorder %s92, %s94
      %p101 = scmp.eq.s32.totalorder %s21, 1
      %p102 = por %p100, %p101
      %p103 = scmp.ne.s32.totalorder %s94, %s95
      %p104 = scmp.eq.s32.totalorder %s21, 0
      %p105 = por %p103, %p104
      %p106 = scmp.ne.s32.totalorder %s94, %s95
      %p107 = scmp.eq.s32.totalorder %s22, 1
      %p108 = por %p106, %p107
      %p110 = scmp.ne.s32.totalorder %s95, %s109
      %p111 = scmp.eq.s32.totalorder %s22, 0
      %p112 = por %p110, %p111
      %s114 = sadd.s32 %s113, 1
      %p117 = scmp.eq.s32.totalorder %s16, 1
      %p118 = scmp.ne.s32.totalorder %s113, %s115
      %p119 = scmp.eq.s32.totalorder %s16, 0
      %p120 = por %p118, %p119
      %p121 = scmp.ne.s32.totalorder %s113, %s115
      %p122 = scmp.eq.s32.totalorder %s21, 1
      %p123 = por %p121, %p122
      %p124 = scmp.ne.s32.totalorder %s115, %s116
      %p125 = scmp.eq.s32.totalorder %s21, 0
      %p126 = por %p124, %p125
      %p127 = scmp.ne.s32.totalorder %s115, %s116
      %p128 = scmp.eq.s32.totalorder %s22, 1
      %p129 = por %p127, %p128
      %p131 = scmp.ne.s32.totalorder %s116, %s130
      %p132 = scmp.eq.s32.totalorder %s22, 0
      %p133 = por %p131, %p132
      %s135 = sadd.s32 %s134, 1
      %p138 = scmp.eq.s32.totalorder %s16, 1
      %p139 = scmp.ne.s32.totalorder %s134, %s136
      %p140 = scmp.eq.s32.totalorder %s16, 0
      %p141 = por %p139, %p140
      %p142 = scmp.ne.s32.totalorder %s134, %s136
      %p143 = scmp.eq.s32.totalorder %s21, 1
      %p144 = por %p142, %p143
      %p145 = scmp.ne.s32.totalorder %s136, %s137
      %p146 = scmp.eq.s32.totalorder %s21, 0
      %p147 = por %p145, %p146
      %p148 = scmp.ne.s32.totalorder %s136, %s137
      %p149 = scmp.eq.s32.totalorder %s22, 1
      %p150 = por %p148, %p149
      %p152 = scmp.ne.s32.totalorder %s137, %s151
      %p153 = scmp.eq.s32.totalorder %s22, 0
      %p154 = por %p152, %p153
      %s156 = sadd.s32 %s155, 1
      %p159 = scmp.eq.s32.totalorder %s16, 1
      %p160 = scmp.ne.s32.totalorder %s155, %s157
      %p161 = scmp.eq.s32.totalorder %s16, 0
      %p162 = por %p160, %p161
      %p163 = scmp.ne.s32.totalorder %s155, %s157
      %p164 = scmp.eq.s32.totalorder %s21, 1
      %p165 = por %p163, %p164
      %p166 = scmp.ne.s32.totalorder %s157, %s158
      %p167 = scmp.eq.s32.totalorder %s21, 0
      %p168 = por %p166, %p167
      %p169 = scmp.ne.s32.totalorder %s157, %s158
      %p170 = scmp.eq.s32.totalorder %s22, 1
      %p171 = por %p169, %p170
      %p173 = scmp.ne.s32.totalorder %s158, %s172
      %p174 = scmp.eq.s32.totalorder %s22, 0
      %p175 = por %p173, %p174
      %s176 = ssub.s32 %s16, %s23
      %p177 = scmp.eq.s32.totalorder %s176, 0
      %s179 = sadd.s32 %s178, 1
      %s180 = scalar_select %p177, %s178, %s179
      %p183 = pneg %p177
      %p184 = scmp.eq.s32.totalorder %s16, 1
      %p185 = por %p183, %p184
      %p186 = scmp.ne.s32.totalorder %s178, %s181
      %p187 = scmp.eq.s32.totalorder %s16, 0
      %p188 = por %p186, %p187
      %p189 = scmp.ne.s32.totalorder %s178, %s181
      %p190 = scmp.eq.s32.totalorder %s21, 1
      %p191 = por %p189, %p190
      %p192 = scmp.ne.s32.totalorder %s181, %s182
      %p193 = scmp.eq.s32.totalorder %s21, 0
      %p194 = por %p192, %p193
      %p195 = scmp.ne.s32.totalorder %s181, %s182
      %p196 = scmp.eq.s32.totalorder %s22, 1
      %p197 = por %p195, %p196
      %p199 = scmp.ne.s32.totalorder %s182, %s198
      %p200 = scmp.eq.s32.totalorder %s22, 0
      %p201 = por %p199, %p200
      %p202 = scmp.le.s32.totalorder 1, %s16
      %p203 = scmp.lt.s32.totalorder %s16, 3
      %p204 = pnand %p202, %p203
      %p205 = pneg %p204
      // Predicated region
      $region9: #{inception_a_1_1_res_forward.1} parent=5 // pred_check
        _
      $region10: #{inception_a_1_1_res_forward.1} parent=5 // pred_check_branch
        %207 = sbr.rel (%p204) target = $region12
      $region11: #{inception_a_1_1_res_forward.1} parent=5 // pred_region
        %s208 = ssub.s32 %s16, 1
        // Predicated region
        $region13: #{inception_a_1_1_res_forward.1} parent=11 // pred_check
          %p209 = pneg %p63
        $region14: #{inception_a_1_1_res_forward.1} parent=11 // pred_check_branch
          %211 = sbr.rel (%p209) target = $region16
        $region15: #{inception_a_1_1_res_forward.1} parent=11 // pred_region
          _
        $region16: #{inception_a_1_1_res_forward.1} parent=11 // pred_fallthru
          _
        // Predicated region
        $region17: #{inception_a_1_1_res_forward.1} parent=11 // pred_check
          %p212 = pneg %p84
        $region18: #{inception_a_1_1_res_forward.1} parent=11 // pred_check_branch
          %214 = sbr.rel (%p212) target = $region20
        $region19: #{inception_a_1_1_res_forward.1} parent=11 // pred_region
          _
        $region20: #{inception_a_1_1_res_forward.1} parent=11 // pred_fallthru
          _
        // Predicated region
        $region21: #{inception_a_1_1_res_forward.1} parent=11 // pred_check
          %p215 = pneg %p105
        $region22: #{inception_a_1_1_res_forward.1} parent=11 // pred_check_branch
          %217 = sbr.rel (%p215) target = $region24
        $region23: #{inception_a_1_1_res_forward.1} parent=11 // pred_region
          _
        $region24: #{inception_a_1_1_res_forward.1} parent=11 // pred_fallthru
          _
        // Predicated region
        $region25: #{inception_a_1_1_res_forward.1} parent=11 // pred_check
          %p218 = pneg %p126
        $region26: #{inception_a_1_1_res_forward.1} parent=11 // pred_check_branch
          %220 = sbr.rel (%p218) target = $region28
        $region27: #{inception_a_1_1_res_forward.1} parent=11 // pred_region
          _
        $region28: #{inception_a_1_1_res_forward.1} parent=11 // pred_fallthru
          _
        // Predicated region
        $region29: #{inception_a_1_1_res_forward.1} parent=11 // pred_check
          %p221 = pneg %p147
        $region30: #{inception_a_1_1_res_forward.1} parent=11 // pred_check_branch
          %223 = sbr.rel (%p221) target = $region32
        $region31: #{inception_a_1_1_res_forward.1} parent=11 // pred_region
          _
        $region32: #{inception_a_1_1_res_forward.1} parent=11 // pred_fallthru
          _
        // Predicated region
        $region33: #{inception_a_1_1_res_forward.1} parent=11 // pred_check
          %p224 = pneg %p168
        $region34: #{inception_a_1_1_res_forward.1} parent=11 // pred_check_branch
          %226 = sbr.rel (%p224) target = $region36
        $region35: #{inception_a_1_1_res_forward.1} parent=11 // pred_region
          _
        $region36: #{inception_a_1_1_res_forward.1} parent=11 // pred_fallthru
          _
      $region12: #{inception_a_1_1_res_forward.1} parent=5 // pred_fallthru
        _
      %p227 = scmp.lt.s32.totalorder %s16, 2
      // Predicated region
      $region37: #{inception_a_1_1_res_forward.1} parent=5 // pred_check
        %p228 = pneg %p227
      $region38: #{inception_a_1_1_res_forward.1} parent=5 // pred_check_branch
        %230 = sbr.rel (%p228) target = $region40
      $region39: #{inception_a_1_1_res_forward.1} parent=5 // pred_region
        // Predicated region
        $region41: #{inception_a_1_1_res_forward.1} parent=39 // pred_check
          %p231 = pneg %p36
        $region42: #{inception_a_1_1_res_forward.1} parent=39 // pred_check_branch
          %233 = sbr.rel (%p231) target = $region44
        $region43: #{inception_a_1_1_res_forward.1} parent=39 // pred_region
          %p234 = scmp.lt.s32.totalorder %s16, 1
          %s235 = scalar_select %p234, %s16, 1
          %s236 = smul.addr %s235, 72
          %s237 = smul.addr %s236, 8
          %s238 = scalar_lea.vmem %s0, %s237
        $region44: #{inception_a_1_1_res_forward.1} parent=39 // pred_fallthru
          _
      $region40: #{inception_a_1_1_res_forward.1} parent=5 // pred_fallthru
        _
      %p239 = scmp.le.s32.totalorder 1, %s16
      %p240 = scmp.lt.s32.totalorder %s16, 3
      %p241 = pnand %p239, %p240
      %p242 = pneg %p241
      // Predicated region
      $region45: #{inception_a_1_1_res_forward.1} parent=5 // pred_check
        _
      $region46: #{inception_a_1_1_res_forward.1} parent=5 // pred_check_branch
        %244 = sbr.rel (%p241) target = $region48
      $region47: #{inception_a_1_1_res_forward.1} parent=5 // pred_region
        %s245 = ssub.s32 %s16, 1
        %p246 = scmp.lt.s32.totalorder %s21, 1
        %s247 = scalar_select %p246, %s21, 1
        %s248 = smul.addr %s247, 72
        %s249 = smul.addr %s248, 8
        %s250 = scalar_lea.vmem %s0, %s249
        %p251 = pneg %p42
        %p252 = pneg %p39
        %p253 = pneg %p63
        %p254 = pneg %p60
        %p255 = pneg %p84
        %p256 = pneg %p81
        %p257 = pneg %p105
        %p258 = pneg %p102
        %p259 = pneg %p126
        %p260 = pneg %p123
        %p261 = pneg %p147
        %p262 = pneg %p144
        %p263 = pneg %p168
        %p264 = pneg %p165
        %p265 = pneg %p194
        %p266 = pneg %p191
        %s267 = sand.u32 %s181, 1
        %s268 = scalar_lea.sflag [#allocation5], %s267
        %s269 = sand.u32 %s181, 1
        %s270 = smul.addr %s269, 64
        %s271 = scalar_lea.vmem [#allocation4], %s270
        %p272 = scmp.lt.s32.totalorder %s21, 1
        %s273 = scalar_select %p272, %s21, 1
        %s274 = smul.addr %s273, 72
        %s275 = smul.addr %s274, 8
        %s276 = scalar_lea.vmem %s0, %s275
        %vm278 = vcmask 257024
        %279 = vst.msk [vmem:[#allocation2] sm:$0xf] %vm278, 0
        %vm280 = vcmask 253952
        %vm281 = vsmask.f32 256
        %vm282 = vmand %vm280, %vm281
        %v283 = vld [vmem:[#allocation2 + $0x4] sm:$0x1]
        %v284 = vsel %vm282, 0, %v283
        %285 = vst [vmem:[#allocation2 + $0x4] sm:$0x1] %v284
        %286 = vst.msk [vmem:[#allocation2 + $0x8] sm:$0xf] %vm278, 0
        %v287 = vld [vmem:[#allocation2 + $0xc] sm:$0x1]
        %v288 = vsel %vm282, 0, %v287
        %289 = vst [vmem:[#allocation2 + $0xc] sm:$0x1] %v288
        %290 = vst.msk [vmem:[#allocation2 + $0x10] sm:$0xf] %vm278, 0
        %v291 = vld [vmem:[#allocation2 + $0x14] sm:$0x1]
        %v292 = vsel %vm282, 0, %v291
        %293 = vst [vmem:[#allocation2 + $0x14] sm:$0x1] %v292
        %294 = vst.msk [vmem:[#allocation2 + $0x18] sm:$0xf] %vm278, 0
        %v295 = vld [vmem:[#allocation2 + $0x1c] sm:$0x1]
        %v296 = vsel %vm282, 0, %v295
        %297 = vst [vmem:[#allocation2 + $0x1c] sm:$0x1] %v296
        %298 = vst.msk [vmem:[#allocation2 + $0x20] sm:$0xf] %vm278, 0
        %v299 = vld [vmem:[#allocation2 + $0x24] sm:$0x1]
        %v300 = vsel %vm282, 0, %v299
        %301 = vst [vmem:[#allocation2 + $0x24] sm:$0x1] %v300
        %302 = vst.msk [vmem:[#allocation2 + $0x28] sm:$0xf] %vm278, 0
        %v303 = vld [vmem:[#allocation2 + $0x2c] sm:$0x1]
        %v304 = vsel %vm282, 0, %v303
        %305 = vst [vmem:[#allocation2 + $0x2c] sm:$0x1] %v304
        %306 = vst.msk [vmem:[#allocation2 + $0x30] sm:$0xf] %vm278, 0
        %v307 = vld [vmem:[#allocation2 + $0x34] sm:$0x1]
        %v308 = vsel %vm282, 0, %v307
        %309 = vst [vmem:[#allocation2 + $0x34] sm:$0x1] %v308
        %310 = vst.msk [vmem:[#allocation2 + $0x38] sm:$0xf] %vm278, 0
        %v311 = vld [vmem:[#allocation2 + $0x3c] sm:$0x1]
        %v312 = vsel %vm282, 0, %v311
        %313 = vst [vmem:[#allocation2 + $0x3c] sm:$0x1] %v312
        %314 = vst.msk [vmem:[#allocation2 + $0x40] sm:$0xf] %vm278, 0
        %v315 = vld [vmem:[#allocation2 + $0x44] sm:$0x1]
        %v316 = vsel %vm282, 0, %v315
        %317 = vst [vmem:[#allocation2 + $0x44] sm:$0x1] %v316
        %318 = vst.msk [vmem:[#allocation2 + $0x48] sm:$0xf] %vm278, 0
        %v319 = vld [vmem:[#allocation2 + $0x4c] sm:$0x1]
        %v320 = vsel %vm282, 0, %v319
        %321 = vst [vmem:[#allocation2 + $0x4c] sm:$0x1] %v320
        %322 = vst.msk [vmem:[#allocation2 + $0x50] sm:$0xf] %vm278, 0
        %v323 = vld [vmem:[#allocation2 + $0x54] sm:$0x1]
        %v324 = vsel %vm282, 0, %v323
        %325 = vst [vmem:[#allocation2 + $0x54] sm:$0x1] %v324
        %326 = vst.msk [vmem:[#allocation2 + $0x58] sm:$0xf] %vm278, 0
        %v327 = vld [vmem:[#allocation2 + $0x5c] sm:$0x1]
        %v328 = vsel %vm282, 0, %v327
        %329 = vst [vmem:[#allocation2 + $0x5c] sm:$0x1] %v328
        %330 = vst.msk [vmem:[#allocation2 + $0x60] sm:$0xf] %vm278, 0
        %v331 = vld [vmem:[#allocation2 + $0x64] sm:$0x1]
        %v332 = vsel %vm282, 0, %v331
        %333 = vst [vmem:[#allocation2 + $0x64] sm:$0x1] %v332
        %334 = vst.msk [vmem:[#allocation2 + $0x68] sm:$0xf] %vm278, 0
        %v335 = vld [vmem:[#allocation2 + $0x6c] sm:$0x1]
        %v336 = vsel %vm282, 0, %v335
        %337 = vst [vmem:[#allocation2 + $0x6c] sm:$0x1] %v336
        %338 = vst.msk [vmem:[#allocation2 + $0x70] sm:$0xf] %vm278, 0
        %v339 = vld [vmem:[#allocation2 + $0x74] sm:$0x1]
        %v340 = vsel %vm282, 0, %v339
        %341 = vst [vmem:[#allocation2 + $0x74] sm:$0x1] %v340
        %342 = vst.msk [vmem:[#allocation2 + $0x78] sm:$0xf] %vm278, 0
        %v343 = vld [vmem:[#allocation2 + $0x7c] sm:$0x1]
        %v344 = vsel %vm282, 0, %v343
        %345 = vst [vmem:[#allocation2 + $0x7c] sm:$0x1] %v344
        %346 = vst.msk [vmem:[#allocation2 + $0x80] sm:$0xf] %vm278, 0
        %v347 = vld [vmem:[#allocation2 + $0x84] sm:$0x1]
        %v348 = vsel %vm282, 0, %v347
        %349 = vst [vmem:[#allocation2 + $0x84] sm:$0x1] %v348
        %350 = vst.msk [vmem:[#allocation2 + $0x88] sm:$0xf] %vm278, 0
        %v351 = vld [vmem:[#allocation2 + $0x8c] sm:$0x1]
        %v352 = vsel %vm282, 0, %v351
        %353 = vst [vmem:[#allocation2 + $0x8c] sm:$0x1] %v352
        %354 = vst.msk [vmem:[#allocation2 + $0x90] sm:$0xf] %vm278, 0
        %v355 = vld [vmem:[#allocation2 + $0x94] sm:$0x1]
        %v356 = vsel %vm282, 0, %v355
        %357 = vst [vmem:[#allocation2 + $0x94] sm:$0x1] %v356
        %358 = vst.msk [vmem:[#allocation2 + $0x98] sm:$0xf] %vm278, 0
        %v359 = vld [vmem:[#allocation2 + $0x9c] sm:$0x1]
        %v360 = vsel %vm282, 0, %v359
        %361 = vst [vmem:[#allocation2 + $0x9c] sm:$0x1] %v360
        %362 = vst.msk [vmem:[#allocation2 + $0xa0] sm:$0xf] %vm278, 0
        %v363 = vld [vmem:[#allocation2 + $0xa4] sm:$0x1]
        %v364 = vsel %vm282, 0, %v363
        %365 = vst [vmem:[#allocation2 + $0xa4] sm:$0x1] %v364
        %366 = vst.msk [vmem:[#allocation2 + $0xa8] sm:$0xf] %vm278, 0
        %v367 = vld [vmem:[#allocation2 + $0xac] sm:$0x1]
        %v368 = vsel %vm282, 0, %v367
        %369 = vst [vmem:[#allocation2 + $0xac] sm:$0x1] %v368
        %370 = vst.msk [vmem:[#allocation2 + $0xb0] sm:$0xf] %vm278, 0
        %v371 = vld [vmem:[#allocation2 + $0xb4] sm:$0x1]
        %v372 = vsel %vm282, 0, %v371
        %373 = vst [vmem:[#allocation2 + $0xb4] sm:$0x1] %v372
        %374 = vst.msk [vmem:[#allocation2 + $0xb8] sm:$0xf] %vm278, 0
        %v375 = vld [vmem:[#allocation2 + $0xbc] sm:$0x1]
        %v376 = vsel %vm282, 0, %v375
        %377 = vst [vmem:[#allocation2 + $0xbc] sm:$0x1] %v376
        %378 = vst.msk [vmem:[#allocation2 + $0xc0] sm:$0xf] %vm278, 0
        %v379 = vld [vmem:[#allocation2 + $0xc4] sm:$0x1]
        %v380 = vsel %vm282, 0, %v379
        %381 = vst [vmem:[#allocation2 + $0xc4] sm:$0x1] %v380
        %382 = vst.msk [vmem:[#allocation2 + $0xc8] sm:$0xf] %vm278, 0
        %v383 = vld [vmem:[#allocation2 + $0xcc] sm:$0x1]
        %v384 = vsel %vm282, 0, %v383
        %385 = vst [vmem:[#allocation2 + $0xcc] sm:$0x1] %v384
        %386 = vst.msk [vmem:[#allocation2 + $0xd0] sm:$0xf] %vm278, 0
        %v387 = vld [vmem:[#allocation2 + $0xd4] sm:$0x1]
        %v388 = vsel %vm282, 0, %v387
        %389 = vst [vmem:[#allocation2 + $0xd4] sm:$0x1] %v388
        %390 = vst.msk [vmem:[#allocation2 + $0xd8] sm:$0xf] %vm278, 0
        %v391 = vld [vmem:[#allocation2 + $0xdc] sm:$0x1]
        %v392 = vsel %vm282, 0, %v391
        %393 = vst [vmem:[#allocation2 + $0xdc] sm:$0x1] %v392
        %394 = vst.msk [vmem:[#allocation2 + $0xe0] sm:$0xf] %vm278, 0
        %v395 = vld [vmem:[#allocation2 + $0xe4] sm:$0x1]
        %v396 = vsel %vm282, 0, %v395
        %397 = vst [vmem:[#allocation2 + $0xe4] sm:$0x1] %v396
        %398 = vst.msk [vmem:[#allocation2 + $0xe8] sm:$0xf] %vm278, 0
        %v399 = vld [vmem:[#allocation2 + $0xec] sm:$0x1]
        %v400 = vsel %vm282, 0, %v399
        %401 = vst [vmem:[#allocation2 + $0xec] sm:$0x1] %v400
        %402 = vst.msk [vmem:[#allocation2 + $0xf0] sm:$0xf] %vm278, 0
        %v403 = vld [vmem:[#allocation2 + $0xf4] sm:$0x1]
        %v404 = vsel %vm282, 0, %v403
        %405 = vst [vmem:[#allocation2 + $0xf4] sm:$0x1] %v404
        %406 = vst.msk [vmem:[#allocation2 + $0xf8] sm:$0xf] %vm278, 0
        %v407 = vld [vmem:[#allocation2 + $0xfc] sm:$0x1]
        %v408 = vsel %vm282, 0, %v407
        %409 = vst [vmem:[#allocation2 + $0xfc] sm:$0x1] %v408
        %410 = vst.msk [vmem:[#allocation2 + $0x100] sm:$0xf] %vm278, 0
        %v411 = vld [vmem:[#allocation2 + $0x104] sm:$0x1]
        %v412 = vsel %vm282, 0, %v411
        %413 = vst [vmem:[#allocation2 + $0x104] sm:$0x1] %v412
        %414 = vst.msk [vmem:[#allocation2 + $0x108] sm:$0xf] %vm278, 0
        %v415 = vld [vmem:[#allocation2 + $0x10c] sm:$0x1]
        %v416 = vsel %vm282, 0, %v415
        %417 = vst [vmem:[#allocation2 + $0x10c] sm:$0x1] %v416
        %418 = vst.msk [vmem:[#allocation2 + $0x110] sm:$0xf] %vm278, 0
        %v419 = vld [vmem:[#allocation2 + $0x114] sm:$0x1]
        %v420 = vsel %vm282, 0, %v419
        %421 = vst [vmem:[#allocation2 + $0x114] sm:$0x1] %v420
        %422 = vst.msk [vmem:[#allocation2 + $0x118] sm:$0xf] %vm278, 0
        %v423 = vld [vmem:[#allocation2 + $0x11c] sm:$0x1]
        %v424 = vsel %vm282, 0, %v423
        %425 = vst [vmem:[#allocation2 + $0x11c] sm:$0x1] %v424
        %vm426 = vcmask 261120
        %427 = vst.msk [vmem:[#allocation3] sm:$0xff] %vm426, 0.0
        %vm428 = vcmask 253952
        %429 = vst.msk [vmem:[#allocation3 + $0x8] sm:$0x1] %vm428, 0.0
        %430 = vst.msk [vmem:[#allocation3 + $0x10] sm:$0xff] %vm426, 0.0
        %431 = vst.msk [vmem:[#allocation3 + $0x18] sm:$0x1] %vm428, 0.0
        %432 = vst.msk [vmem:[#allocation3 + $0x20] sm:$0xff] %vm426, 0.0
        %433 = vst.msk [vmem:[#allocation3 + $0x28] sm:$0x1] %vm428, 0.0
        %434 = vst.msk [vmem:[#allocation3 + $0x30] sm:$0xff] %vm426, 0.0
        %435 = vst.msk [vmem:[#allocation3 + $0x38] sm:$0x1] %vm428, 0.0
        %436 = vst.msk [vmem:[#allocation3 + $0x40] sm:$0xff] %vm426, 0.0
        %437 = vst.msk [vmem:[#allocation3 + $0x48] sm:$0x1] %vm428, 0.0
        %438 = vst.msk [vmem:[#allocation3 + $0x50] sm:$0xff] %vm426, 0.0
        %439 = vst.msk [vmem:[#allocation3 + $0x58] sm:$0x1] %vm428, 0.0
        %440 = vst.msk [vmem:[#allocation3 + $0x60] sm:$0xff] %vm426, 0.0
        %441 = vst.msk [vmem:[#allocation3 + $0x68] sm:$0x1] %vm428, 0.0
        %442 = vst.msk [vmem:[#allocation3 + $0x70] sm:$0xff] %vm426, 0.0
        %443 = vst.msk [vmem:[#allocation3 + $0x78] sm:$0x1] %vm428, 0.0
        %444 = vst.msk [vmem:[#allocation3 + $0x80] sm:$0xff] %vm426, 0.0
        %445 = vst.msk [vmem:[#allocation3 + $0x88] sm:$0x1] %vm428, 0.0
        %446 = vst.msk [vmem:[#allocation3 + $0x90] sm:$0xff] %vm426, 0.0
        %447 = vst.msk [vmem:[#allocation3 + $0x98] sm:$0x1] %vm428, 0.0
        %448 = vst.msk [vmem:[#allocation3 + $0xa0] sm:$0xff] %vm426, 0.0
        %449 = vst.msk [vmem:[#allocation3 + $0xa8] sm:$0x1] %vm428, 0.0
        %450 = vst.msk [vmem:[#allocation3 + $0xb0] sm:$0xff] %vm426, 0.0
        %451 = vst.msk [vmem:[#allocation3 + $0xb8] sm:$0x1] %vm428, 0.0
        %452 = vst.msk [vmem:[#allocation3 + $0xc0] sm:$0xff] %vm426, 0.0
        %453 = vst.msk [vmem:[#allocation3 + $0xc8] sm:$0x1] %vm428, 0.0
        %454 = vst.msk [vmem:[#allocation3 + $0xd0] sm:$0xff] %vm426, 0.0
        %455 = vst.msk [vmem:[#allocation3 + $0xd8] sm:$0x1] %vm428, 0.0
        %456 = vst.msk [vmem:[#allocation3 + $0xe0] sm:$0xff] %vm426, 0.0
        %457 = vst.msk [vmem:[#allocation3 + $0xe8] sm:$0x1] %vm428, 0.0
        %458 = vst.msk [vmem:[#allocation3 + $0xf0] sm:$0xff] %vm426, 0.0
        %459 = vst.msk [vmem:[#allocation3 + $0xf8] sm:$0x1] %vm428, 0.0
        %460 = vst.msk [vmem:[#allocation3 + $0x100] sm:$0xff] %vm426, 0.0
        %461 = vst.msk [vmem:[#allocation3 + $0x108] sm:$0x1] %vm428, 0.0
        %462 = vst.msk [vmem:[#allocation3 + $0x110] sm:$0xff] %vm426, 0.0
        %463 = vst.msk [vmem:[#allocation3 + $0x118] sm:$0x1] %vm428, 0.0
        %464 = vst.msk [vmem:[#allocation3 + $0x120] sm:$0xff] %vm426, 0.0
        %465 = vst.msk [vmem:[#allocation3 + $0x128] sm:$0x1] %vm428, 0.0
        %466 = vst.msk [vmem:[#allocation3 + $0x130] sm:$0xff] %vm426, 0.0
        %467 = vst.msk [vmem:[#allocation3 + $0x138] sm:$0x1] %vm428, 0.0
        %468 = vst.msk [vmem:[#allocation3 + $0x140] sm:$0xff] %vm426, 0.0
        %469 = vst.msk [vmem:[#allocation3 + $0x148] sm:$0x1] %vm428, 0.0
        %470 = vst.msk [vmem:[#allocation3 + $0x150] sm:$0xff] %vm426, 0.0
        %471 = vst.msk [vmem:[#allocation3 + $0x158] sm:$0x1] %vm428, 0.0
        %472 = vst.msk [vmem:[#allocation3 + $0x160] sm:$0xff] %vm426, 0.0
        %473 = vst.msk [vmem:[#allocation3 + $0x168] sm:$0x1] %vm428, 0.0
        %474 = vst.msk [vmem:[#allocation3 + $0x170] sm:$0xff] %vm426, 0.0
        %475 = vst.msk [vmem:[#allocation3 + $0x178] sm:$0x1] %vm428, 0.0
        %476 = vst.msk [vmem:[#allocation3 + $0x180] sm:$0xff] %vm426, 0.0
        %477 = vst.msk [vmem:[#allocation3 + $0x188] sm:$0x1] %vm428, 0.0
        %478 = vst.msk [vmem:[#allocation3 + $0x190] sm:$0xff] %vm426, 0.0
        %479 = vst.msk [vmem:[#allocation3 + $0x198] sm:$0x1] %vm428, 0.0
        %480 = vst.msk [vmem:[#allocation3 + $0x1a0] sm:$0xff] %vm426, 0.0
        %481 = vst.msk [vmem:[#allocation3 + $0x1a8] sm:$0x1] %vm428, 0.0
        %482 = vst.msk [vmem:[#allocation3 + $0x1b0] sm:$0xff] %vm426, 0.0
        %483 = vst.msk [vmem:[#allocation3 + $0x1b8] sm:$0x1] %vm428, 0.0
        %484 = vst.msk [vmem:[#allocation3 + $0x1c0] sm:$0xff] %vm426, 0.0
        %485 = vst.msk [vmem:[#allocation3 + $0x1c8] sm:$0x1] %vm428, 0.0
        %486 = vst.msk [vmem:[#allocation3 + $0x1d0] sm:$0xff] %vm426, 0.0
        %487 = vst.msk [vmem:[#allocation3 + $0x1d8] sm:$0x1] %vm428, 0.0
        %488 = vst.msk [vmem:[#allocation3 + $0x1e0] sm:$0xff] %vm426, 0.0
        %489 = vst.msk [vmem:[#allocation3 + $0x1e8] sm:$0x1] %vm428, 0.0
        %490 = vst.msk [vmem:[#allocation3 + $0x1f0] sm:$0xff] %vm426, 0.0
        %491 = vst.msk [vmem:[#allocation3 + $0x1f8] sm:$0x1] %vm428, 0.0
        %492 = vst.msk [vmem:[#allocation3 + $0x200] sm:$0xff] %vm426, 0.0
        %493 = vst.msk [vmem:[#allocation3 + $0x208] sm:$0x1] %vm428, 0.0
        %494 = vst.msk [vmem:[#allocation3 + $0x210] sm:$0xff] %vm426, 0.0
        %495 = vst.msk [vmem:[#allocation3 + $0x218] sm:$0x1] %vm428, 0.0
        %496 = vst.msk [vmem:[#allocation3 + $0x220] sm:$0xff] %vm426, 0.0
        %497 = vst.msk [vmem:[#allocation3 + $0x228] sm:$0x1] %vm428, 0.0
        %498 = vst.msk [vmem:[#allocation3 + $0x230] sm:$0xff] %vm426, 0.0
        %499 = vst.msk [vmem:[#allocation3 + $0x238] sm:$0x1] %vm428, 0.0
        %v500 = vld [vmem:[%s276] sm:$0xff]
        %v501 = vld [vmem:[%s276 + $0x8] sm:$0x1]
        %v502 = vld [vmem:[%s276 + $0x10] sm:$0xff]
        %v503 = vld [vmem:[%s276 + $0x18] sm:$0x1]
        %v504 = vld [vmem:[%s276 + $0x20] sm:$0xff]
        %v505 = vld [vmem:[%s276 + $0x28] sm:$0x1]
        %v506 = vld [vmem:[%s276 + $0x30] sm:$0xff]
        %v507 = vld [vmem:[%s276 + $0x38] sm:$0x1]
        %v508 = vld [vmem:[%s276 + $0x40] sm:$0xff]
        %v509 = vld [vmem:[%s276 + $0x48] sm:$0x1]
        %v510 = vld [vmem:[%s276 + $0x50] sm:$0xff]
        %v511 = vld [vmem:[%s276 + $0x58] sm:$0x1]
        %v512 = vld [vmem:[%s276 + $0x60] sm:$0xff]
        %v513 = vld [vmem:[%s276 + $0x68] sm:$0x1]
        %v514 = vld [vmem:[%s276 + $0x70] sm:$0xff]
        %v515 = vld [vmem:[%s276 + $0x78] sm:$0x1]
        %v516 = vld [vmem:[%s276 + $0x80] sm:$0xff]
        %v517 = vld [vmem:[%s276 + $0x88] sm:$0x1]
        %s518 = scalar_lea.vmem %s276, 144
        %v519 = vld [vmem:[%s518] sm:$0xff]
        %v520 = vld [vmem:[%s518 + $0x8] sm:$0x1]
        %v521 = vld [vmem:[%s518 + $0x10] sm:$0xff]
        %v522 = vld [vmem:[%s518 + $0x18] sm:$0x1]
        %v523 = vld [vmem:[%s518 + $0x20] sm:$0xff]
        %v524 = vld [vmem:[%s518 + $0x28] sm:$0x1]
        %v525 = vld [vmem:[%s518 + $0x30] sm:$0xff]
        %v526 = vld [vmem:[%s518 + $0x38] sm:$0x1]
        %v527 = vld [vmem:[%s518 + $0x40] sm:$0xff]
        %v528 = vld [vmem:[%s518 + $0x48] sm:$0x1]
        %v529 = vld [vmem:[%s518 + $0x50] sm:$0xff]
        %v530 = vld [vmem:[%s518 + $0x58] sm:$0x1]
        %v531 = vld [vmem:[%s518 + $0x60] sm:$0xff]
        %v532 = vld [vmem:[%s518 + $0x68] sm:$0x1]
        %v533 = vld [vmem:[%s518 + $0x70] sm:$0xff]
        %v534 = vld [vmem:[%s518 + $0x78] sm:$0x1]
        %v535 = vld [vmem:[%s518 + $0x80] sm:$0xff]
        %v536 = vld [vmem:[%s518 + $0x88] sm:$0x1]
        %s537 = scalar_lea.vmem %s276, 288
        %v538 = vld [vmem:[%s537] sm:$0xff]
        %v539 = vld [vmem:[%s537 + $0x8] sm:$0x1]
        %v540 = vld [vmem:[%s537 + $0x10] sm:$0xff]
        %v541 = vld [vmem:[%s537 + $0x18] sm:$0x1]
        %v542 = vld [vmem:[%s537 + $0x20] sm:$0xff]
        %v543 = vld [vmem:[%s537 + $0x28] sm:$0x1]
        %v544 = vld [vmem:[%s537 + $0x30] sm:$0xff]
        %v545 = vld [vmem:[%s537 + $0x38] sm:$0x1]
        %v546 = vld [vmem:[%s537 + $0x40] sm:$0xff]
        %v547 = vld [vmem:[%s537 + $0x48] sm:$0x1]
        %v548 = vld [vmem:[%s537 + $0x50] sm:$0xff]
        %v549 = vld [vmem:[%s537 + $0x58] sm:$0x1]
        %v550 = vld [vmem:[%s537 + $0x60] sm:$0xff]
        %v551 = vld [vmem:[%s537 + $0x68] sm:$0x1]
        %v552 = vld [vmem:[%s537 + $0x70] sm:$0xff]
        %v553 = vld [vmem:[%s537 + $0x78] sm:$0x1]
        %v554 = vld [vmem:[%s537 + $0x80] sm:$0xff]
        %v555 = vld [vmem:[%s537 + $0x88] sm:$0x1]
        %s556 = scalar_lea.vmem %s276, 432
        %v557 = vld [vmem:[%s556] sm:$0xff]
        %v558 = vld [vmem:[%s556 + $0x8] sm:$0x1]
        %v559 = vld [vmem:[%s556 + $0x10] sm:$0xff]
        %v560 = vld [vmem:[%s556 + $0x18] sm:$0x1]
        %v561 = vld [vmem:[%s556 + $0x20] sm:$0xff]
        %v562 = vld [vmem:[%s556 + $0x28] sm:$0x1]
        %v563 = vld [vmem:[%s556 + $0x30] sm:$0xff]
        %v564 = vld [vmem:[%s556 + $0x38] sm:$0x1]
        %v565 = vld [vmem:[%s556 + $0x40] sm:$0xff]
        %v566 = vld [vmem:[%s556 + $0x48] sm:$0x1]
        %v567 = vld [vmem:[%s556 + $0x50] sm:$0xff]
        %v568 = vld [vmem:[%s556 + $0x58] sm:$0x1]
        %v569 = vld [vmem:[%s556 + $0x60] sm:$0xff]
        %v570 = vld [vmem:[%s556 + $0x68] sm:$0x1]
        %v571 = vld [vmem:[%s556 + $0x70] sm:$0xff]
        %v572 = vld [vmem:[%s556 + $0x78] sm:$0x1]
        %v573 = vld [vmem:[%s556 + $0x80] sm:$0xff]
        %v574 = vld [vmem:[%s556 + $0x88] sm:$0x1]
        %v575 = vpack.c.bf16 %v502, %v500
        %v576 = vpack.c.bf16 %v506, %v504
        %v577 = vpack.c.bf16 %v510, %v508
        %v578 = vpack.c.bf16 %v514, %v512
        %vm595 = vcmask 1046528
        %v596 = vrot.slane %v500, 1
        %v597 = vrot.slane %v501, 1
        %v598 = vsel %vm595, %v596, %v597
        %v599 = vrot.slane %v502, 1
        %v600 = vrot.slane %v503, 1
        %v601 = vsel %vm595, %v599, %v600
        %v602 = vrot.slane %v504, 1
        %v603 = vrot.slane %v505, 1
        %v604 = vsel %vm595, %v602, %v603
        %v605 = vrot.slane %v506, 1
        %v606 = vrot.slane %v507, 1
        %v607 = vsel %vm595, %v605, %v606
        %v608 = vrot.slane %v508, 1
        %v609 = vrot.slane %v509, 1
        %v610 = vsel %vm595, %v608, %v609
        %v611 = vrot.slane %v510, 1
        %v612 = vrot.slane %v511, 1
        %v613 = vsel %vm595, %v611, %v612
        %v614 = vrot.slane %v512, 1
        %v615 = vrot.slane %v513, 1
        %v616 = vsel %vm595, %v614, %v615
        %v617 = vrot.slane %v514, 1
        %v618 = vrot.slane %v515, 1
        %v619 = vsel %vm595, %v617, %v618
        %v628 = vpack.c.bf16 %v601, %v598
        %v629 = vpack.c.bf16 %v607, %v604
        %v630 = vpack.c.bf16 %v613, %v610
        %v631 = vpack.c.bf16 %v619, %v616
        %v632 = vpack.c.bf16 %v504, %v502
        %v633 = vpack.c.bf16 %v508, %v506
        %v634 = vpack.c.bf16 %v512, %v510
        %v635 = vpack.c.bf16 %v516, %v514
        %v638 = vrot.slane %v516, 1
        %v639 = vrot.slane %v517, 1
        %v640 = vsel %vm595, %v638, %v639
        %v642 = vpack.c.bf16 %v604, %v601
        %v643 = vpack.c.bf16 %v610, %v607
        %v644 = vpack.c.bf16 %v616, %v613
        %v645 = vpack.c.bf16 %v640, %v619
        %v646 = vpack.c.bf16 %v521, %v519
        %v647 = vpack.c.bf16 %v525, %v523
        %v648 = vpack.c.bf16 %v529, %v527
        %v649 = vpack.c.bf16 %v533, %v531
        %v666 = vrot.slane %v519, 1
        %v667 = vrot.slane %v520, 1
        %v668 = vsel %vm595, %v666, %v667
        %v669 = vrot.slane %v521, 1
        %v670 = vrot.slane %v522, 1
        %v671 = vsel %vm595, %v669, %v670
        %v672 = vrot.slane %v523, 1
        %v673 = vrot.slane %v524, 1
        %v674 = vsel %vm595, %v672, %v673
        %v675 = vrot.slane %v525, 1
        %v676 = vrot.slane %v526, 1
        %v677 = vsel %vm595, %v675, %v676
        %v678 = vrot.slane %v527, 1
        %v679 = vrot.slane %v528, 1
        %v680 = vsel %vm595, %v678, %v679
        %v681 = vrot.slane %v529, 1
        %v682 = vrot.slane %v530, 1
        %v683 = vsel %vm595, %v681, %v682
        %v684 = vrot.slane %v531, 1
        %v685 = vrot.slane %v532, 1
        %v686 = vsel %vm595, %v684, %v685
        %v687 = vrot.slane %v533, 1
        %v688 = vrot.slane %v534, 1
        %v689 = vsel %vm595, %v687, %v688
        %v698 = vpack.c.bf16 %v671, %v668
        %v699 = vpack.c.bf16 %v677, %v674
        %v700 = vpack.c.bf16 %v683, %v680
        %v701 = vpack.c.bf16 %v689, %v686
        %v702 = vpack.c.bf16 %v523, %v521
        %v703 = vpack.c.bf16 %v527, %v525
        %v704 = vpack.c.bf16 %v531, %v529
        %v705 = vpack.c.bf16 %v535, %v533
        %v708 = vrot.slane %v535, 1
        %v709 = vrot.slane %v536, 1
        %v710 = vsel %vm595, %v708, %v709
        %v712 = vpack.c.bf16 %v674, %v671
        %v713 = vpack.c.bf16 %v680, %v677
        %v714 = vpack.c.bf16 %v686, %v683
        %v715 = vpack.c.bf16 %v710, %v689
        %v716 = vpack.c.bf16 %v540, %v538
        %v717 = vpack.c.bf16 %v544, %v542
        %v718 = vpack.c.bf16 %v548, %v546
        %v719 = vpack.c.bf16 %v552, %v550
        %v736 = vrot.slane %v538, 1
        %v737 = vrot.slane %v539, 1
        %v738 = vsel %vm595, %v736, %v737
        %v739 = vrot.slane %v540, 1
        %v740 = vrot.slane %v541, 1
        %v741 = vsel %vm595, %v739, %v740
        %v742 = vrot.slane %v542, 1
        %v743 = vrot.slane %v543, 1
        %v744 = vsel %vm595, %v742, %v743
        %v745 = vrot.slane %v544, 1
        %v746 = vrot.slane %v545, 1
        %v747 = vsel %vm595, %v745, %v746
        %v748 = vrot.slane %v546, 1
        %v749 = vrot.slane %v547, 1
        %v750 = vsel %vm595, %v748, %v749
        %v751 = vrot.slane %v548, 1
        %v752 = vrot.slane %v549, 1
        %v753 = vsel %vm595, %v751, %v752
        %v754 = vrot.slane %v550, 1
        %v755 = vrot.slane %v551, 1
        %v756 = vsel %vm595, %v754, %v755
        %v757 = vrot.slane %v552, 1
        %v758 = vrot.slane %v553, 1
        %v759 = vsel %vm595, %v757, %v758
        %v768 = vpack.c.bf16 %v741, %v738
        %v769 = vpack.c.bf16 %v747, %v744
        %v770 = vpack.c.bf16 %v753, %v750
        %v771 = vpack.c.bf16 %v759, %v756
        %v772 = vpack.c.bf16 %v542, %v540
        %v773 = vpack.c.bf16 %v546, %v544
        %v774 = vpack.c.bf16 %v550, %v548
        %v775 = vpack.c.bf16 %v554, %v552
        %v778 = vrot.slane %v554, 1
        %v779 = vrot.slane %v555, 1
        %v780 = vsel %vm595, %v778, %v779
        %v782 = vpack.c.bf16 %v744, %v741
        %v783 = vpack.c.bf16 %v750, %v747
        %v784 = vpack.c.bf16 %v756, %v753
        %v785 = vpack.c.bf16 %v780, %v759
        %v786 = vpack.c.bf16 %v559, %v557
        %v787 = vpack.c.bf16 %v563, %v561
        %v788 = vpack.c.bf16 %v567, %v565
        %v789 = vpack.c.bf16 %v571, %v569
        %v806 = vrot.slane %v557, 1
        %v807 = vrot.slane %v558, 1
        %v808 = vsel %vm595, %v806, %v807
        %v809 = vrot.slane %v559, 1
        %v810 = vrot.slane %v560, 1
        %v811 = vsel %vm595, %v809, %v810
        %v812 = vrot.slane %v561, 1
        %v813 = vrot.slane %v562, 1
        %v814 = vsel %vm595, %v812, %v813
        %v815 = vrot.slane %v563, 1
        %v816 = vrot.slane %v564, 1
        %v817 = vsel %vm595, %v815, %v816
        %v818 = vrot.slane %v565, 1
        %v819 = vrot.slane %v566, 1
        %v820 = vsel %vm595, %v818, %v819
        %v821 = vrot.slane %v567, 1
        %v822 = vrot.slane %v568, 1
        %v823 = vsel %vm595, %v821, %v822
        %v824 = vrot.slane %v569, 1
        %v825 = vrot.slane %v570, 1
        %v826 = vsel %vm595, %v824, %v825
        %v827 = vrot.slane %v571, 1
        %v828 = vrot.slane %v572, 1
        %v829 = vsel %vm595, %v827, %v828
        %v838 = vpack.c.bf16 %v811, %v808
        %v839 = vpack.c.bf16 %v817, %v814
        %v840 = vpack.c.bf16 %v823, %v820
        %v841 = vpack.c.bf16 %v829, %v826
        %v842 = vpack.c.bf16 %v561, %v559
        %v843 = vpack.c.bf16 %v565, %v563
        %v844 = vpack.c.bf16 %v569, %v567
        %v845 = vpack.c.bf16 %v573, %v571
        %v848 = vrot.slane %v573, 1
        %v849 = vrot.slane %v574, 1
        %v850 = vsel %vm595, %v848, %v849
        %v852 = vpack.c.bf16 %v814, %v811
        %v853 = vpack.c.bf16 %v820, %v817
        %v854 = vpack.c.bf16 %v826, %v823
        %v855 = vpack.c.bf16 %v850, %v829
        %v856 = vld [vmem:[%s1] sm:$0x3]
        %s857 = scalar_lea.vmem %s1, 2
        %v858 = vld [vmem:[%s857] sm:$0x3]
        %vm859 = vcmask 31744
        %v861 = vsel %vm859, %v646, 0
        %v864 = vsel %vm859, %v647, 0
        %v867 = vsel %vm859, %v648, 0
        %v870 = vsel %vm859, %v649, 0
        %vm872 = vcmask 1041408
        %v874 = vsel %vm872, %v858, 0
        %876 = vmatprep.subr.bf16.mxu0 0
        %877 = vmatpush1.bf16.msra.mxu0 0
        %878 = vmatprep.subr.bf16.mxu0 0
        %879 = vmatpush1.bf16.msra.mxu0 0
        %880 = vmatprep.subr.bf16.mxu0 0
        %881 = vmatpush1.bf16.msra.mxu0 0
        %882 = vmatprep.subr.bf16.mxu0 0
        %883 = vmatpush1.bf16.msra.mxu0 0
        %884 = vmatprep.subr.bf16.mxu0 0
        %885 = vmatpush1.bf16.msra.mxu0 0
        %886 = vmatprep.subr.bf16.mxu0 0
        %887 = vmatpush1.bf16.msra.mxu0 0
        %888 = vmatprep.subr.bf16.mxu0 0
        %889 = vmatpush1.bf16.msra.mxu0 0
        %890 = vmatprep.subr.bf16.mxu0 0
        %891 = vmatpush1.bf16.msra.mxu0 %v874
        %892 = vmatprep.subr.bf16.mxu0 0
        %893 = vmatpush2.bf16.msra.mxu0 0
        %894 = vmatprep.subr.bf16.mxu0 0
        %895 = vmatpush2.bf16.msra.mxu0 0
        %896 = vmatprep.subr.bf16.mxu0 0
        %897 = vmatpush2.bf16.msra.mxu0 0
        %898 = vmatprep.subr.bf16.mxu0 0
        %899 = vmatpush2.bf16.msra.mxu0 0
        %900 = vmatprep.subr.bf16.mxu0 0
        %901 = vmatpush2.bf16.msra.mxu0 0
        %902 = vmatprep.subr.bf16.mxu0 0
        %903 = vmatpush2.bf16.msra.mxu0 0
        %904 = vmatprep.subr.bf16.mxu0 0
        %905 = vmatpush2.bf16.msra.mxu0 0
        %906 = vmatprep.subr.bf16.mxu0 0
        %907 = vmatpush2.bf16.msra.mxu0 0
        %908 = vmatprep.mubr.bf16.mxu0 0
        %909 = vmatmul.mubr.bf16.gmra.mxu0 %v861
        %v910 = vpop.f32.mrf.mxu0
        %v911 = vadd.f32 0.0, %v910
        %v912 = vpop.f32.mrf.mxu0
        %v913 = vpop.f32.mrf.mxu0
        %v914 = vadd.f32 0.0, %v913
        %v915 = vpop.f32.mrf.mxu0
        %916 = vmatprep.mubr.bf16.mxu0 0
        %917 = vmatmul.mubr.bf16.gmra.mxu0 %v864
        %v918 = vpop.f32.mrf.mxu0
        %v919 = vadd.f32 0.0, %v918
        %v920 = vpop.f32.mrf.mxu0
        %v921 = vpop.f32.mrf.mxu0
        %v922 = vadd.f32 0.0, %v921
        %v923 = vpop.f32.mrf.mxu0
        %924 = vmatprep.mubr.bf16.mxu0 0
        %925 = vmatmul.mubr.bf16.gmra.mxu0 %v867
        %v926 = vpop.f32.mrf.mxu0
        %v927 = vadd.f32 0.0, %v926
        %v928 = vpop.f32.mrf.mxu0
        %v929 = vpop.f32.mrf.mxu0
        %v930 = vadd.f32 0.0, %v929
        %v931 = vpop.f32.mrf.mxu0
        %932 = vmatprep.mubr.bf16.mxu0 0
        %933 = vmatmul.mubr.bf16.gmra.mxu0 %v870
        %v934 = vpop.f32.mrf.mxu0
        %v935 = vadd.f32 0.0, %v934
        %v936 = vpop.f32.mrf.mxu0
        %v937 = vpop.f32.mrf.mxu0
        %v938 = vadd.f32 0.0, %v937
        %v939 = vpop.f32.mrf.mxu0
        %940 = vdwg.mxu0
        %v942 = vsel %vm859, %v575, 0
        %v945 = vsel %vm859, %v576, 0
        %v948 = vsel %vm859, %v577, 0
        %v951 = vsel %vm859, %v578, 0
        %v954 = vsel %vm872, %v856, 0
        %956 = vmatprep.subr.bf16.mxu0 0
        %957 = vmatpush1.bf16.msra.mxu0 0
        %958 = vmatprep.subr.bf16.mxu0 0
        %959 = vmatpush1.bf16.msra.mxu0 0
        %960 = vmatprep.subr.bf16.mxu0 0
        %961 = vmatpush1.bf16.msra.mxu0 0
        %962 = vmatprep.subr.bf16.mxu0 0
        %963 = vmatpush1.bf16.msra.mxu0 0
        %964 = vmatprep.subr.bf16.mxu0 0
        %965 = vmatpush1.bf16.msra.mxu0 0
        %966 = vmatprep.subr.bf16.mxu0 0
        %967 = vmatpush1.bf16.msra.mxu0 0
        %968 = vmatprep.subr.bf16.mxu0 0
        %969 = vmatpush1.bf16.msra.mxu0 0
        %970 = vmatprep.subr.bf16.mxu0 0
        %971 = vmatpush1.bf16.msra.mxu0 %v954
        %972 = vmatprep.subr.bf16.mxu0 0
        %973 = vmatpush2.bf16.msra.mxu0 0
        %974 = vmatprep.subr.bf16.mxu0 0
        %975 = vmatpush2.bf16.msra.mxu0 0
        %976 = vmatprep.subr.bf16.mxu0 0
        %977 = vmatpush2.bf16.msra.mxu0 0
        %978 = vmatprep.subr.bf16.mxu0 0
        %979 = vmatpush2.bf16.msra.mxu0 0
        %980 = vmatprep.subr.bf16.mxu0 0
        %981 = vmatpush2.bf16.msra.mxu0 0
        %982 = vmatprep.subr.bf16.mxu0 0
        %983 = vmatpush2.bf16.msra.mxu0 0
        %984 = vmatprep.subr.bf16.mxu0 0
        %985 = vmatpush2.bf16.msra.mxu0 0
        %986 = vmatprep.subr.bf16.mxu0 0
        %987 = vmatpush2.bf16.msra.mxu0 0
        %988 = vmatprep.mubr.bf16.mxu0 0
        %989 = vmatmul.mubr.bf16.gmra.mxu0 %v942
        %v990 = vpop.f32.mrf.mxu0
        %v991 = vadd.f32 %v911, %v990
        %v992 = vpop.f32.mrf.mxu0
        %v993 = vpop.f32.mrf.mxu0
        %v994 = vadd.f32 %v914, %v993
        %v995 = vpop.f32.mrf.mxu0
        %996 = vmatprep.mubr.bf16.mxu0 0
        %997 = vmatmul.mubr.bf16.gmra.mxu0 %v945
        %v998 = vpop.f32.mrf.mxu0
        %v999 = vadd.f32 %v919, %v998
        %v1000 = vpop.f32.mrf.mxu0
        %v1001 = vpop.f32.mrf.mxu0
        %v1002 = vadd.f32 %v922, %v1001
        %v1003 = vpop.f32.mrf.mxu0
        %1004 = vmatprep.mubr.bf16.mxu0 0
        %1005 = vmatmul.mubr.bf16.gmra.mxu0 %v948
        %v1006 = vpop.f32.mrf.mxu0
        %v1007 = vadd.f32 %v927, %v1006
        %v1008 = vpop.f32.mrf.mxu0
        %v1009 = vpop.f32.mrf.mxu0
        %v1010 = vadd.f32 %v930, %v1009
        %v1011 = vpop.f32.mrf.mxu0
        %1012 = vmatprep.mubr.bf16.mxu0 0
        %1013 = vmatmul.mubr.bf16.gmra.mxu0 %v951
        %v1014 = vpop.f32.mrf.mxu0
        %v1015 = vadd.f32 %v935, %v1014
        %v1016 = vpop.f32.mrf.mxu0
        %v1017 = vpop.f32.mrf.mxu0
        %v1018 = vadd.f32 %v938, %v1017
        %v1019 = vpop.f32.mrf.mxu0
        %1020 = vdwg.mxu0
        %s1021 = scalar_lea.vmem %s1, 4
        %v1022 = vld [vmem:[%s1021] sm:$0x3]
        %v1024 = vsel %vm859, %v628, 0
        %v1027 = vsel %vm859, %v629, 0
        %v1030 = vsel %vm859, %v630, 0
        %v1033 = vsel %vm859, %v631, 0
        %v1036 = vsel %vm872, %v1022, 0
        %1038 = vmatprep.subr.bf16.mxu0 0
        %1039 = vmatpush1.bf16.msra.mxu0 0
        %1040 = vmatprep.subr.bf16.mxu0 0
        %1041 = vmatpush1.bf16.msra.mxu0 0
        %1042 = vmatprep.subr.bf16.mxu0 0
        %1043 = vmatpush1.bf16.msra.mxu0 0
        %1044 = vmatprep.subr.bf16.mxu0 0
        %1045 = vmatpush1.bf16.msra.mxu0 0
        %1046 = vmatprep.subr.bf16.mxu0 0
        %1047 = vmatpush1.bf16.msra.mxu0 0
        %1048 = vmatprep.subr.bf16.mxu0 0
        %1049 = vmatpush1.bf16.msra.mxu0 0
        %1050 = vmatprep.subr.bf16.mxu0 0
        %1051 = vmatpush1.bf16.msra.mxu0 0
        %1052 = vmatprep.subr.bf16.mxu0 0
        %1053 = vmatpush1.bf16.msra.mxu0 %v1036
        %1054 = vmatprep.subr.bf16.mxu0 0
        %1055 = vmatpush2.bf16.msra.mxu0 0
        %1056 = vmatprep.subr.bf16.mxu0 0
        %1057 = vmatpush2.bf16.msra.mxu0 0
        %1058 = vmatprep.subr.bf16.mxu0 0
        %1059 = vmatpush2.bf16.msra.mxu0 0
        %1060 = vmatprep.subr.bf16.mxu0 0
        %1061 = vmatpush2.bf16.msra.mxu0 0
        %1062 = vmatprep.subr.bf16.mxu0 0
        %1063 = vmatpush2.bf16.msra.mxu0 0
        %1064 = vmatprep.subr.bf16.mxu0 0
        %1065 = vmatpush2.bf16.msra.mxu0 0
        %1066 = vmatprep.subr.bf16.mxu0 0
        %1067 = vmatpush2.bf16.msra.mxu0 0
        %1068 = vmatprep.subr.bf16.mxu0 0
        %1069 = vmatpush2.bf16.msra.mxu0 0
        %1070 = vmatprep.mubr.bf16.mxu0 0
        %1071 = vmatmul.mubr.bf16.gmra.mxu0 %v1024
        %v1072 = vpop.f32.mrf.mxu0
        %v1073 = vadd.f32 0.0, %v1072
        %v1074 = vpop.f32.mrf.mxu0
        %v1075 = vpop.f32.mrf.mxu0
        %v1076 = vadd.f32 0.0, %v1075
        %v1077 = vpop.f32.mrf.mxu0
        %1078 = vmatprep.mubr.bf16.mxu0 0
        %1079 = vmatmul.mubr.bf16.gmra.mxu0 %v1027
        %v1080 = vpop.f32.mrf.mxu0
        %v1081 = vadd.f32 0.0, %v1080
        %v1082 = vpop.f32.mrf.mxu0
        %v1083 = vpop.f32.mrf.mxu0
        %v1084 = vadd.f32 0.0, %v1083
        %v1085 = vpop.f32.mrf.mxu0
        %1086 = vmatprep.mubr.bf16.mxu0 0
        %1087 = vmatmul.mubr.bf16.gmra.mxu0 %v1030
        %v1088 = vpop.f32.mrf.mxu0
        %v1089 = vadd.f32 0.0, %v1088
        %v1090 = vpop.f32.mrf.mxu0
        %v1091 = vpop.f32.mrf.mxu0
        %v1092 = vadd.f32 0.0, %v1091
        %v1093 = vpop.f32.mrf.mxu0
        %1094 = vmatprep.mubr.bf16.mxu0 0
        %1095 = vmatmul.mubr.bf16.gmra.mxu0 %v1033
        %v1096 = vpop.f32.mrf.mxu0
        %v1097 = vadd.f32 0.0, %v1096
        %v1098 = vpop.f32.mrf.mxu0
        %v1099 = vpop.f32.mrf.mxu0
        %v1100 = vadd.f32 0.0, %v1099
        %v1101 = vpop.f32.mrf.mxu0
        %1102 = vdwg.mxu0
        %v1103 = vadd.f32 %v991, %v1073
        %v1104 = vadd.f32 %v994, %v1076
        %v1105 = vadd.f32 %v999, %v1081
        %v1106 = vadd.f32 %v1002, %v1084
        %v1107 = vadd.f32 %v1007, %v1089
        %v1108 = vadd.f32 %v1010, %v1092
        %v1109 = vadd.f32 %v1015, %v1097
        %v1110 = vadd.f32 %v1018, %v1100
        %s1111 = scalar_lea.vmem %s1, 6
        %v1112 = vld [vmem:[%s1111] sm:$0x3]
        %v1114 = vsel %vm859, %v716, 0
        %v1117 = vsel %vm859, %v717, 0
        %v1120 = vsel %vm859, %v718, 0
        %v1123 = vsel %vm859, %v719, 0
        %v1126 = vsel %vm872, %v1112, 0
        %1128 = vmatprep.subr.bf16.mxu0 0
        %1129 = vmatpush1.bf16.msra.mxu0 0
        %1130 = vmatprep.subr.bf16.mxu0 0
        %1131 = vmatpush1.bf16.msra.mxu0 0
        %1132 = vmatprep.subr.bf16.mxu0 0
        %1133 = vmatpush1.bf16.msra.mxu0 0
        %1134 = vmatprep.subr.bf16.mxu0 0
        %1135 = vmatpush1.bf16.msra.mxu0 0
        %1136 = vmatprep.subr.bf16.mxu0 0
        %1137 = vmatpush1.bf16.msra.mxu0 0
        %1138 = vmatprep.subr.bf16.mxu0 0
        %1139 = vmatpush1.bf16.msra.mxu0 0
        %1140 = vmatprep.subr.bf16.mxu0 0
        %1141 = vmatpush1.bf16.msra.mxu0 0
        %1142 = vmatprep.subr.bf16.mxu0 0
        %1143 = vmatpush1.bf16.msra.mxu0 %v1126
        %1144 = vmatprep.subr.bf16.mxu0 0
        %1145 = vmatpush2.bf16.msra.mxu0 0
        %1146 = vmatprep.subr.bf16.mxu0 0
        %1147 = vmatpush2.bf16.msra.mxu0 0
        %1148 = vmatprep.subr.bf16.mxu0 0
        %1149 = vmatpush2.bf16.msra.mxu0 0
        %1150 = vmatprep.subr.bf16.mxu0 0
        %1151 = vmatpush2.bf16.msra.mxu0 0
        %1152 = vmatprep.subr.bf16.mxu0 0
        %1153 = vmatpush2.bf16.msra.mxu0 0
        %1154 = vmatprep.subr.bf16.mxu0 0
        %1155 = vmatpush2.bf16.msra.mxu0 0
        %1156 = vmatprep.subr.bf16.mxu0 0
        %1157 = vmatpush2.bf16.msra.mxu0 0
        %1158 = vmatprep.subr.bf16.mxu0 0
        %1159 = vmatpush2.bf16.msra.mxu0 0
        %1160 = vmatprep.mubr.bf16.mxu0 0
        %1161 = vmatmul.mubr.bf16.gmra.mxu0 %v1114
        %v1162 = vpop.f32.mrf.mxu0
        %v1163 = vadd.f32 0.0, %v1162
        %v1164 = vpop.f32.mrf.mxu0
        %v1165 = vpop.f32.mrf.mxu0
        %v1166 = vadd.f32 0.0, %v1165
        %v1167 = vpop.f32.mrf.mxu0
        %1168 = vmatprep.mubr.bf16.mxu0 0
        %1169 = vmatmul.mubr.bf16.gmra.mxu0 %v1117
        %v1170 = vpop.f32.mrf.mxu0
        %v1171 = vadd.f32 0.0, %v1170
        %v1172 = vpop.f32.mrf.mxu0
        %v1173 = vpop.f32.mrf.mxu0
        %v1174 = vadd.f32 0.0, %v1173
        %v1175 = vpop.f32.mrf.mxu0
        %1176 = vmatprep.mubr.bf16.mxu0 0
        %1177 = vmatmul.mubr.bf16.gmra.mxu0 %v1120
        %v1178 = vpop.f32.mrf.mxu0
        %v1179 = vadd.f32 0.0, %v1178
        %v1180 = vpop.f32.mrf.mxu0
        %v1181 = vpop.f32.mrf.mxu0
        %v1182 = vadd.f32 0.0, %v1181
        %v1183 = vpop.f32.mrf.mxu0
        %1184 = vmatprep.mubr.bf16.mxu0 0
        %1185 = vmatmul.mubr.bf16.gmra.mxu0 %v1123
        %v1186 = vpop.f32.mrf.mxu0
        %v1187 = vadd.f32 0.0, %v1186
        %v1188 = vpop.f32.mrf.mxu0
        %v1189 = vpop.f32.mrf.mxu0
        %v1190 = vadd.f32 0.0, %v1189
        %v1191 = vpop.f32.mrf.mxu0
        %1192 = vdwg.mxu0
        %v1193 = vadd.f32 %v1103, %v1163
        %v1194 = vadd.f32 %v1104, %v1166
        %v1195 = vadd.f32 %v1105, %v1171
        %v1196 = vadd.f32 %v1106, %v1174
        %v1197 = vadd.f32 %v1107, %v1179
        %v1198 = vadd.f32 %v1108, %v1182
        %v1199 = vadd.f32 %v1109, %v1187
        %v1200 = vadd.f32 %v1110, %v1190
        %s1201 = scalar_lea.vmem %s1, 8
        %v1202 = vld [vmem:[%s1201] sm:$0x3]
        %v1204 = vsel %vm859, %v786, 0
        %v1207 = vsel %vm859, %v787, 0
        %v1210 = vsel %vm859, %v788, 0
        %v1213 = vsel %vm859, %v789, 0
        %v1216 = vsel %vm872, %v1202, 0
        %1218 = vmatprep.subr.bf16.mxu0 0
        %1219 = vmatpush1.bf16.msra.mxu0 0
        %1220 = vmatprep.subr.bf16.mxu0 0
        %1221 = vmatpush1.bf16.msra.mxu0 0
        %1222 = vmatprep.subr.bf16.mxu0 0
        %1223 = vmatpush1.bf16.msra.mxu0 0
        %1224 = vmatprep.subr.bf16.mxu0 0
        %1225 = vmatpush1.bf16.msra.mxu0 0
        %1226 = vmatprep.subr.bf16.mxu0 0
        %1227 = vmatpush1.bf16.msra.mxu0 0
        %1228 = vmatprep.subr.bf16.mxu0 0
        %1229 = vmatpush1.bf16.msra.mxu0 0
        %1230 = vmatprep.subr.bf16.mxu0 0
        %1231 = vmatpush1.bf16.msra.mxu0 0
        %1232 = vmatprep.subr.bf16.mxu0 0
        %1233 = vmatpush1.bf16.msra.mxu0 %v1216
        %1234 = vmatprep.subr.bf16.mxu0 0
        %1235 = vmatpush2.bf16.msra.mxu0 0
        %1236 = vmatprep.subr.bf16.mxu0 0
        %1237 = vmatpush2.bf16.msra.mxu0 0
        %1238 = vmatprep.subr.bf16.mxu0 0
        %1239 = vmatpush2.bf16.msra.mxu0 0
        %1240 = vmatprep.subr.bf16.mxu0 0
        %1241 = vmatpush2.bf16.msra.mxu0 0
        %1242 = vmatprep.subr.bf16.mxu0 0
        %1243 = vmatpush2.bf16.msra.mxu0 0
        %1244 = vmatprep.subr.bf16.mxu0 0
        %1245 = vmatpush2.bf16.msra.mxu0 0
        %1246 = vmatprep.subr.bf16.mxu0 0
        %1247 = vmatpush2.bf16.msra.mxu0 0
        %1248 = vmatprep.subr.bf16.mxu0 0
        %1249 = vmatpush2.bf16.msra.mxu0 0
        %1250 = vmatprep.mubr.bf16.mxu0 0
        %1251 = vmatmul.mubr.bf16.gmra.mxu0 %v1204
        %v1252 = vpop.f32.mrf.mxu0
        %v1253 = vadd.f32 0.0, %v1252
        %v1254 = vpop.f32.mrf.mxu0
        %v1255 = vpop.f32.mrf.mxu0
        %v1256 = vadd.f32 0.0, %v1255
        %v1257 = vpop.f32.mrf.mxu0
        %1258 = vmatprep.mubr.bf16.mxu0 0
        %1259 = vmatmul.mubr.bf16.gmra.mxu0 %v1207
        %v1260 = vpop.f32.mrf.mxu0
        %v1261 = vadd.f32 0.0, %v1260
        %v1262 = vpop.f32.mrf.mxu0
        %v1263 = vpop.f32.mrf.mxu0
        %v1264 = vadd.f32 0.0, %v1263
        %v1265 = vpop.f32.mrf.mxu0
        %1266 = vmatprep.mubr.bf16.mxu0 0
        %1267 = vmatmul.mubr.bf16.gmra.mxu0 %v1210
        %v1268 = vpop.f32.mrf.mxu0
        %v1269 = vadd.f32 0.0, %v1268
        %v1270 = vpop.f32.mrf.mxu0
        %v1271 = vpop.f32.mrf.mxu0
        %v1272 = vadd.f32 0.0, %v1271
        %v1273 = vpop.f32.mrf.mxu0
        %1274 = vmatprep.mubr.bf16.mxu0 0
        %1275 = vmatmul.mubr.bf16.gmra.mxu0 %v1213
        %v1276 = vpop.f32.mrf.mxu0
        %v1277 = vadd.f32 0.0, %v1276
        %v1278 = vpop.f32.mrf.mxu0
        %v1279 = vpop.f32.mrf.mxu0
        %v1280 = vadd.f32 0.0, %v1279
        %v1281 = vpop.f32.mrf.mxu0
        %1282 = vdwg.mxu0
        %v1283 = vadd.f32 %v1193, %v1253
        %v1284 = vadd.f32 %v1194, %v1256
        %v1285 = vadd.f32 %v1195, %v1261
        %v1286 = vadd.f32 %v1196, %v1264
        %v1287 = vadd.f32 %v1197, %v1269
        %v1288 = vadd.f32 %v1198, %v1272
        %v1289 = vadd.f32 %v1199, %v1277
        %v1290 = vadd.f32 %v1200, %v1280
        %s1291 = scalar_lea.vmem %s1, 10
        %v1292 = vld [vmem:[%s1291] sm:$0x3]
        %v1294 = vsel %vm859, %v768, 0
        %v1297 = vsel %vm859, %v769, 0
        %v1300 = vsel %vm859, %v770, 0
        %v1303 = vsel %vm859, %v771, 0
        %v1306 = vsel %vm872, %v1292, 0
        %1308 = vmatprep.subr.bf16.mxu0 0
        %1309 = vmatpush1.bf16.msra.mxu0 0
        %1310 = vmatprep.subr.bf16.mxu0 0
        %1311 = vmatpush1.bf16.msra.mxu0 0
        %1312 = vmatprep.subr.bf16.mxu0 0
        %1313 = vmatpush1.bf16.msra.mxu0 0
        %1314 = vmatprep.subr.bf16.mxu0 0
        %1315 = vmatpush1.bf16.msra.mxu0 0
        %1316 = vmatprep.subr.bf16.mxu0 0
        %1317 = vmatpush1.bf16.msra.mxu0 0
        %1318 = vmatprep.subr.bf16.mxu0 0
        %1319 = vmatpush1.bf16.msra.mxu0 0
        %1320 = vmatprep.subr.bf16.mxu0 0
        %1321 = vmatpush1.bf16.msra.mxu0 0
        %1322 = vmatprep.subr.bf16.mxu0 0
        %1323 = vmatpush1.bf16.msra.mxu0 %v1306
        %1324 = vmatprep.subr.bf16.mxu0 0
        %1325 = vmatpush2.bf16.msra.mxu0 0
        %1326 = vmatprep.subr.bf16.mxu0 0
        %1327 = vmatpush2.bf16.msra.mxu0 0
        %1328 = vmatprep.subr.bf16.mxu0 0
        %1329 = vmatpush2.bf16.msra.mxu0 0
        %1330 = vmatprep.subr.bf16.mxu0 0
        %1331 = vmatpush2.bf16.msra.mxu0 0
        %1332 = vmatprep.subr.bf16.mxu0 0
        %1333 = vmatpush2.bf16.msra.mxu0 0
        %1334 = vmatprep.subr.bf16.mxu0 0
        %1335 = vmatpush2.bf16.msra.mxu0 0
        %1336 = vmatprep.subr.bf16.mxu0 0
        %1337 = vmatpush2.bf16.msra.mxu0 0
        %1338 = vmatprep.subr.bf16.mxu0 0
        %1339 = vmatpush2.bf16.msra.mxu0 0
        %1340 = vmatprep.mubr.bf16.mxu0 0
        %1341 = vmatmul.mubr.bf16.gmra.mxu0 %v1294
        %v1342 = vpop.f32.mrf.mxu0
        %v1343 = vadd.f32 0.0, %v1342
        %v1344 = vpop.f32.mrf.mxu0
        %v1345 = vpop.f32.mrf.mxu0
        %v1346 = vadd.f32 0.0, %v1345
        %v1347 = vpop.f32.mrf.mxu0
        %1348 = vmatprep.mubr.bf16.mxu0 0
        %1349 = vmatmul.mubr.bf16.gmra.mxu0 %v1297
        %v1350 = vpop.f32.mrf.mxu0
        %v1351 = vadd.f32 0.0, %v1350
        %v1352 = vpop.f32.mrf.mxu0
        %v1353 = vpop.f32.mrf.mxu0
        %v1354 = vadd.f32 0.0, %v1353
        %v1355 = vpop.f32.mrf.mxu0
        %1356 = vmatprep.mubr.bf16.mxu0 0
        %1357 = vmatmul.mubr.bf16.gmra.mxu0 %v1300
        %v1358 = vpop.f32.mrf.mxu0
        %v1359 = vadd.f32 0.0, %v1358
        %v1360 = vpop.f32.mrf.mxu0
        %v1361 = vpop.f32.mrf.mxu0
        %v1362 = vadd.f32 0.0, %v1361
        %v1363 = vpop.f32.mrf.mxu0
        %1364 = vmatprep.mubr.bf16.mxu0 0
        %1365 = vmatmul.mubr.bf16.gmra.mxu0 %v1303
        %v1366 = vpop.f32.mrf.mxu0
        %v1367 = vadd.f32 0.0, %v1366
        %v1368 = vpop.f32.mrf.mxu0
        %v1369 = vpop.f32.mrf.mxu0
        %v1370 = vadd.f32 0.0, %v1369
        %v1371 = vpop.f32.mrf.mxu0
        %1372 = vdwg.mxu0
        %v1373 = vadd.f32 %v1283, %v1343
        %v1374 = vadd.f32 %v1284, %v1346
        %v1375 = vadd.f32 %v1285, %v1351
        %v1376 = vadd.f32 %v1286, %v1354
        %v1377 = vadd.f32 %v1287, %v1359
        %v1378 = vadd.f32 %v1288, %v1362
        %v1379 = vadd.f32 %v1289, %v1367
        %v1380 = vadd.f32 %v1290, %v1370
        %s1381 = scalar_lea.vmem %s1, 12
        %v1382 = vld [vmem:[%s1381] sm:$0x3]
        %v1384 = vsel %vm859, %v632, 0
        %v1387 = vsel %vm859, %v633, 0
        %v1390 = vsel %vm859, %v634, 0
        %v1393 = vsel %vm859, %v635, 0
        %v1396 = vsel %vm872, %v1382, 0
        %1398 = vmatprep.subr.bf16.mxu0 0
        %1399 = vmatpush1.bf16.msra.mxu0 0
        %1400 = vmatprep.subr.bf16.mxu0 0
        %1401 = vmatpush1.bf16.msra.mxu0 0
        %1402 = vmatprep.subr.bf16.mxu0 0
        %1403 = vmatpush1.bf16.msra.mxu0 0
        %1404 = vmatprep.subr.bf16.mxu0 0
        %1405 = vmatpush1.bf16.msra.mxu0 0
        %1406 = vmatprep.subr.bf16.mxu0 0
        %1407 = vmatpush1.bf16.msra.mxu0 0
        %1408 = vmatprep.subr.bf16.mxu0 0
        %1409 = vmatpush1.bf16.msra.mxu0 0
        %1410 = vmatprep.subr.bf16.mxu0 0
        %1411 = vmatpush1.bf16.msra.mxu0 0
        %1412 = vmatprep.subr.bf16.mxu0 0
        %1413 = vmatpush1.bf16.msra.mxu0 %v1396
        %1414 = vmatprep.subr.bf16.mxu0 0
        %1415 = vmatpush2.bf16.msra.mxu0 0
        %1416 = vmatprep.subr.bf16.mxu0 0
        %1417 = vmatpush2.bf16.msra.mxu0 0
        %1418 = vmatprep.subr.bf16.mxu0 0
        %1419 = vmatpush2.bf16.msra.mxu0 0
        %1420 = vmatprep.subr.bf16.mxu0 0
        %1421 = vmatpush2.bf16.msra.mxu0 0
        %1422 = vmatprep.subr.bf16.mxu0 0
        %1423 = vmatpush2.bf16.msra.mxu0 0
        %1424 = vmatprep.subr.bf16.mxu0 0
        %1425 = vmatpush2.bf16.msra.mxu0 0
        %1426 = vmatprep.subr.bf16.mxu0 0
        %1427 = vmatpush2.bf16.msra.mxu0 0
        %1428 = vmatprep.subr.bf16.mxu0 0
        %1429 = vmatpush2.bf16.msra.mxu0 0
        %1430 = vmatprep.mubr.bf16.mxu0 0
        %1431 = vmatmul.mubr.bf16.gmra.mxu0 %v1384
        %v1432 = vpop.f32.mrf.mxu0
        %v1433 = vadd.f32 0.0, %v1432
        %v1434 = vpop.f32.mrf.mxu0
        %v1435 = vpop.f32.mrf.mxu0
        %v1436 = vadd.f32 0.0, %v1435
        %v1437 = vpop.f32.mrf.mxu0
        %1438 = vmatprep.mubr.bf16.mxu0 0
        %1439 = vmatmul.mubr.bf16.gmra.mxu0 %v1387
        %v1440 = vpop.f32.mrf.mxu0
        %v1441 = vadd.f32 0.0, %v1440
        %v1442 = vpop.f32.mrf.mxu0
        %v1443 = vpop.f32.mrf.mxu0
        %v1444 = vadd.f32 0.0, %v1443
        %v1445 = vpop.f32.mrf.mxu0
        %1446 = vmatprep.mubr.bf16.mxu0 0
        %1447 = vmatmul.mubr.bf16.gmra.mxu0 %v1390
        %v1448 = vpop.f32.mrf.mxu0
        %v1449 = vadd.f32 0.0, %v1448
        %v1450 = vpop.f32.mrf.mxu0
        %v1451 = vpop.f32.mrf.mxu0
        %v1452 = vadd.f32 0.0, %v1451
        %v1453 = vpop.f32.mrf.mxu0
        %1454 = vmatprep.mubr.bf16.mxu0 0
        %1455 = vmatmul.mubr.bf16.gmra.mxu0 %v1393
        %v1456 = vpop.f32.mrf.mxu0
        %v1457 = vadd.f32 0.0, %v1456
        %v1458 = vpop.f32.mrf.mxu0
        %v1459 = vpop.f32.mrf.mxu0
        %v1460 = vadd.f32 0.0, %v1459
        %v1461 = vpop.f32.mrf.mxu0
        %1462 = vdwg.mxu0
        %v1463 = vadd.f32 %v1373, %v1433
        %v1464 = vadd.f32 %v1374, %v1436
        %v1465 = vadd.f32 %v1375, %v1441
        %v1466 = vadd.f32 %v1376, %v1444
        %v1467 = vadd.f32 %v1377, %v1449
        %v1468 = vadd.f32 %v1378, %v1452
        %v1469 = vadd.f32 %v1379, %v1457
        %v1470 = vadd.f32 %v1380, %v1460
        %s1471 = scalar_lea.vmem %s1, 14
        %v1472 = vld [vmem:[%s1471] sm:$0x3]
        %v1474 = vsel %vm859, %v702, 0
        %v1477 = vsel %vm859, %v703, 0
        %v1480 = vsel %vm859, %v704, 0
        %v1483 = vsel %vm859, %v705, 0
        %v1486 = vsel %vm872, %v1472, 0
        %1488 = vmatprep.subr.bf16.mxu0 0
        %1489 = vmatpush1.bf16.msra.mxu0 0
        %1490 = vmatprep.subr.bf16.mxu0 0
        %1491 = vmatpush1.bf16.msra.mxu0 0
        %1492 = vmatprep.subr.bf16.mxu0 0
        %1493 = vmatpush1.bf16.msra.mxu0 0
        %1494 = vmatprep.subr.bf16.mxu0 0
        %1495 = vmatpush1.bf16.msra.mxu0 0
        %1496 = vmatprep.subr.bf16.mxu0 0
        %1497 = vmatpush1.bf16.msra.mxu0 0
        %1498 = vmatprep.subr.bf16.mxu0 0
        %1499 = vmatpush1.bf16.msra.mxu0 0
        %1500 = vmatprep.subr.bf16.mxu0 0
        %1501 = vmatpush1.bf16.msra.mxu0 0
        %1502 = vmatprep.subr.bf16.mxu0 0
        %1503 = vmatpush1.bf16.msra.mxu0 %v1486
        %1504 = vmatprep.subr.bf16.mxu0 0
        %1505 = vmatpush2.bf16.msra.mxu0 0
        %1506 = vmatprep.subr.bf16.mxu0 0
        %1507 = vmatpush2.bf16.msra.mxu0 0
        %1508 = vmatprep.subr.bf16.mxu0 0
        %1509 = vmatpush2.bf16.msra.mxu0 0
        %1510 = vmatprep.subr.bf16.mxu0 0
        %1511 = vmatpush2.bf16.msra.mxu0 0
        %1512 = vmatprep.subr.bf16.mxu0 0
        %1513 = vmatpush2.bf16.msra.mxu0 0
        %1514 = vmatprep.subr.bf16.mxu0 0
        %1515 = vmatpush2.bf16.msra.mxu0 0
        %1516 = vmatprep.subr.bf16.mxu0 0
        %1517 = vmatpush2.bf16.msra.mxu0 0
        %1518 = vmatprep.subr.bf16.mxu0 0
        %1519 = vmatpush2.bf16.msra.mxu0 0
        %1520 = vmatprep.mubr.bf16.mxu0 0
        %1521 = vmatmul.mubr.bf16.gmra.mxu0 %v1474
        %v1522 = vpop.f32.mrf.mxu0
        %v1523 = vadd.f32 0.0, %v1522
        %v1524 = vpop.f32.mrf.mxu0
        %v1525 = vpop.f32.mrf.mxu0
        %v1526 = vadd.f32 0.0, %v1525
        %v1527 = vpop.f32.mrf.mxu0
        %1528 = vmatprep.mubr.bf16.mxu0 0
        %1529 = vmatmul.mubr.bf16.gmra.mxu0 %v1477
        %v1530 = vpop.f32.mrf.mxu0
        %v1531 = vadd.f32 0.0, %v1530
        %v1532 = vpop.f32.mrf.mxu0
        %v1533 = vpop.f32.mrf.mxu0
        %v1534 = vadd.f32 0.0, %v1533
        %v1535 = vpop.f32.mrf.mxu0
        %1536 = vmatprep.mubr.bf16.mxu0 0
        %1537 = vmatmul.mubr.bf16.gmra.mxu0 %v1480
        %v1538 = vpop.f32.mrf.mxu0
        %v1539 = vadd.f32 0.0, %v1538
        %v1540 = vpop.f32.mrf.mxu0
        %v1541 = vpop.f32.mrf.mxu0
        %v1542 = vadd.f32 0.0, %v1541
        %v1543 = vpop.f32.mrf.mxu0
        %1544 = vmatprep.mubr.bf16.mxu0 0
        %1545 = vmatmul.mubr.bf16.gmra.mxu0 %v1483
        %v1546 = vpop.f32.mrf.mxu0
        %v1547 = vadd.f32 0.0, %v1546
        %v1548 = vpop.f32.mrf.mxu0
        %v1549 = vpop.f32.mrf.mxu0
        %v1550 = vadd.f32 0.0, %v1549
        %v1551 = vpop.f32.mrf.mxu0
        %1552 = vdwg.mxu0
        %v1553 = vadd.f32 %v1463, %v1523
        %v1554 = vadd.f32 %v1464, %v1526
        %v1555 = vadd.f32 %v1465, %v1531
        %v1556 = vadd.f32 %v1466, %v1534
        %v1557 = vadd.f32 %v1467, %v1539
        %v1558 = vadd.f32 %v1468, %v1542
        %v1559 = vadd.f32 %v1469, %v1547
        %v1560 = vadd.f32 %v1470, %v1550
        %s1561 = scalar_lea.vmem %s1, 16
        %v1562 = vld [vmem:[%s1561] sm:$0x3]
        %v1564 = vsel %vm859, %v642, 0
        %v1567 = vsel %vm859, %v643, 0
        %v1570 = vsel %vm859, %v644, 0
        %v1573 = vsel %vm859, %v645, 0
        %v1576 = vsel %vm872, %v1562, 0
        %1578 = vmatprep.subr.bf16.mxu0 0
        %1579 = vmatpush1.bf16.msra.mxu0 0
        %1580 = vmatprep.subr.bf16.mxu0 0
        %1581 = vmatpush1.bf16.msra.mxu0 0
        %1582 = vmatprep.subr.bf16.mxu0 0
        %1583 = vmatpush1.bf16.msra.mxu0 0
        %1584 = vmatprep.subr.bf16.mxu0 0
        %1585 = vmatpush1.bf16.msra.mxu0 0
        %1586 = vmatprep.subr.bf16.mxu0 0
        %1587 = vmatpush1.bf16.msra.mxu0 0
        %1588 = vmatprep.subr.bf16.mxu0 0
        %1589 = vmatpush1.bf16.msra.mxu0 0
        %1590 = vmatprep.subr.bf16.mxu0 0
        %1591 = vmatpush1.bf16.msra.mxu0 0
        %1592 = vmatprep.subr.bf16.mxu0 0
        %1593 = vmatpush1.bf16.msra.mxu0 %v1576
        %1594 = vmatprep.subr.bf16.mxu0 0
        %1595 = vmatpush2.bf16.msra.mxu0 0
        %1596 = vmatprep.subr.bf16.mxu0 0
        %1597 = vmatpush2.bf16.msra.mxu0 0
        %1598 = vmatprep.subr.bf16.mxu0 0
        %1599 = vmatpush2.bf16.msra.mxu0 0
        %1600 = vmatprep.subr.bf16.mxu0 0
        %1601 = vmatpush2.bf16.msra.mxu0 0
        %1602 = vmatprep.subr.bf16.mxu0 0
        %1603 = vmatpush2.bf16.msra.mxu0 0
        %1604 = vmatprep.subr.bf16.mxu0 0
        %1605 = vmatpush2.bf16.msra.mxu0 0
        %1606 = vmatprep.subr.bf16.mxu0 0
        %1607 = vmatpush2.bf16.msra.mxu0 0
        %1608 = vmatprep.subr.bf16.mxu0 0
        %1609 = vmatpush2.bf16.msra.mxu0 0
        %1610 = vmatprep.mubr.bf16.mxu0 0
        %1611 = vmatmul.mubr.bf16.gmra.mxu0 %v1564
        %v1612 = vpop.f32.mrf.mxu0
        %v1613 = vadd.f32 0.0, %v1612
        %v1614 = vpop.f32.mrf.mxu0
        %v1615 = vpop.f32.mrf.mxu0
        %v1616 = vadd.f32 0.0, %v1615
        %v1617 = vpop.f32.mrf.mxu0
        %1618 = vmatprep.mubr.bf16.mxu0 0
        %1619 = vmatmul.mubr.bf16.gmra.mxu0 %v1567
        %v1620 = vpop.f32.mrf.mxu0
        %v1621 = vadd.f32 0.0, %v1620
        %v1622 = vpop.f32.mrf.mxu0
        %v1623 = vpop.f32.mrf.mxu0
        %v1624 = vadd.f32 0.0, %v1623
        %v1625 = vpop.f32.mrf.mxu0
        %1626 = vmatprep.mubr.bf16.mxu0 0
        %1627 = vmatmul.mubr.bf16.gmra.mxu0 %v1570
        %v1628 = vpop.f32.mrf.mxu0
        %v1629 = vadd.f32 0.0, %v1628
        %v1630 = vpop.f32.mrf.mxu0
        %v1631 = vpop.f32.mrf.mxu0
        %v1632 = vadd.f32 0.0, %v1631
        %v1633 = vpop.f32.mrf.mxu0
        %1634 = vmatprep.mubr.bf16.mxu0 0
        %1635 = vmatmul.mubr.bf16.gmra.mxu0 %v1573
        %v1636 = vpop.f32.mrf.mxu0
        %v1637 = vadd.f32 0.0, %v1636
        %v1638 = vpop.f32.mrf.mxu0
        %v1639 = vpop.f32.mrf.mxu0
        %v1640 = vadd.f32 0.0, %v1639
        %v1641 = vpop.f32.mrf.mxu0
        %1642 = vdwg.mxu0
        %v1643 = vadd.f32 %v1553, %v1613
        %v1644 = vadd.f32 %v1554, %v1616
        %v1645 = vadd.f32 %v1555, %v1621
        %v1646 = vadd.f32 %v1556, %v1624
        %v1647 = vadd.f32 %v1557, %v1629
        %v1648 = vadd.f32 %v1558, %v1632
        %v1649 = vadd.f32 %v1559, %v1637
        %v1650 = vadd.f32 %v1560, %v1640
        %v1651 = vld [vmem:[%s2] sm:$0x1]
        %v1653 = vlaneseq
        %v1654 = vshrl.u32 %v1653, 7
        %v1655 = vsub.s32 0, %v1654
        %v1656 = vrot.slane %v1651, %v1655
        %v1658 = vadd.f32 %v1643, %v1656
        %v1659 = vadd.f32 %v1644, %v1656
        %v1660 = vadd.f32 %v1645, %v1656
        %v1661 = vadd.f32 %v1646, %v1656
        %v1662 = vadd.f32 %v1647, %v1656
        %v1663 = vadd.f32 %v1648, %v1656
        %v1664 = vadd.f32 %v1649, %v1656
        %v1665 = vadd.f32 %v1650, %v1656
        %v1666 = vmax.f32 %v1658, 0.0
        %v1667 = vmax.f32 %v1659, 0.0
        %v1668 = vmax.f32 %v1660, 0.0
        %v1669 = vmax.f32 %v1661, 0.0
        %v1670 = vmax.f32 %v1662, 0.0
        %v1671 = vmax.f32 %v1663, 0.0
        %v1672 = vmax.f32 %v1664, 0.0
        %v1673 = vmax.f32 %v1665, 0.0
        %s1674 = scalar_lea.vmem [#allocation3], 432
        %vm1675 = vcmask 130048
        %1676 = vst.msk [vmem:[%s1674] sm:$0xff] %vm1675, %v1666
        %1677 = vst.msk [vmem:[%s1674 + $0x10] sm:$0xff] %vm1675, %v1667
        %1678 = vst.msk [vmem:[%s1674 + $0x20] sm:$0xff] %vm1675, %v1668
        %1679 = vst.msk [vmem:[%s1674 + $0x30] sm:$0xff] %vm1675, %v1669
        %1680 = vst.msk [vmem:[%s1674 + $0x40] sm:$0xff] %vm1675, %v1670
        %1681 = vst.msk [vmem:[%s1674 + $0x50] sm:$0xff] %vm1675, %v1671
        %1682 = vst.msk [vmem:[%s1674 + $0x60] sm:$0xff] %vm1675, %v1672
        %1683 = vst.msk [vmem:[%s1674 + $0x70] sm:$0xff] %vm1675, %v1673
        %1692 = vrot.lane.b32.xlu0 %v1666, 104
        %v1693 = vpop.permute.xlu0 %1692
        %1694 = vrot.lane.b32.xlu0 %v1667, 104
        %v1695 = vpop.permute.xlu0 %1694
        %1696 = vrot.lane.b32.xlu0 %v1668, 104
        %v1697 = vpop.permute.xlu0 %1696
        %1698 = vrot.lane.b32.xlu0 %v1669, 104
        %v1699 = vpop.permute.xlu0 %1698
        %1700 = vrot.lane.b32.xlu0 %v1670, 104
        %v1701 = vpop.permute.xlu0 %1700
        %1702 = vrot.lane.b32.xlu0 %v1671, 104
        %v1703 = vpop.permute.xlu0 %1702
        %1704 = vrot.lane.b32.xlu0 %v1672, 104
        %v1705 = vpop.permute.xlu0 %1704
        %1706 = vrot.lane.b32.xlu0 %v1673, 104
        %v1707 = vpop.permute.xlu0 %1706
        %vm1716 = vcmask 261312
        %1717 = vst.msk [vmem:[%s1674] sm:$0xff] %vm1716, %v1693
        %1718 = vst.msk [vmem:[%s1674 + $0x10] sm:$0xff] %vm1716, %v1695
        %1719 = vst.msk [vmem:[%s1674 + $0x20] sm:$0xff] %vm1716, %v1697
        %1720 = vst.msk [vmem:[%s1674 + $0x30] sm:$0xff] %vm1716, %v1699
        %1721 = vst.msk [vmem:[%s1674 + $0x40] sm:$0xff] %vm1716, %v1701
        %1722 = vst.msk [vmem:[%s1674 + $0x50] sm:$0xff] %vm1716, %v1703
        %1723 = vst.msk [vmem:[%s1674 + $0x60] sm:$0xff] %vm1716, %v1705
        %1724 = vst.msk [vmem:[%s1674 + $0x70] sm:$0xff] %vm1716, %v1707
        %v1725 = vpack.c.bf16 %v1666, %v1666
        %v1726 = vpack.c.bf16 %v1667, %v1667
        %v1727 = vpack.c.bf16 %v1668, %v1668
        %v1728 = vpack.c.bf16 %v1669, %v1669
        %v1729 = vpack.c.bf16 %v1670, %v1670
        %v1730 = vpack.c.bf16 %v1671, %v1671
        %v1731 = vpack.c.bf16 %v1672, %v1672
        %v1732 = vpack.c.bf16 %v1673, %v1673
        %v1741 = vunpack.c.l.b16 %v1725
        %v1742 = vunpack.c.l.b16 %v1726
        %v1743 = vunpack.c.l.b16 %v1727
        %v1744 = vunpack.c.l.b16 %v1728
        %v1745 = vunpack.c.l.b16 %v1729
        %v1746 = vunpack.c.l.b16 %v1730
        %v1747 = vunpack.c.l.b16 %v1731
        %v1748 = vunpack.c.l.b16 %v1732
        %v1749 = vpack.c.b16 %v1741, %v1741
        %v1750 = vpack.c.b16 %v1742, %v1742
        %v1751 = vpack.c.b16 %v1743, %v1743
        %v1752 = vpack.c.b16 %v1744, %v1744
        %v1753 = vpack.c.b16 %v1745, %v1745
        %v1754 = vpack.c.b16 %v1746, %v1746
        %v1755 = vpack.c.b16 %v1747, %v1747
        %v1756 = vpack.c.b16 %v1748, %v1748
        %1757 = vrot.lane.b32.xlu0 %v1749, 112
        %v1758 = vpop.permute.xlu0 %1757
        %1759 = vrot.lane.b32.xlu0 %v1750, 112
        %v1760 = vpop.permute.xlu0 %1759
        %1761 = vrot.lane.b32.xlu0 %v1751, 112
        %v1762 = vpop.permute.xlu0 %1761
        %1763 = vrot.lane.b32.xlu0 %v1752, 112
        %v1764 = vpop.permute.xlu0 %1763
        %1765 = vrot.lane.b32.xlu0 %v1753, 112
        %v1766 = vpop.permute.xlu0 %1765
        %1767 = vrot.lane.b32.xlu0 %v1754, 112
        %v1768 = vpop.permute.xlu0 %1767
        %1769 = vrot.lane.b32.xlu0 %v1755, 112
        %v1770 = vpop.permute.xlu0 %1769
        %1771 = vrot.lane.b32.xlu0 %v1756, 112
        %v1772 = vpop.permute.xlu0 %1771
        %s1781 = scalar_lea.vmem [#allocation2], 216
        %1782 = vst.msk [vmem:[%s1781] sm:$0xf] %vm278, %v1758
        %1783 = vst.msk [vmem:[%s1781 + $0x8] sm:$0xf] %vm278, %v1760
        %1784 = vst.msk [vmem:[%s1781 + $0x10] sm:$0xf] %vm278, %v1762
        %1785 = vst.msk [vmem:[%s1781 + $0x18] sm:$0xf] %vm278, %v1764
        %1786 = vst.msk [vmem:[%s1781 + $0x20] sm:$0xf] %vm278, %v1766
        %1787 = vst.msk [vmem:[%s1781 + $0x28] sm:$0xf] %vm278, %v1768
        %1788 = vst.msk [vmem:[%s1781 + $0x30] sm:$0xf] %vm278, %v1770
        %1789 = vst.msk [vmem:[%s1781 + $0x38] sm:$0xf] %vm278, %v1772
        %v1790 = vld [vmem:[%s1] sm:$0x3]
        %v1791 = vld [vmem:[%s857] sm:$0x3]
        %v1793 = vsel %vm872, %v1791, 0
        %1795 = vmatprep.subr.bf16.mxu0 0
        %1796 = vmatpush1.bf16.msra.mxu0 0
        %1797 = vmatprep.subr.bf16.mxu0 0
        %1798 = vmatpush1.bf16.msra.mxu0 0
        %1799 = vmatprep.subr.bf16.mxu0 0
        %1800 = vmatpush1.bf16.msra.mxu0 0
        %1801 = vmatprep.subr.bf16.mxu0 0
        %1802 = vmatpush1.bf16.msra.mxu0 0
        %1803 = vmatprep.subr.bf16.mxu0 0
        %1804 = vmatpush1.bf16.msra.mxu0 0
        %1805 = vmatprep.subr.bf16.mxu0 0
        %1806 = vmatpush1.bf16.msra.mxu0 0
        %1807 = vmatprep.subr.bf16.mxu0 0
        %1808 = vmatpush1.bf16.msra.mxu0 0
        %1809 = vmatprep.subr.bf16.mxu0 0
        %1810 = vmatpush1.bf16.msra.mxu0 %v1793
        %1811 = vmatprep.subr.bf16.mxu0 0
        %1812 = vmatpush2.bf16.msra.mxu0 0
        %1813 = vmatprep.subr.bf16.mxu0 0
        %1814 = vmatpush2.bf16.msra.mxu0 0
        %1815 = vmatprep.subr.bf16.mxu0 0
        %1816 = vmatpush2.bf16.msra.mxu0 0
        %1817 = vmatprep.subr.bf16.mxu0 0
        %1818 = vmatpush2.bf16.msra.mxu0 0
        %1819 = vmatprep.subr.bf16.mxu0 0
        %1820 = vmatpush2.bf16.msra.mxu0 0
        %1821 = vmatprep.subr.bf16.mxu0 0
        %1822 = vmatpush2.bf16.msra.mxu0 0
        %1823 = vmatprep.subr.bf16.mxu0 0
        %1824 = vmatpush2.bf16.msra.mxu0 0
        %1825 = vmatprep.subr.bf16.mxu0 0
        %1826 = vmatpush2.bf16.msra.mxu0 0
        %1827 = vmatprep.mubr.bf16.mxu0 0
        %1828 = vmatmul.mubr.bf16.gmra.mxu0 %v1024
        %v1829 = vpop.f32.mrf.mxu0
        %v1830 = vadd.f32 0.0, %v1829
        %v1831 = vpop.f32.mrf.mxu0
        %v1832 = vpop.f32.mrf.mxu0
        %v1833 = vadd.f32 0.0, %v1832
        %v1834 = vpop.f32.mrf.mxu0
        %1835 = vmatprep.mubr.bf16.mxu0 0
        %1836 = vmatmul.mubr.bf16.gmra.mxu0 %v1027
        %v1837 = vpop.f32.mrf.mxu0
        %v1838 = vadd.f32 0.0, %v1837
        %v1839 = vpop.f32.mrf.mxu0
        %v1840 = vpop.f32.mrf.mxu0
        %v1841 = vadd.f32 0.0, %v1840
        %v1842 = vpop.f32.mrf.mxu0
        %1843 = vmatprep.mubr.bf16.mxu0 0
        %1844 = vmatmul.mubr.bf16.gmra.mxu0 %v1030
        %v1845 = vpop.f32.mrf.mxu0
        %v1846 = vadd.f32 0.0, %v1845
        %v1847 = vpop.f32.mrf.mxu0
        %v1848 = vpop.f32.mrf.mxu0
        %v1849 = vadd.f32 0.0, %v1848
        %v1850 = vpop.f32.mrf.mxu0
        %1851 = vmatprep.mubr.bf16.mxu0 0
        %1852 = vmatmul.mubr.bf16.gmra.mxu0 %v1033
        %v1853 = vpop.f32.mrf.mxu0
        %v1854 = vadd.f32 0.0, %v1853
        %v1855 = vpop.f32.mrf.mxu0
        %v1856 = vpop.f32.mrf.mxu0
        %v1857 = vadd.f32 0.0, %v1856
        %v1858 = vpop.f32.mrf.mxu0
        %1859 = vdwg.mxu0
        %v1861 = vsel %vm872, %v1790, 0
        %1863 = vmatprep.subr.bf16.mxu0 0
        %1864 = vmatpush1.bf16.msra.mxu0 0
        %1865 = vmatprep.subr.bf16.mxu0 0
        %1866 = vmatpush1.bf16.msra.mxu0 0
        %1867 = vmatprep.subr.bf16.mxu0 0
        %1868 = vmatpush1.bf16.msra.mxu0 0
        %1869 = vmatprep.subr.bf16.mxu0 0
        %1870 = vmatpush1.bf16.msra.mxu0 0
        %1871 = vmatprep.subr.bf16.mxu0 0
        %1872 = vmatpush1.bf16.msra.mxu0 0
        %1873 = vmatprep.subr.bf16.mxu0 0
        %1874 = vmatpush1.bf16.msra.mxu0 0
        %1875 = vmatprep.subr.bf16.mxu0 0
        %1876 = vmatpush1.bf16.msra.mxu0 0
        %1877 = vmatprep.subr.bf16.mxu0 0
        %1878 = vmatpush1.bf16.msra.mxu0 %v1861
        %1879 = vmatprep.subr.bf16.mxu0 0
        %1880 = vmatpush2.bf16.msra.mxu0 0
        %1881 = vmatprep.subr.bf16.mxu0 0
        %1882 = vmatpush2.bf16.msra.mxu0 0
        %1883 = vmatprep.subr.bf16.mxu0 0
        %1884 = vmatpush2.bf16.msra.mxu0 0
        %1885 = vmatprep.subr.bf16.mxu0 0
        %1886 = vmatpush2.bf16.msra.mxu0 0
        %1887 = vmatprep.subr.bf16.mxu0 0
        %1888 = vmatpush2.bf16.msra.mxu0 0
        %1889 = vmatprep.subr.bf16.mxu0 0
        %1890 = vmatpush2.bf16.msra.mxu0 0
        %1891 = vmatprep.subr.bf16.mxu0 0
        %1892 = vmatpush2.bf16.msra.mxu0 0
        %1893 = vmatprep.subr.bf16.mxu0 0
        %1894 = vmatpush2.bf16.msra.mxu0 0
        %1895 = vmatprep.mubr.bf16.mxu0 0
        %1896 = vmatmul.mubr.bf16.gmra.mxu0 %v861
        %v1897 = vpop.f32.mrf.mxu0
        %v1898 = vadd.f32 %v1830, %v1897
        %v1899 = vpop.f32.mrf.mxu0
        %v1900 = vpop.f32.mrf.mxu0
        %v1901 = vadd.f32 %v1833, %v1900
        %v1902 = vpop.f32.mrf.mxu0
        %1903 = vmatprep.mubr.bf16.mxu0 0
        %1904 = vmatmul.mubr.bf16.gmra.mxu0 %v864
        %v1905 = vpop.f32.mrf.mxu0
        %v1906 = vadd.f32 %v1838, %v1905
        %v1907 = vpop.f32.mrf.mxu0
        %v1908 = vpop.f32.mrf.mxu0
        %v1909 = vadd.f32 %v1841, %v1908
        %v1910 = vpop.f32.mrf.mxu0
        %1911 = vmatprep.mubr.bf16.mxu0 0
        %1912 = vmatmul.mubr.bf16.gmra.mxu0 %v867
        %v1913 = vpop.f32.mrf.mxu0
        %v1914 = vadd.f32 %v1846, %v1913
        %v1915 = vpop.f32.mrf.mxu0
        %v1916 = vpop.f32.mrf.mxu0
        %v1917 = vadd.f32 %v1849, %v1916
        %v1918 = vpop.f32.mrf.mxu0
        %1919 = vmatprep.mubr.bf16.mxu0 0
        %1920 = vmatmul.mubr.bf16.gmra.mxu0 %v870
        %v1921 = vpop.f32.mrf.mxu0
        %v1922 = vadd.f32 %v1854, %v1921
        %v1923 = vpop.f32.mrf.mxu0
        %v1924 = vpop.f32.mrf.mxu0
        %v1925 = vadd.f32 %v1857, %v1924
        %v1926 = vpop.f32.mrf.mxu0
        %1927 = vdwg.mxu0
        %v1928 = vld [vmem:[%s1021] sm:$0x3]
        %v1930 = vsel %vm859, %v698, 0
        %v1933 = vsel %vm859, %v699, 0
        %v1936 = vsel %vm859, %v700, 0
        %v1939 = vsel %vm859, %v701, 0
        %v1942 = vsel %vm872, %v1928, 0
        %1944 = vmatprep.subr.bf16.mxu0 0
        %1945 = vmatpush1.bf16.msra.mxu0 0
        %1946 = vmatprep.subr.bf16.mxu0 0
        %1947 = vmatpush1.bf16.msra.mxu0 0
        %1948 = vmatprep.subr.bf16.mxu0 0
        %1949 = vmatpush1.bf16.msra.mxu0 0
        %1950 = vmatprep.subr.bf16.mxu0 0
        %1951 = vmatpush1.bf16.msra.mxu0 0
        %1952 = vmatprep.subr.bf16.mxu0 0
        %1953 = vmatpush1.bf16.msra.mxu0 0
        %1954 = vmatprep.subr.bf16.mxu0 0
        %1955 = vmatpush1.bf16.msra.mxu0 0
        %1956 = vmatprep.subr.bf16.mxu0 0
        %1957 = vmatpush1.bf16.msra.mxu0 0
        %1958 = vmatprep.subr.bf16.mxu0 0
        %1959 = vmatpush1.bf16.msra.mxu0 %v1942
        %1960 = vmatprep.subr.bf16.mxu0 0
        %1961 = vmatpush2.bf16.msra.mxu0 0
        %1962 = vmatprep.subr.bf16.mxu0 0
        %1963 = vmatpush2.bf16.msra.mxu0 0
        %1964 = vmatprep.subr.bf16.mxu0 0
        %1965 = vmatpush2.bf16.msra.mxu0 0
        %1966 = vmatprep.subr.bf16.mxu0 0
        %1967 = vmatpush2.bf16.msra.mxu0 0
        %1968 = vmatprep.subr.bf16.mxu0 0
        %1969 = vmatpush2.bf16.msra.mxu0 0
        %1970 = vmatprep.subr.bf16.mxu0 0
        %1971 = vmatpush2.bf16.msra.mxu0 0
        %1972 = vmatprep.subr.bf16.mxu0 0
        %1973 = vmatpush2.bf16.msra.mxu0 0
        %1974 = vmatprep.subr.bf16.mxu0 0
        %1975 = vmatpush2.bf16.msra.mxu0 0
        %1976 = vmatprep.mubr.bf16.mxu0 0
        %1977 = vmatmul.mubr.bf16.gmra.mxu0 %v1930
        %v1978 = vpop.f32.mrf.mxu0
        %v1979 = vadd.f32 0.0, %v1978
        %v1980 = vpop.f32.mrf.mxu0
        %v1981 = vpop.f32.mrf.mxu0
        %v1982 = vadd.f32 0.0, %v1981
        %v1983 = vpop.f32.mrf.mxu0
        %1984 = vmatprep.mubr.bf16.mxu0 0
        %1985 = vmatmul.mubr.bf16.gmra.mxu0 %v1933
        %v1986 = vpop.f32.mrf.mxu0
        %v1987 = vadd.f32 0.0, %v1986
        %v1988 = vpop.f32.mrf.mxu0
        %v1989 = vpop.f32.mrf.mxu0
        %v1990 = vadd.f32 0.0, %v1989
        %v1991 = vpop.f32.mrf.mxu0
        %1992 = vmatprep.mubr.bf16.mxu0 0
        %1993 = vmatmul.mubr.bf16.gmra.mxu0 %v1936
        %v1994 = vpop.f32.mrf.mxu0
        %v1995 = vadd.f32 0.0, %v1994
        %v1996 = vpop.f32.mrf.mxu0
        %v1997 = vpop.f32.mrf.mxu0
        %v1998 = vadd.f32 0.0, %v1997
        %v1999 = vpop.f32.mrf.mxu0
        %2000 = vmatprep.mubr.bf16.mxu0 0
        %2001 = vmatmul.mubr.bf16.gmra.mxu0 %v1939
        %v2002 = vpop.f32.mrf.mxu0
        %v2003 = vadd.f32 0.0, %v2002
        %v2004 = vpop.f32.mrf.mxu0
        %v2005 = vpop.f32.mrf.mxu0
        %v2006 = vadd.f32 0.0, %v2005
        %v2007 = vpop.f32.mrf.mxu0
        %2008 = vdwg.mxu0
        %v2009 = vadd.f32 %v1898, %v1979
        %v2010 = vadd.f32 %v1901, %v1982
        %v2011 = vadd.f32 %v1906, %v1987
        %v2012 = vadd.f32 %v1909, %v1990
        %v2013 = vadd.f32 %v1914, %v1995
        %v2014 = vadd.f32 %v1917, %v1998
        %v2015 = vadd.f32 %v1922, %v2003
        %v2016 = vadd.f32 %v1925, %v2006
        %v2017 = vld [vmem:[%s1111] sm:$0x3]
        %v2019 = vsel %vm872, %v2017, 0
        %2021 = vmatprep.subr.bf16.mxu0 0
        %2022 = vmatpush1.bf16.msra.mxu0 0
        %2023 = vmatprep.subr.bf16.mxu0 0
        %2024 = vmatpush1.bf16.msra.mxu0 0
        %2025 = vmatprep.subr.bf16.mxu0 0
        %2026 = vmatpush1.bf16.msra.mxu0 0
        %2027 = vmatprep.subr.bf16.mxu0 0
        %2028 = vmatpush1.bf16.msra.mxu0 0
        %2029 = vmatprep.subr.bf16.mxu0 0
        %2030 = vmatpush1.bf16.msra.mxu0 0
        %2031 = vmatprep.subr.bf16.mxu0 0
        %2032 = vmatpush1.bf16.msra.mxu0 0
        %2033 = vmatprep.subr.bf16.mxu0 0
        %2034 = vmatpush1.bf16.msra.mxu0 0
        %2035 = vmatprep.subr.bf16.mxu0 0
        %2036 = vmatpush1.bf16.msra.mxu0 %v2019
        %2037 = vmatprep.subr.bf16.mxu0 0
        %2038 = vmatpush2.bf16.msra.mxu0 0
        %2039 = vmatprep.subr.bf16.mxu0 0
        %2040 = vmatpush2.bf16.msra.mxu0 0
        %2041 = vmatprep.subr.bf16.mxu0 0
        %2042 = vmatpush2.bf16.msra.mxu0 0
        %2043 = vmatprep.subr.bf16.mxu0 0
        %2044 = vmatpush2.bf16.msra.mxu0 0
        %2045 = vmatprep.subr.bf16.mxu0 0
        %2046 = vmatpush2.bf16.msra.mxu0 0
        %2047 = vmatprep.subr.bf16.mxu0 0
        %2048 = vmatpush2.bf16.msra.mxu0 0
        %2049 = vmatprep.subr.bf16.mxu0 0
        %2050 = vmatpush2.bf16.msra.mxu0 0
        %2051 = vmatprep.subr.bf16.mxu0 0
        %2052 = vmatpush2.bf16.msra.mxu0 0
        %2053 = vmatprep.mubr.bf16.mxu0 0
        %2054 = vmatmul.mubr.bf16.gmra.mxu0 %v1204
        %v2055 = vpop.f32.mrf.mxu0
        %v2056 = vadd.f32 0.0, %v2055
        %v2057 = vpop.f32.mrf.mxu0
        %v2058 = vpop.f32.mrf.mxu0
        %v2059 = vadd.f32 0.0, %v2058
        %v2060 = vpop.f32.mrf.mxu0
        %2061 = vmatprep.mubr.bf16.mxu0 0
        %2062 = vmatmul.mubr.bf16.gmra.mxu0 %v1207
        %v2063 = vpop.f32.mrf.mxu0
        %v2064 = vadd.f32 0.0, %v2063
        %v2065 = vpop.f32.mrf.mxu0
        %v2066 = vpop.f32.mrf.mxu0
        %v2067 = vadd.f32 0.0, %v2066
        %v2068 = vpop.f32.mrf.mxu0
        %2069 = vmatprep.mubr.bf16.mxu0 0
        %2070 = vmatmul.mubr.bf16.gmra.mxu0 %v1210
        %v2071 = vpop.f32.mrf.mxu0
        %v2072 = vadd.f32 0.0, %v2071
        %v2073 = vpop.f32.mrf.mxu0
        %v2074 = vpop.f32.mrf.mxu0
        %v2075 = vadd.f32 0.0, %v2074
        %v2076 = vpop.f32.mrf.mxu0
        %2077 = vmatprep.mubr.bf16.mxu0 0
        %2078 = vmatmul.mubr.bf16.gmra.mxu0 %v1213
        %v2079 = vpop.f32.mrf.mxu0
        %v2080 = vadd.f32 0.0, %v2079
        %v2081 = vpop.f32.mrf.mxu0
        %v2082 = vpop.f32.mrf.mxu0
        %v2083 = vadd.f32 0.0, %v2082
        %v2084 = vpop.f32.mrf.mxu0
        %2085 = vdwg.mxu0
        %v2086 = vadd.f32 %v2009, %v2056
        %v2087 = vadd.f32 %v2010, %v2059
        %v2088 = vadd.f32 %v2011, %v2064
        %v2089 = vadd.f32 %v2012, %v2067
        %v2090 = vadd.f32 %v2013, %v2072
        %v2091 = vadd.f32 %v2014, %v2075
        %v2092 = vadd.f32 %v2015, %v2080
        %v2093 = vadd.f32 %v2016, %v2083
        %v2094 = vld [vmem:[%s1201] sm:$0x3]
        %v2096 = vsel %vm872, %v2094, 0
        %2098 = vmatprep.subr.bf16.mxu0 0
        %2099 = vmatpush1.bf16.msra.mxu0 0
        %2100 = vmatprep.subr.bf16.mxu0 0
        %2101 = vmatpush1.bf16.msra.mxu0 0
        %2102 = vmatprep.subr.bf16.mxu0 0
        %2103 = vmatpush1.bf16.msra.mxu0 0
        %2104 = vmatprep.subr.bf16.mxu0 0
        %2105 = vmatpush1.bf16.msra.mxu0 0
        %2106 = vmatprep.subr.bf16.mxu0 0
        %2107 = vmatpush1.bf16.msra.mxu0 0
        %2108 = vmatprep.subr.bf16.mxu0 0
        %2109 = vmatpush1.bf16.msra.mxu0 0
        %2110 = vmatprep.subr.bf16.mxu0 0
        %2111 = vmatpush1.bf16.msra.mxu0 0
        %2112 = vmatprep.subr.bf16.mxu0 0
        %2113 = vmatpush1.bf16.msra.mxu0 %v2096
        %2114 = vmatprep.subr.bf16.mxu0 0
        %2115 = vmatpush2.bf16.msra.mxu0 0
        %2116 = vmatprep.subr.bf16.mxu0 0
        %2117 = vmatpush2.bf16.msra.mxu0 0
        %2118 = vmatprep.subr.bf16.mxu0 0
        %2119 = vmatpush2.bf16.msra.mxu0 0
        %2120 = vmatprep.subr.bf16.mxu0 0
        %2121 = vmatpush2.bf16.msra.mxu0 0
        %2122 = vmatprep.subr.bf16.mxu0 0
        %2123 = vmatpush2.bf16.msra.mxu0 0
        %2124 = vmatprep.subr.bf16.mxu0 0
        %2125 = vmatpush2.bf16.msra.mxu0 0
        %2126 = vmatprep.subr.bf16.mxu0 0
        %2127 = vmatpush2.bf16.msra.mxu0 0
        %2128 = vmatprep.subr.bf16.mxu0 0
        %2129 = vmatpush2.bf16.msra.mxu0 0
        %2130 = vmatprep.mubr.bf16.mxu0 0
        %2131 = vmatmul.mubr.bf16.gmra.mxu0 %v1294
        %v2132 = vpop.f32.mrf.mxu0
        %v2133 = vadd.f32 0.0, %v2132
        %v2134 = vpop.f32.mrf.mxu0
        %v2135 = vpop.f32.mrf.mxu0
        %v2136 = vadd.f32 0.0, %v2135
        %v2137 = vpop.f32.mrf.mxu0
        %2138 = vmatprep.mubr.bf16.mxu0 0
        %2139 = vmatmul.mubr.bf16.gmra.mxu0 %v1297
        %v2140 = vpop.f32.mrf.mxu0
        %v2141 = vadd.f32 0.0, %v2140
        %v2142 = vpop.f32.mrf.mxu0
        %v2143 = vpop.f32.mrf.mxu0
        %v2144 = vadd.f32 0.0, %v2143
        %v2145 = vpop.f32.mrf.mxu0
        %2146 = vmatprep.mubr.bf16.mxu0 0
        %2147 = vmatmul.mubr.bf16.gmra.mxu0 %v1300
        %v2148 = vpop.f32.mrf.mxu0
        %v2149 = vadd.f32 0.0, %v2148
        %v2150 = vpop.f32.mrf.mxu0
        %v2151 = vpop.f32.mrf.mxu0
        %v2152 = vadd.f32 0.0, %v2151
        %v2153 = vpop.f32.mrf.mxu0
        %2154 = vmatprep.mubr.bf16.mxu0 0
        %2155 = vmatmul.mubr.bf16.gmra.mxu0 %v1303
        %v2156 = vpop.f32.mrf.mxu0
        %v2157 = vadd.f32 0.0, %v2156
        %v2158 = vpop.f32.mrf.mxu0
        %v2159 = vpop.f32.mrf.mxu0
        %v2160 = vadd.f32 0.0, %v2159
        %v2161 = vpop.f32.mrf.mxu0
        %2162 = vdwg.mxu0
        %v2163 = vadd.f32 %v2086, %v2133
        %v2164 = vadd.f32 %v2087, %v2136
        %v2165 = vadd.f32 %v2088, %v2141
        %v2166 = vadd.f32 %v2089, %v2144
        %v2167 = vadd.f32 %v2090, %v2149
        %v2168 = vadd.f32 %v2091, %v2152
        %v2169 = vadd.f32 %v2092, %v2157
        %v2170 = vadd.f32 %v2093, %v2160
        %v2171 = vld [vmem:[%s1291] sm:$0x3]
        %v2173 = vsel %vm859, %v838, 0
        %v2176 = vsel %vm859, %v839, 0
        %v2179 = vsel %vm859, %v840, 0
        %v2182 = vsel %vm859, %v841, 0
        %v2185 = vsel %vm872, %v2171, 0
        %2187 = vmatprep.subr.bf16.mxu0 0
        %2188 = vmatpush1.bf16.msra.mxu0 0
        %2189 = vmatprep.subr.bf16.mxu0 0
        %2190 = vmatpush1.bf16.msra.mxu0 0
        %2191 = vmatprep.subr.bf16.mxu0 0
        %2192 = vmatpush1.bf16.msra.mxu0 0
        %2193 = vmatprep.subr.bf16.mxu0 0
        %2194 = vmatpush1.bf16.msra.mxu0 0
        %2195 = vmatprep.subr.bf16.mxu0 0
        %2196 = vmatpush1.bf16.msra.mxu0 0
        %2197 = vmatprep.subr.bf16.mxu0 0
        %2198 = vmatpush1.bf16.msra.mxu0 0
        %2199 = vmatprep.subr.bf16.mxu0 0
        %2200 = vmatpush1.bf16.msra.mxu0 0
        %2201 = vmatprep.subr.bf16.mxu0 0
        %2202 = vmatpush1.bf16.msra.mxu0 %v2185
        %2203 = vmatprep.subr.bf16.mxu0 0
        %2204 = vmatpush2.bf16.msra.mxu0 0
        %2205 = vmatprep.subr.bf16.mxu0 0
        %2206 = vmatpush2.bf16.msra.mxu0 0
        %2207 = vmatprep.subr.bf16.mxu0 0
        %2208 = vmatpush2.bf16.msra.mxu0 0
        %2209 = vmatprep.subr.bf16.mxu0 0
        %2210 = vmatpush2.bf16.msra.mxu0 0
        %2211 = vmatprep.subr.bf16.mxu0 0
        %2212 = vmatpush2.bf16.msra.mxu0 0
        %2213 = vmatprep.subr.bf16.mxu0 0
        %2214 = vmatpush2.bf16.msra.mxu0 0
        %2215 = vmatprep.subr.bf16.mxu0 0
        %2216 = vmatpush2.bf16.msra.mxu0 0
        %2217 = vmatprep.subr.bf16.mxu0 0
        %2218 = vmatpush2.bf16.msra.mxu0 0
        %2219 = vmatprep.mubr.bf16.mxu0 0
        %2220 = vmatmul.mubr.bf16.gmra.mxu0 %v2173
        %v2221 = vpop.f32.mrf.mxu0
        %v2222 = vadd.f32 0.0, %v2221
        %v2223 = vpop.f32.mrf.mxu0
        %v2224 = vpop.f32.mrf.mxu0
        %v2225 = vadd.f32 0.0, %v2224
        %v2226 = vpop.f32.mrf.mxu0
        %2227 = vmatprep.mubr.bf16.mxu0 0
        %2228 = vmatmul.mubr.bf16.gmra.mxu0 %v2176
        %v2229 = vpop.f32.mrf.mxu0
        %v2230 = vadd.f32 0.0, %v2229
        %v2231 = vpop.f32.mrf.mxu0
        %v2232 = vpop.f32.mrf.mxu0
        %v2233 = vadd.f32 0.0, %v2232
        %v2234 = vpop.f32.mrf.mxu0
        %2235 = vmatprep.mubr.bf16.mxu0 0
        %2236 = vmatmul.mubr.bf16.gmra.mxu0 %v2179
        %v2237 = vpop.f32.mrf.mxu0
        %v2238 = vadd.f32 0.0, %v2237
        %v2239 = vpop.f32.mrf.mxu0
        %v2240 = vpop.f32.mrf.mxu0
        %v2241 = vadd.f32 0.0, %v2240
        %v2242 = vpop.f32.mrf.mxu0
        %2243 = vmatprep.mubr.bf16.mxu0 0
        %2244 = vmatmul.mubr.bf16.gmra.mxu0 %v2182
        %v2245 = vpop.f32.mrf.mxu0
        %v2246 = vadd.f32 0.0, %v2245
        %v2247 = vpop.f32.mrf.mxu0
        %v2248 = vpop.f32.mrf.mxu0
        %v2249 = vadd.f32 0.0, %v2248
        %v2250 = vpop.f32.mrf.mxu0
        %2251 = vdwg.mxu0
        %v2252 = vadd.f32 %v2163, %v2222
        %v2253 = vadd.f32 %v2164, %v2225
        %v2254 = vadd.f32 %v2165, %v2230
        %v2255 = vadd.f32 %v2166, %v2233
        %v2256 = vadd.f32 %v2167, %v2238
        %v2257 = vadd.f32 %v2168, %v2241
        %v2258 = vadd.f32 %v2169, %v2246
        %v2259 = vadd.f32 %v2170, %v2249
        %v2260 = vld [vmem:[%s1381] sm:$0x3]
        %v2262 = vsel %vm872, %v2260, 0
        %2264 = vmatprep.subr.bf16.mxu0 0
        %2265 = vmatpush1.bf16.msra.mxu0 0
        %2266 = vmatprep.subr.bf16.mxu0 0
        %2267 = vmatpush1.bf16.msra.mxu0 0
        %2268 = vmatprep.subr.bf16.mxu0 0
        %2269 = vmatpush1.bf16.msra.mxu0 0
        %2270 = vmatprep.subr.bf16.mxu0 0
        %2271 = vmatpush1.bf16.msra.mxu0 0
        %2272 = vmatprep.subr.bf16.mxu0 0
        %2273 = vmatpush1.bf16.msra.mxu0 0
        %2274 = vmatprep.subr.bf16.mxu0 0
        %2275 = vmatpush1.bf16.msra.mxu0 0
        %2276 = vmatprep.subr.bf16.mxu0 0
        %2277 = vmatpush1.bf16.msra.mxu0 0
        %2278 = vmatprep.subr.bf16.mxu0 0
        %2279 = vmatpush1.bf16.msra.mxu0 %v2262
        %2280 = vmatprep.subr.bf16.mxu0 0
        %2281 = vmatpush2.bf16.msra.mxu0 0
        %2282 = vmatprep.subr.bf16.mxu0 0
        %2283 = vmatpush2.bf16.msra.mxu0 0
        %2284 = vmatprep.subr.bf16.mxu0 0
        %2285 = vmatpush2.bf16.msra.mxu0 0
        %2286 = vmatprep.subr.bf16.mxu0 0
        %2287 = vmatpush2.bf16.msra.mxu0 0
        %2288 = vmatprep.subr.bf16.mxu0 0
        %2289 = vmatpush2.bf16.msra.mxu0 0
        %2290 = vmatprep.subr.bf16.mxu0 0
        %2291 = vmatpush2.bf16.msra.mxu0 0
        %2292 = vmatprep.subr.bf16.mxu0 0
        %2293 = vmatpush2.bf16.msra.mxu0 0
        %2294 = vmatprep.subr.bf16.mxu0 0
        %2295 = vmatpush2.bf16.msra.mxu0 0
        %2296 = vmatprep.mubr.bf16.mxu0 0
        %2297 = vmatmul.mubr.bf16.gmra.mxu0 %v1474
        %v2298 = vpop.f32.mrf.mxu0
        %v2299 = vadd.f32 0.0, %v2298
        %v2300 = vpop.f32.mrf.mxu0
        %v2301 = vpop.f32.mrf.mxu0
        %v2302 = vadd.f32 0.0, %v2301
        %v2303 = vpop.f32.mrf.mxu0
        %2304 = vmatprep.mubr.bf16.mxu0 0
        %2305 = vmatmul.mubr.bf16.gmra.mxu0 %v1477
        %v2306 = vpop.f32.mrf.mxu0
        %v2307 = vadd.f32 0.0, %v2306
        %v2308 = vpop.f32.mrf.mxu0
        %v2309 = vpop.f32.mrf.mxu0
        %v2310 = vadd.f32 0.0, %v2309
        %v2311 = vpop.f32.mrf.mxu0
        %2312 = vmatprep.mubr.bf16.mxu0 0
        %2313 = vmatmul.mubr.bf16.gmra.mxu0 %v1480
        %v2314 = vpop.f32.mrf.mxu0
        %v2315 = vadd.f32 0.0, %v2314
        %v2316 = vpop.f32.mrf.mxu0
        %v2317 = vpop.f32.mrf.mxu0
        %v2318 = vadd.f32 0.0, %v2317
        %v2319 = vpop.f32.mrf.mxu0
        %2320 = vmatprep.mubr.bf16.mxu0 0
        %2321 = vmatmul.mubr.bf16.gmra.mxu0 %v1483
        %v2322 = vpop.f32.mrf.mxu0
        %v2323 = vadd.f32 0.0, %v2322
        %v2324 = vpop.f32.mrf.mxu0
        %v2325 = vpop.f32.mrf.mxu0
        %v2326 = vadd.f32 0.0, %v2325
        %v2327 = vpop.f32.mrf.mxu0
        %2328 = vdwg.mxu0
        %v2329 = vadd.f32 %v2252, %v2299
        %v2330 = vadd.f32 %v2253, %v2302
        %v2331 = vadd.f32 %v2254, %v2307
        %v2332 = vadd.f32 %v2255, %v2310
        %v2333 = vadd.f32 %v2256, %v2315
        %v2334 = vadd.f32 %v2257, %v2318
        %v2335 = vadd.f32 %v2258, %v2323
        %v2336 = vadd.f32 %v2259, %v2326
        %v2337 = vld [vmem:[%s1471] sm:$0x3]
        %v2339 = vsel %vm872, %v2337, 0
        %2341 = vmatprep.subr.bf16.mxu0 0
        %2342 = vmatpush1.bf16.msra.mxu0 0
        %2343 = vmatprep.subr.bf16.mxu0 0
        %2344 = vmatpush1.bf16.msra.mxu0 0
        %2345 = vmatprep.subr.bf16.mxu0 0
        %2346 = vmatpush1.bf16.msra.mxu0 0
        %2347 = vmatprep.subr.bf16.mxu0 0
        %2348 = vmatpush1.bf16.msra.mxu0 0
        %2349 = vmatprep.subr.bf16.mxu0 0
        %2350 = vmatpush1.bf16.msra.mxu0 0
        %2351 = vmatprep.subr.bf16.mxu0 0
        %2352 = vmatpush1.bf16.msra.mxu0 0
        %2353 = vmatprep.subr.bf16.mxu0 0
        %2354 = vmatpush1.bf16.msra.mxu0 0
        %2355 = vmatprep.subr.bf16.mxu0 0
        %2356 = vmatpush1.bf16.msra.mxu0 %v2339
        %2357 = vmatprep.subr.bf16.mxu0 0
        %2358 = vmatpush2.bf16.msra.mxu0 0
        %2359 = vmatprep.subr.bf16.mxu0 0
        %2360 = vmatpush2.bf16.msra.mxu0 0
        %2361 = vmatprep.subr.bf16.mxu0 0
        %2362 = vmatpush2.bf16.msra.mxu0 0
        %2363 = vmatprep.subr.bf16.mxu0 0
        %2364 = vmatpush2.bf16.msra.mxu0 0
        %2365 = vmatprep.subr.bf16.mxu0 0
        %2366 = vmatpush2.bf16.msra.mxu0 0
        %2367 = vmatprep.subr.bf16.mxu0 0
        %2368 = vmatpush2.bf16.msra.mxu0 0
        %2369 = vmatprep.subr.bf16.mxu0 0
        %2370 = vmatpush2.bf16.msra.mxu0 0
        %2371 = vmatprep.subr.bf16.mxu0 0
        %2372 = vmatpush2.bf16.msra.mxu0 0
        %2373 = vmatprep.mubr.bf16.mxu0 0
        %2374 = vmatmul.mubr.bf16.gmra.mxu0 %v1564
        %v2375 = vpop.f32.mrf.mxu0
        %v2376 = vadd.f32 0.0, %v2375
        %v2377 = vpop.f32.mrf.mxu0
        %v2378 = vpop.f32.mrf.mxu0
        %v2379 = vadd.f32 0.0, %v2378
        %v2380 = vpop.f32.mrf.mxu0
        %2381 = vmatprep.mubr.bf16.mxu0 0
        %2382 = vmatmul.mubr.bf16.gmra.mxu0 %v1567
        %v2383 = vpop.f32.mrf.mxu0
        %v2384 = vadd.f32 0.0, %v2383
        %v2385 = vpop.f32.mrf.mxu0
        %v2386 = vpop.f32.mrf.mxu0
        %v2387 = vadd.f32 0.0, %v2386
        %v2388 = vpop.f32.mrf.mxu0
        %2389 = vmatprep.mubr.bf16.mxu0 0
        %2390 = vmatmul.mubr.bf16.gmra.mxu0 %v1570
        %v2391 = vpop.f32.mrf.mxu0
        %v2392 = vadd.f32 0.0, %v2391
        %v2393 = vpop.f32.mrf.mxu0
        %v2394 = vpop.f32.mrf.mxu0
        %v2395 = vadd.f32 0.0, %v2394
        %v2396 = vpop.f32.mrf.mxu0
        %2397 = vmatprep.mubr.bf16.mxu0 0
        %2398 = vmatmul.mubr.bf16.gmra.mxu0 %v1573
        %v2399 = vpop.f32.mrf.mxu0
        %v2400 = vadd.f32 0.0, %v2399
        %v2401 = vpop.f32.mrf.mxu0
        %v2402 = vpop.f32.mrf.mxu0
        %v2403 = vadd.f32 0.0, %v2402
        %v2404 = vpop.f32.mrf.mxu0
        %2405 = vdwg.mxu0
        %v2406 = vadd.f32 %v2329, %v2376
        %v2407 = vadd.f32 %v2330, %v2379
        %v2408 = vadd.f32 %v2331, %v2384
        %v2409 = vadd.f32 %v2332, %v2387
        %v2410 = vadd.f32 %v2333, %v2392
        %v2411 = vadd.f32 %v2334, %v2395
        %v2412 = vadd.f32 %v2335, %v2400
        %v2413 = vadd.f32 %v2336, %v2403
        %v2414 = vld [vmem:[%s1561] sm:$0x3]
        %v2416 = vsel %vm859, %v712, 0
        %v2419 = vsel %vm859, %v713, 0
        %v2422 = vsel %vm859, %v714, 0
        %v2425 = vsel %vm859, %v715, 0
        %v2428 = vsel %vm872, %v2414, 0
        %2430 = vmatprep.subr.bf16.mxu0 0
        %2431 = vmatpush1.bf16.msra.mxu0 0
        %2432 = vmatprep.subr.bf16.mxu0 0
        %2433 = vmatpush1.bf16.msra.mxu0 0
        %2434 = vmatprep.subr.bf16.mxu0 0
        %2435 = vmatpush1.bf16.msra.mxu0 0
        %2436 = vmatprep.subr.bf16.mxu0 0
        %2437 = vmatpush1.bf16.msra.mxu0 0
        %2438 = vmatprep.subr.bf16.mxu0 0
        %2439 = vmatpush1.bf16.msra.mxu0 0
        %2440 = vmatprep.subr.bf16.mxu0 0
        %2441 = vmatpush1.bf16.msra.mxu0 0
        %2442 = vmatprep.subr.bf16.mxu0 0
        %2443 = vmatpush1.bf16.msra.mxu0 0
        %2444 = vmatprep.subr.bf16.mxu0 0
        %2445 = vmatpush1.bf16.msra.mxu0 %v2428
        %2446 = vmatprep.subr.bf16.mxu0 0
        %2447 = vmatpush2.bf16.msra.mxu0 0
        %2448 = vmatprep.subr.bf16.mxu0 0
        %2449 = vmatpush2.bf16.msra.mxu0 0
        %2450 = vmatprep.subr.bf16.mxu0 0
        %2451 = vmatpush2.bf16.msra.mxu0 0
        %2452 = vmatprep.subr.bf16.mxu0 0
        %2453 = vmatpush2.bf16.msra.mxu0 0
        %2454 = vmatprep.subr.bf16.mxu0 0
        %2455 = vmatpush2.bf16.msra.mxu0 0
        %2456 = vmatprep.subr.bf16.mxu0 0
        %2457 = vmatpush2.bf16.msra.mxu0 0
        %2458 = vmatprep.subr.bf16.mxu0 0
        %2459 = vmatpush2.bf16.msra.mxu0 0
        %2460 = vmatprep.subr.bf16.mxu0 0
        %2461 = vmatpush2.bf16.msra.mxu0 0
        %2462 = vmatprep.mubr.bf16.mxu0 0
        %2463 = vmatmul.mubr.bf16.gmra.mxu0 %v2416
        %v2464 = vpop.f32.mrf.mxu0
        %v2465 = vadd.f32 0.0, %v2464
        %v2466 = vpop.f32.mrf.mxu0
        %v2467 = vpop.f32.mrf.mxu0
        %v2468 = vadd.f32 0.0, %v2467
        %v2469 = vpop.f32.mrf.mxu0
        %2470 = vmatprep.mubr.bf16.mxu0 0
        %2471 = vmatmul.mubr.bf16.gmra.mxu0 %v2419
        %v2472 = vpop.f32.mrf.mxu0
        %v2473 = vadd.f32 0.0, %v2472
        %v2474 = vpop.f32.mrf.mxu0
        %v2475 = vpop.f32.mrf.mxu0
        %v2476 = vadd.f32 0.0, %v2475
        %v2477 = vpop.f32.mrf.mxu0
        %2478 = vmatprep.mubr.bf16.mxu0 0
        %2479 = vmatmul.mubr.bf16.gmra.mxu0 %v2422
        %v2480 = vpop.f32.mrf.mxu0
        %v2481 = vadd.f32 0.0, %v2480
        %v2482 = vpop.f32.mrf.mxu0
        %v2483 = vpop.f32.mrf.mxu0
        %v2484 = vadd.f32 0.0, %v2483
        %v2485 = vpop.f32.mrf.mxu0
        %2486 = vmatprep.mubr.bf16.mxu0 0
        %2487 = vmatmul.mubr.bf16.gmra.mxu0 %v2425
        %v2488 = vpop.f32.mrf.mxu0
        %v2489 = vadd.f32 0.0, %v2488
        %v2490 = vpop.f32.mrf.mxu0
        %v2491 = vpop.f32.mrf.mxu0
        %v2492 = vadd.f32 0.0, %v2491
        %v2493 = vpop.f32.mrf.mxu0
        %2494 = vdwg.mxu0
        %v2495 = vadd.f32 %v2406, %v2465
        %v2496 = vadd.f32 %v2407, %v2468
        %v2497 = vadd.f32 %v2408, %v2473
        %v2498 = vadd.f32 %v2409, %v2476
        %v2499 = vadd.f32 %v2410, %v2481
        %v2500 = vadd.f32 %v2411, %v2484
        %v2501 = vadd.f32 %v2412, %v2489
        %v2502 = vadd.f32 %v2413, %v2492
        %v2503 = vld [vmem:[%s2] sm:$0x1]
        %v2505 = vlaneseq
        %v2506 = vshrl.u32 %v2505, 7
        %v2507 = vsub.s32 0, %v2506
        %v2508 = vrot.slane %v2503, %v2507
        %v2510 = vadd.f32 %v2495, %v2508
        %v2511 = vadd.f32 %v2496, %v2508
        %v2512 = vadd.f32 %v2497, %v2508
        %v2513 = vadd.f32 %v2498, %v2508
        %v2514 = vadd.f32 %v2499, %v2508
        %v2515 = vadd.f32 %v2500, %v2508
        %v2516 = vadd.f32 %v2501, %v2508
        %v2517 = vadd.f32 %v2502, %v2508
        %v2518 = vmax.f32 %v2510, 0.0
        %v2519 = vmax.f32 %v2511, 0.0
        %v2520 = vmax.f32 %v2512, 0.0
        %v2521 = vmax.f32 %v2513, 0.0
        %v2522 = vmax.f32 %v2514, 0.0
        %v2523 = vmax.f32 %v2515, 0.0
        %v2524 = vmax.f32 %v2516, 0.0
        %v2525 = vmax.f32 %v2517, 0.0
        %s2526 = scalar_lea.vmem [#allocation3], 288
        %2527 = vst.msk [vmem:[%s2526 + $0x1] sm:$0xff] %vm1675, %v2518
        %2528 = vst.msk [vmem:[%s2526 + $0x11] sm:$0xff] %vm1675, %v2519
        %2529 = vst.msk [vmem:[%s2526 + $0x21] sm:$0xff] %vm1675, %v2520
        %2530 = vst.msk [vmem:[%s2526 + $0x31] sm:$0xff] %vm1675, %v2521
        %2531 = vst.msk [vmem:[%s2526 + $0x41] sm:$0xff] %vm1675, %v2522
        %2532 = vst.msk [vmem:[%s2526 + $0x51] sm:$0xff] %vm1675, %v2523
        %2533 = vst.msk [vmem:[%s2526 + $0x61] sm:$0xff] %vm1675, %v2524
        %2534 = vst.msk [vmem:[%s2526 + $0x71] sm:$0xff] %vm1675, %v2525
        %2543 = vrot.lane.b32.xlu0 %v2518, 104
        %v2544 = vpop.permute.xlu0 %2543
        %2545 = vrot.lane.b32.xlu0 %v2519, 104
        %v2546 = vpop.permute.xlu0 %2545
        %2547 = vrot.lane.b32.xlu0 %v2520, 104
        %v2548 = vpop.permute.xlu0 %2547
        %2549 = vrot.lane.b32.xlu0 %v2521, 104
        %v2550 = vpop.permute.xlu0 %2549
        %2551 = vrot.lane.b32.xlu0 %v2522, 104
        %v2552 = vpop.permute.xlu0 %2551
        %2553 = vrot.lane.b32.xlu0 %v2523, 104
        %v2554 = vpop.permute.xlu0 %2553
        %2555 = vrot.lane.b32.xlu0 %v2524, 104
        %v2556 = vpop.permute.xlu0 %2555
        %2557 = vrot.lane.b32.xlu0 %v2525, 104
        %v2558 = vpop.permute.xlu0 %2557
        %2567 = vst.msk [vmem:[%s2526 + $0x1] sm:$0xff] %vm1716, %v2544
        %2568 = vst.msk [vmem:[%s2526 + $0x11] sm:$0xff] %vm1716, %v2546
        %2569 = vst.msk [vmem:[%s2526 + $0x21] sm:$0xff] %vm1716, %v2548
        %2570 = vst.msk [vmem:[%s2526 + $0x31] sm:$0xff] %vm1716, %v2550
        %2571 = vst.msk [vmem:[%s2526 + $0x41] sm:$0xff] %vm1716, %v2552
        %2572 = vst.msk [vmem:[%s2526 + $0x51] sm:$0xff] %vm1716, %v2554
        %2573 = vst.msk [vmem:[%s2526 + $0x61] sm:$0xff] %vm1716, %v2556
        %2574 = vst.msk [vmem:[%s2526 + $0x71] sm:$0xff] %vm1716, %v2558
        %v2575 = vpack.c.bf16 %v2518, %v2518
        %v2576 = vpack.c.bf16 %v2519, %v2519
        %v2577 = vpack.c.bf16 %v2520, %v2520
        %v2578 = vpack.c.bf16 %v2521, %v2521
        %v2579 = vpack.c.bf16 %v2522, %v2522
        %v2580 = vpack.c.bf16 %v2523, %v2523
        %v2581 = vpack.c.bf16 %v2524, %v2524
        %v2582 = vpack.c.bf16 %v2525, %v2525
        %v2591 = vunpack.c.l.b16 %v2575
        %v2592 = vunpack.c.l.b16 %v2576
        %v2593 = vunpack.c.l.b16 %v2577
        %v2594 = vunpack.c.l.b16 %v2578
        %v2595 = vunpack.c.l.b16 %v2579
        %v2596 = vunpack.c.l.b16 %v2580
        %v2597 = vunpack.c.l.b16 %v2581
        %v2598 = vunpack.c.l.b16 %v2582
        %v2599 = vpack.c.b16 %v2591, %v2591
        %v2600 = vpack.c.b16 %v2592, %v2592
        %v2601 = vpack.c.b16 %v2593, %v2593
        %v2602 = vpack.c.b16 %v2594, %v2594
        %v2603 = vpack.c.b16 %v2595, %v2595
        %v2604 = vpack.c.b16 %v2596, %v2596
        %v2605 = vpack.c.b16 %v2597, %v2597
        %v2606 = vpack.c.b16 %v2598, %v2598
        %v2608 = vshrl.u32 %v2599, 16
        %v2610 = vrot.slane %v2608, 7
        %v2611 = vshll.u32 %v2599, 16
        %v2613 = vor.u32 %v2610, %v2611
        %v2614 = vrot.slane %v2610, 4
        %v2616 = vshrl.u32 %v2600, 16
        %v2618 = vrot.slane %v2616, 7
        %v2619 = vshll.u32 %v2600, 16
        %v2621 = vor.u32 %v2618, %v2619
        %v2622 = vrot.slane %v2618, 4
        %v2624 = vshrl.u32 %v2601, 16
        %v2626 = vrot.slane %v2624, 7
        %v2627 = vshll.u32 %v2601, 16
        %v2629 = vor.u32 %v2626, %v2627
        %v2630 = vrot.slane %v2626, 4
        %v2632 = vshrl.u32 %v2602, 16
        %v2634 = vrot.slane %v2632, 7
        %v2635 = vshll.u32 %v2602, 16
        %v2637 = vor.u32 %v2634, %v2635
        %v2638 = vrot.slane %v2634, 4
        %v2640 = vshrl.u32 %v2603, 16
        %v2642 = vrot.slane %v2640, 7
        %v2643 = vshll.u32 %v2603, 16
        %v2645 = vor.u32 %v2642, %v2643
        %v2646 = vrot.slane %v2642, 4
        %v2648 = vshrl.u32 %v2604, 16
        %v2650 = vrot.slane %v2648, 7
        %v2651 = vshll.u32 %v2604, 16
        %v2653 = vor.u32 %v2650, %v2651
        %v2654 = vrot.slane %v2650, 4
        %v2656 = vshrl.u32 %v2605, 16
        %v2658 = vrot.slane %v2656, 7
        %v2659 = vshll.u32 %v2605, 16
        %v2661 = vor.u32 %v2658, %v2659
        %v2662 = vrot.slane %v2658, 4
        %v2664 = vshrl.u32 %v2606, 16
        %v2666 = vrot.slane %v2664, 7
        %v2667 = vshll.u32 %v2606, 16
        %v2669 = vor.u32 %v2666, %v2667
        %v2670 = vrot.slane %v2666, 4
        %2671 = vrot.lane.b32.xlu0 %v2613, 112
        %v2672 = vpop.permute.xlu0 %2671
        %2673 = vrot.lane.b32.xlu0 %v2614, 112
        %v2674 = vpop.permute.xlu0 %2673
        %2675 = vrot.lane.b32.xlu0 %v2621, 112
        %v2676 = vpop.permute.xlu0 %2675
        %2677 = vrot.lane.b32.xlu0 %v2622, 112
        %v2678 = vpop.permute.xlu0 %2677
        %2679 = vrot.lane.b32.xlu0 %v2629, 112
        %v2680 = vpop.permute.xlu0 %2679
        %2681 = vrot.lane.b32.xlu0 %v2630, 112
        %v2682 = vpop.permute.xlu0 %2681
        %2683 = vrot.lane.b32.xlu0 %v2637, 112
        %v2684 = vpop.permute.xlu0 %2683
        %2685 = vrot.lane.b32.xlu0 %v2638, 112
        %v2686 = vpop.permute.xlu0 %2685
        %2687 = vrot.lane.b32.xlu0 %v2645, 112
        %v2688 = vpop.permute.xlu0 %2687
        %2689 = vrot.lane.b32.xlu0 %v2646, 112
        %v2690 = vpop.permute.xlu0 %2689
        %2691 = vrot.lane.b32.xlu0 %v2653, 112
        %v2692 = vpop.permute.xlu0 %2691
        %2693 = vrot.lane.b32.xlu0 %v2654, 112
        %v2694 = vpop.permute.xlu0 %2693
        %2695 = vrot.lane.b32.xlu0 %v2661, 112
        %v2696 = vpop.permute.xlu0 %2695
        %2697 = vrot.lane.b32.xlu0 %v2662, 112
        %v2698 = vpop.permute.xlu0 %2697
        %2699 = vrot.lane.b32.xlu0 %v2669, 112
        %v2700 = vpop.permute.xlu0 %2699
        %2701 = vrot.lane.b32.xlu0 %v2670, 112
        %v2702 = vpop.permute.xlu0 %2701
        %s2719 = scalar_lea.vmem [#allocation2], 144
        %vm2720 = vcmask 257024
        %vm2721 = vsmask.f32 7938
        %vm2722 = vmand %vm2720, %vm2721
        %v2723 = vld [vmem:[%s2719] sm:$0xf]
        %v2724 = vsel %vm2722, %v2672, %v2723
        %2725 = vst [vmem:[%s2719] sm:$0xf] %v2724
        %v2726 = vld [vmem:[%s2719 + $0x4] sm:$0x1]
        %v2727 = vsel %vm282, %v2674, %v2726
        %2728 = vst [vmem:[%s2719 + $0x4] sm:$0x1] %v2727
        %v2729 = vld [vmem:[%s2719 + $0x8] sm:$0xf]
        %v2730 = vsel %vm2722, %v2676, %v2729
        %2731 = vst [vmem:[%s2719 + $0x8] sm:$0xf] %v2730
        %v2732 = vld [vmem:[%s2719 + $0xc] sm:$0x1]
        %v2733 = vsel %vm282, %v2678, %v2732
        %2734 = vst [vmem:[%s2719 + $0xc] sm:$0x1] %v2733
        %v2735 = vld [vmem:[%s2719 + $0x10] sm:$0xf]
        %v2736 = vsel %vm2722, %v2680, %v2735
        %2737 = vst [vmem:[%s2719 + $0x10] sm:$0xf] %v2736
        %v2738 = vld [vmem:[%s2719 + $0x14] sm:$0x1]
        %v2739 = vsel %vm282, %v2682, %v2738
        %2740 = vst [vmem:[%s2719 + $0x14] sm:$0x1] %v2739
        %v2741 = vld [vmem:[%s2719 + $0x18] sm:$0xf]
        %v2742 = vsel %vm2722, %v2684, %v2741
        %2743 = vst [vmem:[%s2719 + $0x18] sm:$0xf] %v2742
        %v2744 = vld [vmem:[%s2719 + $0x1c] sm:$0x1]
        %v2745 = vsel %vm282, %v2686, %v2744
        %2746 = vst [vmem:[%s2719 + $0x1c] sm:$0x1] %v2745
        %v2747 = vld [vmem:[%s2719 + $0x20] sm:$0xf]
        %v2748 = vsel %vm2722, %v2688, %v2747
        %2749 = vst [vmem:[%s2719 + $0x20] sm:$0xf] %v2748
        %v2750 = vld [vmem:[%s2719 + $0x24] sm:$0x1]
        %v2751 = vsel %vm282, %v2690, %v2750
        %2752 = vst [vmem:[%s2719 + $0x24] sm:$0x1] %v2751
        %v2753 = vld [vmem:[%s2719 + $0x28] sm:$0xf]
        %v2754 = vsel %vm2722, %v2692, %v2753
        %2755 = vst [vmem:[%s2719 + $0x28] sm:$0xf] %v2754
        %v2756 = vld [vmem:[%s2719 + $0x2c] sm:$0x1]
        %v2757 = vsel %vm282, %v2694, %v2756
        %2758 = vst [vmem:[%s2719 + $0x2c] sm:$0x1] %v2757
        %v2759 = vld [vmem:[%s2719 + $0x30] sm:$0xf]
        %v2760 = vsel %vm2722, %v2696, %v2759
        %2761 = vst [vmem:[%s2719 + $0x30] sm:$0xf] %v2760
        %v2762 = vld [vmem:[%s2719 + $0x34] sm:$0x1]
        %v2763 = vsel %vm282, %v2698, %v2762
        %2764 = vst [vmem:[%s2719 + $0x34] sm:$0x1] %v2763
        %v2765 = vld [vmem:[%s2719 + $0x38] sm:$0xf]
        %v2766 = vsel %vm2722, %v2700, %v2765
        %2767 = vst [vmem:[%s2719 + $0x38] sm:$0xf] %v2766
        %v2768 = vld [vmem:[%s2719 + $0x3c] sm:$0x1]
        %v2769 = vsel %vm282, %v2702, %v2768
        %2770 = vst [vmem:[%s2719 + $0x3c] sm:$0x1] %v2769
        %v2771 = vld [vmem:[%s1] sm:$0x3]
        %v2772 = vld [vmem:[%s857] sm:$0x3]
        %v2774 = vsel %vm872, %v2772, 0
        %2776 = vmatprep.subr.bf16.mxu0 0
        %2777 = vmatpush1.bf16.msra.mxu0 0
        %2778 = vmatprep.subr.bf16.mxu0 0
        %2779 = vmatpush1.bf16.msra.mxu0 0
        %2780 = vmatprep.subr.bf16.mxu0 0
        %2781 = vmatpush1.bf16.msra.mxu0 0
        %2782 = vmatprep.subr.bf16.mxu0 0
        %2783 = vmatpush1.bf16.msra.mxu0 0
        %2784 = vmatprep.subr.bf16.mxu0 0
        %2785 = vmatpush1.bf16.msra.mxu0 0
        %2786 = vmatprep.subr.bf16.mxu0 0
        %2787 = vmatpush1.bf16.msra.mxu0 0
        %2788 = vmatprep.subr.bf16.mxu0 0
        %2789 = vmatpush1.bf16.msra.mxu0 0
        %2790 = vmatprep.subr.bf16.mxu0 0
        %2791 = vmatpush1.bf16.msra.mxu0 %v2774
        %2792 = vmatprep.subr.bf16.mxu0 0
        %2793 = vmatpush2.bf16.msra.mxu0 0
        %2794 = vmatprep.subr.bf16.mxu0 0
        %2795 = vmatpush2.bf16.msra.mxu0 0
        %2796 = vmatprep.subr.bf16.mxu0 0
        %2797 = vmatpush2.bf16.msra.mxu0 0
        %2798 = vmatprep.subr.bf16.mxu0 0
        %2799 = vmatpush2.bf16.msra.mxu0 0
        %2800 = vmatprep.subr.bf16.mxu0 0
        %2801 = vmatpush2.bf16.msra.mxu0 0
        %2802 = vmatprep.subr.bf16.mxu0 0
        %2803 = vmatpush2.bf16.msra.mxu0 0
        %2804 = vmatprep.subr.bf16.mxu0 0
        %2805 = vmatpush2.bf16.msra.mxu0 0
        %2806 = vmatprep.subr.bf16.mxu0 0
        %2807 = vmatpush2.bf16.msra.mxu0 0
        %2808 = vmatprep.mubr.bf16.mxu0 0
        %2809 = vmatmul.mubr.bf16.gmra.mxu0 %v1204
        %v2810 = vpop.f32.mrf.mxu0
        %v2811 = vadd.f32 0.0, %v2810
        %v2812 = vpop.f32.mrf.mxu0
        %v2813 = vpop.f32.mrf.mxu0
        %v2814 = vadd.f32 0.0, %v2813
        %v2815 = vpop.f32.mrf.mxu0
        %2816 = vmatprep.mubr.bf16.mxu0 0
        %2817 = vmatmul.mubr.bf16.gmra.mxu0 %v1207
        %v2818 = vpop.f32.mrf.mxu0
        %v2819 = vadd.f32 0.0, %v2818
        %v2820 = vpop.f32.mrf.mxu0
        %v2821 = vpop.f32.mrf.mxu0
        %v2822 = vadd.f32 0.0, %v2821
        %v2823 = vpop.f32.mrf.mxu0
        %2824 = vmatprep.mubr.bf16.mxu0 0
        %2825 = vmatmul.mubr.bf16.gmra.mxu0 %v1210
        %v2826 = vpop.f32.mrf.mxu0
        %v2827 = vadd.f32 0.0, %v2826
        %v2828 = vpop.f32.mrf.mxu0
        %v2829 = vpop.f32.mrf.mxu0
        %v2830 = vadd.f32 0.0, %v2829
        %v2831 = vpop.f32.mrf.mxu0
        %2832 = vmatprep.mubr.bf16.mxu0 0
        %2833 = vmatmul.mubr.bf16.gmra.mxu0 %v1213
        %v2834 = vpop.f32.mrf.mxu0
        %v2835 = vadd.f32 0.0, %v2834
        %v2836 = vpop.f32.mrf.mxu0
        %v2837 = vpop.f32.mrf.mxu0
        %v2838 = vadd.f32 0.0, %v2837
        %v2839 = vpop.f32.mrf.mxu0
        %2840 = vdwg.mxu0
        %v2842 = vsel %vm872, %v2771, 0
        %2844 = vmatprep.subr.bf16.mxu0 0
        %2845 = vmatpush1.bf16.msra.mxu0 0
        %2846 = vmatprep.subr.bf16.mxu0 0
        %2847 = vmatpush1.bf16.msra.mxu0 0
        %2848 = vmatprep.subr.bf16.mxu0 0
        %2849 = vmatpush1.bf16.msra.mxu0 0
        %2850 = vmatprep.subr.bf16.mxu0 0
        %2851 = vmatpush1.bf16.msra.mxu0 0
        %2852 = vmatprep.subr.bf16.mxu0 0
        %2853 = vmatpush1.bf16.msra.mxu0 0
        %2854 = vmatprep.subr.bf16.mxu0 0
        %2855 = vmatpush1.bf16.msra.mxu0 0
        %2856 = vmatprep.subr.bf16.mxu0 0
        %2857 = vmatpush1.bf16.msra.mxu0 0
        %2858 = vmatprep.subr.bf16.mxu0 0
        %2859 = vmatpush1.bf16.msra.mxu0 %v2842
        %2860 = vmatprep.subr.bf16.mxu0 0
        %2861 = vmatpush2.bf16.msra.mxu0 0
        %2862 = vmatprep.subr.bf16.mxu0 0
        %2863 = vmatpush2.bf16.msra.mxu0 0
        %2864 = vmatprep.subr.bf16.mxu0 0
        %2865 = vmatpush2.bf16.msra.mxu0 0
        %2866 = vmatprep.subr.bf16.mxu0 0
        %2867 = vmatpush2.bf16.msra.mxu0 0
        %2868 = vmatprep.subr.bf16.mxu0 0
        %2869 = vmatpush2.bf16.msra.mxu0 0
        %2870 = vmatprep.subr.bf16.mxu0 0
        %2871 = vmatpush2.bf16.msra.mxu0 0
        %2872 = vmatprep.subr.bf16.mxu0 0
        %2873 = vmatpush2.bf16.msra.mxu0 0
        %2874 = vmatprep.subr.bf16.mxu0 0
        %2875 = vmatpush2.bf16.msra.mxu0 0
        %2876 = vmatprep.mubr.bf16.mxu0 0
        %2877 = vmatmul.mubr.bf16.gmra.mxu0 %v1114
        %v2878 = vpop.f32.mrf.mxu0
        %v2879 = vadd.f32 %v2811, %v2878
        %v2880 = vpop.f32.mrf.mxu0
        %v2881 = vpop.f32.mrf.mxu0
        %v2882 = vadd.f32 %v2814, %v2881
        %v2883 = vpop.f32.mrf.mxu0
        %2884 = vmatprep.mubr.bf16.mxu0 0
        %2885 = vmatmul.mubr.bf16.gmra.mxu0 %v1117
        %v2886 = vpop.f32.mrf.mxu0
        %v2887 = vadd.f32 %v2819, %v2886
        %v2888 = vpop.f32.mrf.mxu0
        %v2889 = vpop.f32.mrf.mxu0
        %v2890 = vadd.f32 %v2822, %v2889
        %v2891 = vpop.f32.mrf.mxu0
        %2892 = vmatprep.mubr.bf16.mxu0 0
        %2893 = vmatmul.mubr.bf16.gmra.mxu0 %v1120
        %v2894 = vpop.f32.mrf.mxu0
        %v2895 = vadd.f32 %v2827, %v2894
        %v2896 = vpop.f32.mrf.mxu0
        %v2897 = vpop.f32.mrf.mxu0
        %v2898 = vadd.f32 %v2830, %v2897
        %v2899 = vpop.f32.mrf.mxu0
        %2900 = vmatprep.mubr.bf16.mxu0 0
        %2901 = vmatmul.mubr.bf16.gmra.mxu0 %v1123
        %v2902 = vpop.f32.mrf.mxu0
        %v2903 = vadd.f32 %v2835, %v2902
        %v2904 = vpop.f32.mrf.mxu0
        %v2905 = vpop.f32.mrf.mxu0
        %v2906 = vadd.f32 %v2838, %v2905
        %v2907 = vpop.f32.mrf.mxu0
        %2908 = vdwg.mxu0
        %v2909 = vld [vmem:[%s1021] sm:$0x3]
        %v2911 = vsel %vm872, %v2909, 0
        %2913 = vmatprep.subr.bf16.mxu0 0
        %2914 = vmatpush1.bf16.msra.mxu0 0
        %2915 = vmatprep.subr.bf16.mxu0 0
        %2916 = vmatpush1.bf16.msra.mxu0 0
        %2917 = vmatprep.subr.bf16.mxu0 0
        %2918 = vmatpush1.bf16.msra.mxu0 0
        %2919 = vmatprep.subr.bf16.mxu0 0
        %2920 = vmatpush1.bf16.msra.mxu0 0
        %2921 = vmatprep.subr.bf16.mxu0 0
        %2922 = vmatpush1.bf16.msra.mxu0 0
        %2923 = vmatprep.subr.bf16.mxu0 0
        %2924 = vmatpush1.bf16.msra.mxu0 0
        %2925 = vmatprep.subr.bf16.mxu0 0
        %2926 = vmatpush1.bf16.msra.mxu0 0
        %2927 = vmatprep.subr.bf16.mxu0 0
        %2928 = vmatpush1.bf16.msra.mxu0 %v2911
        %2929 = vmatprep.subr.bf16.mxu0 0
        %2930 = vmatpush2.bf16.msra.mxu0 0
        %2931 = vmatprep.subr.bf16.mxu0 0
        %2932 = vmatpush2.bf16.msra.mxu0 0
        %2933 = vmatprep.subr.bf16.mxu0 0
        %2934 = vmatpush2.bf16.msra.mxu0 0
        %2935 = vmatprep.subr.bf16.mxu0 0
        %2936 = vmatpush2.bf16.msra.mxu0 0
        %2937 = vmatprep.subr.bf16.mxu0 0
        %2938 = vmatpush2.bf16.msra.mxu0 0
        %2939 = vmatprep.subr.bf16.mxu0 0
        %2940 = vmatpush2.bf16.msra.mxu0 0
        %2941 = vmatprep.subr.bf16.mxu0 0
        %2942 = vmatpush2.bf16.msra.mxu0 0
        %2943 = vmatprep.subr.bf16.mxu0 0
        %2944 = vmatpush2.bf16.msra.mxu0 0
        %2945 = vmatprep.mubr.bf16.mxu0 0
        %2946 = vmatmul.mubr.bf16.gmra.mxu0 %v1294
        %v2947 = vpop.f32.mrf.mxu0
        %v2948 = vadd.f32 0.0, %v2947
        %v2949 = vpop.f32.mrf.mxu0
        %v2950 = vpop.f32.mrf.mxu0
        %v2951 = vadd.f32 0.0, %v2950
        %v2952 = vpop.f32.mrf.mxu0
        %2953 = vmatprep.mubr.bf16.mxu0 0
        %2954 = vmatmul.mubr.bf16.gmra.mxu0 %v1297
        %v2955 = vpop.f32.mrf.mxu0
        %v2956 = vadd.f32 0.0, %v2955
        %v2957 = vpop.f32.mrf.mxu0
        %v2958 = vpop.f32.mrf.mxu0
        %v2959 = vadd.f32 0.0, %v2958
        %v2960 = vpop.f32.mrf.mxu0
        %2961 = vmatprep.mubr.bf16.mxu0 0
        %2962 = vmatmul.mubr.bf16.gmra.mxu0 %v1300
        %v2963 = vpop.f32.mrf.mxu0
        %v2964 = vadd.f32 0.0, %v2963
        %v2965 = vpop.f32.mrf.mxu0
        %v2966 = vpop.f32.mrf.mxu0
        %v2967 = vadd.f32 0.0, %v2966
        %v2968 = vpop.f32.mrf.mxu0
        %2969 = vmatprep.mubr.bf16.mxu0 0
        %2970 = vmatmul.mubr.bf16.gmra.mxu0 %v1303
        %v2971 = vpop.f32.mrf.mxu0
        %v2972 = vadd.f32 0.0, %v2971
        %v2973 = vpop.f32.mrf.mxu0
        %v2974 = vpop.f32.mrf.mxu0
        %v2975 = vadd.f32 0.0, %v2974
        %v2976 = vpop.f32.mrf.mxu0
        %2977 = vdwg.mxu0
        %v2978 = vadd.f32 %v2879, %v2948
        %v2979 = vadd.f32 %v2882, %v2951
        %v2980 = vadd.f32 %v2887, %v2956
        %v2981 = vadd.f32 %v2890, %v2959
        %v2982 = vadd.f32 %v2895, %v2964
        %v2983 = vadd.f32 %v2898, %v2967
        %v2984 = vadd.f32 %v2903, %v2972
        %v2985 = vadd.f32 %v2906, %v2975
        %v2986 = vld [vmem:[%s1111] sm:$0x3]
        %v2988 = vsel %vm872, %v2986, 0
        %2990 = vmatprep.subr.bf16.mxu0 0
        %2991 = vmatpush1.bf16.msra.mxu0 0
        %2992 = vmatprep.subr.bf16.mxu0 0
        %2993 = vmatpush1.bf16.msra.mxu0 0
        %2994 = vmatprep.subr.bf16.mxu0 0
        %2995 = vmatpush1.bf16.msra.mxu0 0
        %2996 = vmatprep.subr.bf16.mxu0 0
        %2997 = vmatpush1.bf16.msra.mxu0 0
        %2998 = vmatprep.subr.bf16.mxu0 0
        %2999 = vmatpush1.bf16.msra.mxu0 0
        %3000 = vmatprep.subr.bf16.mxu0 0
        %3001 = vmatpush1.bf16.msra.mxu0 0
        %3002 = vmatprep.subr.bf16.mxu0 0
        %3003 = vmatpush1.bf16.msra.mxu0 0
        %3004 = vmatprep.subr.bf16.mxu0 0
        %3005 = vmatpush1.bf16.msra.mxu0 %v2988
        %3006 = vmatprep.subr.bf16.mxu0 0
        %3007 = vmatpush2.bf16.msra.mxu0 0
        %3008 = vmatprep.subr.bf16.mxu0 0
        %3009 = vmatpush2.bf16.msra.mxu0 0
        %3010 = vmatprep.subr.bf16.mxu0 0
        %3011 = vmatpush2.bf16.msra.mxu0 0
        %3012 = vmatprep.subr.bf16.mxu0 0
        %3013 = vmatpush2.bf16.msra.mxu0 0
        %3014 = vmatprep.subr.bf16.mxu0 0
        %3015 = vmatpush2.bf16.msra.mxu0 0
        %3016 = vmatprep.subr.bf16.mxu0 0
        %3017 = vmatpush2.bf16.msra.mxu0 0
        %3018 = vmatprep.subr.bf16.mxu0 0
        %3019 = vmatpush2.bf16.msra.mxu0 0
        %3020 = vmatprep.subr.bf16.mxu0 0
        %3021 = vmatpush2.bf16.msra.mxu0 0
        %3022 = vmatprep.mubr.bf16.mxu0 0
        %3023 = vmatmul.mubr.bf16.gmra.mxu0 %v1384
        %v3024 = vpop.f32.mrf.mxu0
        %v3025 = vadd.f32 0.0, %v3024
        %v3026 = vpop.f32.mrf.mxu0
        %v3027 = vpop.f32.mrf.mxu0
        %v3028 = vadd.f32 0.0, %v3027
        %v3029 = vpop.f32.mrf.mxu0
        %3030 = vmatprep.mubr.bf16.mxu0 0
        %3031 = vmatmul.mubr.bf16.gmra.mxu0 %v1387
        %v3032 = vpop.f32.mrf.mxu0
        %v3033 = vadd.f32 0.0, %v3032
        %v3034 = vpop.f32.mrf.mxu0
        %v3035 = vpop.f32.mrf.mxu0
        %v3036 = vadd.f32 0.0, %v3035
        %v3037 = vpop.f32.mrf.mxu0
        %3038 = vmatprep.mubr.bf16.mxu0 0
        %3039 = vmatmul.mubr.bf16.gmra.mxu0 %v1390
        %v3040 = vpop.f32.mrf.mxu0
        %v3041 = vadd.f32 0.0, %v3040
        %v3042 = vpop.f32.mrf.mxu0
        %v3043 = vpop.f32.mrf.mxu0
        %v3044 = vadd.f32 0.0, %v3043
        %v3045 = vpop.f32.mrf.mxu0
        %3046 = vmatprep.mubr.bf16.mxu0 0
        %3047 = vmatmul.mubr.bf16.gmra.mxu0 %v1393
        %v3048 = vpop.f32.mrf.mxu0
        %v3049 = vadd.f32 0.0, %v3048
        %v3050 = vpop.f32.mrf.mxu0
        %v3051 = vpop.f32.mrf.mxu0
        %v3052 = vadd.f32 0.0, %v3051
        %v3053 = vpop.f32.mrf.mxu0
        %3054 = vdwg.mxu0
        %v3055 = vadd.f32 %v2978, %v3025
        %v3056 = vadd.f32 %v2979, %v3028
        %v3057 = vadd.f32 %v2980, %v3033
        %v3058 = vadd.f32 %v2981, %v3036
        %v3059 = vadd.f32 %v2982, %v3041
        %v3060 = vadd.f32 %v2983, %v3044
        %v3061 = vadd.f32 %v2984, %v3049
        %v3062 = vadd.f32 %v2985, %v3052
        %v3063 = vld [vmem:[%s1201] sm:$0x3]
        %v3065 = vsel %vm872, %v3063, 0
        %3067 = vmatprep.subr.bf16.mxu0 0
        %3068 = vmatpush1.bf16.msra.mxu0 0
        %3069 = vmatprep.subr.bf16.mxu0 0
        %3070 = vmatpush1.bf16.msra.mxu0 0
        %3071 = vmatprep.subr.bf16.mxu0 0
        %3072 = vmatpush1.bf16.msra.mxu0 0
        %3073 = vmatprep.subr.bf16.mxu0 0
        %3074 = vmatpush1.bf16.msra.mxu0 0
        %3075 = vmatprep.subr.bf16.mxu0 0
        %3076 = vmatpush1.bf16.msra.mxu0 0
        %3077 = vmatprep.subr.bf16.mxu0 0
        %3078 = vmatpush1.bf16.msra.mxu0 0
        %3079 = vmatprep.subr.bf16.mxu0 0
        %3080 = vmatpush1.bf16.msra.mxu0 0
        %3081 = vmatprep.subr.bf16.mxu0 0
        %3082 = vmatpush1.bf16.msra.mxu0 %v3065
        %3083 = vmatprep.subr.bf16.mxu0 0
        %3084 = vmatpush2.bf16.msra.mxu0 0
        %3085 = vmatprep.subr.bf16.mxu0 0
        %3086 = vmatpush2.bf16.msra.mxu0 0
        %3087 = vmatprep.subr.bf16.mxu0 0
        %3088 = vmatpush2.bf16.msra.mxu0 0
        %3089 = vmatprep.subr.bf16.mxu0 0
        %3090 = vmatpush2.bf16.msra.mxu0 0
        %3091 = vmatprep.subr.bf16.mxu0 0
        %3092 = vmatpush2.bf16.msra.mxu0 0
        %3093 = vmatprep.subr.bf16.mxu0 0
        %3094 = vmatpush2.bf16.msra.mxu0 0
        %3095 = vmatprep.subr.bf16.mxu0 0
        %3096 = vmatpush2.bf16.msra.mxu0 0
        %3097 = vmatprep.subr.bf16.mxu0 0
        %3098 = vmatpush2.bf16.msra.mxu0 0
        %3099 = vmatprep.mubr.bf16.mxu0 0
        %3100 = vmatmul.mubr.bf16.gmra.mxu0 %v1474
        %v3101 = vpop.f32.mrf.mxu0
        %v3102 = vadd.f32 0.0, %v3101
        %v3103 = vpop.f32.mrf.mxu0
        %v3104 = vpop.f32.mrf.mxu0
        %v3105 = vadd.f32 0.0, %v3104
        %v3106 = vpop.f32.mrf.mxu0
        %3107 = vmatprep.mubr.bf16.mxu0 0
        %3108 = vmatmul.mubr.bf16.gmra.mxu0 %v1477
        %v3109 = vpop.f32.mrf.mxu0
        %v3110 = vadd.f32 0.0, %v3109
        %v3111 = vpop.f32.mrf.mxu0
        %v3112 = vpop.f32.mrf.mxu0
        %v3113 = vadd.f32 0.0, %v3112
        %v3114 = vpop.f32.mrf.mxu0
        %3115 = vmatprep.mubr.bf16.mxu0 0
        %3116 = vmatmul.mubr.bf16.gmra.mxu0 %v1480
        %v3117 = vpop.f32.mrf.mxu0
        %v3118 = vadd.f32 0.0, %v3117
        %v3119 = vpop.f32.mrf.mxu0
        %v3120 = vpop.f32.mrf.mxu0
        %v3121 = vadd.f32 0.0, %v3120
        %v3122 = vpop.f32.mrf.mxu0
        %3123 = vmatprep.mubr.bf16.mxu0 0
        %3124 = vmatmul.mubr.bf16.gmra.mxu0 %v1483
        %v3125 = vpop.f32.mrf.mxu0
        %v3126 = vadd.f32 0.0, %v3125
        %v3127 = vpop.f32.mrf.mxu0
        %v3128 = vpop.f32.mrf.mxu0
        %v3129 = vadd.f32 0.0, %v3128
        %v3130 = vpop.f32.mrf.mxu0
        %3131 = vdwg.mxu0
        %v3132 = vadd.f32 %v3055, %v3102
        %v3133 = vadd.f32 %v3056, %v3105
        %v3134 = vadd.f32 %v3057, %v3110
        %v3135 = vadd.f32 %v3058, %v3113
        %v3136 = vadd.f32 %v3059, %v3118
        %v3137 = vadd.f32 %v3060, %v3121
        %v3138 = vadd.f32 %v3061, %v3126
        %v3139 = vadd.f32 %v3062, %v3129
        %v3140 = vld [vmem:[%s1291] sm:$0x3]
        %v3142 = vsel %vm872, %v3140, 0
        %3144 = vmatprep.subr.bf16.mxu0 0
        %3145 = vmatpush1.bf16.msra.mxu0 0
        %3146 = vmatprep.subr.bf16.mxu0 0
        %3147 = vmatpush1.bf16.msra.mxu0 0
        %3148 = vmatprep.subr.bf16.mxu0 0
        %3149 = vmatpush1.bf16.msra.mxu0 0
        %3150 = vmatprep.subr.bf16.mxu0 0
        %3151 = vmatpush1.bf16.msra.mxu0 0
        %3152 = vmatprep.subr.bf16.mxu0 0
        %3153 = vmatpush1.bf16.msra.mxu0 0
        %3154 = vmatprep.subr.bf16.mxu0 0
        %3155 = vmatpush1.bf16.msra.mxu0 0
        %3156 = vmatprep.subr.bf16.mxu0 0
        %3157 = vmatpush1.bf16.msra.mxu0 0
        %3158 = vmatprep.subr.bf16.mxu0 0
        %3159 = vmatpush1.bf16.msra.mxu0 %v3142
        %3160 = vmatprep.subr.bf16.mxu0 0
        %3161 = vmatpush2.bf16.msra.mxu0 0
        %3162 = vmatprep.subr.bf16.mxu0 0
        %3163 = vmatpush2.bf16.msra.mxu0 0
        %3164 = vmatprep.subr.bf16.mxu0 0
        %3165 = vmatpush2.bf16.msra.mxu0 0
        %3166 = vmatprep.subr.bf16.mxu0 0
        %3167 = vmatpush2.bf16.msra.mxu0 0
        %3168 = vmatprep.subr.bf16.mxu0 0
        %3169 = vmatpush2.bf16.msra.mxu0 0
        %3170 = vmatprep.subr.bf16.mxu0 0
        %3171 = vmatpush2.bf16.msra.mxu0 0
        %3172 = vmatprep.subr.bf16.mxu0 0
        %3173 = vmatpush2.bf16.msra.mxu0 0
        %3174 = vmatprep.subr.bf16.mxu0 0
        %3175 = vmatpush2.bf16.msra.mxu0 0
        %3176 = vmatprep.mubr.bf16.mxu0 0
        %3177 = vmatmul.mubr.bf16.gmra.mxu0 %v1564
        %v3178 = vpop.f32.mrf.mxu0
        %v3179 = vadd.f32 0.0, %v3178
        %v3180 = vpop.f32.mrf.mxu0
        %v3181 = vpop.f32.mrf.mxu0
        %v3182 = vadd.f32 0.0, %v3181
        %v3183 = vpop.f32.mrf.mxu0
        %3184 = vmatprep.mubr.bf16.mxu0 0
        %3185 = vmatmul.mubr.bf16.gmra.mxu0 %v1567
        %v3186 = vpop.f32.mrf.mxu0
        %v3187 = vadd.f32 0.0, %v3186
        %v3188 = vpop.f32.mrf.mxu0
        %v3189 = vpop.f32.mrf.mxu0
        %v3190 = vadd.f32 0.0, %v3189
        %v3191 = vpop.f32.mrf.mxu0
        %3192 = vmatprep.mubr.bf16.mxu0 0
        %3193 = vmatmul.mubr.bf16.gmra.mxu0 %v1570
        %v3194 = vpop.f32.mrf.mxu0
        %v3195 = vadd.f32 0.0, %v3194
        %v3196 = vpop.f32.mrf.mxu0
        %v3197 = vpop.f32.mrf.mxu0
        %v3198 = vadd.f32 0.0, %v3197
        %v3199 = vpop.f32.mrf.mxu0
        %3200 = vmatprep.mubr.bf16.mxu0 0
        %3201 = vmatmul.mubr.bf16.gmra.mxu0 %v1573
        %v3202 = vpop.f32.mrf.mxu0
        %v3203 = vadd.f32 0.0, %v3202
        %v3204 = vpop.f32.mrf.mxu0
        %v3205 = vpop.f32.mrf.mxu0
        %v3206 = vadd.f32 0.0, %v3205
        %v3207 = vpop.f32.mrf.mxu0
        %3208 = vdwg.mxu0
        %v3209 = vadd.f32 %v3132, %v3179
        %v3210 = vadd.f32 %v3133, %v3182
        %v3211 = vadd.f32 %v3134, %v3187
        %v3212 = vadd.f32 %v3135, %v3190
        %v3213 = vadd.f32 %v3136, %v3195
        %v3214 = vadd.f32 %v3137, %v3198
        %v3215 = vadd.f32 %v3138, %v3203
        %v3216 = vadd.f32 %v3139, %v3206
        %v3217 = vld [vmem:[%s1381] sm:$0x3]
        %v3219 = vsel %vm859, %v772, 0
        %v3222 = vsel %vm859, %v773, 0
        %v3225 = vsel %vm859, %v774, 0
        %v3228 = vsel %vm859, %v775, 0
        %v3231 = vsel %vm872, %v3217, 0
        %3233 = vmatprep.subr.bf16.mxu0 0
        %3234 = vmatpush1.bf16.msra.mxu0 0
        %3235 = vmatprep.subr.bf16.mxu0 0
        %3236 = vmatpush1.bf16.msra.mxu0 0
        %3237 = vmatprep.subr.bf16.mxu0 0
        %3238 = vmatpush1.bf16.msra.mxu0 0
        %3239 = vmatprep.subr.bf16.mxu0 0
        %3240 = vmatpush1.bf16.msra.mxu0 0
        %3241 = vmatprep.subr.bf16.mxu0 0
        %3242 = vmatpush1.bf16.msra.mxu0 0
        %3243 = vmatprep.subr.bf16.mxu0 0
        %3244 = vmatpush1.bf16.msra.mxu0 0
        %3245 = vmatprep.subr.bf16.mxu0 0
        %3246 = vmatpush1.bf16.msra.mxu0 0
        %3247 = vmatprep.subr.bf16.mxu0 0
        %3248 = vmatpush1.bf16.msra.mxu0 %v3231
        %3249 = vmatprep.subr.bf16.mxu0 0
        %3250 = vmatpush2.bf16.msra.mxu0 0
        %3251 = vmatprep.subr.bf16.mxu0 0
        %3252 = vmatpush2.bf16.msra.mxu0 0
        %3253 = vmatprep.subr.bf16.mxu0 0
        %3254 = vmatpush2.bf16.msra.mxu0 0
        %3255 = vmatprep.subr.bf16.mxu0 0
        %3256 = vmatpush2.bf16.msra.mxu0 0
        %3257 = vmatprep.subr.bf16.mxu0 0
        %3258 = vmatpush2.bf16.msra.mxu0 0
        %3259 = vmatprep.subr.bf16.mxu0 0
        %3260 = vmatpush2.bf16.msra.mxu0 0
        %3261 = vmatprep.subr.bf16.mxu0 0
        %3262 = vmatpush2.bf16.msra.mxu0 0
        %3263 = vmatprep.subr.bf16.mxu0 0
        %3264 = vmatpush2.bf16.msra.mxu0 0
        %3265 = vmatprep.mubr.bf16.mxu0 0
        %3266 = vmatmul.mubr.bf16.gmra.mxu0 %v3219
        %v3267 = vpop.f32.mrf.mxu0
        %v3268 = vadd.f32 0.0, %v3267
        %v3269 = vpop.f32.mrf.mxu0
        %v3270 = vpop.f32.mrf.mxu0
        %v3271 = vadd.f32 0.0, %v3270
        %v3272 = vpop.f32.mrf.mxu0
        %3273 = vmatprep.mubr.bf16.mxu0 0
        %3274 = vmatmul.mubr.bf16.gmra.mxu0 %v3222
        %v3275 = vpop.f32.mrf.mxu0
        %v3276 = vadd.f32 0.0, %v3275
        %v3277 = vpop.f32.mrf.mxu0
        %v3278 = vpop.f32.mrf.mxu0
        %v3279 = vadd.f32 0.0, %v3278
        %v3280 = vpop.f32.mrf.mxu0
        %3281 = vmatprep.mubr.bf16.mxu0 0
        %3282 = vmatmul.mubr.bf16.gmra.mxu0 %v3225
        %v3283 = vpop.f32.mrf.mxu0
        %v3284 = vadd.f32 0.0, %v3283
        %v3285 = vpop.f32.mrf.mxu0
        %v3286 = vpop.f32.mrf.mxu0
        %v3287 = vadd.f32 0.0, %v3286
        %v3288 = vpop.f32.mrf.mxu0
        %3289 = vmatprep.mubr.bf16.mxu0 0
        %3290 = vmatmul.mubr.bf16.gmra.mxu0 %v3228
        %v3291 = vpop.f32.mrf.mxu0
        %v3292 = vadd.f32 0.0, %v3291
        %v3293 = vpop.f32.mrf.mxu0
        %v3294 = vpop.f32.mrf.mxu0
        %v3295 = vadd.f32 0.0, %v3294
        %v3296 = vpop.f32.mrf.mxu0
        %3297 = vdwg.mxu0
        %v3298 = vadd.f32 %v3209, %v3268
        %v3299 = vadd.f32 %v3210, %v3271
        %v3300 = vadd.f32 %v3211, %v3276
        %v3301 = vadd.f32 %v3212, %v3279
        %v3302 = vadd.f32 %v3213, %v3284
        %v3303 = vadd.f32 %v3214, %v3287
        %v3304 = vadd.f32 %v3215, %v3292
        %v3305 = vadd.f32 %v3216, %v3295
        %v3306 = vld [vmem:[%s1471] sm:$0x3]
        %v3308 = vsel %vm859, %v842, 0
        %v3311 = vsel %vm859, %v843, 0
        %v3314 = vsel %vm859, %v844, 0
        %v3317 = vsel %vm859, %v845, 0
        %v3320 = vsel %vm872, %v3306, 0
        %3322 = vmatprep.subr.bf16.mxu0 0
        %3323 = vmatpush1.bf16.msra.mxu0 0
        %3324 = vmatprep.subr.bf16.mxu0 0
        %3325 = vmatpush1.bf16.msra.mxu0 0
        %3326 = vmatprep.subr.bf16.mxu0 0
        %3327 = vmatpush1.bf16.msra.mxu0 0
        %3328 = vmatprep.subr.bf16.mxu0 0
        %3329 = vmatpush1.bf16.msra.mxu0 0
        %3330 = vmatprep.subr.bf16.mxu0 0
        %3331 = vmatpush1.bf16.msra.mxu0 0
        %3332 = vmatprep.subr.bf16.mxu0 0
        %3333 = vmatpush1.bf16.msra.mxu0 0
        %3334 = vmatprep.subr.bf16.mxu0 0
        %3335 = vmatpush1.bf16.msra.mxu0 0
        %3336 = vmatprep.subr.bf16.mxu0 0
        %3337 = vmatpush1.bf16.msra.mxu0 %v3320
        %3338 = vmatprep.subr.bf16.mxu0 0
        %3339 = vmatpush2.bf16.msra.mxu0 0
        %3340 = vmatprep.subr.bf16.mxu0 0
        %3341 = vmatpush2.bf16.msra.mxu0 0
        %3342 = vmatprep.subr.bf16.mxu0 0
        %3343 = vmatpush2.bf16.msra.mxu0 0
        %3344 = vmatprep.subr.bf16.mxu0 0
        %3345 = vmatpush2.bf16.msra.mxu0 0
        %3346 = vmatprep.subr.bf16.mxu0 0
        %3347 = vmatpush2.bf16.msra.mxu0 0
        %3348 = vmatprep.subr.bf16.mxu0 0
        %3349 = vmatpush2.bf16.msra.mxu0 0
        %3350 = vmatprep.subr.bf16.mxu0 0
        %3351 = vmatpush2.bf16.msra.mxu0 0
        %3352 = vmatprep.subr.bf16.mxu0 0
        %3353 = vmatpush2.bf16.msra.mxu0 0
        %3354 = vmatprep.mubr.bf16.mxu0 0
        %3355 = vmatmul.mubr.bf16.gmra.mxu0 %v3308
        %v3356 = vpop.f32.mrf.mxu0
        %v3357 = vadd.f32 0.0, %v3356
        %v3358 = vpop.f32.mrf.mxu0
        %v3359 = vpop.f32.mrf.mxu0
        %v3360 = vadd.f32 0.0, %v3359
        %v3361 = vpop.f32.mrf.mxu0
        %3362 = vmatprep.mubr.bf16.mxu0 0
        %3363 = vmatmul.mubr.bf16.gmra.mxu0 %v3311
        %v3364 = vpop.f32.mrf.mxu0
        %v3365 = vadd.f32 0.0, %v3364
        %v3366 = vpop.f32.mrf.mxu0
        %v3367 = vpop.f32.mrf.mxu0
        %v3368 = vadd.f32 0.0, %v3367
        %v3369 = vpop.f32.mrf.mxu0
        %3370 = vmatprep.mubr.bf16.mxu0 0
        %3371 = vmatmul.mubr.bf16.gmra.mxu0 %v3314
        %v3372 = vpop.f32.mrf.mxu0
        %v3373 = vadd.f32 0.0, %v3372
        %v3374 = vpop.f32.mrf.mxu0
        %v3375 = vpop.f32.mrf.mxu0
        %v3376 = vadd.f32 0.0, %v3375
        %v3377 = vpop.f32.mrf.mxu0
        %3378 = vmatprep.mubr.bf16.mxu0 0
        %3379 = vmatmul.mubr.bf16.gmra.mxu0 %v3317
        %v3380 = vpop.f32.mrf.mxu0
        %v3381 = vadd.f32 0.0, %v3380
        %v3382 = vpop.f32.mrf.mxu0
        %v3383 = vpop.f32.mrf.mxu0
        %v3384 = vadd.f32 0.0, %v3383
        %v3385 = vpop.f32.mrf.mxu0
        %3386 = vdwg.mxu0
        %v3387 = vadd.f32 %v3298, %v3357
        %v3388 = vadd.f32 %v3299, %v3360
        %v3389 = vadd.f32 %v3300, %v3365
        %v3390 = vadd.f32 %v3301, %v3368
        %v3391 = vadd.f32 %v3302, %v3373
        %v3392 = vadd.f32 %v3303, %v3376
        %v3393 = vadd.f32 %v3304, %v3381
        %v3394 = vadd.f32 %v3305, %v3384
        %v3395 = vld [vmem:[%s1561] sm:$0x3]
        %v3397 = vsel %vm859, %v782, 0
        %v3400 = vsel %vm859, %v783, 0
        %v3403 = vsel %vm859, %v784, 0
        %v3406 = vsel %vm859, %v785, 0
        %v3409 = vsel %vm872, %v3395, 0
        %3411 = vmatprep.subr.bf16.mxu0 0
        %3412 = vmatpush1.bf16.msra.mxu0 0
        %3413 = vmatprep.subr.bf16.mxu0 0
        %3414 = vmatpush1.bf16.msra.mxu0 0
        %3415 = vmatprep.subr.bf16.mxu0 0
        %3416 = vmatpush1.bf16.msra.mxu0 0
        %3417 = vmatprep.subr.bf16.mxu0 0
        %3418 = vmatpush1.bf16.msra.mxu0 0
        %3419 = vmatprep.subr.bf16.mxu0 0
        %3420 = vmatpush1.bf16.msra.mxu0 0
        %3421 = vmatprep.subr.bf16.mxu0 0
        %3422 = vmatpush1.bf16.msra.mxu0 0
        %3423 = vmatprep.subr.bf16.mxu0 0
        %3424 = vmatpush1.bf16.msra.mxu0 0
        %3425 = vmatprep.subr.bf16.mxu0 0
        %3426 = vmatpush1.bf16.msra.mxu0 %v3409
        %3427 = vmatprep.subr.bf16.mxu0 0
        %3428 = vmatpush2.bf16.msra.mxu0 0
        %3429 = vmatprep.subr.bf16.mxu0 0
        %3430 = vmatpush2.bf16.msra.mxu0 0
        %3431 = vmatprep.subr.bf16.mxu0 0
        %3432 = vmatpush2.bf16.msra.mxu0 0
        %3433 = vmatprep.subr.bf16.mxu0 0
        %3434 = vmatpush2.bf16.msra.mxu0 0
        %3435 = vmatprep.subr.bf16.mxu0 0
        %3436 = vmatpush2.bf16.msra.mxu0 0
        %3437 = vmatprep.subr.bf16.mxu0 0
        %3438 = vmatpush2.bf16.msra.mxu0 0
        %3439 = vmatprep.subr.bf16.mxu0 0
        %3440 = vmatpush2.bf16.msra.mxu0 0
        %3441 = vmatprep.subr.bf16.mxu0 0
        %3442 = vmatpush2.bf16.msra.mxu0 0
        %3443 = vmatprep.mubr.bf16.mxu0 0
        %3444 = vmatmul.mubr.bf16.gmra.mxu0 %v3397
        %v3445 = vpop.f32.mrf.mxu0
        %v3446 = vadd.f32 0.0, %v3445
        %v3447 = vpop.f32.mrf.mxu0
        %v3448 = vpop.f32.mrf.mxu0
        %v3449 = vadd.f32 0.0, %v3448
        %v3450 = vpop.f32.mrf.mxu0
        %3451 = vmatprep.mubr.bf16.mxu0 0
        %3452 = vmatmul.mubr.bf16.gmra.mxu0 %v3400
        %v3453 = vpop.f32.mrf.mxu0
        %v3454 = vadd.f32 0.0, %v3453
        %v3455 = vpop.f32.mrf.mxu0
        %v3456 = vpop.f32.mrf.mxu0
        %v3457 = vadd.f32 0.0, %v3456
        %v3458 = vpop.f32.mrf.mxu0
        %3459 = vmatprep.mubr.bf16.mxu0 0
        %3460 = vmatmul.mubr.bf16.gmra.mxu0 %v3403
        %v3461 = vpop.f32.mrf.mxu0
        %v3462 = vadd.f32 0.0, %v3461
        %v3463 = vpop.f32.mrf.mxu0
        %v3464 = vpop.f32.mrf.mxu0
        %v3465 = vadd.f32 0.0, %v3464
        %v3466 = vpop.f32.mrf.mxu0
        %3467 = vmatprep.mubr.bf16.mxu0 0
        %3468 = vmatmul.mubr.bf16.gmra.mxu0 %v3406
        %v3469 = vpop.f32.mrf.mxu0
        %v3470 = vadd.f32 0.0, %v3469
        %v3471 = vpop.f32.mrf.mxu0
        %v3472 = vpop.f32.mrf.mxu0
        %v3473 = vadd.f32 0.0, %v3472
        %v3474 = vpop.f32.mrf.mxu0
        %3475 = vdwg.mxu0
        %v3476 = vadd.f32 %v3387, %v3446
        %v3477 = vadd.f32 %v3388, %v3449
        %v3478 = vadd.f32 %v3389, %v3454
        %v3479 = vadd.f32 %v3390, %v3457
        %v3480 = vadd.f32 %v3391, %v3462
        %v3481 = vadd.f32 %v3392, %v3465
        %v3482 = vadd.f32 %v3393, %v3470
        %v3483 = vadd.f32 %v3394, %v3473
        %v3484 = vld [vmem:[%s2] sm:$0x1]
        %v3486 = vlaneseq
        %v3487 = vshrl.u32 %v3486, 7
        %v3488 = vsub.s32 0, %v3487
        %v3489 = vrot.slane %v3484, %v3488
        %v3491 = vadd.f32 %v3476, %v3489
        %v3492 = vadd.f32 %v3477, %v3489
        %v3493 = vadd.f32 %v3478, %v3489
        %v3494 = vadd.f32 %v3479, %v3489
        %v3495 = vadd.f32 %v3480, %v3489
        %v3496 = vadd.f32 %v3481, %v3489
        %v3497 = vadd.f32 %v3482, %v3489
        %v3498 = vadd.f32 %v3483, %v3489
        %v3499 = vmax.f32 %v3491, 0.0
        %v3500 = vmax.f32 %v3492, 0.0
        %v3501 = vmax.f32 %v3493, 0.0
        %v3502 = vmax.f32 %v3494, 0.0
        %v3503 = vmax.f32 %v3495, 0.0
        %v3504 = vmax.f32 %v3496, 0.0
        %v3505 = vmax.f32 %v3497, 0.0
        %v3506 = vmax.f32 %v3498, 0.0
        %s3507 = scalar_lea.vmem [#allocation3], 160
        %3508 = vst.msk [vmem:[%s3507] sm:$0xff] %vm1675, %v3499
        %3509 = vst.msk [vmem:[%s3507 + $0x10] sm:$0xff] %vm1675, %v3500
        %3510 = vst.msk [vmem:[%s3507 + $0x20] sm:$0xff] %vm1675, %v3501
        %3511 = vst.msk [vmem:[%s3507 + $0x30] sm:$0xff] %vm1675, %v3502
        %3512 = vst.msk [vmem:[%s3507 + $0x40] sm:$0xff] %vm1675, %v3503
        %3513 = vst.msk [vmem:[%s3507 + $0x50] sm:$0xff] %vm1675, %v3504
        %3514 = vst.msk [vmem:[%s3507 + $0x60] sm:$0xff] %vm1675, %v3505
        %3515 = vst.msk [vmem:[%s3507 + $0x70] sm:$0xff] %vm1675, %v3506
        %3524 = vrot.lane.b32.xlu0 %v3499, 104
        %v3525 = vpop.permute.xlu0 %3524
        %3526 = vrot.lane.b32.xlu0 %v3500, 104
        %v3527 = vpop.permute.xlu0 %3526
        %3528 = vrot.lane.b32.xlu0 %v3501, 104
        %v3529 = vpop.permute.xlu0 %3528
        %3530 = vrot.lane.b32.xlu0 %v3502, 104
        %v3531 = vpop.permute.xlu0 %3530
        %3532 = vrot.lane.b32.xlu0 %v3503, 104
        %v3533 = vpop.permute.xlu0 %3532
        %3534 = vrot.lane.b32.xlu0 %v3504, 104
        %v3535 = vpop.permute.xlu0 %3534
        %3536 = vrot.lane.b32.xlu0 %v3505, 104
        %v3537 = vpop.permute.xlu0 %3536
        %3538 = vrot.lane.b32.xlu0 %v3506, 104
        %v3539 = vpop.permute.xlu0 %3538
        %3548 = vst.msk [vmem:[%s3507] sm:$0xff] %vm1716, %v3525
        %3549 = vst.msk [vmem:[%s3507 + $0x10] sm:$0xff] %vm1716, %v3527
        %3550 = vst.msk [vmem:[%s3507 + $0x20] sm:$0xff] %vm1716, %v3529
        %3551 = vst.msk [vmem:[%s3507 + $0x30] sm:$0xff] %vm1716, %v3531
        %3552 = vst.msk [vmem:[%s3507 + $0x40] sm:$0xff] %vm1716, %v3533
        %3553 = vst.msk [vmem:[%s3507 + $0x50] sm:$0xff] %vm1716, %v3535
        %3554 = vst.msk [vmem:[%s3507 + $0x60] sm:$0xff] %vm1716, %v3537
        %3555 = vst.msk [vmem:[%s3507 + $0x70] sm:$0xff] %vm1716, %v3539
        %v3556 = vpack.c.bf16 %v3499, %v3499
        %v3557 = vpack.c.bf16 %v3500, %v3500
        %v3558 = vpack.c.bf16 %v3501, %v3501
        %v3559 = vpack.c.bf16 %v3502, %v3502
        %v3560 = vpack.c.bf16 %v3503, %v3503
        %v3561 = vpack.c.bf16 %v3504, %v3504
        %v3562 = vpack.c.bf16 %v3505, %v3505
        %v3563 = vpack.c.bf16 %v3506, %v3506
        %v3572 = vunpack.c.l.b16 %v3556
        %v3573 = vunpack.c.l.b16 %v3557
        %v3574 = vunpack.c.l.b16 %v3558
        %v3575 = vunpack.c.l.b16 %v3559
        %v3576 = vunpack.c.l.b16 %v3560
        %v3577 = vunpack.c.l.b16 %v3561
        %v3578 = vunpack.c.l.b16 %v3562
        %v3579 = vunpack.c.l.b16 %v3563
        %v3580 = vpack.c.b16 %v3572, %v3572
        %v3581 = vpack.c.b16 %v3573, %v3573
        %v3582 = vpack.c.b16 %v3574, %v3574
        %v3583 = vpack.c.b16 %v3575, %v3575
        %v3584 = vpack.c.b16 %v3576, %v3576
        %v3585 = vpack.c.b16 %v3577, %v3577
        %v3586 = vpack.c.b16 %v3578, %v3578
        %v3587 = vpack.c.b16 %v3579, %v3579
        %3588 = vrot.lane.b32.xlu0 %v3580, 112
        %v3589 = vpop.permute.xlu0 %3588
        %3590 = vrot.lane.b32.xlu0 %v3581, 112
        %v3591 = vpop.permute.xlu0 %3590
        %3592 = vrot.lane.b32.xlu0 %v3582, 112
        %v3593 = vpop.permute.xlu0 %3592
        %3594 = vrot.lane.b32.xlu0 %v3583, 112
        %v3595 = vpop.permute.xlu0 %3594
        %3596 = vrot.lane.b32.xlu0 %v3584, 112
        %v3597 = vpop.permute.xlu0 %3596
        %3598 = vrot.lane.b32.xlu0 %v3585, 112
        %v3599 = vpop.permute.xlu0 %3598
        %3600 = vrot.lane.b32.xlu0 %v3586, 112
        %v3601 = vpop.permute.xlu0 %3600
        %3602 = vrot.lane.b32.xlu0 %v3587, 112
        %v3603 = vpop.permute.xlu0 %3602
        %s3612 = scalar_lea.vmem [#allocation2], 80
        %3613 = vst.msk [vmem:[%s3612] sm:$0xf] %vm278, %v3589
        %3614 = vst.msk [vmem:[%s3612 + $0x8] sm:$0xf] %vm278, %v3591
        %3615 = vst.msk [vmem:[%s3612 + $0x10] sm:$0xf] %vm278, %v3593
        %3616 = vst.msk [vmem:[%s3612 + $0x18] sm:$0xf] %vm278, %v3595
        %3617 = vst.msk [vmem:[%s3612 + $0x20] sm:$0xf] %vm278, %v3597
        %3618 = vst.msk [vmem:[%s3612 + $0x28] sm:$0xf] %vm278, %v3599
        %3619 = vst.msk [vmem:[%s3612 + $0x30] sm:$0xf] %vm278, %v3601
        %3620 = vst.msk [vmem:[%s3612 + $0x38] sm:$0xf] %vm278, %v3603
        %v3621 = vld [vmem:[%s1] sm:$0x3]
        %v3622 = vld [vmem:[%s857] sm:$0x3]
        %v3624 = vsel %vm872, %v3622, 0
        %3626 = vmatprep.subr.bf16.mxu0 0
        %3627 = vmatpush1.bf16.msra.mxu0 0
        %3628 = vmatprep.subr.bf16.mxu0 0
        %3629 = vmatpush1.bf16.msra.mxu0 0
        %3630 = vmatprep.subr.bf16.mxu0 0
        %3631 = vmatpush1.bf16.msra.mxu0 0
        %3632 = vmatprep.subr.bf16.mxu0 0
        %3633 = vmatpush1.bf16.msra.mxu0 0
        %3634 = vmatprep.subr.bf16.mxu0 0
        %3635 = vmatpush1.bf16.msra.mxu0 0
        %3636 = vmatprep.subr.bf16.mxu0 0
        %3637 = vmatpush1.bf16.msra.mxu0 0
        %3638 = vmatprep.subr.bf16.mxu0 0
        %3639 = vmatpush1.bf16.msra.mxu0 0
        %3640 = vmatprep.subr.bf16.mxu0 0
        %3641 = vmatpush1.bf16.msra.mxu0 %v3624
        %3642 = vmatprep.subr.bf16.mxu0 0
        %3643 = vmatpush2.bf16.msra.mxu0 0
        %3644 = vmatprep.subr.bf16.mxu0 0
        %3645 = vmatpush2.bf16.msra.mxu0 0
        %3646 = vmatprep.subr.bf16.mxu0 0
        %3647 = vmatpush2.bf16.msra.mxu0 0
        %3648 = vmatprep.subr.bf16.mxu0 0
        %3649 = vmatpush2.bf16.msra.mxu0 0
        %3650 = vmatprep.subr.bf16.mxu0 0
        %3651 = vmatpush2.bf16.msra.mxu0 0
        %3652 = vmatprep.subr.bf16.mxu0 0
        %3653 = vmatpush2.bf16.msra.mxu0 0
        %3654 = vmatprep.subr.bf16.mxu0 0
        %3655 = vmatpush2.bf16.msra.mxu0 0
        %3656 = vmatprep.subr.bf16.mxu0 0
        %3657 = vmatpush2.bf16.msra.mxu0 0
        %3658 = vmatprep.mubr.bf16.mxu0 0
        %3659 = vmatmul.mubr.bf16.gmra.mxu0 %v1294
        %v3660 = vpop.f32.mrf.mxu0
        %v3661 = vadd.f32 0.0, %v3660
        %v3662 = vpop.f32.mrf.mxu0
        %v3663 = vpop.f32.mrf.mxu0
        %v3664 = vadd.f32 0.0, %v3663
        %v3665 = vpop.f32.mrf.mxu0
        %3666 = vmatprep.mubr.bf16.mxu0 0
        %3667 = vmatmul.mubr.bf16.gmra.mxu0 %v1297
        %v3668 = vpop.f32.mrf.mxu0
        %v3669 = vadd.f32 0.0, %v3668
        %v3670 = vpop.f32.mrf.mxu0
        %v3671 = vpop.f32.mrf.mxu0
        %v3672 = vadd.f32 0.0, %v3671
        %v3673 = vpop.f32.mrf.mxu0
        %3674 = vmatprep.mubr.bf16.mxu0 0
        %3675 = vmatmul.mubr.bf16.gmra.mxu0 %v1300
        %v3676 = vpop.f32.mrf.mxu0
        %v3677 = vadd.f32 0.0, %v3676
        %v3678 = vpop.f32.mrf.mxu0
        %v3679 = vpop.f32.mrf.mxu0
        %v3680 = vadd.f32 0.0, %v3679
        %v3681 = vpop.f32.mrf.mxu0
        %3682 = vmatprep.mubr.bf16.mxu0 0
        %3683 = vmatmul.mubr.bf16.gmra.mxu0 %v1303
        %v3684 = vpop.f32.mrf.mxu0
        %v3685 = vadd.f32 0.0, %v3684
        %v3686 = vpop.f32.mrf.mxu0
        %v3687 = vpop.f32.mrf.mxu0
        %v3688 = vadd.f32 0.0, %v3687
        %v3689 = vpop.f32.mrf.mxu0
        %3690 = vdwg.mxu0
        %v3692 = vsel %vm872, %v3621, 0
        %3694 = vmatprep.subr.bf16.mxu0 0
        %3695 = vmatpush1.bf16.msra.mxu0 0
        %3696 = vmatprep.subr.bf16.mxu0 0
        %3697 = vmatpush1.bf16.msra.mxu0 0
        %3698 = vmatprep.subr.bf16.mxu0 0
        %3699 = vmatpush1.bf16.msra.mxu0 0
        %3700 = vmatprep.subr.bf16.mxu0 0
        %3701 = vmatpush1.bf16.msra.mxu0 0
        %3702 = vmatprep.subr.bf16.mxu0 0
        %3703 = vmatpush1.bf16.msra.mxu0 0
        %3704 = vmatprep.subr.bf16.mxu0 0
        %3705 = vmatpush1.bf16.msra.mxu0 0
        %3706 = vmatprep.subr.bf16.mxu0 0
        %3707 = vmatpush1.bf16.msra.mxu0 0
        %3708 = vmatprep.subr.bf16.mxu0 0
        %3709 = vmatpush1.bf16.msra.mxu0 %v3692
        %3710 = vmatprep.subr.bf16.mxu0 0
        %3711 = vmatpush2.bf16.msra.mxu0 0
        %3712 = vmatprep.subr.bf16.mxu0 0
        %3713 = vmatpush2.bf16.msra.mxu0 0
        %3714 = vmatprep.subr.bf16.mxu0 0
        %3715 = vmatpush2.bf16.msra.mxu0 0
        %3716 = vmatprep.subr.bf16.mxu0 0
        %3717 = vmatpush2.bf16.msra.mxu0 0
        %3718 = vmatprep.subr.bf16.mxu0 0
        %3719 = vmatpush2.bf16.msra.mxu0 0
        %3720 = vmatprep.subr.bf16.mxu0 0
        %3721 = vmatpush2.bf16.msra.mxu0 0
        %3722 = vmatprep.subr.bf16.mxu0 0
        %3723 = vmatpush2.bf16.msra.mxu0 0
        %3724 = vmatprep.subr.bf16.mxu0 0
        %3725 = vmatpush2.bf16.msra.mxu0 0
        %3726 = vmatprep.mubr.bf16.mxu0 0
        %3727 = vmatmul.mubr.bf16.gmra.mxu0 %v1204
        %v3728 = vpop.f32.mrf.mxu0
        %v3729 = vadd.f32 %v3661, %v3728
        %v3730 = vpop.f32.mrf.mxu0
        %v3731 = vpop.f32.mrf.mxu0
        %v3732 = vadd.f32 %v3664, %v3731
        %v3733 = vpop.f32.mrf.mxu0
        %3734 = vmatprep.mubr.bf16.mxu0 0
        %3735 = vmatmul.mubr.bf16.gmra.mxu0 %v1207
        %v3736 = vpop.f32.mrf.mxu0
        %v3737 = vadd.f32 %v3669, %v3736
        %v3738 = vpop.f32.mrf.mxu0
        %v3739 = vpop.f32.mrf.mxu0
        %v3740 = vadd.f32 %v3672, %v3739
        %v3741 = vpop.f32.mrf.mxu0
        %3742 = vmatprep.mubr.bf16.mxu0 0
        %3743 = vmatmul.mubr.bf16.gmra.mxu0 %v1210
        %v3744 = vpop.f32.mrf.mxu0
        %v3745 = vadd.f32 %v3677, %v3744
        %v3746 = vpop.f32.mrf.mxu0
        %v3747 = vpop.f32.mrf.mxu0
        %v3748 = vadd.f32 %v3680, %v3747
        %v3749 = vpop.f32.mrf.mxu0
        %3750 = vmatprep.mubr.bf16.mxu0 0
        %3751 = vmatmul.mubr.bf16.gmra.mxu0 %v1213
        %v3752 = vpop.f32.mrf.mxu0
        %v3753 = vadd.f32 %v3685, %v3752
        %v3754 = vpop.f32.mrf.mxu0
        %v3755 = vpop.f32.mrf.mxu0
        %v3756 = vadd.f32 %v3688, %v3755
        %v3757 = vpop.f32.mrf.mxu0
        %3758 = vdwg.mxu0
        %v3759 = vld [vmem:[%s1021] sm:$0x3]
        %v3761 = vsel %vm872, %v3759, 0
        %3763 = vmatprep.subr.bf16.mxu0 0
        %3764 = vmatpush1.bf16.msra.mxu0 0
        %3765 = vmatprep.subr.bf16.mxu0 0
        %3766 = vmatpush1.bf16.msra.mxu0 0
        %3767 = vmatprep.subr.bf16.mxu0 0
        %3768 = vmatpush1.bf16.msra.mxu0 0
        %3769 = vmatprep.subr.bf16.mxu0 0
        %3770 = vmatpush1.bf16.msra.mxu0 0
        %3771 = vmatprep.subr.bf16.mxu0 0
        %3772 = vmatpush1.bf16.msra.mxu0 0
        %3773 = vmatprep.subr.bf16.mxu0 0
        %3774 = vmatpush1.bf16.msra.mxu0 0
        %3775 = vmatprep.subr.bf16.mxu0 0
        %3776 = vmatpush1.bf16.msra.mxu0 0
        %3777 = vmatprep.subr.bf16.mxu0 0
        %3778 = vmatpush1.bf16.msra.mxu0 %v3761
        %3779 = vmatprep.subr.bf16.mxu0 0
        %3780 = vmatpush2.bf16.msra.mxu0 0
        %3781 = vmatprep.subr.bf16.mxu0 0
        %3782 = vmatpush2.bf16.msra.mxu0 0
        %3783 = vmatprep.subr.bf16.mxu0 0
        %3784 = vmatpush2.bf16.msra.mxu0 0
        %3785 = vmatprep.subr.bf16.mxu0 0
        %3786 = vmatpush2.bf16.msra.mxu0 0
        %3787 = vmatprep.subr.bf16.mxu0 0
        %3788 = vmatpush2.bf16.msra.mxu0 0
        %3789 = vmatprep.subr.bf16.mxu0 0
        %3790 = vmatpush2.bf16.msra.mxu0 0
        %3791 = vmatprep.subr.bf16.mxu0 0
        %3792 = vmatpush2.bf16.msra.mxu0 0
        %3793 = vmatprep.subr.bf16.mxu0 0
        %3794 = vmatpush2.bf16.msra.mxu0 0
        %3795 = vmatprep.mubr.bf16.mxu0 0
        %3796 = vmatmul.mubr.bf16.gmra.mxu0 %v2173
        %v3797 = vpop.f32.mrf.mxu0
        %v3798 = vadd.f32 0.0, %v3797
        %v3799 = vpop.f32.mrf.mxu0
        %v3800 = vpop.f32.mrf.mxu0
        %v3801 = vadd.f32 0.0, %v3800
        %v3802 = vpop.f32.mrf.mxu0
        %3803 = vmatprep.mubr.bf16.mxu0 0
        %3804 = vmatmul.mubr.bf16.gmra.mxu0 %v2176
        %v3805 = vpop.f32.mrf.mxu0
        %v3806 = vadd.f32 0.0, %v3805
        %v3807 = vpop.f32.mrf.mxu0
        %v3808 = vpop.f32.mrf.mxu0
        %v3809 = vadd.f32 0.0, %v3808
        %v3810 = vpop.f32.mrf.mxu0
        %3811 = vmatprep.mubr.bf16.mxu0 0
        %3812 = vmatmul.mubr.bf16.gmra.mxu0 %v2179
        %v3813 = vpop.f32.mrf.mxu0
        %v3814 = vadd.f32 0.0, %v3813
        %v3815 = vpop.f32.mrf.mxu0
        %v3816 = vpop.f32.mrf.mxu0
        %v3817 = vadd.f32 0.0, %v3816
        %v3818 = vpop.f32.mrf.mxu0
        %3819 = vmatprep.mubr.bf16.mxu0 0
        %3820 = vmatmul.mubr.bf16.gmra.mxu0 %v2182
        %v3821 = vpop.f32.mrf.mxu0
        %v3822 = vadd.f32 0.0, %v3821
        %v3823 = vpop.f32.mrf.mxu0
        %v3824 = vpop.f32.mrf.mxu0
        %v3825 = vadd.f32 0.0, %v3824
        %v3826 = vpop.f32.mrf.mxu0
        %3827 = vdwg.mxu0
        %v3828 = vadd.f32 %v3729, %v3798
        %v3829 = vadd.f32 %v3732, %v3801
        %v3830 = vadd.f32 %v3737, %v3806
        %v3831 = vadd.f32 %v3740, %v3809
        %v3832 = vadd.f32 %v3745, %v3814
        %v3833 = vadd.f32 %v3748, %v3817
        %v3834 = vadd.f32 %v3753, %v3822
        %v3835 = vadd.f32 %v3756, %v3825
        %v3836 = vld [vmem:[%s1111] sm:$0x3]
        %v3838 = vsel %vm872, %v3836, 0
        %3840 = vmatprep.subr.bf16.mxu0 0
        %3841 = vmatpush1.bf16.msra.mxu0 0
        %3842 = vmatprep.subr.bf16.mxu0 0
        %3843 = vmatpush1.bf16.msra.mxu0 0
        %3844 = vmatprep.subr.bf16.mxu0 0
        %3845 = vmatpush1.bf16.msra.mxu0 0
        %3846 = vmatprep.subr.bf16.mxu0 0
        %3847 = vmatpush1.bf16.msra.mxu0 0
        %3848 = vmatprep.subr.bf16.mxu0 0
        %3849 = vmatpush1.bf16.msra.mxu0 0
        %3850 = vmatprep.subr.bf16.mxu0 0
        %3851 = vmatpush1.bf16.msra.mxu0 0
        %3852 = vmatprep.subr.bf16.mxu0 0
        %3853 = vmatpush1.bf16.msra.mxu0 0
        %3854 = vmatprep.subr.bf16.mxu0 0
        %3855 = vmatpush1.bf16.msra.mxu0 %v3838
        %3856 = vmatprep.subr.bf16.mxu0 0
        %3857 = vmatpush2.bf16.msra.mxu0 0
        %3858 = vmatprep.subr.bf16.mxu0 0
        %3859 = vmatpush2.bf16.msra.mxu0 0
        %3860 = vmatprep.subr.bf16.mxu0 0
        %3861 = vmatpush2.bf16.msra.mxu0 0
        %3862 = vmatprep.subr.bf16.mxu0 0
        %3863 = vmatpush2.bf16.msra.mxu0 0
        %3864 = vmatprep.subr.bf16.mxu0 0
        %3865 = vmatpush2.bf16.msra.mxu0 0
        %3866 = vmatprep.subr.bf16.mxu0 0
        %3867 = vmatpush2.bf16.msra.mxu0 0
        %3868 = vmatprep.subr.bf16.mxu0 0
        %3869 = vmatpush2.bf16.msra.mxu0 0
        %3870 = vmatprep.subr.bf16.mxu0 0
        %3871 = vmatpush2.bf16.msra.mxu0 0
        %3872 = vmatprep.mubr.bf16.mxu0 0
        %3873 = vmatmul.mubr.bf16.gmra.mxu0 %v1474
        %v3874 = vpop.f32.mrf.mxu0
        %v3875 = vadd.f32 0.0, %v3874
        %v3876 = vpop.f32.mrf.mxu0
        %v3877 = vpop.f32.mrf.mxu0
        %v3878 = vadd.f32 0.0, %v3877
        %v3879 = vpop.f32.mrf.mxu0
        %3880 = vmatprep.mubr.bf16.mxu0 0
        %3881 = vmatmul.mubr.bf16.gmra.mxu0 %v1477
        %v3882 = vpop.f32.mrf.mxu0
        %v3883 = vadd.f32 0.0, %v3882
        %v3884 = vpop.f32.mrf.mxu0
        %v3885 = vpop.f32.mrf.mxu0
        %v3886 = vadd.f32 0.0, %v3885
        %v3887 = vpop.f32.mrf.mxu0
        %3888 = vmatprep.mubr.bf16.mxu0 0
        %3889 = vmatmul.mubr.bf16.gmra.mxu0 %v1480
        %v3890 = vpop.f32.mrf.mxu0
        %v3891 = vadd.f32 0.0, %v3890
        %v3892 = vpop.f32.mrf.mxu0
        %v3893 = vpop.f32.mrf.mxu0
        %v3894 = vadd.f32 0.0, %v3893
        %v3895 = vpop.f32.mrf.mxu0
        %3896 = vmatprep.mubr.bf16.mxu0 0
        %3897 = vmatmul.mubr.bf16.gmra.mxu0 %v1483
        %v3898 = vpop.f32.mrf.mxu0
        %v3899 = vadd.f32 0.0, %v3898
        %v3900 = vpop.f32.mrf.mxu0
        %v3901 = vpop.f32.mrf.mxu0
        %v3902 = vadd.f32 0.0, %v3901
        %v3903 = vpop.f32.mrf.mxu0
        %3904 = vdwg.mxu0
        %v3905 = vadd.f32 %v3828, %v3875
        %v3906 = vadd.f32 %v3829, %v3878
        %v3907 = vadd.f32 %v3830, %v3883
        %v3908 = vadd.f32 %v3831, %v3886
        %v3909 = vadd.f32 %v3832, %v3891
        %v3910 = vadd.f32 %v3833, %v3894
        %v3911 = vadd.f32 %v3834, %v3899
        %v3912 = vadd.f32 %v3835, %v3902
        %v3913 = vld [vmem:[%s1201] sm:$0x3]
        %v3915 = vsel %vm872, %v3913, 0
        %3917 = vmatprep.subr.bf16.mxu0 0
        %3918 = vmatpush1.bf16.msra.mxu0 0
        %3919 = vmatprep.subr.bf16.mxu0 0
        %3920 = vmatpush1.bf16.msra.mxu0 0
        %3921 = vmatprep.subr.bf16.mxu0 0
        %3922 = vmatpush1.bf16.msra.mxu0 0
        %3923 = vmatprep.subr.bf16.mxu0 0
        %3924 = vmatpush1.bf16.msra.mxu0 0
        %3925 = vmatprep.subr.bf16.mxu0 0
        %3926 = vmatpush1.bf16.msra.mxu0 0
        %3927 = vmatprep.subr.bf16.mxu0 0
        %3928 = vmatpush1.bf16.msra.mxu0 0
        %3929 = vmatprep.subr.bf16.mxu0 0
        %3930 = vmatpush1.bf16.msra.mxu0 0
        %3931 = vmatprep.subr.bf16.mxu0 0
        %3932 = vmatpush1.bf16.msra.mxu0 %v3915
        %3933 = vmatprep.subr.bf16.mxu0 0
        %3934 = vmatpush2.bf16.msra.mxu0 0
        %3935 = vmatprep.subr.bf16.mxu0 0
        %3936 = vmatpush2.bf16.msra.mxu0 0
        %3937 = vmatprep.subr.bf16.mxu0 0
        %3938 = vmatpush2.bf16.msra.mxu0 0
        %3939 = vmatprep.subr.bf16.mxu0 0
        %3940 = vmatpush2.bf16.msra.mxu0 0
        %3941 = vmatprep.subr.bf16.mxu0 0
        %3942 = vmatpush2.bf16.msra.mxu0 0
        %3943 = vmatprep.subr.bf16.mxu0 0
        %3944 = vmatpush2.bf16.msra.mxu0 0
        %3945 = vmatprep.subr.bf16.mxu0 0
        %3946 = vmatpush2.bf16.msra.mxu0 0
        %3947 = vmatprep.subr.bf16.mxu0 0
        %3948 = vmatpush2.bf16.msra.mxu0 0
        %3949 = vmatprep.mubr.bf16.mxu0 0
        %3950 = vmatmul.mubr.bf16.gmra.mxu0 %v1564
        %v3951 = vpop.f32.mrf.mxu0
        %v3952 = vadd.f32 0.0, %v3951
        %v3953 = vpop.f32.mrf.mxu0
        %v3954 = vpop.f32.mrf.mxu0
        %v3955 = vadd.f32 0.0, %v3954
        %v3956 = vpop.f32.mrf.mxu0
        %3957 = vmatprep.mubr.bf16.mxu0 0
        %3958 = vmatmul.mubr.bf16.gmra.mxu0 %v1567
        %v3959 = vpop.f32.mrf.mxu0
        %v3960 = vadd.f32 0.0, %v3959
        %v3961 = vpop.f32.mrf.mxu0
        %v3962 = vpop.f32.mrf.mxu0
        %v3963 = vadd.f32 0.0, %v3962
        %v3964 = vpop.f32.mrf.mxu0
        %3965 = vmatprep.mubr.bf16.mxu0 0
        %3966 = vmatmul.mubr.bf16.gmra.mxu0 %v1570
        %v3967 = vpop.f32.mrf.mxu0
        %v3968 = vadd.f32 0.0, %v3967
        %v3969 = vpop.f32.mrf.mxu0
        %v3970 = vpop.f32.mrf.mxu0
        %v3971 = vadd.f32 0.0, %v3970
        %v3972 = vpop.f32.mrf.mxu0
        %3973 = vmatprep.mubr.bf16.mxu0 0
        %3974 = vmatmul.mubr.bf16.gmra.mxu0 %v1573
        %v3975 = vpop.f32.mrf.mxu0
        %v3976 = vadd.f32 0.0, %v3975
        %v3977 = vpop.f32.mrf.mxu0
        %v3978 = vpop.f32.mrf.mxu0
        %v3979 = vadd.f32 0.0, %v3978
        %v3980 = vpop.f32.mrf.mxu0
        %3981 = vdwg.mxu0
        %v3982 = vadd.f32 %v3905, %v3952
        %v3983 = vadd.f32 %v3906, %v3955
        %v3984 = vadd.f32 %v3907, %v3960
        %v3985 = vadd.f32 %v3908, %v3963
        %v3986 = vadd.f32 %v3909, %v3968
        %v3987 = vadd.f32 %v3910, %v3971
        %v3988 = vadd.f32 %v3911, %v3976
        %v3989 = vadd.f32 %v3912, %v3979
        %v3990 = vld [vmem:[%s1291] sm:$0x3]
        %v3992 = vsel %vm872, %v3990, 0
        %3994 = vmatprep.subr.bf16.mxu0 0
        %3995 = vmatpush1.bf16.msra.mxu0 0
        %3996 = vmatprep.subr.bf16.mxu0 0
        %3997 = vmatpush1.bf16.msra.mxu0 0
        %3998 = vmatprep.subr.bf16.mxu0 0
        %3999 = vmatpush1.bf16.msra.mxu0 0
        %4000 = vmatprep.subr.bf16.mxu0 0
        %4001 = vmatpush1.bf16.msra.mxu0 0
        %4002 = vmatprep.subr.bf16.mxu0 0
        %4003 = vmatpush1.bf16.msra.mxu0 0
        %4004 = vmatprep.subr.bf16.mxu0 0
        %4005 = vmatpush1.bf16.msra.mxu0 0
        %4006 = vmatprep.subr.bf16.mxu0 0
        %4007 = vmatpush1.bf16.msra.mxu0 0
        %4008 = vmatprep.subr.bf16.mxu0 0
        %4009 = vmatpush1.bf16.msra.mxu0 %v3992
        %4010 = vmatprep.subr.bf16.mxu0 0
        %4011 = vmatpush2.bf16.msra.mxu0 0
        %4012 = vmatprep.subr.bf16.mxu0 0
        %4013 = vmatpush2.bf16.msra.mxu0 0
        %4014 = vmatprep.subr.bf16.mxu0 0
        %4015 = vmatpush2.bf16.msra.mxu0 0
        %4016 = vmatprep.subr.bf16.mxu0 0
        %4017 = vmatpush2.bf16.msra.mxu0 0
        %4018 = vmatprep.subr.bf16.mxu0 0
        %4019 = vmatpush2.bf16.msra.mxu0 0
        %4020 = vmatprep.subr.bf16.mxu0 0
        %4021 = vmatpush2.bf16.msra.mxu0 0
        %4022 = vmatprep.subr.bf16.mxu0 0
        %4023 = vmatpush2.bf16.msra.mxu0 0
        %4024 = vmatprep.subr.bf16.mxu0 0
        %4025 = vmatpush2.bf16.msra.mxu0 0
        %4026 = vmatprep.mubr.bf16.mxu0 0
        %4027 = vmatmul.mubr.bf16.gmra.mxu0 %v2416
        %v4028 = vpop.f32.mrf.mxu0
        %v4029 = vadd.f32 0.0, %v4028
        %v4030 = vpop.f32.mrf.mxu0
        %v4031 = vpop.f32.mrf.mxu0
        %v4032 = vadd.f32 0.0, %v4031
        %v4033 = vpop.f32.mrf.mxu0
        %4034 = vmatprep.mubr.bf16.mxu0 0
        %4035 = vmatmul.mubr.bf16.gmra.mxu0 %v2419
        %v4036 = vpop.f32.mrf.mxu0
        %v4037 = vadd.f32 0.0, %v4036
        %v4038 = vpop.f32.mrf.mxu0
        %v4039 = vpop.f32.mrf.mxu0
        %v4040 = vadd.f32 0.0, %v4039
        %v4041 = vpop.f32.mrf.mxu0
        %4042 = vmatprep.mubr.bf16.mxu0 0
        %4043 = vmatmul.mubr.bf16.gmra.mxu0 %v2422
        %v4044 = vpop.f32.mrf.mxu0
        %v4045 = vadd.f32 0.0, %v4044
        %v4046 = vpop.f32.mrf.mxu0
        %v4047 = vpop.f32.mrf.mxu0
        %v4048 = vadd.f32 0.0, %v4047
        %v4049 = vpop.f32.mrf.mxu0
        %4050 = vmatprep.mubr.bf16.mxu0 0
        %4051 = vmatmul.mubr.bf16.gmra.mxu0 %v2425
        %v4052 = vpop.f32.mrf.mxu0
        %v4053 = vadd.f32 0.0, %v4052
        %v4054 = vpop.f32.mrf.mxu0
        %v4055 = vpop.f32.mrf.mxu0
        %v4056 = vadd.f32 0.0, %v4055
        %v4057 = vpop.f32.mrf.mxu0
        %4058 = vdwg.mxu0
        %v4059 = vadd.f32 %v3982, %v4029
        %v4060 = vadd.f32 %v3983, %v4032
        %v4061 = vadd.f32 %v3984, %v4037
        %v4062 = vadd.f32 %v3985, %v4040
        %v4063 = vadd.f32 %v3986, %v4045
        %v4064 = vadd.f32 %v3987, %v4048
        %v4065 = vadd.f32 %v3988, %v4053
        %v4066 = vadd.f32 %v3989, %v4056
        %v4067 = vld [vmem:[%s1381] sm:$0x3]
        %v4069 = vsel %vm872, %v4067, 0
        %4071 = vmatprep.subr.bf16.mxu0 0
        %4072 = vmatpush1.bf16.msra.mxu0 0
        %4073 = vmatprep.subr.bf16.mxu0 0
        %4074 = vmatpush1.bf16.msra.mxu0 0
        %4075 = vmatprep.subr.bf16.mxu0 0
        %4076 = vmatpush1.bf16.msra.mxu0 0
        %4077 = vmatprep.subr.bf16.mxu0 0
        %4078 = vmatpush1.bf16.msra.mxu0 0
        %4079 = vmatprep.subr.bf16.mxu0 0
        %4080 = vmatpush1.bf16.msra.mxu0 0
        %4081 = vmatprep.subr.bf16.mxu0 0
        %4082 = vmatpush1.bf16.msra.mxu0 0
        %4083 = vmatprep.subr.bf16.mxu0 0
        %4084 = vmatpush1.bf16.msra.mxu0 0
        %4085 = vmatprep.subr.bf16.mxu0 0
        %4086 = vmatpush1.bf16.msra.mxu0 %v4069
        %4087 = vmatprep.subr.bf16.mxu0 0
        %4088 = vmatpush2.bf16.msra.mxu0 0
        %4089 = vmatprep.subr.bf16.mxu0 0
        %4090 = vmatpush2.bf16.msra.mxu0 0
        %4091 = vmatprep.subr.bf16.mxu0 0
        %4092 = vmatpush2.bf16.msra.mxu0 0
        %4093 = vmatprep.subr.bf16.mxu0 0
        %4094 = vmatpush2.bf16.msra.mxu0 0
        %4095 = vmatprep.subr.bf16.mxu0 0
        %4096 = vmatpush2.bf16.msra.mxu0 0
        %4097 = vmatprep.subr.bf16.mxu0 0
        %4098 = vmatpush2.bf16.msra.mxu0 0
        %4099 = vmatprep.subr.bf16.mxu0 0
        %4100 = vmatpush2.bf16.msra.mxu0 0
        %4101 = vmatprep.subr.bf16.mxu0 0
        %4102 = vmatpush2.bf16.msra.mxu0 0
        %4103 = vmatprep.mubr.bf16.mxu0 0
        %4104 = vmatmul.mubr.bf16.gmra.mxu0 %v3308
        %v4105 = vpop.f32.mrf.mxu0
        %v4106 = vadd.f32 0.0, %v4105
        %v4107 = vpop.f32.mrf.mxu0
        %v4108 = vpop.f32.mrf.mxu0
        %v4109 = vadd.f32 0.0, %v4108
        %v4110 = vpop.f32.mrf.mxu0
        %4111 = vmatprep.mubr.bf16.mxu0 0
        %4112 = vmatmul.mubr.bf16.gmra.mxu0 %v3311
        %v4113 = vpop.f32.mrf.mxu0
        %v4114 = vadd.f32 0.0, %v4113
        %v4115 = vpop.f32.mrf.mxu0
        %v4116 = vpop.f32.mrf.mxu0
        %v4117 = vadd.f32 0.0, %v4116
        %v4118 = vpop.f32.mrf.mxu0
        %4119 = vmatprep.mubr.bf16.mxu0 0
        %4120 = vmatmul.mubr.bf16.gmra.mxu0 %v3314
        %v4121 = vpop.f32.mrf.mxu0
        %v4122 = vadd.f32 0.0, %v4121
        %v4123 = vpop.f32.mrf.mxu0
        %v4124 = vpop.f32.mrf.mxu0
        %v4125 = vadd.f32 0.0, %v4124
        %v4126 = vpop.f32.mrf.mxu0
        %4127 = vmatprep.mubr.bf16.mxu0 0
        %4128 = vmatmul.mubr.bf16.gmra.mxu0 %v3317
        %v4129 = vpop.f32.mrf.mxu0
        %v4130 = vadd.f32 0.0, %v4129
        %v4131 = vpop.f32.mrf.mxu0
        %v4132 = vpop.f32.mrf.mxu0
        %v4133 = vadd.f32 0.0, %v4132
        %v4134 = vpop.f32.mrf.mxu0
        %4135 = vdwg.mxu0
        %v4136 = vadd.f32 %v4059, %v4106
        %v4137 = vadd.f32 %v4060, %v4109
        %v4138 = vadd.f32 %v4061, %v4114
        %v4139 = vadd.f32 %v4062, %v4117
        %v4140 = vadd.f32 %v4063, %v4122
        %v4141 = vadd.f32 %v4064, %v4125
        %v4142 = vadd.f32 %v4065, %v4130
        %v4143 = vadd.f32 %v4066, %v4133
        %v4144 = vld [vmem:[%s1471] sm:$0x3]
        %v4146 = vsel %vm872, %v4144, 0
        %4148 = vmatprep.subr.bf16.mxu0 0
        %4149 = vmatpush1.bf16.msra.mxu0 0
        %4150 = vmatprep.subr.bf16.mxu0 0
        %4151 = vmatpush1.bf16.msra.mxu0 0
        %4152 = vmatprep.subr.bf16.mxu0 0
        %4153 = vmatpush1.bf16.msra.mxu0 0
        %4154 = vmatprep.subr.bf16.mxu0 0
        %4155 = vmatpush1.bf16.msra.mxu0 0
        %4156 = vmatprep.subr.bf16.mxu0 0
        %4157 = vmatpush1.bf16.msra.mxu0 0
        %4158 = vmatprep.subr.bf16.mxu0 0
        %4159 = vmatpush1.bf16.msra.mxu0 0
        %4160 = vmatprep.subr.bf16.mxu0 0
        %4161 = vmatpush1.bf16.msra.mxu0 0
        %4162 = vmatprep.subr.bf16.mxu0 0
        %4163 = vmatpush1.bf16.msra.mxu0 %v4146
        %4164 = vmatprep.subr.bf16.mxu0 0
        %4165 = vmatpush2.bf16.msra.mxu0 0
        %4166 = vmatprep.subr.bf16.mxu0 0
        %4167 = vmatpush2.bf16.msra.mxu0 0
        %4168 = vmatprep.subr.bf16.mxu0 0
        %4169 = vmatpush2.bf16.msra.mxu0 0
        %4170 = vmatprep.subr.bf16.mxu0 0
        %4171 = vmatpush2.bf16.msra.mxu0 0
        %4172 = vmatprep.subr.bf16.mxu0 0
        %4173 = vmatpush2.bf16.msra.mxu0 0
        %4174 = vmatprep.subr.bf16.mxu0 0
        %4175 = vmatpush2.bf16.msra.mxu0 0
        %4176 = vmatprep.subr.bf16.mxu0 0
        %4177 = vmatpush2.bf16.msra.mxu0 0
        %4178 = vmatprep.subr.bf16.mxu0 0
        %4179 = vmatpush2.bf16.msra.mxu0 0
        %4180 = vmatprep.mubr.bf16.mxu0 0
        %4181 = vmatmul.mubr.bf16.gmra.mxu0 %v3397
        %v4182 = vpop.f32.mrf.mxu0
        %v4183 = vadd.f32 0.0, %v4182
        %v4184 = vpop.f32.mrf.mxu0
        %v4185 = vpop.f32.mrf.mxu0
        %v4186 = vadd.f32 0.0, %v4185
        %v4187 = vpop.f32.mrf.mxu0
        %4188 = vmatprep.mubr.bf16.mxu0 0
        %4189 = vmatmul.mubr.bf16.gmra.mxu0 %v3400
        %v4190 = vpop.f32.mrf.mxu0
        %v4191 = vadd.f32 0.0, %v4190
        %v4192 = vpop.f32.mrf.mxu0
        %v4193 = vpop.f32.mrf.mxu0
        %v4194 = vadd.f32 0.0, %v4193
        %v4195 = vpop.f32.mrf.mxu0
        %4196 = vmatprep.mubr.bf16.mxu0 0
        %4197 = vmatmul.mubr.bf16.gmra.mxu0 %v3403
        %v4198 = vpop.f32.mrf.mxu0
        %v4199 = vadd.f32 0.0, %v4198
        %v4200 = vpop.f32.mrf.mxu0
        %v4201 = vpop.f32.mrf.mxu0
        %v4202 = vadd.f32 0.0, %v4201
        %v4203 = vpop.f32.mrf.mxu0
        %4204 = vmatprep.mubr.bf16.mxu0 0
        %4205 = vmatmul.mubr.bf16.gmra.mxu0 %v3406
        %v4206 = vpop.f32.mrf.mxu0
        %v4207 = vadd.f32 0.0, %v4206
        %v4208 = vpop.f32.mrf.mxu0
        %v4209 = vpop.f32.mrf.mxu0
        %v4210 = vadd.f32 0.0, %v4209
        %v4211 = vpop.f32.mrf.mxu0
        %4212 = vdwg.mxu0
        %v4213 = vadd.f32 %v4136, %v4183
        %v4214 = vadd.f32 %v4137, %v4186
        %v4215 = vadd.f32 %v4138, %v4191
        %v4216 = vadd.f32 %v4139, %v4194
        %v4217 = vadd.f32 %v4140, %v4199
        %v4218 = vadd.f32 %v4141, %v4202
        %v4219 = vadd.f32 %v4142, %v4207
        %v4220 = vadd.f32 %v4143, %v4210
        %v4221 = vld [vmem:[%s1561] sm:$0x3]
        %v4223 = vsel %vm859, %v852, 0
        %v4226 = vsel %vm859, %v853, 0
        %v4229 = vsel %vm859, %v854, 0
        %v4232 = vsel %vm859, %v855, 0
        %v4235 = vsel %vm872, %v4221, 0
        %4237 = vmatprep.subr.bf16.mxu0 0
        %4238 = vmatpush1.bf16.msra.mxu0 0
        %4239 = vmatprep.subr.bf16.mxu0 0
        %4240 = vmatpush1.bf16.msra.mxu0 0
        %4241 = vmatprep.subr.bf16.mxu0 0
        %4242 = vmatpush1.bf16.msra.mxu0 0
        %4243 = vmatprep.subr.bf16.mxu0 0
        %4244 = vmatpush1.bf16.msra.mxu0 0
        %4245 = vmatprep.subr.bf16.mxu0 0
        %4246 = vmatpush1.bf16.msra.mxu0 0
        %4247 = vmatprep.subr.bf16.mxu0 0
        %4248 = vmatpush1.bf16.msra.mxu0 0
        %4249 = vmatprep.subr.bf16.mxu0 0
        %4250 = vmatpush1.bf16.msra.mxu0 0
        %4251 = vmatprep.subr.bf16.mxu0 0
        %4252 = vmatpush1.bf16.msra.mxu0 %v4235
        %4253 = vmatprep.subr.bf16.mxu0 0
        %4254 = vmatpush2.bf16.msra.mxu0 0
        %4255 = vmatprep.subr.bf16.mxu0 0
        %4256 = vmatpush2.bf16.msra.mxu0 0
        %4257 = vmatprep.subr.bf16.mxu0 0
        %4258 = vmatpush2.bf16.msra.mxu0 0
        %4259 = vmatprep.subr.bf16.mxu0 0
        %4260 = vmatpush2.bf16.msra.mxu0 0
        %4261 = vmatprep.subr.bf16.mxu0 0
        %4262 = vmatpush2.bf16.msra.mxu0 0
        %4263 = vmatprep.subr.bf16.mxu0 0
        %4264 = vmatpush2.bf16.msra.mxu0 0
        %4265 = vmatprep.subr.bf16.mxu0 0
        %4266 = vmatpush2.bf16.msra.mxu0 0
        %4267 = vmatprep.subr.bf16.mxu0 0
        %4268 = vmatpush2.bf16.msra.mxu0 0
        %4269 = vmatprep.mubr.bf16.mxu0 0
        %4270 = vmatmul.mubr.bf16.gmra.mxu0 %v4223
        %v4271 = vpop.f32.mrf.mxu0
        %v4272 = vadd.f32 0.0, %v4271
        %v4273 = vpop.f32.mrf.mxu0
        %v4274 = vpop.f32.mrf.mxu0
        %v4275 = vadd.f32 0.0, %v4274
        %v4276 = vpop.f32.mrf.mxu0
        %4277 = vmatprep.mubr.bf16.mxu0 0
        %4278 = vmatmul.mubr.bf16.gmra.mxu0 %v4226
        %v4279 = vpop.f32.mrf.mxu0
        %v4280 = vadd.f32 0.0, %v4279
        %v4281 = vpop.f32.mrf.mxu0
        %v4282 = vpop.f32.mrf.mxu0
        %v4283 = vadd.f32 0.0, %v4282
        %v4284 = vpop.f32.mrf.mxu0
        %4285 = vmatprep.mubr.bf16.mxu0 0
        %4286 = vmatmul.mubr.bf16.gmra.mxu0 %v4229
        %v4287 = vpop.f32.mrf.mxu0
        %v4288 = vadd.f32 0.0, %v4287
        %v4289 = vpop.f32.mrf.mxu0
        %v4290 = vpop.f32.mrf.mxu0
        %v4291 = vadd.f32 0.0, %v4290
        %v4292 = vpop.f32.mrf.mxu0
        %4293 = vmatprep.mubr.bf16.mxu0 0
        %4294 = vmatmul.mubr.bf16.gmra.mxu0 %v4232
        %v4295 = vpop.f32.mrf.mxu0
        %v4296 = vadd.f32 0.0, %v4295
        %v4297 = vpop.f32.mrf.mxu0
        %v4298 = vpop.f32.mrf.mxu0
        %v4299 = vadd.f32 0.0, %v4298
        %v4300 = vpop.f32.mrf.mxu0
        %4301 = vdwg.mxu0
        %v4302 = vadd.f32 %v4213, %v4272
        %v4303 = vadd.f32 %v4214, %v4275
        %v4304 = vadd.f32 %v4215, %v4280
        %v4305 = vadd.f32 %v4216, %v4283
        %v4306 = vadd.f32 %v4217, %v4288
        %v4307 = vadd.f32 %v4218, %v4291
        %v4308 = vadd.f32 %v4219, %v4296
        %v4309 = vadd.f32 %v4220, %v4299
        %v4310 = vld [vmem:[%s2] sm:$0x1]
        %v4312 = vlaneseq
        %v4313 = vshrl.u32 %v4312, 7
        %v4314 = vsub.s32 0, %v4313
        %v4315 = vrot.slane %v4310, %v4314
        %v4317 = vadd.f32 %v4302, %v4315
        %v4318 = vadd.f32 %v4303, %v4315
        %v4319 = vadd.f32 %v4304, %v4315
        %v4320 = vadd.f32 %v4305, %v4315
        %v4321 = vadd.f32 %v4306, %v4315
        %v4322 = vadd.f32 %v4307, %v4315
        %v4323 = vadd.f32 %v4308, %v4315
        %v4324 = vadd.f32 %v4309, %v4315
        %v4325 = vmax.f32 %v4317, 0.0
        %v4326 = vmax.f32 %v4318, 0.0
        %v4327 = vmax.f32 %v4319, 0.0
        %v4328 = vmax.f32 %v4320, 0.0
        %v4329 = vmax.f32 %v4321, 0.0
        %v4330 = vmax.f32 %v4322, 0.0
        %v4331 = vmax.f32 %v4323, 0.0
        %v4332 = vmax.f32 %v4324, 0.0
        %s4333 = scalar_lea.vmem [#allocation3], 16
        %4334 = vst.msk [vmem:[%s4333 + $0x1] sm:$0xff] %vm1675, %v4325
        %4335 = vst.msk [vmem:[%s4333 + $0x11] sm:$0xff] %vm1675, %v4326
        %4336 = vst.msk [vmem:[%s4333 + $0x21] sm:$0xff] %vm1675, %v4327
        %4337 = vst.msk [vmem:[%s4333 + $0x31] sm:$0xff] %vm1675, %v4328
        %4338 = vst.msk [vmem:[%s4333 + $0x41] sm:$0xff] %vm1675, %v4329
        %4339 = vst.msk [vmem:[%s4333 + $0x51] sm:$0xff] %vm1675, %v4330
        %4340 = vst.msk [vmem:[%s4333 + $0x61] sm:$0xff] %vm1675, %v4331
        %4341 = vst.msk [vmem:[%s4333 + $0x71] sm:$0xff] %vm1675, %v4332
        %4350 = vrot.lane.b32.xlu0 %v4325, 104
        %v4351 = vpop.permute.xlu0 %4350
        %4352 = vrot.lane.b32.xlu0 %v4326, 104
        %v4353 = vpop.permute.xlu0 %4352
        %4354 = vrot.lane.b32.xlu0 %v4327, 104
        %v4355 = vpop.permute.xlu0 %4354
        %4356 = vrot.lane.b32.xlu0 %v4328, 104
        %v4357 = vpop.permute.xlu0 %4356
        %4358 = vrot.lane.b32.xlu0 %v4329, 104
        %v4359 = vpop.permute.xlu0 %4358
        %4360 = vrot.lane.b32.xlu0 %v4330, 104
        %v4361 = vpop.permute.xlu0 %4360
        %4362 = vrot.lane.b32.xlu0 %v4331, 104
        %v4363 = vpop.permute.xlu0 %4362
        %4364 = vrot.lane.b32.xlu0 %v4332, 104
        %v4365 = vpop.permute.xlu0 %4364
        %4374 = vst.msk [vmem:[%s4333 + $0x1] sm:$0xff] %vm1716, %v4351
        %4375 = vst.msk [vmem:[%s4333 + $0x11] sm:$0xff] %vm1716, %v4353
        %4376 = vst.msk [vmem:[%s4333 + $0x21] sm:$0xff] %vm1716, %v4355
        %4377 = vst.msk [vmem:[%s4333 + $0x31] sm:$0xff] %vm1716, %v4357
        %4378 = vst.msk [vmem:[%s4333 + $0x41] sm:$0xff] %vm1716, %v4359
        %4379 = vst.msk [vmem:[%s4333 + $0x51] sm:$0xff] %vm1716, %v4361
        %4380 = vst.msk [vmem:[%s4333 + $0x61] sm:$0xff] %vm1716, %v4363
        %4381 = vst.msk [vmem:[%s4333 + $0x71] sm:$0xff] %vm1716, %v4365
        %v4382 = vpack.c.bf16 %v4325, %v4325
        %v4383 = vpack.c.bf16 %v4326, %v4326
        %v4384 = vpack.c.bf16 %v4327, %v4327
        %v4385 = vpack.c.bf16 %v4328, %v4328
        %v4386 = vpack.c.bf16 %v4329, %v4329
        %v4387 = vpack.c.bf16 %v4330, %v4330
        %v4388 = vpack.c.bf16 %v4331, %v4331
        %v4389 = vpack.c.bf16 %v4332, %v4332
        %v4398 = vunpack.c.l.b16 %v4382
        %v4399 = vunpack.c.l.b16 %v4383
        %v4400 = vunpack.c.l.b16 %v4384
        %v4401 = vunpack.c.l.b16 %v4385
        %v4402 = vunpack.c.l.b16 %v4386
        %v4403 = vunpack.c.l.b16 %v4387
        %v4404 = vunpack.c.l.b16 %v4388
        %v4405 = vunpack.c.l.b16 %v4389
        %v4406 = vpack.c.b16 %v4398, %v4398
        %v4407 = vpack.c.b16 %v4399, %v4399
        %v4408 = vpack.c.b16 %v4400, %v4400
        %v4409 = vpack.c.b16 %v4401, %v4401
        %v4410 = vpack.c.b16 %v4402, %v4402
        %v4411 = vpack.c.b16 %v4403, %v4403
        %v4412 = vpack.c.b16 %v4404, %v4404
        %v4413 = vpack.c.b16 %v4405, %v4405
        %v4415 = vshrl.u32 %v4406, 16
        %v4417 = vrot.slane %v4415, 7
        %v4418 = vshll.u32 %v4406, 16
        %v4420 = vor.u32 %v4417, %v4418
        %v4421 = vrot.slane %v4417, 4
        %v4423 = vshrl.u32 %v4407, 16
        %v4425 = vrot.slane %v4423, 7
        %v4426 = vshll.u32 %v4407, 16
        %v4428 = vor.u32 %v4425, %v4426
        %v4429 = vrot.slane %v4425, 4
        %v4431 = vshrl.u32 %v4408, 16
        %v4433 = vrot.slane %v4431, 7
        %v4434 = vshll.u32 %v4408, 16
        %v4436 = vor.u32 %v4433, %v4434
        %v4437 = vrot.slane %v4433, 4
        %v4439 = vshrl.u32 %v4409, 16
        %v4441 = vrot.slane %v4439, 7
        %v4442 = vshll.u32 %v4409, 16
        %v4444 = vor.u32 %v4441, %v4442
        %v4445 = vrot.slane %v4441, 4
        %v4447 = vshrl.u32 %v4410, 16
        %v4449 = vrot.slane %v4447, 7
        %v4450 = vshll.u32 %v4410, 16
        %v4452 = vor.u32 %v4449, %v4450
        %v4453 = vrot.slane %v4449, 4
        %v4455 = vshrl.u32 %v4411, 16
        %v4457 = vrot.slane %v4455, 7
        %v4458 = vshll.u32 %v4411, 16
        %v4460 = vor.u32 %v4457, %v4458
        %v4461 = vrot.slane %v4457, 4
        %v4463 = vshrl.u32 %v4412, 16
        %v4465 = vrot.slane %v4463, 7
        %v4466 = vshll.u32 %v4412, 16
        %v4468 = vor.u32 %v4465, %v4466
        %v4469 = vrot.slane %v4465, 4
        %v4471 = vshrl.u32 %v4413, 16
        %v4473 = vrot.slane %v4471, 7
        %v4474 = vshll.u32 %v4413, 16
        %v4476 = vor.u32 %v4473, %v4474
        %v4477 = vrot.slane %v4473, 4
        %4478 = vrot.lane.b32.xlu0 %v4420, 112
        %v4479 = vpop.permute.xlu0 %4478
        %4480 = vrot.lane.b32.xlu0 %v4421, 112
        %v4481 = vpop.permute.xlu0 %4480
        %4482 = vrot.lane.b32.xlu0 %v4428, 112
        %v4483 = vpop.permute.xlu0 %4482
        %4484 = vrot.lane.b32.xlu0 %v4429, 112
        %v4485 = vpop.permute.xlu0 %4484
        %4486 = vrot.lane.b32.xlu0 %v4436, 112
        %v4487 = vpop.permute.xlu0 %4486
        %4488 = vrot.lane.b32.xlu0 %v4437, 112
        %v4489 = vpop.permute.xlu0 %4488
        %4490 = vrot.lane.b32.xlu0 %v4444, 112
        %v4491 = vpop.permute.xlu0 %4490
        %4492 = vrot.lane.b32.xlu0 %v4445, 112
        %v4493 = vpop.permute.xlu0 %4492
        %4494 = vrot.lane.b32.xlu0 %v4452, 112
        %v4495 = vpop.permute.xlu0 %4494
        %4496 = vrot.lane.b32.xlu0 %v4453, 112
        %v4497 = vpop.permute.xlu0 %4496
        %4498 = vrot.lane.b32.xlu0 %v4460, 112
        %v4499 = vpop.permute.xlu0 %4498
        %4500 = vrot.lane.b32.xlu0 %v4461, 112
        %v4501 = vpop.permute.xlu0 %4500
        %4502 = vrot.lane.b32.xlu0 %v4468, 112
        %v4503 = vpop.permute.xlu0 %4502
        %4504 = vrot.lane.b32.xlu0 %v4469, 112
        %v4505 = vpop.permute.xlu0 %4504
        %4506 = vrot.lane.b32.xlu0 %v4476, 112
        %v4507 = vpop.permute.xlu0 %4506
        %4508 = vrot.lane.b32.xlu0 %v4477, 112
        %v4509 = vpop.permute.xlu0 %4508
        %s4526 = scalar_lea.vmem [#allocation2], 8
        %v4527 = vld [vmem:[%s4526] sm:$0xf]
        %v4528 = vsel %vm2722, %v4479, %v4527
        %4529 = vst [vmem:[%s4526] sm:$0xf] %v4528
        %v4530 = vld [vmem:[%s4526 + $0x4] sm:$0x1]
        %v4531 = vsel %vm282, %v4481, %v4530
        %4532 = vst [vmem:[%s4526 + $0x4] sm:$0x1] %v4531
        %v4533 = vld [vmem:[%s4526 + $0x8] sm:$0xf]
        %v4534 = vsel %vm2722, %v4483, %v4533
        %4535 = vst [vmem:[%s4526 + $0x8] sm:$0xf] %v4534
        %v4536 = vld [vmem:[%s4526 + $0xc] sm:$0x1]
        %v4537 = vsel %vm282, %v4485, %v4536
        %4538 = vst [vmem:[%s4526 + $0xc] sm:$0x1] %v4537
        %v4539 = vld [vmem:[%s4526 + $0x10] sm:$0xf]
        %v4540 = vsel %vm2722, %v4487, %v4539
        %4541 = vst [vmem:[%s4526 + $0x10] sm:$0xf] %v4540
        %v4542 = vld [vmem:[%s4526 + $0x14] sm:$0x1]
        %v4543 = vsel %vm282, %v4489, %v4542
        %4544 = vst [vmem:[%s4526 + $0x14] sm:$0x1] %v4543
        %v4545 = vld [vmem:[%s4526 + $0x18] sm:$0xf]
        %v4546 = vsel %vm2722, %v4491, %v4545
        %4547 = vst [vmem:[%s4526 + $0x18] sm:$0xf] %v4546
        %v4548 = vld [vmem:[%s4526 + $0x1c] sm:$0x1]
        %v4549 = vsel %vm282, %v4493, %v4548
        %4550 = vst [vmem:[%s4526 + $0x1c] sm:$0x1] %v4549
        %v4551 = vld [vmem:[%s4526 + $0x20] sm:$0xf]
        %v4552 = vsel %vm2722, %v4495, %v4551
        %4553 = vst [vmem:[%s4526 + $0x20] sm:$0xf] %v4552
        %v4554 = vld [vmem:[%s4526 + $0x24] sm:$0x1]
        %v4555 = vsel %vm282, %v4497, %v4554
        %4556 = vst [vmem:[%s4526 + $0x24] sm:$0x1] %v4555
        %v4557 = vld [vmem:[%s4526 + $0x28] sm:$0xf]
        %v4558 = vsel %vm2722, %v4499, %v4557
        %4559 = vst [vmem:[%s4526 + $0x28] sm:$0xf] %v4558
        %v4560 = vld [vmem:[%s4526 + $0x2c] sm:$0x1]
        %v4561 = vsel %vm282, %v4501, %v4560
        %4562 = vst [vmem:[%s4526 + $0x2c] sm:$0x1] %v4561
        %v4563 = vld [vmem:[%s4526 + $0x30] sm:$0xf]
        %v4564 = vsel %vm2722, %v4503, %v4563
        %4565 = vst [vmem:[%s4526 + $0x30] sm:$0xf] %v4564
        %v4566 = vld [vmem:[%s4526 + $0x34] sm:$0x1]
        %v4567 = vsel %vm282, %v4505, %v4566
        %4568 = vst [vmem:[%s4526 + $0x34] sm:$0x1] %v4567
        %v4569 = vld [vmem:[%s4526 + $0x38] sm:$0xf]
        %v4570 = vsel %vm2722, %v4507, %v4569
        %4571 = vst [vmem:[%s4526 + $0x38] sm:$0xf] %v4570
        %v4572 = vld [vmem:[%s4526 + $0x3c] sm:$0x1]
        %v4573 = vsel %vm282, %v4509, %v4572
        %4574 = vst [vmem:[%s4526 + $0x3c] sm:$0x1] %v4573
        %v4575 = vld [vmem:[#allocation2] sm:$0xf]
        %v4576 = vld [vmem:[#allocation2 + $0x4] sm:$0x1]
        %v4577 = vld [vmem:[#allocation2 + $0x8] sm:$0xf]
        %v4578 = vld [vmem:[#allocation2 + $0xc] sm:$0x1]
        %v4579 = vld [vmem:[#allocation2 + $0x10] sm:$0xf]
        %v4580 = vld [vmem:[#allocation2 + $0x14] sm:$0x1]
        %v4581 = vld [vmem:[#allocation2 + $0x18] sm:$0xf]
        %v4582 = vld [vmem:[#allocation2 + $0x1c] sm:$0x1]
        %v4583 = vld [vmem:[#allocation2 + $0x20] sm:$0xf]
        %v4584 = vld [vmem:[#allocation2 + $0x24] sm:$0x1]
        %v4585 = vld [vmem:[#allocation2 + $0x28] sm:$0xf]
        %v4586 = vld [vmem:[#allocation2 + $0x2c] sm:$0x1]
        %v4587 = vld [vmem:[#allocation2 + $0x30] sm:$0xf]
        %v4588 = vld [vmem:[#allocation2 + $0x34] sm:$0x1]
        %v4589 = vld [vmem:[#allocation2 + $0x38] sm:$0xf]
        %v4590 = vld [vmem:[#allocation2 + $0x3c] sm:$0x1]
        %v4591 = vld [vmem:[#allocation2 + $0x40] sm:$0xf]
        %v4592 = vld [vmem:[#allocation2 + $0x44] sm:$0x1]
        %s4593 = scalar_lea.vmem [#allocation2], 72
        %v4594 = vld [vmem:[%s4593] sm:$0xf]
        %v4595 = vld [vmem:[%s4593 + $0x4] sm:$0x1]
        %v4596 = vld [vmem:[%s4593 + $0x8] sm:$0xf]
        %v4597 = vld [vmem:[%s4593 + $0xc] sm:$0x1]
        %v4598 = vld [vmem:[%s4593 + $0x10] sm:$0xf]
        %v4599 = vld [vmem:[%s4593 + $0x14] sm:$0x1]
        %v4600 = vld [vmem:[%s4593 + $0x18] sm:$0xf]
        %v4601 = vld [vmem:[%s4593 + $0x1c] sm:$0x1]
        %v4602 = vld [vmem:[%s4593 + $0x20] sm:$0xf]
        %v4603 = vld [vmem:[%s4593 + $0x24] sm:$0x1]
        %v4604 = vld [vmem:[%s4593 + $0x28] sm:$0xf]
        %v4605 = vld [vmem:[%s4593 + $0x2c] sm:$0x1]
        %v4606 = vld [vmem:[%s4593 + $0x30] sm:$0xf]
        %v4607 = vld [vmem:[%s4593 + $0x34] sm:$0x1]
        %v4608 = vld [vmem:[%s4593 + $0x38] sm:$0xf]
        %v4609 = vld [vmem:[%s4593 + $0x3c] sm:$0x1]
        %v4610 = vld [vmem:[%s4593 + $0x40] sm:$0xf]
        %v4611 = vld [vmem:[%s4593 + $0x44] sm:$0x1]
        %v4612 = vld [vmem:[%s2719] sm:$0xf]
        %v4613 = vld [vmem:[%s2719 + $0x4] sm:$0x1]
        %v4614 = vld [vmem:[%s2719 + $0x8] sm:$0xf]
        %v4615 = vld [vmem:[%s2719 + $0xc] sm:$0x1]
        %v4616 = vld [vmem:[%s2719 + $0x10] sm:$0xf]
        %v4617 = vld [vmem:[%s2719 + $0x14] sm:$0x1]
        %v4618 = vld [vmem:[%s2719 + $0x18] sm:$0xf]
        %v4619 = vld [vmem:[%s2719 + $0x1c] sm:$0x1]
        %v4620 = vld [vmem:[%s2719 + $0x20] sm:$0xf]
        %v4621 = vld [vmem:[%s2719 + $0x24] sm:$0x1]
        %v4622 = vld [vmem:[%s2719 + $0x28] sm:$0xf]
        %v4623 = vld [vmem:[%s2719 + $0x2c] sm:$0x1]
        %v4624 = vld [vmem:[%s2719 + $0x30] sm:$0xf]
        %v4625 = vld [vmem:[%s2719 + $0x34] sm:$0x1]
        %v4626 = vld [vmem:[%s2719 + $0x38] sm:$0xf]
        %v4627 = vld [vmem:[%s2719 + $0x3c] sm:$0x1]
        %v4628 = vld [vmem:[%s2719 + $0x40] sm:$0xf]
        %v4629 = vld [vmem:[%s2719 + $0x44] sm:$0x1]
        %v4630 = vld [vmem:[%s1781] sm:$0xf]
        %v4631 = vld [vmem:[%s1781 + $0x4] sm:$0x1]
        %v4632 = vld [vmem:[%s1781 + $0x8] sm:$0xf]
        %v4633 = vld [vmem:[%s1781 + $0xc] sm:$0x1]
        %v4634 = vld [vmem:[%s1781 + $0x10] sm:$0xf]
        %v4635 = vld [vmem:[%s1781 + $0x14] sm:$0x1]
        %v4636 = vld [vmem:[%s1781 + $0x18] sm:$0xf]
        %v4637 = vld [vmem:[%s1781 + $0x1c] sm:$0x1]
        %v4638 = vld [vmem:[%s1781 + $0x20] sm:$0xf]
        %v4639 = vld [vmem:[%s1781 + $0x24] sm:$0x1]
        %v4640 = vld [vmem:[%s1781 + $0x28] sm:$0xf]
        %v4641 = vld [vmem:[%s1781 + $0x2c] sm:$0x1]
        %v4642 = vld [vmem:[%s1781 + $0x30] sm:$0xf]
        %v4643 = vld [vmem:[%s1781 + $0x34] sm:$0x1]
        %v4644 = vld [vmem:[%s1781 + $0x38] sm:$0xf]
        %v4645 = vld [vmem:[%s1781 + $0x3c] sm:$0x1]
        %v4646 = vld [vmem:[%s1781 + $0x40] sm:$0xf]
        %v4647 = vld [vmem:[%s1781 + $0x44] sm:$0x1]
        %vm4648 = vsmask.f32 3328
        %vm4649 = vsmask.f32 7440
        %vm4650 = vmor %vm4648, %vm4649
        %v4652 = vshrl.u32 %v4575, 16
        %v4654 = vrot.slane %v4652, 4
        %v4655 = vshll.u32 %v4575, 16
        %v4657 = vrot.slane %v4655, 5
        %v4658 = vor.u32 %v4654, %v4657
        %v4659 = vrot.slane %v4658, 4
        %v4661 = vshll.u32 %v4576, 16
        %v4663 = vrot.slane %v4661, 5
        %v4664 = vsel %vm4650, %v4659, %v4663
        %v4666 = vshrl.u32 %v4577, 16
        %v4668 = vrot.slane %v4666, 4
        %v4669 = vshll.u32 %v4577, 16
        %v4671 = vrot.slane %v4669, 5
        %v4672 = vor.u32 %v4668, %v4671
        %v4673 = vrot.slane %v4672, 4
        %v4675 = vshll.u32 %v4578, 16
        %v4677 = vrot.slane %v4675, 5
        %v4678 = vsel %vm4650, %v4673, %v4677
        %v4680 = vshrl.u32 %v4579, 16
        %v4682 = vrot.slane %v4680, 4
        %v4683 = vshll.u32 %v4579, 16
        %v4685 = vrot.slane %v4683, 5
        %v4686 = vor.u32 %v4682, %v4685
        %v4687 = vrot.slane %v4686, 4
        %v4689 = vshll.u32 %v4580, 16
        %v4691 = vrot.slane %v4689, 5
        %v4692 = vsel %vm4650, %v4687, %v4691
        %v4694 = vshrl.u32 %v4581, 16
        %v4696 = vrot.slane %v4694, 4
        %v4697 = vshll.u32 %v4581, 16
        %v4699 = vrot.slane %v4697, 5
        %v4700 = vor.u32 %v4696, %v4699
        %v4701 = vrot.slane %v4700, 4
        %v4703 = vshll.u32 %v4582, 16
        %v4705 = vrot.slane %v4703, 5
        %v4706 = vsel %vm4650, %v4701, %v4705
        %v4708 = vshrl.u32 %v4583, 16
        %v4710 = vrot.slane %v4708, 4
        %v4711 = vshll.u32 %v4583, 16
        %v4713 = vrot.slane %v4711, 5
        %v4714 = vor.u32 %v4710, %v4713
        %v4715 = vrot.slane %v4714, 4
        %v4717 = vshll.u32 %v4584, 16
        %v4719 = vrot.slane %v4717, 5
        %v4720 = vsel %vm4650, %v4715, %v4719
        %v4722 = vshrl.u32 %v4585, 16
        %v4724 = vrot.slane %v4722, 4
        %v4725 = vshll.u32 %v4585, 16
        %v4727 = vrot.slane %v4725, 5
        %v4728 = vor.u32 %v4724, %v4727
        %v4729 = vrot.slane %v4728, 4
        %v4731 = vshll.u32 %v4586, 16
        %v4733 = vrot.slane %v4731, 5
        %v4734 = vsel %vm4650, %v4729, %v4733
        %v4736 = vshrl.u32 %v4587, 16
        %v4738 = vrot.slane %v4736, 4
        %v4739 = vshll.u32 %v4587, 16
        %v4741 = vrot.slane %v4739, 5
        %v4742 = vor.u32 %v4738, %v4741
        %v4743 = vrot.slane %v4742, 4
        %v4745 = vshll.u32 %v4588, 16
        %v4747 = vrot.slane %v4745, 5
        %v4748 = vsel %vm4650, %v4743, %v4747
        %v4750 = vshrl.u32 %v4589, 16
        %v4752 = vrot.slane %v4750, 4
        %v4753 = vshll.u32 %v4589, 16
        %v4755 = vrot.slane %v4753, 5
        %v4756 = vor.u32 %v4752, %v4755
        %v4757 = vrot.slane %v4756, 4
        %v4759 = vshll.u32 %v4590, 16
        %v4761 = vrot.slane %v4759, 5
        %v4762 = vsel %vm4650, %v4757, %v4761
        %v4764 = vshrl.u32 %v4591, 16
        %v4766 = vrot.slane %v4764, 4
        %v4767 = vshll.u32 %v4591, 16
        %v4769 = vrot.slane %v4767, 5
        %v4770 = vor.u32 %v4766, %v4769
        %v4771 = vrot.slane %v4770, 4
        %v4773 = vshll.u32 %v4592, 16
        %v4775 = vrot.slane %v4773, 5
        %v4776 = vsel %vm4650, %v4771, %v4775
        %v4778 = vshrl.u32 %v4594, 16
        %v4780 = vrot.slane %v4778, 4
        %v4781 = vshll.u32 %v4594, 16
        %v4783 = vrot.slane %v4781, 5
        %v4784 = vor.u32 %v4780, %v4783
        %v4785 = vrot.slane %v4784, 4
        %v4787 = vshll.u32 %v4595, 16
        %v4789 = vrot.slane %v4787, 5
        %v4790 = vsel %vm4650, %v4785, %v4789
        %v4792 = vshrl.u32 %v4596, 16
        %v4794 = vrot.slane %v4792, 4
        %v4795 = vshll.u32 %v4596, 16
        %v4797 = vrot.slane %v4795, 5
        %v4798 = vor.u32 %v4794, %v4797
        %v4799 = vrot.slane %v4798, 4
        %v4801 = vshll.u32 %v4597, 16
        %v4803 = vrot.slane %v4801, 5
        %v4804 = vsel %vm4650, %v4799, %v4803
        %v4806 = vshrl.u32 %v4598, 16
        %v4808 = vrot.slane %v4806, 4
        %v4809 = vshll.u32 %v4598, 16
        %v4811 = vrot.slane %v4809, 5
        %v4812 = vor.u32 %v4808, %v4811
        %v4813 = vrot.slane %v4812, 4
        %v4815 = vshll.u32 %v4599, 16
        %v4817 = vrot.slane %v4815, 5
        %v4818 = vsel %vm4650, %v4813, %v4817
        %v4820 = vshrl.u32 %v4600, 16
        %v4822 = vrot.slane %v4820, 4
        %v4823 = vshll.u32 %v4600, 16
        %v4825 = vrot.slane %v4823, 5
        %v4826 = vor.u32 %v4822, %v4825
        %v4827 = vrot.slane %v4826, 4
        %v4829 = vshll.u32 %v4601, 16
        %v4831 = vrot.slane %v4829, 5
        %v4832 = vsel %vm4650, %v4827, %v4831
        %v4834 = vshrl.u32 %v4602, 16
        %v4836 = vrot.slane %v4834, 4
        %v4837 = vshll.u32 %v4602, 16
        %v4839 = vrot.slane %v4837, 5
        %v4840 = vor.u32 %v4836, %v4839
        %v4841 = vrot.slane %v4840, 4
        %v4843 = vshll.u32 %v4603, 16
        %v4845 = vrot.slane %v4843, 5
        %v4846 = vsel %vm4650, %v4841, %v4845
        %v4848 = vshrl.u32 %v4604, 16
        %v4850 = vrot.slane %v4848, 4
        %v4851 = vshll.u32 %v4604, 16
        %v4853 = vrot.slane %v4851, 5
        %v4854 = vor.u32 %v4850, %v4853
        %v4855 = vrot.slane %v4854, 4
        %v4857 = vshll.u32 %v4605, 16
        %v4859 = vrot.slane %v4857, 5
        %v4860 = vsel %vm4650, %v4855, %v4859
        %v4862 = vshrl.u32 %v4606, 16
        %v4864 = vrot.slane %v4862, 4
        %v4865 = vshll.u32 %v4606, 16
        %v4867 = vrot.slane %v4865, 5
        %v4868 = vor.u32 %v4864, %v4867
        %v4869 = vrot.slane %v4868, 4
        %v4871 = vshll.u32 %v4607, 16
        %v4873 = vrot.slane %v4871, 5
        %v4874 = vsel %vm4650, %v4869, %v4873
        %v4876 = vshrl.u32 %v4608, 16
        %v4878 = vrot.slane %v4876, 4
        %v4879 = vshll.u32 %v4608, 16
        %v4881 = vrot.slane %v4879, 5
        %v4882 = vor.u32 %v4878, %v4881
        %v4883 = vrot.slane %v4882, 4
        %v4885 = vshll.u32 %v4609, 16
        %v4887 = vrot.slane %v4885, 5
        %v4888 = vsel %vm4650, %v4883, %v4887
        %v4890 = vshrl.u32 %v4610, 16
        %v4892 = vrot.slane %v4890, 4
        %v4893 = vshll.u32 %v4610, 16
        %v4895 = vrot.slane %v4893, 5
        %v4896 = vor.u32 %v4892, %v4895
        %v4897 = vrot.slane %v4896, 4
        %v4899 = vshll.u32 %v4611, 16
        %v4901 = vrot.slane %v4899, 5
        %v4902 = vsel %vm4650, %v4897, %v4901
        %v4904 = vshrl.u32 %v4612, 16
        %v4906 = vrot.slane %v4904, 4
        %v4907 = vshll.u32 %v4612, 16
        %v4909 = vrot.slane %v4907, 5
        %v4910 = vor.u32 %v4906, %v4909
        %v4911 = vrot.slane %v4910, 4
        %v4913 = vshll.u32 %v4613, 16
        %v4915 = vrot.slane %v4913, 5
        %v4916 = vsel %vm4650, %v4911, %v4915
        %v4918 = vshrl.u32 %v4614, 16
        %v4920 = vrot.slane %v4918, 4
        %v4921 = vshll.u32 %v4614, 16
        %v4923 = vrot.slane %v4921, 5
        %v4924 = vor.u32 %v4920, %v4923
        %v4925 = vrot.slane %v4924, 4
        %v4927 = vshll.u32 %v4615, 16
        %v4929 = vrot.slane %v4927, 5
        %v4930 = vsel %vm4650, %v4925, %v4929
        %v4932 = vshrl.u32 %v4616, 16
        %v4934 = vrot.slane %v4932, 4
        %v4935 = vshll.u32 %v4616, 16
        %v4937 = vrot.slane %v4935, 5
        %v4938 = vor.u32 %v4934, %v4937
        %v4939 = vrot.slane %v4938, 4
        %v4941 = vshll.u32 %v4617, 16
        %v4943 = vrot.slane %v4941, 5
        %v4944 = vsel %vm4650, %v4939, %v4943
        %v4946 = vshrl.u32 %v4618, 16
        %v4948 = vrot.slane %v4946, 4
        %v4949 = vshll.u32 %v4618, 16
        %v4951 = vrot.slane %v4949, 5
        %v4952 = vor.u32 %v4948, %v4951
        %v4953 = vrot.slane %v4952, 4
        %v4955 = vshll.u32 %v4619, 16
        %v4957 = vrot.slane %v4955, 5
        %v4958 = vsel %vm4650, %v4953, %v4957
        %v4960 = vshrl.u32 %v4620, 16
        %v4962 = vrot.slane %v4960, 4
        %v4963 = vshll.u32 %v4620, 16
        %v4965 = vrot.slane %v4963, 5
        %v4966 = vor.u32 %v4962, %v4965
        %v4967 = vrot.slane %v4966, 4
        %v4969 = vshll.u32 %v4621, 16
        %v4971 = vrot.slane %v4969, 5
        %v4972 = vsel %vm4650, %v4967, %v4971
        %v4974 = vshrl.u32 %v4622, 16
        %v4976 = vrot.slane %v4974, 4
        %v4977 = vshll.u32 %v4622, 16
        %v4979 = vrot.slane %v4977, 5
        %v4980 = vor.u32 %v4976, %v4979
        %v4981 = vrot.slane %v4980, 4
        %v4983 = vshll.u32 %v4623, 16
        %v4985 = vrot.slane %v4983, 5
        %v4986 = vsel %vm4650, %v4981, %v4985
        %v4988 = vshrl.u32 %v4624, 16
        %v4990 = vrot.slane %v4988, 4
        %v4991 = vshll.u32 %v4624, 16
        %v4993 = vrot.slane %v4991, 5
        %v4994 = vor.u32 %v4990, %v4993
        %v4995 = vrot.slane %v4994, 4
        %v4997 = vshll.u32 %v4625, 16
        %v4999 = vrot.slane %v4997, 5
        %v5000 = vsel %vm4650, %v4995, %v4999
        %v5002 = vshrl.u32 %v4626, 16
        %v5004 = vrot.slane %v5002, 4
        %v5005 = vshll.u32 %v4626, 16
        %v5007 = vrot.slane %v5005, 5
        %v5008 = vor.u32 %v5004, %v5007
        %v5009 = vrot.slane %v5008, 4
        %v5011 = vshll.u32 %v4627, 16
        %v5013 = vrot.slane %v5011, 5
        %v5014 = vsel %vm4650, %v5009, %v5013
        %v5016 = vshrl.u32 %v4628, 16
        %v5018 = vrot.slane %v5016, 4
        %v5019 = vshll.u32 %v4628, 16
        %v5021 = vrot.slane %v5019, 5
        %v5022 = vor.u32 %v5018, %v5021
        %v5023 = vrot.slane %v5022, 4
        %v5025 = vshll.u32 %v4629, 16
        %v5027 = vrot.slane %v5025, 5
        %v5028 = vsel %vm4650, %v5023, %v5027
        %v5030 = vshrl.u32 %v4630, 16
        %v5032 = vrot.slane %v5030, 4
        %v5033 = vshll.u32 %v4630, 16
        %v5035 = vrot.slane %v5033, 5
        %v5036 = vor.u32 %v5032, %v5035
        %v5037 = vrot.slane %v5036, 4
        %v5039 = vshll.u32 %v4631, 16
        %v5041 = vrot.slane %v5039, 5
        %v5042 = vsel %vm4650, %v5037, %v5041
        %v5044 = vshrl.u32 %v4632, 16
        %v5046 = vrot.slane %v5044, 4
        %v5047 = vshll.u32 %v4632, 16
        %v5049 = vrot.slane %v5047, 5
        %v5050 = vor.u32 %v5046, %v5049
        %v5051 = vrot.slane %v5050, 4
        %v5053 = vshll.u32 %v4633, 16
        %v5055 = vrot.slane %v5053, 5
        %v5056 = vsel %vm4650, %v5051, %v5055
        %v5058 = vshrl.u32 %v4634, 16
        %v5060 = vrot.slane %v5058, 4
        %v5061 = vshll.u32 %v4634, 16
        %v5063 = vrot.slane %v5061, 5
        %v5064 = vor.u32 %v5060, %v5063
        %v5065 = vrot.slane %v5064, 4
        %v5067 = vshll.u32 %v4635, 16
        %v5069 = vrot.slane %v5067, 5
        %v5070 = vsel %vm4650, %v5065, %v5069
        %v5072 = vshrl.u32 %v4636, 16
        %v5074 = vrot.slane %v5072, 4
        %v5075 = vshll.u32 %v4636, 16
        %v5077 = vrot.slane %v5075, 5
        %v5078 = vor.u32 %v5074, %v5077
        %v5079 = vrot.slane %v5078, 4
        %v5081 = vshll.u32 %v4637, 16
        %v5083 = vrot.slane %v5081, 5
        %v5084 = vsel %vm4650, %v5079, %v5083
        %v5086 = vshrl.u32 %v4638, 16
        %v5088 = vrot.slane %v5086, 4
        %v5089 = vshll.u32 %v4638, 16
        %v5091 = vrot.slane %v5089, 5
        %v5092 = vor.u32 %v5088, %v5091
        %v5093 = vrot.slane %v5092, 4
        %v5095 = vshll.u32 %v4639, 16
        %v5097 = vrot.slane %v5095, 5
        %v5098 = vsel %vm4650, %v5093, %v5097
        %v5100 = vshrl.u32 %v4640, 16
        %v5102 = vrot.slane %v5100, 4
        %v5103 = vshll.u32 %v4640, 16
        %v5105 = vrot.slane %v5103, 5
        %v5106 = vor.u32 %v5102, %v5105
        %v5107 = vrot.slane %v5106, 4
        %v5109 = vshll.u32 %v4641, 16
        %v5111 = vrot.slane %v5109, 5
        %v5112 = vsel %vm4650, %v5107, %v5111
        %v5114 = vshrl.u32 %v4642, 16
        %v5116 = vrot.slane %v5114, 4
        %v5117 = vshll.u32 %v4642, 16
        %v5119 = vrot.slane %v5117, 5
        %v5120 = vor.u32 %v5116, %v5119
        %v5121 = vrot.slane %v5120, 4
        %v5123 = vshll.u32 %v4643, 16
        %v5125 = vrot.slane %v5123, 5
        %v5126 = vsel %vm4650, %v5121, %v5125
        %v5128 = vshrl.u32 %v4644, 16
        %v5130 = vrot.slane %v5128, 4
        %v5131 = vshll.u32 %v4644, 16
        %v5133 = vrot.slane %v5131, 5
        %v5134 = vor.u32 %v5130, %v5133
        %v5135 = vrot.slane %v5134, 4
        %v5137 = vshll.u32 %v4645, 16
        %v5139 = vrot.slane %v5137, 5
        %v5140 = vsel %vm4650, %v5135, %v5139
        %v5142 = vshrl.u32 %v4646, 16
        %v5144 = vrot.slane %v5142, 4
        %v5145 = vshll.u32 %v4646, 16
        %v5147 = vrot.slane %v5145, 5
        %v5148 = vor.u32 %v5144, %v5147
        %v5149 = vrot.slane %v5148, 4
        %v5151 = vshll.u32 %v4647, 16
        %v5153 = vrot.slane %v5151, 5
        %v5154 = vsel %vm4650, %v5149, %v5153
        %v5155 = vld [vmem:[%s3] sm:$0xf]
        %v5156 = vld [vmem:[%s3 + $0x4] sm:$0xf]
        %v5157 = vld [vmem:[%s3 + $0x8] sm:$0xf]
        %v5158 = vld [vmem:[%s3 + $0xc] sm:$0xf]
        %s5159 = scalar_lea.vmem %s3, 16
        %v5160 = vld [vmem:[%s5159] sm:$0xf]
        %v5161 = vld [vmem:[%s5159 + $0x4] sm:$0xf]
        %v5162 = vld [vmem:[%s5159 + $0x8] sm:$0xf]
        %v5163 = vld [vmem:[%s5159 + $0xc] sm:$0xf]
        %v5172 = vunpack.c.l.b16 %v4594
        %v5173 = vunpack.c.l.b16 %v4596
        %v5174 = vunpack.c.l.b16 %v4598
        %v5175 = vunpack.c.l.b16 %v4600
        %v5176 = vunpack.c.l.b16 %v4602
        %v5177 = vunpack.c.l.b16 %v4604
        %v5178 = vunpack.c.l.b16 %v4606
        %v5179 = vunpack.c.l.b16 %v4608
        %v5180 = vpack.c.b16 %v5173, %v5172
        %v5181 = vpack.c.b16 %v5175, %v5174
        %v5182 = vpack.c.b16 %v5177, %v5176
        %v5183 = vpack.c.b16 %v5179, %v5178
        %v5188 = vunpack.c.l.b16 %v5160
        %v5189 = vunpack.c.l.b16 %v5161
        %v5190 = vunpack.c.l.b16 %v5162
        %v5191 = vunpack.c.l.b16 %v5163
        %v5192 = vpack.c.b16 %v5189, %v5188
        %v5193 = vpack.c.b16 %v5191, %v5190
        %v5197 = vsel %vm426, %v5180, 0
        %v5200 = vsel %vm426, %v5181, 0
        %v5203 = vsel %vm426, %v5182, 0
        %v5206 = vsel %vm426, %v5183, 0
        %5208 = vmatprep.subr.bf16.mxu0 0
        %5209 = vmatpush1.bf16.msra.mxu0 0
        %5210 = vmatprep.subr.bf16.mxu0 0
        %5211 = vmatpush1.bf16.msra.mxu0 0
        %5212 = vmatprep.subr.bf16.mxu0 0
        %5213 = vmatpush1.bf16.msra.mxu0 0
        %5214 = vmatprep.subr.bf16.mxu0 0
        %5215 = vmatpush1.bf16.msra.mxu0 0
        %5216 = vmatprep.subr.bf16.mxu0 0
        %5217 = vmatpush1.bf16.msra.mxu0 0
        %5218 = vmatprep.subr.bf16.mxu0 0
        %5219 = vmatpush1.bf16.msra.mxu0 0
        %5220 = vmatprep.subr.bf16.mxu0 0
        %5221 = vmatpush1.bf16.msra.mxu0 %v5193
        %5222 = vmatprep.subr.bf16.mxu0 0
        %5223 = vmatpush1.bf16.msra.mxu0 %v5192
        %5224 = vmatprep.subr.bf16.mxu0 0
        %5225 = vmatpush2.bf16.msra.mxu0 0
        %5226 = vmatprep.subr.bf16.mxu0 0
        %5227 = vmatpush2.bf16.msra.mxu0 0
        %5228 = vmatprep.subr.bf16.mxu0 0
        %5229 = vmatpush2.bf16.msra.mxu0 0
        %5230 = vmatprep.subr.bf16.mxu0 0
        %5231 = vmatpush2.bf16.msra.mxu0 0
        %5232 = vmatprep.subr.bf16.mxu0 0
        %5233 = vmatpush2.bf16.msra.mxu0 0
        %5234 = vmatprep.subr.bf16.mxu0 0
        %5235 = vmatpush2.bf16.msra.mxu0 0
        %5236 = vmatprep.subr.bf16.mxu0 0
        %5237 = vmatpush2.bf16.msra.mxu0 0
        %5238 = vmatprep.subr.bf16.mxu0 0
        %5239 = vmatpush2.bf16.msra.mxu0 0
        %5240 = vmatprep.mubr.bf16.mxu0 0
        %5241 = vmatmul.mubr.bf16.gmra.mxu0 %v5197
        %v5242 = vpop.f32.mrf.mxu0
        %v5243 = vadd.f32 0.0, %v5242
        %v5244 = vpop.f32.mrf.mxu0
        %v5245 = vpop.f32.mrf.mxu0
        %v5246 = vadd.f32 0.0, %v5245
        %v5247 = vpop.f32.mrf.mxu0
        %5248 = vmatprep.mubr.bf16.mxu0 0
        %5249 = vmatmul.mubr.bf16.gmra.mxu0 %v5200
        %v5250 = vpop.f32.mrf.mxu0
        %v5251 = vadd.f32 0.0, %v5250
        %v5252 = vpop.f32.mrf.mxu0
        %v5253 = vpop.f32.mrf.mxu0
        %v5254 = vadd.f32 0.0, %v5253
        %v5255 = vpop.f32.mrf.mxu0
        %5256 = vmatprep.mubr.bf16.mxu0 0
        %5257 = vmatmul.mubr.bf16.gmra.mxu0 %v5203
        %v5258 = vpop.f32.mrf.mxu0
        %v5259 = vadd.f32 0.0, %v5258
        %v5260 = vpop.f32.mrf.mxu0
        %v5261 = vpop.f32.mrf.mxu0
        %v5262 = vadd.f32 0.0, %v5261
        %v5263 = vpop.f32.mrf.mxu0
        %5264 = vmatprep.mubr.bf16.mxu0 0
        %5265 = vmatmul.mubr.bf16.gmra.mxu0 %v5206
        %v5266 = vpop.f32.mrf.mxu0
        %v5267 = vadd.f32 0.0, %v5266
        %v5268 = vpop.f32.mrf.mxu0
        %v5269 = vpop.f32.mrf.mxu0
        %v5270 = vadd.f32 0.0, %v5269
        %v5271 = vpop.f32.mrf.mxu0
        %5272 = vdwg.mxu0
        %v5281 = vunpack.c.l.b16 %v4575
        %v5282 = vunpack.c.l.b16 %v4577
        %v5283 = vunpack.c.l.b16 %v4579
        %v5284 = vunpack.c.l.b16 %v4581
        %v5285 = vunpack.c.l.b16 %v4583
        %v5286 = vunpack.c.l.b16 %v4585
        %v5287 = vunpack.c.l.b16 %v4587
        %v5288 = vunpack.c.l.b16 %v4589
        %v5289 = vpack.c.b16 %v5282, %v5281
        %v5290 = vpack.c.b16 %v5284, %v5283
        %v5291 = vpack.c.b16 %v5286, %v5285
        %v5292 = vpack.c.b16 %v5288, %v5287
        %v5297 = vunpack.c.l.b16 %v5155
        %v5298 = vunpack.c.l.b16 %v5156
        %v5299 = vunpack.c.l.b16 %v5157
        %v5300 = vunpack.c.l.b16 %v5158
        %v5301 = vpack.c.b16 %v5298, %v5297
        %v5302 = vpack.c.b16 %v5300, %v5299
        %v5306 = vsel %vm426, %v5289, 0
        %v5309 = vsel %vm426, %v5290, 0
        %v5312 = vsel %vm426, %v5291, 0
        %v5315 = vsel %vm426, %v5292, 0
        %5317 = vmatprep.subr.bf16.mxu0 0
        %5318 = vmatpush1.bf16.msra.mxu0 0
        %5319 = vmatprep.subr.bf16.mxu0 0
        %5320 = vmatpush1.bf16.msra.mxu0 0
        %5321 = vmatprep.subr.bf16.mxu0 0
        %5322 = vmatpush1.bf16.msra.mxu0 0
        %5323 = vmatprep.subr.bf16.mxu0 0
        %5324 = vmatpush1.bf16.msra.mxu0 0
        %5325 = vmatprep.subr.bf16.mxu0 0
        %5326 = vmatpush1.bf16.msra.mxu0 0
        %5327 = vmatprep.subr.bf16.mxu0 0
        %5328 = vmatpush1.bf16.msra.mxu0 0
        %5329 = vmatprep.subr.bf16.mxu0 0
        %5330 = vmatpush1.bf16.msra.mxu0 %v5302
        %5331 = vmatprep.subr.bf16.mxu0 0
        %5332 = vmatpush1.bf16.msra.mxu0 %v5301
        %5333 = vmatprep.subr.bf16.mxu0 0
        %5334 = vmatpush2.bf16.msra.mxu0 0
        %5335 = vmatprep.subr.bf16.mxu0 0
        %5336 = vmatpush2.bf16.msra.mxu0 0
        %5337 = vmatprep.subr.bf16.mxu0 0
        %5338 = vmatpush2.bf16.msra.mxu0 0
        %5339 = vmatprep.subr.bf16.mxu0 0
        %5340 = vmatpush2.bf16.msra.mxu0 0
        %5341 = vmatprep.subr.bf16.mxu0 0
        %5342 = vmatpush2.bf16.msra.mxu0 0
        %5343 = vmatprep.subr.bf16.mxu0 0
        %5344 = vmatpush2.bf16.msra.mxu0 0
        %5345 = vmatprep.subr.bf16.mxu0 0
        %5346 = vmatpush2.bf16.msra.mxu0 0
        %5347 = vmatprep.subr.bf16.mxu0 0
        %5348 = vmatpush2.bf16.msra.mxu0 0
        %5349 = vmatprep.mubr.bf16.mxu0 0
        %5350 = vmatmul.mubr.bf16.gmra.mxu0 %v5306
        %v5351 = vpop.f32.mrf.mxu0
        %v5352 = vadd.f32 %v5243, %v5351
        %v5353 = vpop.f32.mrf.mxu0
        %v5354 = vpop.f32.mrf.mxu0
        %v5355 = vadd.f32 %v5246, %v5354
        %v5356 = vpop.f32.mrf.mxu0
        %5357 = vmatprep.mubr.bf16.mxu0 0
        %5358 = vmatmul.mubr.bf16.gmra.mxu0 %v5309
        %v5359 = vpop.f32.mrf.mxu0
        %v5360 = vadd.f32 %v5251, %v5359
        %v5361 = vpop.f32.mrf.mxu0
        %v5362 = vpop.f32.mrf.mxu0
        %v5363 = vadd.f32 %v5254, %v5362
        %v5364 = vpop.f32.mrf.mxu0
        %5365 = vmatprep.mubr.bf16.mxu0 0
        %5366 = vmatmul.mubr.bf16.gmra.mxu0 %v5312
        %v5367 = vpop.f32.mrf.mxu0
        %v5368 = vadd.f32 %v5259, %v5367
        %v5369 = vpop.f32.mrf.mxu0
        %v5370 = vpop.f32.mrf.mxu0
        %v5371 = vadd.f32 %v5262, %v5370
        %v5372 = vpop.f32.mrf.mxu0
        %5373 = vmatprep.mubr.bf16.mxu0 0
        %5374 = vmatmul.mubr.bf16.gmra.mxu0 %v5315
        %v5375 = vpop.f32.mrf.mxu0
        %v5376 = vadd.f32 %v5267, %v5375
        %v5377 = vpop.f32.mrf.mxu0
        %v5378 = vpop.f32.mrf.mxu0
        %v5379 = vadd.f32 %v5270, %v5378
        %v5380 = vpop.f32.mrf.mxu0
        %5381 = vdwg.mxu0
        %s5382 = scalar_lea.vmem %s3, 32
        %v5383 = vld [vmem:[%s5382] sm:$0xf]
        %v5384 = vld [vmem:[%s5382 + $0x4] sm:$0xf]
        %v5385 = vld [vmem:[%s5382 + $0x8] sm:$0xf]
        %v5386 = vld [vmem:[%s5382 + $0xc] sm:$0xf]
        %v5387 = vunpack.c.l.b16 %v4664
        %v5388 = vunpack.c.l.b16 %v4678
        %v5389 = vunpack.c.l.b16 %v4692
        %v5390 = vunpack.c.l.b16 %v4706
        %v5391 = vunpack.c.l.b16 %v4720
        %v5392 = vunpack.c.l.b16 %v4734
        %v5393 = vunpack.c.l.b16 %v4748
        %v5394 = vunpack.c.l.b16 %v4762
        %v5395 = vpack.c.b16 %v5388, %v5387
        %v5396 = vpack.c.b16 %v5390, %v5389
        %v5397 = vpack.c.b16 %v5392, %v5391
        %v5398 = vpack.c.b16 %v5394, %v5393
        %v5403 = vunpack.c.l.b16 %v5383
        %v5404 = vunpack.c.l.b16 %v5384
        %v5405 = vunpack.c.l.b16 %v5385
        %v5406 = vunpack.c.l.b16 %v5386
        %v5407 = vpack.c.b16 %v5404, %v5403
        %v5408 = vpack.c.b16 %v5406, %v5405
        %v5412 = vsel %vm426, %v5395, 0
        %v5415 = vsel %vm426, %v5396, 0
        %v5418 = vsel %vm426, %v5397, 0
        %v5421 = vsel %vm426, %v5398, 0
        %5423 = vmatprep.subr.bf16.mxu0 0
        %5424 = vmatpush1.bf16.msra.mxu0 0
        %5425 = vmatprep.subr.bf16.mxu0 0
        %5426 = vmatpush1.bf16.msra.mxu0 0
        %5427 = vmatprep.subr.bf16.mxu0 0
        %5428 = vmatpush1.bf16.msra.mxu0 0
        %5429 = vmatprep.subr.bf16.mxu0 0
        %5430 = vmatpush1.bf16.msra.mxu0 0
        %5431 = vmatprep.subr.bf16.mxu0 0
        %5432 = vmatpush1.bf16.msra.mxu0 0
        %5433 = vmatprep.subr.bf16.mxu0 0
        %5434 = vmatpush1.bf16.msra.mxu0 0
        %5435 = vmatprep.subr.bf16.mxu0 0
        %5436 = vmatpush1.bf16.msra.mxu0 %v5408
        %5437 = vmatprep.subr.bf16.mxu0 0
        %5438 = vmatpush1.bf16.msra.mxu0 %v5407
        %5439 = vmatprep.subr.bf16.mxu0 0
        %5440 = vmatpush2.bf16.msra.mxu0 0
        %5441 = vmatprep.subr.bf16.mxu0 0
        %5442 = vmatpush2.bf16.msra.mxu0 0
        %5443 = vmatprep.subr.bf16.mxu0 0
        %5444 = vmatpush2.bf16.msra.mxu0 0
        %5445 = vmatprep.subr.bf16.mxu0 0
        %5446 = vmatpush2.bf16.msra.mxu0 0
        %5447 = vmatprep.subr.bf16.mxu0 0
        %5448 = vmatpush2.bf16.msra.mxu0 0
        %5449 = vmatprep.subr.bf16.mxu0 0
        %5450 = vmatpush2.bf16.msra.mxu0 0
        %5451 = vmatprep.subr.bf16.mxu0 0
        %5452 = vmatpush2.bf16.msra.mxu0 0
        %5453 = vmatprep.subr.bf16.mxu0 0
        %5454 = vmatpush2.bf16.msra.mxu0 0
        %5455 = vmatprep.mubr.bf16.mxu0 0
        %5456 = vmatmul.mubr.bf16.gmra.mxu0 %v5412
        %v5457 = vpop.f32.mrf.mxu0
        %v5458 = vadd.f32 0.0, %v5457
        %v5459 = vpop.f32.mrf.mxu0
        %v5460 = vpop.f32.mrf.mxu0
        %v5461 = vadd.f32 0.0, %v5460
        %v5462 = vpop.f32.mrf.mxu0
        %5463 = vmatprep.mubr.bf16.mxu0 0
        %5464 = vmatmul.mubr.bf16.gmra.mxu0 %v5415
        %v5465 = vpop.f32.mrf.mxu0
        %v5466 = vadd.f32 0.0, %v5465
        %v5467 = vpop.f32.mrf.mxu0
        %v5468 = vpop.f32.mrf.mxu0
        %v5469 = vadd.f32 0.0, %v5468
        %v5470 = vpop.f32.mrf.mxu0
        %5471 = vmatprep.mubr.bf16.mxu0 0
        %5472 = vmatmul.mubr.bf16.gmra.mxu0 %v5418
        %v5473 = vpop.f32.mrf.mxu0
        %v5474 = vadd.f32 0.0, %v5473
        %v5475 = vpop.f32.mrf.mxu0
        %v5476 = vpop.f32.mrf.mxu0
        %v5477 = vadd.f32 0.0, %v5476
        %v5478 = vpop.f32.mrf.mxu0
        %5479 = vmatprep.mubr.bf16.mxu0 0
        %5480 = vmatmul.mubr.bf16.gmra.mxu0 %v5421
        %v5481 = vpop.f32.mrf.mxu0
        %v5482 = vadd.f32 0.0, %v5481
        %v5483 = vpop.f32.mrf.mxu0
        %v5484 = vpop.f32.mrf.mxu0
        %v5485 = vadd.f32 0.0, %v5484
        %v5486 = vpop.f32.mrf.mxu0
        %5487 = vdwg.mxu0
        %v5488 = vadd.f32 %v5352, %v5458
        %v5489 = vadd.f32 %v5355, %v5461
        %v5490 = vadd.f32 %v5360, %v5466
        %v5491 = vadd.f32 %v5363, %v5469
        %v5492 = vadd.f32 %v5368, %v5474
        %v5493 = vadd.f32 %v5371, %v5477
        %v5494 = vadd.f32 %v5376, %v5482
        %v5495 = vadd.f32 %v5379, %v5485
        %s5496 = scalar_lea.vmem %s3, 48
        %v5497 = vld [vmem:[%s5496] sm:$0xf]
        %v5498 = vld [vmem:[%s5496 + $0x4] sm:$0xf]
        %v5499 = vld [vmem:[%s5496 + $0x8] sm:$0xf]
        %v5500 = vld [vmem:[%s5496 + $0xc] sm:$0xf]
        %v5509 = vunpack.c.l.b16 %v4612
        %v5510 = vunpack.c.l.b16 %v4614
        %v5511 = vunpack.c.l.b16 %v4616
        %v5512 = vunpack.c.l.b16 %v4618
        %v5513 = vunpack.c.l.b16 %v4620
        %v5514 = vunpack.c.l.b16 %v4622
        %v5515 = vunpack.c.l.b16 %v4624
        %v5516 = vunpack.c.l.b16 %v4626
        %v5517 = vpack.c.b16 %v5510, %v5509
        %v5518 = vpack.c.b16 %v5512, %v5511
        %v5519 = vpack.c.b16 %v5514, %v5513
        %v5520 = vpack.c.b16 %v5516, %v5515
        %v5525 = vunpack.c.l.b16 %v5497
        %v5526 = vunpack.c.l.b16 %v5498
        %v5527 = vunpack.c.l.b16 %v5499
        %v5528 = vunpack.c.l.b16 %v5500
        %v5529 = vpack.c.b16 %v5526, %v5525
        %v5530 = vpack.c.b16 %v5528, %v5527
        %v5534 = vsel %vm426, %v5517, 0
        %v5537 = vsel %vm426, %v5518, 0
        %v5540 = vsel %vm426, %v5519, 0
        %v5543 = vsel %vm426, %v5520, 0
        %5545 = vmatprep.subr.bf16.mxu0 0
        %5546 = vmatpush1.bf16.msra.mxu0 0
        %5547 = vmatprep.subr.bf16.mxu0 0
        %5548 = vmatpush1.bf16.msra.mxu0 0
        %5549 = vmatprep.subr.bf16.mxu0 0
        %5550 = vmatpush1.bf16.msra.mxu0 0
        %5551 = vmatprep.subr.bf16.mxu0 0
        %5552 = vmatpush1.bf16.msra.mxu0 0
        %5553 = vmatprep.subr.bf16.mxu0 0
        %5554 = vmatpush1.bf16.msra.mxu0 0
        %5555 = vmatprep.subr.bf16.mxu0 0
        %5556 = vmatpush1.bf16.msra.mxu0 0
        %5557 = vmatprep.subr.bf16.mxu0 0
        %5558 = vmatpush1.bf16.msra.mxu0 %v5530
        %5559 = vmatprep.subr.bf16.mxu0 0
        %5560 = vmatpush1.bf16.msra.mxu0 %v5529
        %5561 = vmatprep.subr.bf16.mxu0 0
        %5562 = vmatpush2.bf16.msra.mxu0 0
        %5563 = vmatprep.subr.bf16.mxu0 0
        %5564 = vmatpush2.bf16.msra.mxu0 0
        %5565 = vmatprep.subr.bf16.mxu0 0
        %5566 = vmatpush2.bf16.msra.mxu0 0
        %5567 = vmatprep.subr.bf16.mxu0 0
        %5568 = vmatpush2.bf16.msra.mxu0 0
        %5569 = vmatprep.subr.bf16.mxu0 0
        %5570 = vmatpush2.bf16.msra.mxu0 0
        %5571 = vmatprep.subr.bf16.mxu0 0
        %5572 = vmatpush2.bf16.msra.mxu0 0
        %5573 = vmatprep.subr.bf16.mxu0 0
        %5574 = vmatpush2.bf16.msra.mxu0 0
        %5575 = vmatprep.subr.bf16.mxu0 0
        %5576 = vmatpush2.bf16.msra.mxu0 0
        %5577 = vmatprep.mubr.bf16.mxu0 0
        %5578 = vmatmul.mubr.bf16.gmra.mxu0 %v5534
        %v5579 = vpop.f32.mrf.mxu0
        %v5580 = vadd.f32 0.0, %v5579
        %v5581 = vpop.f32.mrf.mxu0
        %v5582 = vpop.f32.mrf.mxu0
        %v5583 = vadd.f32 0.0, %v5582
        %v5584 = vpop.f32.mrf.mxu0
        %5585 = vmatprep.mubr.bf16.mxu0 0
        %5586 = vmatmul.mubr.bf16.gmra.mxu0 %v5537
        %v5587 = vpop.f32.mrf.mxu0
        %v5588 = vadd.f32 0.0, %v5587
        %v5589 = vpop.f32.mrf.mxu0
        %v5590 = vpop.f32.mrf.mxu0
        %v5591 = vadd.f32 0.0, %v5590
        %v5592 = vpop.f32.mrf.mxu0
        %5593 = vmatprep.mubr.bf16.mxu0 0
        %5594 = vmatmul.mubr.bf16.gmra.mxu0 %v5540
        %v5595 = vpop.f32.mrf.mxu0
        %v5596 = vadd.f32 0.0, %v5595
        %v5597 = vpop.f32.mrf.mxu0
        %v5598 = vpop.f32.mrf.mxu0
        %v5599 = vadd.f32 0.0, %v5598
        %v5600 = vpop.f32.mrf.mxu0
        %5601 = vmatprep.mubr.bf16.mxu0 0
        %5602 = vmatmul.mubr.bf16.gmra.mxu0 %v5543
        %v5603 = vpop.f32.mrf.mxu0
        %v5604 = vadd.f32 0.0, %v5603
        %v5605 = vpop.f32.mrf.mxu0
        %v5606 = vpop.f32.mrf.mxu0
        %v5607 = vadd.f32 0.0, %v5606
        %v5608 = vpop.f32.mrf.mxu0
        %5609 = vdwg.mxu0
        %v5610 = vadd.f32 %v5488, %v5580
        %v5611 = vadd.f32 %v5489, %v5583
        %v5612 = vadd.f32 %v5490, %v5588
        %v5613 = vadd.f32 %v5491, %v5591
        %v5614 = vadd.f32 %v5492, %v5596
        %v5615 = vadd.f32 %v5493, %v5599
        %v5616 = vadd.f32 %v5494, %v5604
        %v5617 = vadd.f32 %v5495, %v5607
        %s5618 = scalar_lea.vmem %s3, 64
        %v5619 = vld [vmem:[%s5618] sm:$0xf]
        %v5620 = vld [vmem:[%s5618 + $0x4] sm:$0xf]
        %v5621 = vld [vmem:[%s5618 + $0x8] sm:$0xf]
        %v5622 = vld [vmem:[%s5618 + $0xc] sm:$0xf]
        %v5631 = vunpack.c.l.b16 %v4630
        %v5632 = vunpack.c.l.b16 %v4632
        %v5633 = vunpack.c.l.b16 %v4634
        %v5634 = vunpack.c.l.b16 %v4636
        %v5635 = vunpack.c.l.b16 %v4638
        %v5636 = vunpack.c.l.b16 %v4640
        %v5637 = vunpack.c.l.b16 %v4642
        %v5638 = vunpack.c.l.b16 %v4644
        %v5639 = vpack.c.b16 %v5632, %v5631
        %v5640 = vpack.c.b16 %v5634, %v5633
        %v5641 = vpack.c.b16 %v5636, %v5635
        %v5642 = vpack.c.b16 %v5638, %v5637
        %v5647 = vunpack.c.l.b16 %v5619
        %v5648 = vunpack.c.l.b16 %v5620
        %v5649 = vunpack.c.l.b16 %v5621
        %v5650 = vunpack.c.l.b16 %v5622
        %v5651 = vpack.c.b16 %v5648, %v5647
        %v5652 = vpack.c.b16 %v5650, %v5649
        %v5656 = vsel %vm426, %v5639, 0
        %v5659 = vsel %vm426, %v5640, 0
        %v5662 = vsel %vm426, %v5641, 0
        %v5665 = vsel %vm426, %v5642, 0
        %5667 = vmatprep.subr.bf16.mxu0 0
        %5668 = vmatpush1.bf16.msra.mxu0 0
        %5669 = vmatprep.subr.bf16.mxu0 0
        %5670 = vmatpush1.bf16.msra.mxu0 0
        %5671 = vmatprep.subr.bf16.mxu0 0
        %5672 = vmatpush1.bf16.msra.mxu0 0
        %5673 = vmatprep.subr.bf16.mxu0 0
        %5674 = vmatpush1.bf16.msra.mxu0 0
        %5675 = vmatprep.subr.bf16.mxu0 0
        %5676 = vmatpush1.bf16.msra.mxu0 0
        %5677 = vmatprep.subr.bf16.mxu0 0
        %5678 = vmatpush1.bf16.msra.mxu0 0
        %5679 = vmatprep.subr.bf16.mxu0 0
        %5680 = vmatpush1.bf16.msra.mxu0 %v5652
        %5681 = vmatprep.subr.bf16.mxu0 0
        %5682 = vmatpush1.bf16.msra.mxu0 %v5651
        %5683 = vmatprep.subr.bf16.mxu0 0
        %5684 = vmatpush2.bf16.msra.mxu0 0
        %5685 = vmatprep.subr.bf16.mxu0 0
        %5686 = vmatpush2.bf16.msra.mxu0 0
        %5687 = vmatprep.subr.bf16.mxu0 0
        %5688 = vmatpush2.bf16.msra.mxu0 0
        %5689 = vmatprep.subr.bf16.mxu0 0
        %5690 = vmatpush2.bf16.msra.mxu0 0
        %5691 = vmatprep.subr.bf16.mxu0 0
        %5692 = vmatpush2.bf16.msra.mxu0 0
        %5693 = vmatprep.subr.bf16.mxu0 0
        %5694 = vmatpush2.bf16.msra.mxu0 0
        %5695 = vmatprep.subr.bf16.mxu0 0
        %5696 = vmatpush2.bf16.msra.mxu0 0
        %5697 = vmatprep.subr.bf16.mxu0 0
        %5698 = vmatpush2.bf16.msra.mxu0 0
        %5699 = vmatprep.mubr.bf16.mxu0 0
        %5700 = vmatmul.mubr.bf16.gmra.mxu0 %v5656
        %v5701 = vpop.f32.mrf.mxu0
        %v5702 = vadd.f32 0.0, %v5701
        %v5703 = vpop.f32.mrf.mxu0
        %v5704 = vpop.f32.mrf.mxu0
        %v5705 = vadd.f32 0.0, %v5704
        %v5706 = vpop.f32.mrf.mxu0
        %5707 = vmatprep.mubr.bf16.mxu0 0
        %5708 = vmatmul.mubr.bf16.gmra.mxu0 %v5659
        %v5709 = vpop.f32.mrf.mxu0
        %v5710 = vadd.f32 0.0, %v5709
        %v5711 = vpop.f32.mrf.mxu0
        %v5712 = vpop.f32.mrf.mxu0
        %v5713 = vadd.f32 0.0, %v5712
        %v5714 = vpop.f32.mrf.mxu0
        %5715 = vmatprep.mubr.bf16.mxu0 0
        %5716 = vmatmul.mubr.bf16.gmra.mxu0 %v5662
        %v5717 = vpop.f32.mrf.mxu0
        %v5718 = vadd.f32 0.0, %v5717
        %v5719 = vpop.f32.mrf.mxu0
        %v5720 = vpop.f32.mrf.mxu0
        %v5721 = vadd.f32 0.0, %v5720
        %v5722 = vpop.f32.mrf.mxu0
        %5723 = vmatprep.mubr.bf16.mxu0 0
        %5724 = vmatmul.mubr.bf16.gmra.mxu0 %v5665
        %v5725 = vpop.f32.mrf.mxu0
        %v5726 = vadd.f32 0.0, %v5725
        %v5727 = vpop.f32.mrf.mxu0
        %v5728 = vpop.f32.mrf.mxu0
        %v5729 = vadd.f32 0.0, %v5728
        %v5730 = vpop.f32.mrf.mxu0
        %5731 = vdwg.mxu0
        %v5732 = vadd.f32 %v5610, %v5702
        %v5733 = vadd.f32 %v5611, %v5705
        %v5734 = vadd.f32 %v5612, %v5710
        %v5735 = vadd.f32 %v5613, %v5713
        %v5736 = vadd.f32 %v5614, %v5718
        %v5737 = vadd.f32 %v5615, %v5721
        %v5738 = vadd.f32 %v5616, %v5726
        %v5739 = vadd.f32 %v5617, %v5729
        %s5740 = scalar_lea.vmem %s3, 80
        %v5741 = vld [vmem:[%s5740] sm:$0xf]
        %v5742 = vld [vmem:[%s5740 + $0x4] sm:$0xf]
        %v5743 = vld [vmem:[%s5740 + $0x8] sm:$0xf]
        %v5744 = vld [vmem:[%s5740 + $0xc] sm:$0xf]
        %v5745 = vunpack.c.l.b16 %v4916
        %v5746 = vunpack.c.l.b16 %v4930
        %v5747 = vunpack.c.l.b16 %v4944
        %v5748 = vunpack.c.l.b16 %v4958
        %v5749 = vunpack.c.l.b16 %v4972
        %v5750 = vunpack.c.l.b16 %v4986
        %v5751 = vunpack.c.l.b16 %v5000
        %v5752 = vunpack.c.l.b16 %v5014
        %v5753 = vpack.c.b16 %v5746, %v5745
        %v5754 = vpack.c.b16 %v5748, %v5747
        %v5755 = vpack.c.b16 %v5750, %v5749
        %v5756 = vpack.c.b16 %v5752, %v5751
        %v5761 = vunpack.c.l.b16 %v5741
        %v5762 = vunpack.c.l.b16 %v5742
        %v5763 = vunpack.c.l.b16 %v5743
        %v5764 = vunpack.c.l.b16 %v5744
        %v5765 = vpack.c.b16 %v5762, %v5761
        %v5766 = vpack.c.b16 %v5764, %v5763
        %v5770 = vsel %vm426, %v5753, 0
        %v5773 = vsel %vm426, %v5754, 0
        %v5776 = vsel %vm426, %v5755, 0
        %v5779 = vsel %vm426, %v5756, 0
        %5781 = vmatprep.subr.bf16.mxu0 0
        %5782 = vmatpush1.bf16.msra.mxu0 0
        %5783 = vmatprep.subr.bf16.mxu0 0
        %5784 = vmatpush1.bf16.msra.mxu0 0
        %5785 = vmatprep.subr.bf16.mxu0 0
        %5786 = vmatpush1.bf16.msra.mxu0 0
        %5787 = vmatprep.subr.bf16.mxu0 0
        %5788 = vmatpush1.bf16.msra.mxu0 0
        %5789 = vmatprep.subr.bf16.mxu0 0
        %5790 = vmatpush1.bf16.msra.mxu0 0
        %5791 = vmatprep.subr.bf16.mxu0 0
        %5792 = vmatpush1.bf16.msra.mxu0 0
        %5793 = vmatprep.subr.bf16.mxu0 0
        %5794 = vmatpush1.bf16.msra.mxu0 %v5766
        %5795 = vmatprep.subr.bf16.mxu0 0
        %5796 = vmatpush1.bf16.msra.mxu0 %v5765
        %5797 = vmatprep.subr.bf16.mxu0 0
        %5798 = vmatpush2.bf16.msra.mxu0 0
        %5799 = vmatprep.subr.bf16.mxu0 0
        %5800 = vmatpush2.bf16.msra.mxu0 0
        %5801 = vmatprep.subr.bf16.mxu0 0
        %5802 = vmatpush2.bf16.msra.mxu0 0
        %5803 = vmatprep.subr.bf16.mxu0 0
        %5804 = vmatpush2.bf16.msra.mxu0 0
        %5805 = vmatprep.subr.bf16.mxu0 0
        %5806 = vmatpush2.bf16.msra.mxu0 0
        %5807 = vmatprep.subr.bf16.mxu0 0
        %5808 = vmatpush2.bf16.msra.mxu0 0
        %5809 = vmatprep.subr.bf16.mxu0 0
        %5810 = vmatpush2.bf16.msra.mxu0 0
        %5811 = vmatprep.subr.bf16.mxu0 0
        %5812 = vmatpush2.bf16.msra.mxu0 0
        %5813 = vmatprep.mubr.bf16.mxu0 0
        %5814 = vmatmul.mubr.bf16.gmra.mxu0 %v5770
        %v5815 = vpop.f32.mrf.mxu0
        %v5816 = vadd.f32 0.0, %v5815
        %v5817 = vpop.f32.mrf.mxu0
        %v5818 = vpop.f32.mrf.mxu0
        %v5819 = vadd.f32 0.0, %v5818
        %v5820 = vpop.f32.mrf.mxu0
        %5821 = vmatprep.mubr.bf16.mxu0 0
        %5822 = vmatmul.mubr.bf16.gmra.mxu0 %v5773
        %v5823 = vpop.f32.mrf.mxu0
        %v5824 = vadd.f32 0.0, %v5823
        %v5825 = vpop.f32.mrf.mxu0
        %v5826 = vpop.f32.mrf.mxu0
        %v5827 = vadd.f32 0.0, %v5826
        %v5828 = vpop.f32.mrf.mxu0
        %5829 = vmatprep.mubr.bf16.mxu0 0
        %5830 = vmatmul.mubr.bf16.gmra.mxu0 %v5776
        %v5831 = vpop.f32.mrf.mxu0
        %v5832 = vadd.f32 0.0, %v5831
        %v5833 = vpop.f32.mrf.mxu0
        %v5834 = vpop.f32.mrf.mxu0
        %v5835 = vadd.f32 0.0, %v5834
        %v5836 = vpop.f32.mrf.mxu0
        %5837 = vmatprep.mubr.bf16.mxu0 0
        %5838 = vmatmul.mubr.bf16.gmra.mxu0 %v5779
        %v5839 = vpop.f32.mrf.mxu0
        %v5840 = vadd.f32 0.0, %v5839
        %v5841 = vpop.f32.mrf.mxu0
        %v5842 = vpop.f32.mrf.mxu0
        %v5843 = vadd.f32 0.0, %v5842
        %v5844 = vpop.f32.mrf.mxu0
        %5845 = vdwg.mxu0
        %v5846 = vadd.f32 %v5732, %v5816
        %v5847 = vadd.f32 %v5733, %v5819
        %v5848 = vadd.f32 %v5734, %v5824
        %v5849 = vadd.f32 %v5735, %v5827
        %v5850 = vadd.f32 %v5736, %v5832
        %v5851 = vadd.f32 %v5737, %v5835
        %v5852 = vadd.f32 %v5738, %v5840
        %v5853 = vadd.f32 %v5739, %v5843
        %s5854 = scalar_lea.vmem %s3, 96
        %v5855 = vld [vmem:[%s5854] sm:$0xf]
        %v5856 = vld [vmem:[%s5854 + $0x4] sm:$0xf]
        %v5857 = vld [vmem:[%s5854 + $0x8] sm:$0xf]
        %v5858 = vld [vmem:[%s5854 + $0xc] sm:$0xf]
        %v5860 = vunpack.c.l.b16 %v4591
        %v5861 = vpack.c.b16 %v5283, %v5282
        %v5862 = vpack.c.b16 %v5285, %v5284
        %v5863 = vpack.c.b16 %v5287, %v5286
        %v5864 = vpack.c.b16 %v5860, %v5288
        %v5869 = vunpack.c.l.b16 %v5855
        %v5870 = vunpack.c.l.b16 %v5856
        %v5871 = vunpack.c.l.b16 %v5857
        %v5872 = vunpack.c.l.b16 %v5858
        %v5873 = vpack.c.b16 %v5870, %v5869
        %v5874 = vpack.c.b16 %v5872, %v5871
        %v5878 = vsel %vm426, %v5861, 0
        %v5881 = vsel %vm426, %v5862, 0
        %v5884 = vsel %vm426, %v5863, 0
        %v5887 = vsel %vm426, %v5864, 0
        %5889 = vmatprep.subr.bf16.mxu0 0
        %5890 = vmatpush1.bf16.msra.mxu0 0
        %5891 = vmatprep.subr.bf16.mxu0 0
        %5892 = vmatpush1.bf16.msra.mxu0 0
        %5893 = vmatprep.subr.bf16.mxu0 0
        %5894 = vmatpush1.bf16.msra.mxu0 0
        %5895 = vmatprep.subr.bf16.mxu0 0
        %5896 = vmatpush1.bf16.msra.mxu0 0
        %5897 = vmatprep.subr.bf16.mxu0 0
        %5898 = vmatpush1.bf16.msra.mxu0 0
        %5899 = vmatprep.subr.bf16.mxu0 0
        %5900 = vmatpush1.bf16.msra.mxu0 0
        %5901 = vmatprep.subr.bf16.mxu0 0
        %5902 = vmatpush1.bf16.msra.mxu0 %v5874
        %5903 = vmatprep.subr.bf16.mxu0 0
        %5904 = vmatpush1.bf16.msra.mxu0 %v5873
        %5905 = vmatprep.subr.bf16.mxu0 0
        %5906 = vmatpush2.bf16.msra.mxu0 0
        %5907 = vmatprep.subr.bf16.mxu0 0
        %5908 = vmatpush2.bf16.msra.mxu0 0
        %5909 = vmatprep.subr.bf16.mxu0 0
        %5910 = vmatpush2.bf16.msra.mxu0 0
        %5911 = vmatprep.subr.bf16.mxu0 0
        %5912 = vmatpush2.bf16.msra.mxu0 0
        %5913 = vmatprep.subr.bf16.mxu0 0
        %5914 = vmatpush2.bf16.msra.mxu0 0
        %5915 = vmatprep.subr.bf16.mxu0 0
        %5916 = vmatpush2.bf16.msra.mxu0 0
        %5917 = vmatprep.subr.bf16.mxu0 0
        %5918 = vmatpush2.bf16.msra.mxu0 0
        %5919 = vmatprep.subr.bf16.mxu0 0
        %5920 = vmatpush2.bf16.msra.mxu0 0
        %5921 = vmatprep.mubr.bf16.mxu0 0
        %5922 = vmatmul.mubr.bf16.gmra.mxu0 %v5878
        %v5923 = vpop.f32.mrf.mxu0
        %v5924 = vadd.f32 0.0, %v5923
        %v5925 = vpop.f32.mrf.mxu0
        %v5926 = vpop.f32.mrf.mxu0
        %v5927 = vadd.f32 0.0, %v5926
        %v5928 = vpop.f32.mrf.mxu0
        %5929 = vmatprep.mubr.bf16.mxu0 0
        %5930 = vmatmul.mubr.bf16.gmra.mxu0 %v5881
        %v5931 = vpop.f32.mrf.mxu0
        %v5932 = vadd.f32 0.0, %v5931
        %v5933 = vpop.f32.mrf.mxu0
        %v5934 = vpop.f32.mrf.mxu0
        %v5935 = vadd.f32 0.0, %v5934
        %v5936 = vpop.f32.mrf.mxu0
        %5937 = vmatprep.mubr.bf16.mxu0 0
        %5938 = vmatmul.mubr.bf16.gmra.mxu0 %v5884
        %v5939 = vpop.f32.mrf.mxu0
        %v5940 = vadd.f32 0.0, %v5939
        %v5941 = vpop.f32.mrf.mxu0
        %v5942 = vpop.f32.mrf.mxu0
        %v5943 = vadd.f32 0.0, %v5942
        %v5944 = vpop.f32.mrf.mxu0
        %5945 = vmatprep.mubr.bf16.mxu0 0
        %5946 = vmatmul.mubr.bf16.gmra.mxu0 %v5887
        %v5947 = vpop.f32.mrf.mxu0
        %v5948 = vadd.f32 0.0, %v5947
        %v5949 = vpop.f32.mrf.mxu0
        %v5950 = vpop.f32.mrf.mxu0
        %v5951 = vadd.f32 0.0, %v5950
        %v5952 = vpop.f32.mrf.mxu0
        %5953 = vdwg.mxu0
        %v5954 = vadd.f32 %v5846, %v5924
        %v5955 = vadd.f32 %v5847, %v5927
        %v5956 = vadd.f32 %v5848, %v5932
        %v5957 = vadd.f32 %v5849, %v5935
        %v5958 = vadd.f32 %v5850, %v5940
        %v5959 = vadd.f32 %v5851, %v5943
        %v5960 = vadd.f32 %v5852, %v5948
        %v5961 = vadd.f32 %v5853, %v5951
        %s5962 = scalar_lea.vmem %s3, 112
        %v5963 = vld [vmem:[%s5962] sm:$0xf]
        %v5964 = vld [vmem:[%s5962 + $0x4] sm:$0xf]
        %v5965 = vld [vmem:[%s5962 + $0x8] sm:$0xf]
        %v5966 = vld [vmem:[%s5962 + $0xc] sm:$0xf]
        %v5968 = vunpack.c.l.b16 %v4610
        %v5969 = vpack.c.b16 %v5174, %v5173
        %v5970 = vpack.c.b16 %v5176, %v5175
        %v5971 = vpack.c.b16 %v5178, %v5177
        %v5972 = vpack.c.b16 %v5968, %v5179
        %v5977 = vunpack.c.l.b16 %v5963
        %v5978 = vunpack.c.l.b16 %v5964
        %v5979 = vunpack.c.l.b16 %v5965
        %v5980 = vunpack.c.l.b16 %v5966
        %v5981 = vpack.c.b16 %v5978, %v5977
        %v5982 = vpack.c.b16 %v5980, %v5979
        %v5986 = vsel %vm426, %v5969, 0
        %v5989 = vsel %vm426, %v5970, 0
        %v5992 = vsel %vm426, %v5971, 0
        %v5995 = vsel %vm426, %v5972, 0
        %5997 = vmatprep.subr.bf16.mxu0 0
        %5998 = vmatpush1.bf16.msra.mxu0 0
        %5999 = vmatprep.subr.bf16.mxu0 0
        %6000 = vmatpush1.bf16.msra.mxu0 0
        %6001 = vmatprep.subr.bf16.mxu0 0
        %6002 = vmatpush1.bf16.msra.mxu0 0
        %6003 = vmatprep.subr.bf16.mxu0 0
        %6004 = vmatpush1.bf16.msra.mxu0 0
        %6005 = vmatprep.subr.bf16.mxu0 0
        %6006 = vmatpush1.bf16.msra.mxu0 0
        %6007 = vmatprep.subr.bf16.mxu0 0
        %6008 = vmatpush1.bf16.msra.mxu0 0
        %6009 = vmatprep.subr.bf16.mxu0 0
        %6010 = vmatpush1.bf16.msra.mxu0 %v5982
        %6011 = vmatprep.subr.bf16.mxu0 0
        %6012 = vmatpush1.bf16.msra.mxu0 %v5981
        %6013 = vmatprep.subr.bf16.mxu0 0
        %6014 = vmatpush2.bf16.msra.mxu0 0
        %6015 = vmatprep.subr.bf16.mxu0 0
        %6016 = vmatpush2.bf16.msra.mxu0 0
        %6017 = vmatprep.subr.bf16.mxu0 0
        %6018 = vmatpush2.bf16.msra.mxu0 0
        %6019 = vmatprep.subr.bf16.mxu0 0
        %6020 = vmatpush2.bf16.msra.mxu0 0
        %6021 = vmatprep.subr.bf16.mxu0 0
        %6022 = vmatpush2.bf16.msra.mxu0 0
        %6023 = vmatprep.subr.bf16.mxu0 0
        %6024 = vmatpush2.bf16.msra.mxu0 0
        %6025 = vmatprep.subr.bf16.mxu0 0
        %6026 = vmatpush2.bf16.msra.mxu0 0
        %6027 = vmatprep.subr.bf16.mxu0 0
        %6028 = vmatpush2.bf16.msra.mxu0 0
        %6029 = vmatprep.mubr.bf16.mxu0 0
        %6030 = vmatmul.mubr.bf16.gmra.mxu0 %v5986
        %v6031 = vpop.f32.mrf.mxu0
        %v6032 = vadd.f32 0.0, %v6031
        %v6033 = vpop.f32.mrf.mxu0
        %v6034 = vpop.f32.mrf.mxu0
        %v6035 = vadd.f32 0.0, %v6034
        %v6036 = vpop.f32.mrf.mxu0
        %6037 = vmatprep.mubr.bf16.mxu0 0
        %6038 = vmatmul.mubr.bf16.gmra.mxu0 %v5989
        %v6039 = vpop.f32.mrf.mxu0
        %v6040 = vadd.f32 0.0, %v6039
        %v6041 = vpop.f32.mrf.mxu0
        %v6042 = vpop.f32.mrf.mxu0
        %v6043 = vadd.f32 0.0, %v6042
        %v6044 = vpop.f32.mrf.mxu0
        %6045 = vmatprep.mubr.bf16.mxu0 0
        %6046 = vmatmul.mubr.bf16.gmra.mxu0 %v5992
        %v6047 = vpop.f32.mrf.mxu0
        %v6048 = vadd.f32 0.0, %v6047
        %v6049 = vpop.f32.mrf.mxu0
        %v6050 = vpop.f32.mrf.mxu0
        %v6051 = vadd.f32 0.0, %v6050
        %v6052 = vpop.f32.mrf.mxu0
        %6053 = vmatprep.mubr.bf16.mxu0 0
        %6054 = vmatmul.mubr.bf16.gmra.mxu0 %v5995
        %v6055 = vpop.f32.mrf.mxu0
        %v6056 = vadd.f32 0.0, %v6055
        %v6057 = vpop.f32.mrf.mxu0
        %v6058 = vpop.f32.mrf.mxu0
        %v6059 = vadd.f32 0.0, %v6058
        %v6060 = vpop.f32.mrf.mxu0
        %6061 = vdwg.mxu0
        %v6062 = vadd.f32 %v5954, %v6032
        %v6063 = vadd.f32 %v5955, %v6035
        %v6064 = vadd.f32 %v5956, %v6040
        %v6065 = vadd.f32 %v5957, %v6043
        %v6066 = vadd.f32 %v5958, %v6048
        %v6067 = vadd.f32 %v5959, %v6051
        %v6068 = vadd.f32 %v5960, %v6056
        %v6069 = vadd.f32 %v5961, %v6059
        %s6070 = scalar_lea.vmem %s3, 128
        %v6071 = vld [vmem:[%s6070] sm:$0xf]
        %v6072 = vld [vmem:[%s6070 + $0x4] sm:$0xf]
        %v6073 = vld [vmem:[%s6070 + $0x8] sm:$0xf]
        %v6074 = vld [vmem:[%s6070 + $0xc] sm:$0xf]
        %v6075 = vunpack.c.l.b16 %v4776
        %v6076 = vpack.c.b16 %v5389, %v5388
        %v6077 = vpack.c.b16 %v5391, %v5390
        %v6078 = vpack.c.b16 %v5393, %v5392
        %v6079 = vpack.c.b16 %v6075, %v5394
        %v6084 = vunpack.c.l.b16 %v6071
        %v6085 = vunpack.c.l.b16 %v6072
        %v6086 = vunpack.c.l.b16 %v6073
        %v6087 = vunpack.c.l.b16 %v6074
        %v6088 = vpack.c.b16 %v6085, %v6084
        %v6089 = vpack.c.b16 %v6087, %v6086
        %v6093 = vsel %vm426, %v6076, 0
        %v6096 = vsel %vm426, %v6077, 0
        %v6099 = vsel %vm426, %v6078, 0
        %v6102 = vsel %vm426, %v6079, 0
        %6104 = vmatprep.subr.bf16.mxu0 0
        %6105 = vmatpush1.bf16.msra.mxu0 0
        %6106 = vmatprep.subr.bf16.mxu0 0
        %6107 = vmatpush1.bf16.msra.mxu0 0
        %6108 = vmatprep.subr.bf16.mxu0 0
        %6109 = vmatpush1.bf16.msra.mxu0 0
        %6110 = vmatprep.subr.bf16.mxu0 0
        %6111 = vmatpush1.bf16.msra.mxu0 0
        %6112 = vmatprep.subr.bf16.mxu0 0
        %6113 = vmatpush1.bf16.msra.mxu0 0
        %6114 = vmatprep.subr.bf16.mxu0 0
        %6115 = vmatpush1.bf16.msra.mxu0 0
        %6116 = vmatprep.subr.bf16.mxu0 0
        %6117 = vmatpush1.bf16.msra.mxu0 %v6089
        %6118 = vmatprep.subr.bf16.mxu0 0
        %6119 = vmatpush1.bf16.msra.mxu0 %v6088
        %6120 = vmatprep.subr.bf16.mxu0 0
        %6121 = vmatpush2.bf16.msra.mxu0 0
        %6122 = vmatprep.subr.bf16.mxu0 0
        %6123 = vmatpush2.bf16.msra.mxu0 0
        %6124 = vmatprep.subr.bf16.mxu0 0
        %6125 = vmatpush2.bf16.msra.mxu0 0
        %6126 = vmatprep.subr.bf16.mxu0 0
        %6127 = vmatpush2.bf16.msra.mxu0 0
        %6128 = vmatprep.subr.bf16.mxu0 0
        %6129 = vmatpush2.bf16.msra.mxu0 0
        %6130 = vmatprep.subr.bf16.mxu0 0
        %6131 = vmatpush2.bf16.msra.mxu0 0
        %6132 = vmatprep.subr.bf16.mxu0 0
        %6133 = vmatpush2.bf16.msra.mxu0 0
        %6134 = vmatprep.subr.bf16.mxu0 0
        %6135 = vmatpush2.bf16.msra.mxu0 0
        %6136 = vmatprep.mubr.bf16.mxu0 0
        %6137 = vmatmul.mubr.bf16.gmra.mxu0 %v6093
        %v6138 = vpop.f32.mrf.mxu0
        %v6139 = vadd.f32 0.0, %v6138
        %v6140 = vpop.f32.mrf.mxu0
        %v6141 = vpop.f32.mrf.mxu0
        %v6142 = vadd.f32 0.0, %v6141
        %v6143 = vpop.f32.mrf.mxu0
        %6144 = vmatprep.mubr.bf16.mxu0 0
        %6145 = vmatmul.mubr.bf16.gmra.mxu0 %v6096
        %v6146 = vpop.f32.mrf.mxu0
        %v6147 = vadd.f32 0.0, %v6146
        %v6148 = vpop.f32.mrf.mxu0
        %v6149 = vpop.f32.mrf.mxu0
        %v6150 = vadd.f32 0.0, %v6149
        %v6151 = vpop.f32.mrf.mxu0
        %6152 = vmatprep.mubr.bf16.mxu0 0
        %6153 = vmatmul.mubr.bf16.gmra.mxu0 %v6099
        %v6154 = vpop.f32.mrf.mxu0
        %v6155 = vadd.f32 0.0, %v6154
        %v6156 = vpop.f32.mrf.mxu0
        %v6157 = vpop.f32.mrf.mxu0
        %v6158 = vadd.f32 0.0, %v6157
        %v6159 = vpop.f32.mrf.mxu0
        %6160 = vmatprep.mubr.bf16.mxu0 0
        %6161 = vmatmul.mubr.bf16.gmra.mxu0 %v6102
        %v6162 = vpop.f32.mrf.mxu0
        %v6163 = vadd.f32 0.0, %v6162
        %v6164 = vpop.f32.mrf.mxu0
        %v6165 = vpop.f32.mrf.mxu0
        %v6166 = vadd.f32 0.0, %v6165
        %v6167 = vpop.f32.mrf.mxu0
        %6168 = vdwg.mxu0
        %v6169 = vadd.f32 %v6062, %v6139
        %v6170 = vadd.f32 %v6063, %v6142
        %v6171 = vadd.f32 %v6064, %v6147
        %v6172 = vadd.f32 %v6065, %v6150
        %v6173 = vadd.f32 %v6066, %v6155
        %v6174 = vadd.f32 %v6067, %v6158
        %v6175 = vadd.f32 %v6068, %v6163
        %v6176 = vadd.f32 %v6069, %v6166
        %v6177 = vld [vmem:[%s4] sm:$0x1]
        %v6179 = vlaneseq
        %v6180 = vshrl.u32 %v6179, 7
        %v6181 = vsub.s32 0, %v6180
        %v6182 = vrot.slane %v6177, %v6181
        %v6184 = vadd.f32 %v6169, %v6182
        %v6185 = vadd.f32 %v6170, %v6182
        %v6186 = vadd.f32 %v6171, %v6182
        %v6187 = vadd.f32 %v6172, %v6182
        %v6188 = vadd.f32 %v6173, %v6182
        %v6189 = vadd.f32 %v6174, %v6182
        %v6190 = vadd.f32 %v6175, %v6182
        %v6191 = vadd.f32 %v6176, %v6182
        %v6192 = vmax.f32 %v6184, 0.0
        %v6193 = vmax.f32 %v6185, 0.0
        %v6194 = vmax.f32 %v6186, 0.0
        %v6195 = vmax.f32 %v6187, 0.0
        %v6196 = vmax.f32 %v6188, 0.0
        %v6197 = vmax.f32 %v6189, 0.0
        %v6198 = vmax.f32 %v6190, 0.0
        %v6199 = vmax.f32 %v6191, 0.0
        %6208 = vrot.lane.b32.xlu0 %v6192, 16
        %v6209 = vpop.permute.xlu0 %6208
        %6210 = vrot.lane.b32.xlu0 %v6193, 16
        %v6211 = vpop.permute.xlu0 %6210
        %6212 = vrot.lane.b32.xlu0 %v6194, 16
        %v6213 = vpop.permute.xlu0 %6212
        %6214 = vrot.lane.b32.xlu0 %v6195, 16
        %v6215 = vpop.permute.xlu0 %6214
        %6216 = vrot.lane.b32.xlu0 %v6196, 16
        %v6217 = vpop.permute.xlu0 %6216
        %6218 = vrot.lane.b32.xlu0 %v6197, 16
        %v6219 = vpop.permute.xlu0 %6218
        %6220 = vrot.lane.b32.xlu0 %v6198, 16
        %v6221 = vpop.permute.xlu0 %6220
        %6222 = vrot.lane.b32.xlu0 %v6199, 16
        %v6223 = vpop.permute.xlu0 %6222
        %vm6232 = vcmask 195712
        %6233 = vst.msk [vmem:[%s1674] sm:$0xff] %vm6232, %v6209
        %6234 = vst.msk [vmem:[%s1674 + $0x10] sm:$0xff] %vm6232, %v6211
        %6235 = vst.msk [vmem:[%s1674 + $0x20] sm:$0xff] %vm6232, %v6213
        %6236 = vst.msk [vmem:[%s1674 + $0x30] sm:$0xff] %vm6232, %v6215
        %6237 = vst.msk [vmem:[%s1674 + $0x40] sm:$0xff] %vm6232, %v6217
        %6238 = vst.msk [vmem:[%s1674 + $0x50] sm:$0xff] %vm6232, %v6219
        %6239 = vst.msk [vmem:[%s1674 + $0x60] sm:$0xff] %vm6232, %v6221
        %6240 = vst.msk [vmem:[%s1674 + $0x70] sm:$0xff] %vm6232, %v6223
        %v6241 = vld [vmem:[%s3] sm:$0xf]
        %v6242 = vld [vmem:[%s3 + $0x4] sm:$0xf]
        %v6243 = vld [vmem:[%s3 + $0x8] sm:$0xf]
        %v6244 = vld [vmem:[%s3 + $0xc] sm:$0xf]
        %v6245 = vld [vmem:[%s5159] sm:$0xf]
        %v6246 = vld [vmem:[%s5159 + $0x4] sm:$0xf]
        %v6247 = vld [vmem:[%s5159 + $0x8] sm:$0xf]
        %v6248 = vld [vmem:[%s5159 + $0xc] sm:$0xf]
        %v6253 = vunpack.c.l.b16 %v6245
        %v6254 = vunpack.c.l.b16 %v6246
        %v6255 = vunpack.c.l.b16 %v6247
        %v6256 = vunpack.c.l.b16 %v6248
        %v6257 = vpack.c.b16 %v6254, %v6253
        %v6258 = vpack.c.b16 %v6256, %v6255
        %6261 = vmatprep.subr.bf16.mxu0 0
        %6262 = vmatpush1.bf16.msra.mxu0 0
        %6263 = vmatprep.subr.bf16.mxu0 0
        %6264 = vmatpush1.bf16.msra.mxu0 0
        %6265 = vmatprep.subr.bf16.mxu0 0
        %6266 = vmatpush1.bf16.msra.mxu0 0
        %6267 = vmatprep.subr.bf16.mxu0 0
        %6268 = vmatpush1.bf16.msra.mxu0 0
        %6269 = vmatprep.subr.bf16.mxu0 0
        %6270 = vmatpush1.bf16.msra.mxu0 0
        %6271 = vmatprep.subr.bf16.mxu0 0
        %6272 = vmatpush1.bf16.msra.mxu0 0
        %6273 = vmatprep.subr.bf16.mxu0 0
        %6274 = vmatpush1.bf16.msra.mxu0 %v6258
        %6275 = vmatprep.subr.bf16.mxu0 0
        %6276 = vmatpush1.bf16.msra.mxu0 %v6257
        %6277 = vmatprep.subr.bf16.mxu0 0
        %6278 = vmatpush2.bf16.msra.mxu0 0
        %6279 = vmatprep.subr.bf16.mxu0 0
        %6280 = vmatpush2.bf16.msra.mxu0 0
        %6281 = vmatprep.subr.bf16.mxu0 0
        %6282 = vmatpush2.bf16.msra.mxu0 0
        %6283 = vmatprep.subr.bf16.mxu0 0
        %6284 = vmatpush2.bf16.msra.mxu0 0
        %6285 = vmatprep.subr.bf16.mxu0 0
        %6286 = vmatpush2.bf16.msra.mxu0 0
        %6287 = vmatprep.subr.bf16.mxu0 0
        %6288 = vmatpush2.bf16.msra.mxu0 0
        %6289 = vmatprep.subr.bf16.mxu0 0
        %6290 = vmatpush2.bf16.msra.mxu0 0
        %6291 = vmatprep.subr.bf16.mxu0 0
        %6292 = vmatpush2.bf16.msra.mxu0 0
        %6293 = vmatprep.mubr.bf16.mxu0 0
        %6294 = vmatmul.mubr.bf16.gmra.mxu0 %v5412
        %v6295 = vpop.f32.mrf.mxu0
        %v6296 = vadd.f32 0.0, %v6295
        %v6297 = vpop.f32.mrf.mxu0
        %v6298 = vpop.f32.mrf.mxu0
        %v6299 = vadd.f32 0.0, %v6298
        %v6300 = vpop.f32.mrf.mxu0
        %6301 = vmatprep.mubr.bf16.mxu0 0
        %6302 = vmatmul.mubr.bf16.gmra.mxu0 %v5415
        %v6303 = vpop.f32.mrf.mxu0
        %v6304 = vadd.f32 0.0, %v6303
        %v6305 = vpop.f32.mrf.mxu0
        %v6306 = vpop.f32.mrf.mxu0
        %v6307 = vadd.f32 0.0, %v6306
        %v6308 = vpop.f32.mrf.mxu0
        %6309 = vmatprep.mubr.bf16.mxu0 0
        %6310 = vmatmul.mubr.bf16.gmra.mxu0 %v5418
        %v6311 = vpop.f32.mrf.mxu0
        %v6312 = vadd.f32 0.0, %v6311
        %v6313 = vpop.f32.mrf.mxu0
        %v6314 = vpop.f32.mrf.mxu0
        %v6315 = vadd.f32 0.0, %v6314
        %v6316 = vpop.f32.mrf.mxu0
        %6317 = vmatprep.mubr.bf16.mxu0 0
        %6318 = vmatmul.mubr.bf16.gmra.mxu0 %v5421
        %v6319 = vpop.f32.mrf.mxu0
        %v6320 = vadd.f32 0.0, %v6319
        %v6321 = vpop.f32.mrf.mxu0
        %v6322 = vpop.f32.mrf.mxu0
        %v6323 = vadd.f32 0.0, %v6322
        %v6324 = vpop.f32.mrf.mxu0
        %6325 = vdwg.mxu0
        %v6330 = vunpack.c.l.b16 %v6241
        %v6331 = vunpack.c.l.b16 %v6242
        %v6332 = vunpack.c.l.b16 %v6243
        %v6333 = vunpack.c.l.b16 %v6244
        %v6334 = vpack.c.b16 %v6331, %v6330
        %v6335 = vpack.c.b16 %v6333, %v6332
        %6338 = vmatprep.subr.bf16.mxu0 0
        %6339 = vmatpush1.bf16.msra.mxu0 0
        %6340 = vmatprep.subr.bf16.mxu0 0
        %6341 = vmatpush1.bf16.msra.mxu0 0
        %6342 = vmatprep.subr.bf16.mxu0 0
        %6343 = vmatpush1.bf16.msra.mxu0 0
        %6344 = vmatprep.subr.bf16.mxu0 0
        %6345 = vmatpush1.bf16.msra.mxu0 0
        %6346 = vmatprep.subr.bf16.mxu0 0
        %6347 = vmatpush1.bf16.msra.mxu0 0
        %6348 = vmatprep.subr.bf16.mxu0 0
        %6349 = vmatpush1.bf16.msra.mxu0 0
        %6350 = vmatprep.subr.bf16.mxu0 0
        %6351 = vmatpush1.bf16.msra.mxu0 %v6335
        %6352 = vmatprep.subr.bf16.mxu0 0
        %6353 = vmatpush1.bf16.msra.mxu0 %v6334
        %6354 = vmatprep.subr.bf16.mxu0 0
        %6355 = vmatpush2.bf16.msra.mxu0 0
        %6356 = vmatprep.subr.bf16.mxu0 0
        %6357 = vmatpush2.bf16.msra.mxu0 0
        %6358 = vmatprep.subr.bf16.mxu0 0
        %6359 = vmatpush2.bf16.msra.mxu0 0
        %6360 = vmatprep.subr.bf16.mxu0 0
        %6361 = vmatpush2.bf16.msra.mxu0 0
        %6362 = vmatprep.subr.bf16.mxu0 0
        %6363 = vmatpush2.bf16.msra.mxu0 0
        %6364 = vmatprep.subr.bf16.mxu0 0
        %6365 = vmatpush2.bf16.msra.mxu0 0
        %6366 = vmatprep.subr.bf16.mxu0 0
        %6367 = vmatpush2.bf16.msra.mxu0 0
        %6368 = vmatprep.subr.bf16.mxu0 0
        %6369 = vmatpush2.bf16.msra.mxu0 0
        %6370 = vmatprep.mubr.bf16.mxu0 0
        %6371 = vmatmul.mubr.bf16.gmra.mxu0 %v5197
        %v6372 = vpop.f32.mrf.mxu0
        %v6373 = vadd.f32 %v6296, %v6372
        %v6374 = vpop.f32.mrf.mxu0
        %v6375 = vpop.f32.mrf.mxu0
        %v6376 = vadd.f32 %v6299, %v6375
        %v6377 = vpop.f32.mrf.mxu0
        %6378 = vmatprep.mubr.bf16.mxu0 0
        %6379 = vmatmul.mubr.bf16.gmra.mxu0 %v5200
        %v6380 = vpop.f32.mrf.mxu0
        %v6381 = vadd.f32 %v6304, %v6380
        %v6382 = vpop.f32.mrf.mxu0
        %v6383 = vpop.f32.mrf.mxu0
        %v6384 = vadd.f32 %v6307, %v6383
        %v6385 = vpop.f32.mrf.mxu0
        %6386 = vmatprep.mubr.bf16.mxu0 0
        %6387 = vmatmul.mubr.bf16.gmra.mxu0 %v5203
        %v6388 = vpop.f32.mrf.mxu0
        %v6389 = vadd.f32 %v6312, %v6388
        %v6390 = vpop.f32.mrf.mxu0
        %v6391 = vpop.f32.mrf.mxu0
        %v6392 = vadd.f32 %v6315, %v6391
        %v6393 = vpop.f32.mrf.mxu0
        %6394 = vmatprep.mubr.bf16.mxu0 0
        %6395 = vmatmul.mubr.bf16.gmra.mxu0 %v5206
        %v6396 = vpop.f32.mrf.mxu0
        %v6397 = vadd.f32 %v6320, %v6396
        %v6398 = vpop.f32.mrf.mxu0
        %v6399 = vpop.f32.mrf.mxu0
        %v6400 = vadd.f32 %v6323, %v6399
        %v6401 = vpop.f32.mrf.mxu0
        %6402 = vdwg.mxu0
        %v6403 = vld [vmem:[%s5382] sm:$0xf]
        %v6404 = vld [vmem:[%s5382 + $0x4] sm:$0xf]
        %v6405 = vld [vmem:[%s5382 + $0x8] sm:$0xf]
        %v6406 = vld [vmem:[%s5382 + $0xc] sm:$0xf]
        %v6407 = vunpack.c.l.b16 %v4790
        %v6408 = vunpack.c.l.b16 %v4804
        %v6409 = vunpack.c.l.b16 %v4818
        %v6410 = vunpack.c.l.b16 %v4832
        %v6411 = vunpack.c.l.b16 %v4846
        %v6412 = vunpack.c.l.b16 %v4860
        %v6413 = vunpack.c.l.b16 %v4874
        %v6414 = vunpack.c.l.b16 %v4888
        %v6415 = vpack.c.b16 %v6408, %v6407
        %v6416 = vpack.c.b16 %v6410, %v6409
        %v6417 = vpack.c.b16 %v6412, %v6411
        %v6418 = vpack.c.b16 %v6414, %v6413
        %v6423 = vunpack.c.l.b16 %v6403
        %v6424 = vunpack.c.l.b16 %v6404
        %v6425 = vunpack.c.l.b16 %v6405
        %v6426 = vunpack.c.l.b16 %v6406
        %v6427 = vpack.c.b16 %v6424, %v6423
        %v6428 = vpack.c.b16 %v6426, %v6425
        %v6432 = vsel %vm426, %v6415, 0
        %v6435 = vsel %vm426, %v6416, 0
        %v6438 = vsel %vm426, %v6417, 0
        %v6441 = vsel %vm426, %v6418, 0
        %6443 = vmatprep.subr.bf16.mxu0 0
        %6444 = vmatpush1.bf16.msra.mxu0 0
        %6445 = vmatprep.subr.bf16.mxu0 0
        %6446 = vmatpush1.bf16.msra.mxu0 0
        %6447 = vmatprep.subr.bf16.mxu0 0
        %6448 = vmatpush1.bf16.msra.mxu0 0
        %6449 = vmatprep.subr.bf16.mxu0 0
        %6450 = vmatpush1.bf16.msra.mxu0 0
        %6451 = vmatprep.subr.bf16.mxu0 0
        %6452 = vmatpush1.bf16.msra.mxu0 0
        %6453 = vmatprep.subr.bf16.mxu0 0
        %6454 = vmatpush1.bf16.msra.mxu0 0
        %6455 = vmatprep.subr.bf16.mxu0 0
        %6456 = vmatpush1.bf16.msra.mxu0 %v6428
        %6457 = vmatprep.subr.bf16.mxu0 0
        %6458 = vmatpush1.bf16.msra.mxu0 %v6427
        %6459 = vmatprep.subr.bf16.mxu0 0
        %6460 = vmatpush2.bf16.msra.mxu0 0
        %6461 = vmatprep.subr.bf16.mxu0 0
        %6462 = vmatpush2.bf16.msra.mxu0 0
        %6463 = vmatprep.subr.bf16.mxu0 0
        %6464 = vmatpush2.bf16.msra.mxu0 0
        %6465 = vmatprep.subr.bf16.mxu0 0
        %6466 = vmatpush2.bf16.msra.mxu0 0
        %6467 = vmatprep.subr.bf16.mxu0 0
        %6468 = vmatpush2.bf16.msra.mxu0 0
        %6469 = vmatprep.subr.bf16.mxu0 0
        %6470 = vmatpush2.bf16.msra.mxu0 0
        %6471 = vmatprep.subr.bf16.mxu0 0
        %6472 = vmatpush2.bf16.msra.mxu0 0
        %6473 = vmatprep.subr.bf16.mxu0 0
        %6474 = vmatpush2.bf16.msra.mxu0 0
        %6475 = vmatprep.mubr.bf16.mxu0 0
        %6476 = vmatmul.mubr.bf16.gmra.mxu0 %v6432
        %v6477 = vpop.f32.mrf.mxu0
        %v6478 = vadd.f32 0.0, %v6477
        %v6479 = vpop.f32.mrf.mxu0
        %v6480 = vpop.f32.mrf.mxu0
        %v6481 = vadd.f32 0.0, %v6480
        %v6482 = vpop.f32.mrf.mxu0
        %6483 = vmatprep.mubr.bf16.mxu0 0
        %6484 = vmatmul.mubr.bf16.gmra.mxu0 %v6435
        %v6485 = vpop.f32.mrf.mxu0
        %v6486 = vadd.f32 0.0, %v6485
        %v6487 = vpop.f32.mrf.mxu0
        %v6488 = vpop.f32.mrf.mxu0
        %v6489 = vadd.f32 0.0, %v6488
        %v6490 = vpop.f32.mrf.mxu0
        %6491 = vmatprep.mubr.bf16.mxu0 0
        %6492 = vmatmul.mubr.bf16.gmra.mxu0 %v6438
        %v6493 = vpop.f32.mrf.mxu0
        %v6494 = vadd.f32 0.0, %v6493
        %v6495 = vpop.f32.mrf.mxu0
        %v6496 = vpop.f32.mrf.mxu0
        %v6497 = vadd.f32 0.0, %v6496
        %v6498 = vpop.f32.mrf.mxu0
        %6499 = vmatprep.mubr.bf16.mxu0 0
        %6500 = vmatmul.mubr.bf16.gmra.mxu0 %v6441
        %v6501 = vpop.f32.mrf.mxu0
        %v6502 = vadd.f32 0.0, %v6501
        %v6503 = vpop.f32.mrf.mxu0
        %v6504 = vpop.f32.mrf.mxu0
        %v6505 = vadd.f32 0.0, %v6504
        %v6506 = vpop.f32.mrf.mxu0
        %6507 = vdwg.mxu0
        %v6508 = vadd.f32 %v6373, %v6478
        %v6509 = vadd.f32 %v6376, %v6481
        %v6510 = vadd.f32 %v6381, %v6486
        %v6511 = vadd.f32 %v6384, %v6489
        %v6512 = vadd.f32 %v6389, %v6494
        %v6513 = vadd.f32 %v6392, %v6497
        %v6514 = vadd.f32 %v6397, %v6502
        %v6515 = vadd.f32 %v6400, %v6505
        %v6516 = vld [vmem:[%s5496] sm:$0xf]
        %v6517 = vld [vmem:[%s5496 + $0x4] sm:$0xf]
        %v6518 = vld [vmem:[%s5496 + $0x8] sm:$0xf]
        %v6519 = vld [vmem:[%s5496 + $0xc] sm:$0xf]
        %v6524 = vunpack.c.l.b16 %v6516
        %v6525 = vunpack.c.l.b16 %v6517
        %v6526 = vunpack.c.l.b16 %v6518
        %v6527 = vunpack.c.l.b16 %v6519
        %v6528 = vpack.c.b16 %v6525, %v6524
        %v6529 = vpack.c.b16 %v6527, %v6526
        %6532 = vmatprep.subr.bf16.mxu0 0
        %6533 = vmatpush1.bf16.msra.mxu0 0
        %6534 = vmatprep.subr.bf16.mxu0 0
        %6535 = vmatpush1.bf16.msra.mxu0 0
        %6536 = vmatprep.subr.bf16.mxu0 0
        %6537 = vmatpush1.bf16.msra.mxu0 0
        %6538 = vmatprep.subr.bf16.mxu0 0
        %6539 = vmatpush1.bf16.msra.mxu0 0
        %6540 = vmatprep.subr.bf16.mxu0 0
        %6541 = vmatpush1.bf16.msra.mxu0 0
        %6542 = vmatprep.subr.bf16.mxu0 0
        %6543 = vmatpush1.bf16.msra.mxu0 0
        %6544 = vmatprep.subr.bf16.mxu0 0
        %6545 = vmatpush1.bf16.msra.mxu0 %v6529
        %6546 = vmatprep.subr.bf16.mxu0 0
        %6547 = vmatpush1.bf16.msra.mxu0 %v6528
        %6548 = vmatprep.subr.bf16.mxu0 0
        %6549 = vmatpush2.bf16.msra.mxu0 0
        %6550 = vmatprep.subr.bf16.mxu0 0
        %6551 = vmatpush2.bf16.msra.mxu0 0
        %6552 = vmatprep.subr.bf16.mxu0 0
        %6553 = vmatpush2.bf16.msra.mxu0 0
        %6554 = vmatprep.subr.bf16.mxu0 0
        %6555 = vmatpush2.bf16.msra.mxu0 0
        %6556 = vmatprep.subr.bf16.mxu0 0
        %6557 = vmatpush2.bf16.msra.mxu0 0
        %6558 = vmatprep.subr.bf16.mxu0 0
        %6559 = vmatpush2.bf16.msra.mxu0 0
        %6560 = vmatprep.subr.bf16.mxu0 0
        %6561 = vmatpush2.bf16.msra.mxu0 0
        %6562 = vmatprep.subr.bf16.mxu0 0
        %6563 = vmatpush2.bf16.msra.mxu0 0
        %6564 = vmatprep.mubr.bf16.mxu0 0
        %6565 = vmatmul.mubr.bf16.gmra.mxu0 %v5656
        %v6566 = vpop.f32.mrf.mxu0
        %v6567 = vadd.f32 0.0, %v6566
        %v6568 = vpop.f32.mrf.mxu0
        %v6569 = vpop.f32.mrf.mxu0
        %v6570 = vadd.f32 0.0, %v6569
        %v6571 = vpop.f32.mrf.mxu0
        %6572 = vmatprep.mubr.bf16.mxu0 0
        %6573 = vmatmul.mubr.bf16.gmra.mxu0 %v5659
        %v6574 = vpop.f32.mrf.mxu0
        %v6575 = vadd.f32 0.0, %v6574
        %v6576 = vpop.f32.mrf.mxu0
        %v6577 = vpop.f32.mrf.mxu0
        %v6578 = vadd.f32 0.0, %v6577
        %v6579 = vpop.f32.mrf.mxu0
        %6580 = vmatprep.mubr.bf16.mxu0 0
        %6581 = vmatmul.mubr.bf16.gmra.mxu0 %v5662
        %v6582 = vpop.f32.mrf.mxu0
        %v6583 = vadd.f32 0.0, %v6582
        %v6584 = vpop.f32.mrf.mxu0
        %v6585 = vpop.f32.mrf.mxu0
        %v6586 = vadd.f32 0.0, %v6585
        %v6587 = vpop.f32.mrf.mxu0
        %6588 = vmatprep.mubr.bf16.mxu0 0
        %6589 = vmatmul.mubr.bf16.gmra.mxu0 %v5665
        %v6590 = vpop.f32.mrf.mxu0
        %v6591 = vadd.f32 0.0, %v6590
        %v6592 = vpop.f32.mrf.mxu0
        %v6593 = vpop.f32.mrf.mxu0
        %v6594 = vadd.f32 0.0, %v6593
        %v6595 = vpop.f32.mrf.mxu0
        %6596 = vdwg.mxu0
        %v6597 = vadd.f32 %v6508, %v6567
        %v6598 = vadd.f32 %v6509, %v6570
        %v6599 = vadd.f32 %v6510, %v6575
        %v6600 = vadd.f32 %v6511, %v6578
        %v6601 = vadd.f32 %v6512, %v6583
        %v6602 = vadd.f32 %v6513, %v6586
        %v6603 = vadd.f32 %v6514, %v6591
        %v6604 = vadd.f32 %v6515, %v6594
        %v6605 = vld [vmem:[%s5618] sm:$0xf]
        %v6606 = vld [vmem:[%s5618 + $0x4] sm:$0xf]
        %v6607 = vld [vmem:[%s5618 + $0x8] sm:$0xf]
        %v6608 = vld [vmem:[%s5618 + $0xc] sm:$0xf]
        %v6613 = vunpack.c.l.b16 %v6605
        %v6614 = vunpack.c.l.b16 %v6606
        %v6615 = vunpack.c.l.b16 %v6607
        %v6616 = vunpack.c.l.b16 %v6608
        %v6617 = vpack.c.b16 %v6614, %v6613
        %v6618 = vpack.c.b16 %v6616, %v6615
        %6621 = vmatprep.subr.bf16.mxu0 0
        %6622 = vmatpush1.bf16.msra.mxu0 0
        %6623 = vmatprep.subr.bf16.mxu0 0
        %6624 = vmatpush1.bf16.msra.mxu0 0
        %6625 = vmatprep.subr.bf16.mxu0 0
        %6626 = vmatpush1.bf16.msra.mxu0 0
        %6627 = vmatprep.subr.bf16.mxu0 0
        %6628 = vmatpush1.bf16.msra.mxu0 0
        %6629 = vmatprep.subr.bf16.mxu0 0
        %6630 = vmatpush1.bf16.msra.mxu0 0
        %6631 = vmatprep.subr.bf16.mxu0 0
        %6632 = vmatpush1.bf16.msra.mxu0 0
        %6633 = vmatprep.subr.bf16.mxu0 0
        %6634 = vmatpush1.bf16.msra.mxu0 %v6618
        %6635 = vmatprep.subr.bf16.mxu0 0
        %6636 = vmatpush1.bf16.msra.mxu0 %v6617
        %6637 = vmatprep.subr.bf16.mxu0 0
        %6638 = vmatpush2.bf16.msra.mxu0 0
        %6639 = vmatprep.subr.bf16.mxu0 0
        %6640 = vmatpush2.bf16.msra.mxu0 0
        %6641 = vmatprep.subr.bf16.mxu0 0
        %6642 = vmatpush2.bf16.msra.mxu0 0
        %6643 = vmatprep.subr.bf16.mxu0 0
        %6644 = vmatpush2.bf16.msra.mxu0 0
        %6645 = vmatprep.subr.bf16.mxu0 0
        %6646 = vmatpush2.bf16.msra.mxu0 0
        %6647 = vmatprep.subr.bf16.mxu0 0
        %6648 = vmatpush2.bf16.msra.mxu0 0
        %6649 = vmatprep.subr.bf16.mxu0 0
        %6650 = vmatpush2.bf16.msra.mxu0 0
        %6651 = vmatprep.subr.bf16.mxu0 0
        %6652 = vmatpush2.bf16.msra.mxu0 0
        %6653 = vmatprep.mubr.bf16.mxu0 0
        %6654 = vmatmul.mubr.bf16.gmra.mxu0 %v5770
        %v6655 = vpop.f32.mrf.mxu0
        %v6656 = vadd.f32 0.0, %v6655
        %v6657 = vpop.f32.mrf.mxu0
        %v6658 = vpop.f32.mrf.mxu0
        %v6659 = vadd.f32 0.0, %v6658
        %v6660 = vpop.f32.mrf.mxu0
        %6661 = vmatprep.mubr.bf16.mxu0 0
        %6662 = vmatmul.mubr.bf16.gmra.mxu0 %v5773
        %v6663 = vpop.f32.mrf.mxu0
        %v6664 = vadd.f32 0.0, %v6663
        %v6665 = vpop.f32.mrf.mxu0
        %v6666 = vpop.f32.mrf.mxu0
        %v6667 = vadd.f32 0.0, %v6666
        %v6668 = vpop.f32.mrf.mxu0
        %6669 = vmatprep.mubr.bf16.mxu0 0
        %6670 = vmatmul.mubr.bf16.gmra.mxu0 %v5776
        %v6671 = vpop.f32.mrf.mxu0
        %v6672 = vadd.f32 0.0, %v6671
        %v6673 = vpop.f32.mrf.mxu0
        %v6674 = vpop.f32.mrf.mxu0
        %v6675 = vadd.f32 0.0, %v6674
        %v6676 = vpop.f32.mrf.mxu0
        %6677 = vmatprep.mubr.bf16.mxu0 0
        %6678 = vmatmul.mubr.bf16.gmra.mxu0 %v5779
        %v6679 = vpop.f32.mrf.mxu0
        %v6680 = vadd.f32 0.0, %v6679
        %v6681 = vpop.f32.mrf.mxu0
        %v6682 = vpop.f32.mrf.mxu0
        %v6683 = vadd.f32 0.0, %v6682
        %v6684 = vpop.f32.mrf.mxu0
        %6685 = vdwg.mxu0
        %v6686 = vadd.f32 %v6597, %v6656
        %v6687 = vadd.f32 %v6598, %v6659
        %v6688 = vadd.f32 %v6599, %v6664
        %v6689 = vadd.f32 %v6600, %v6667
        %v6690 = vadd.f32 %v6601, %v6672
        %v6691 = vadd.f32 %v6602, %v6675
        %v6692 = vadd.f32 %v6603, %v6680
        %v6693 = vadd.f32 %v6604, %v6683
        %v6694 = vld [vmem:[%s5740] sm:$0xf]
        %v6695 = vld [vmem:[%s5740 + $0x4] sm:$0xf]
        %v6696 = vld [vmem:[%s5740 + $0x8] sm:$0xf]
        %v6697 = vld [vmem:[%s5740 + $0xc] sm:$0xf]
        %v6698 = vunpack.c.l.b16 %v5042
        %v6699 = vunpack.c.l.b16 %v5056
        %v6700 = vunpack.c.l.b16 %v5070
        %v6701 = vunpack.c.l.b16 %v5084
        %v6702 = vunpack.c.l.b16 %v5098
        %v6703 = vunpack.c.l.b16 %v5112
        %v6704 = vunpack.c.l.b16 %v5126
        %v6705 = vunpack.c.l.b16 %v5140
        %v6706 = vpack.c.b16 %v6699, %v6698
        %v6707 = vpack.c.b16 %v6701, %v6700
        %v6708 = vpack.c.b16 %v6703, %v6702
        %v6709 = vpack.c.b16 %v6705, %v6704
        %v6714 = vunpack.c.l.b16 %v6694
        %v6715 = vunpack.c.l.b16 %v6695
        %v6716 = vunpack.c.l.b16 %v6696
        %v6717 = vunpack.c.l.b16 %v6697
        %v6718 = vpack.c.b16 %v6715, %v6714
        %v6719 = vpack.c.b16 %v6717, %v6716
        %v6723 = vsel %vm426, %v6706, 0
        %v6726 = vsel %vm426, %v6707, 0
        %v6729 = vsel %vm426, %v6708, 0
        %v6732 = vsel %vm426, %v6709, 0
        %6734 = vmatprep.subr.bf16.mxu0 0
        %6735 = vmatpush1.bf16.msra.mxu0 0
        %6736 = vmatprep.subr.bf16.mxu0 0
        %6737 = vmatpush1.bf16.msra.mxu0 0
        %6738 = vmatprep.subr.bf16.mxu0 0
        %6739 = vmatpush1.bf16.msra.mxu0 0
        %6740 = vmatprep.subr.bf16.mxu0 0
        %6741 = vmatpush1.bf16.msra.mxu0 0
        %6742 = vmatprep.subr.bf16.mxu0 0
        %6743 = vmatpush1.bf16.msra.mxu0 0
        %6744 = vmatprep.subr.bf16.mxu0 0
        %6745 = vmatpush1.bf16.msra.mxu0 0
        %6746 = vmatprep.subr.bf16.mxu0 0
        %6747 = vmatpush1.bf16.msra.mxu0 %v6719
        %6748 = vmatprep.subr.bf16.mxu0 0
        %6749 = vmatpush1.bf16.msra.mxu0 %v6718
        %6750 = vmatprep.subr.bf16.mxu0 0
        %6751 = vmatpush2.bf16.msra.mxu0 0
        %6752 = vmatprep.subr.bf16.mxu0 0
        %6753 = vmatpush2.bf16.msra.mxu0 0
        %6754 = vmatprep.subr.bf16.mxu0 0
        %6755 = vmatpush2.bf16.msra.mxu0 0
        %6756 = vmatprep.subr.bf16.mxu0 0
        %6757 = vmatpush2.bf16.msra.mxu0 0
        %6758 = vmatprep.subr.bf16.mxu0 0
        %6759 = vmatpush2.bf16.msra.mxu0 0
        %6760 = vmatprep.subr.bf16.mxu0 0
        %6761 = vmatpush2.bf16.msra.mxu0 0
        %6762 = vmatprep.subr.bf16.mxu0 0
        %6763 = vmatpush2.bf16.msra.mxu0 0
        %6764 = vmatprep.subr.bf16.mxu0 0
        %6765 = vmatpush2.bf16.msra.mxu0 0
        %6766 = vmatprep.mubr.bf16.mxu0 0
        %6767 = vmatmul.mubr.bf16.gmra.mxu0 %v6723
        %v6768 = vpop.f32.mrf.mxu0
        %v6769 = vadd.f32 0.0, %v6768
        %v6770 = vpop.f32.mrf.mxu0
        %v6771 = vpop.f32.mrf.mxu0
        %v6772 = vadd.f32 0.0, %v6771
        %v6773 = vpop.f32.mrf.mxu0
        %6774 = vmatprep.mubr.bf16.mxu0 0
        %6775 = vmatmul.mubr.bf16.gmra.mxu0 %v6726
        %v6776 = vpop.f32.mrf.mxu0
        %v6777 = vadd.f32 0.0, %v6776
        %v6778 = vpop.f32.mrf.mxu0
        %v6779 = vpop.f32.mrf.mxu0
        %v6780 = vadd.f32 0.0, %v6779
        %v6781 = vpop.f32.mrf.mxu0
        %6782 = vmatprep.mubr.bf16.mxu0 0
        %6783 = vmatmul.mubr.bf16.gmra.mxu0 %v6729
        %v6784 = vpop.f32.mrf.mxu0
        %v6785 = vadd.f32 0.0, %v6784
        %v6786 = vpop.f32.mrf.mxu0
        %v6787 = vpop.f32.mrf.mxu0
        %v6788 = vadd.f32 0.0, %v6787
        %v6789 = vpop.f32.mrf.mxu0
        %6790 = vmatprep.mubr.bf16.mxu0 0
        %6791 = vmatmul.mubr.bf16.gmra.mxu0 %v6732
        %v6792 = vpop.f32.mrf.mxu0
        %v6793 = vadd.f32 0.0, %v6792
        %v6794 = vpop.f32.mrf.mxu0
        %v6795 = vpop.f32.mrf.mxu0
        %v6796 = vadd.f32 0.0, %v6795
        %v6797 = vpop.f32.mrf.mxu0
        %6798 = vdwg.mxu0
        %v6799 = vadd.f32 %v6686, %v6769
        %v6800 = vadd.f32 %v6687, %v6772
        %v6801 = vadd.f32 %v6688, %v6777
        %v6802 = vadd.f32 %v6689, %v6780
        %v6803 = vadd.f32 %v6690, %v6785
        %v6804 = vadd.f32 %v6691, %v6788
        %v6805 = vadd.f32 %v6692, %v6793
        %v6806 = vadd.f32 %v6693, %v6796
        %v6807 = vld [vmem:[%s5854] sm:$0xf]
        %v6808 = vld [vmem:[%s5854 + $0x4] sm:$0xf]
        %v6809 = vld [vmem:[%s5854 + $0x8] sm:$0xf]
        %v6810 = vld [vmem:[%s5854 + $0xc] sm:$0xf]
        %v6815 = vunpack.c.l.b16 %v6807
        %v6816 = vunpack.c.l.b16 %v6808
        %v6817 = vunpack.c.l.b16 %v6809
        %v6818 = vunpack.c.l.b16 %v6810
        %v6819 = vpack.c.b16 %v6816, %v6815
        %v6820 = vpack.c.b16 %v6818, %v6817
        %6823 = vmatprep.subr.bf16.mxu0 0
        %6824 = vmatpush1.bf16.msra.mxu0 0
        %6825 = vmatprep.subr.bf16.mxu0 0
        %6826 = vmatpush1.bf16.msra.mxu0 0
        %6827 = vmatprep.subr.bf16.mxu0 0
        %6828 = vmatpush1.bf16.msra.mxu0 0
        %6829 = vmatprep.subr.bf16.mxu0 0
        %6830 = vmatpush1.bf16.msra.mxu0 0
        %6831 = vmatprep.subr.bf16.mxu0 0
        %6832 = vmatpush1.bf16.msra.mxu0 0
        %6833 = vmatprep.subr.bf16.mxu0 0
        %6834 = vmatpush1.bf16.msra.mxu0 0
        %6835 = vmatprep.subr.bf16.mxu0 0
        %6836 = vmatpush1.bf16.msra.mxu0 %v6820
        %6837 = vmatprep.subr.bf16.mxu0 0
        %6838 = vmatpush1.bf16.msra.mxu0 %v6819
        %6839 = vmatprep.subr.bf16.mxu0 0
        %6840 = vmatpush2.bf16.msra.mxu0 0
        %6841 = vmatprep.subr.bf16.mxu0 0
        %6842 = vmatpush2.bf16.msra.mxu0 0
        %6843 = vmatprep.subr.bf16.mxu0 0
        %6844 = vmatpush2.bf16.msra.mxu0 0
        %6845 = vmatprep.subr.bf16.mxu0 0
        %6846 = vmatpush2.bf16.msra.mxu0 0
        %6847 = vmatprep.subr.bf16.mxu0 0
        %6848 = vmatpush2.bf16.msra.mxu0 0
        %6849 = vmatprep.subr.bf16.mxu0 0
        %6850 = vmatpush2.bf16.msra.mxu0 0
        %6851 = vmatprep.subr.bf16.mxu0 0
        %6852 = vmatpush2.bf16.msra.mxu0 0
        %6853 = vmatprep.subr.bf16.mxu0 0
        %6854 = vmatpush2.bf16.msra.mxu0 0
        %6855 = vmatprep.mubr.bf16.mxu0 0
        %6856 = vmatmul.mubr.bf16.gmra.mxu0 %v5986
        %v6857 = vpop.f32.mrf.mxu0
        %v6858 = vadd.f32 0.0, %v6857
        %v6859 = vpop.f32.mrf.mxu0
        %v6860 = vpop.f32.mrf.mxu0
        %v6861 = vadd.f32 0.0, %v6860
        %v6862 = vpop.f32.mrf.mxu0
        %6863 = vmatprep.mubr.bf16.mxu0 0
        %6864 = vmatmul.mubr.bf16.gmra.mxu0 %v5989
        %v6865 = vpop.f32.mrf.mxu0
        %v6866 = vadd.f32 0.0, %v6865
        %v6867 = vpop.f32.mrf.mxu0
        %v6868 = vpop.f32.mrf.mxu0
        %v6869 = vadd.f32 0.0, %v6868
        %v6870 = vpop.f32.mrf.mxu0
        %6871 = vmatprep.mubr.bf16.mxu0 0
        %6872 = vmatmul.mubr.bf16.gmra.mxu0 %v5992
        %v6873 = vpop.f32.mrf.mxu0
        %v6874 = vadd.f32 0.0, %v6873
        %v6875 = vpop.f32.mrf.mxu0
        %v6876 = vpop.f32.mrf.mxu0
        %v6877 = vadd.f32 0.0, %v6876
        %v6878 = vpop.f32.mrf.mxu0
        %6879 = vmatprep.mubr.bf16.mxu0 0
        %6880 = vmatmul.mubr.bf16.gmra.mxu0 %v5995
        %v6881 = vpop.f32.mrf.mxu0
        %v6882 = vadd.f32 0.0, %v6881
        %v6883 = vpop.f32.mrf.mxu0
        %v6884 = vpop.f32.mrf.mxu0
        %v6885 = vadd.f32 0.0, %v6884
        %v6886 = vpop.f32.mrf.mxu0
        %6887 = vdwg.mxu0
        %v6888 = vadd.f32 %v6799, %v6858
        %v6889 = vadd.f32 %v6800, %v6861
        %v6890 = vadd.f32 %v6801, %v6866
        %v6891 = vadd.f32 %v6802, %v6869
        %v6892 = vadd.f32 %v6803, %v6874
        %v6893 = vadd.f32 %v6804, %v6877
        %v6894 = vadd.f32 %v6805, %v6882
        %v6895 = vadd.f32 %v6806, %v6885
        %v6896 = vld [vmem:[%s5962] sm:$0xf]
        %v6897 = vld [vmem:[%s5962 + $0x4] sm:$0xf]
        %v6898 = vld [vmem:[%s5962 + $0x8] sm:$0xf]
        %v6899 = vld [vmem:[%s5962 + $0xc] sm:$0xf]
        %v6904 = vunpack.c.l.b16 %v6896
        %v6905 = vunpack.c.l.b16 %v6897
        %v6906 = vunpack.c.l.b16 %v6898
        %v6907 = vunpack.c.l.b16 %v6899
        %v6908 = vpack.c.b16 %v6905, %v6904
        %v6909 = vpack.c.b16 %v6907, %v6906
        %6912 = vmatprep.subr.bf16.mxu0 0
        %6913 = vmatpush1.bf16.msra.mxu0 0
        %6914 = vmatprep.subr.bf16.mxu0 0
        %6915 = vmatpush1.bf16.msra.mxu0 0
        %6916 = vmatprep.subr.bf16.mxu0 0
        %6917 = vmatpush1.bf16.msra.mxu0 0
        %6918 = vmatprep.subr.bf16.mxu0 0
        %6919 = vmatpush1.bf16.msra.mxu0 0
        %6920 = vmatprep.subr.bf16.mxu0 0
        %6921 = vmatpush1.bf16.msra.mxu0 0
        %6922 = vmatprep.subr.bf16.mxu0 0
        %6923 = vmatpush1.bf16.msra.mxu0 0
        %6924 = vmatprep.subr.bf16.mxu0 0
        %6925 = vmatpush1.bf16.msra.mxu0 %v6909
        %6926 = vmatprep.subr.bf16.mxu0 0
        %6927 = vmatpush1.bf16.msra.mxu0 %v6908
        %6928 = vmatprep.subr.bf16.mxu0 0
        %6929 = vmatpush2.bf16.msra.mxu0 0
        %6930 = vmatprep.subr.bf16.mxu0 0
        %6931 = vmatpush2.bf16.msra.mxu0 0
        %6932 = vmatprep.subr.bf16.mxu0 0
        %6933 = vmatpush2.bf16.msra.mxu0 0
        %6934 = vmatprep.subr.bf16.mxu0 0
        %6935 = vmatpush2.bf16.msra.mxu0 0
        %6936 = vmatprep.subr.bf16.mxu0 0
        %6937 = vmatpush2.bf16.msra.mxu0 0
        %6938 = vmatprep.subr.bf16.mxu0 0
        %6939 = vmatpush2.bf16.msra.mxu0 0
        %6940 = vmatprep.subr.bf16.mxu0 0
        %6941 = vmatpush2.bf16.msra.mxu0 0
        %6942 = vmatprep.subr.bf16.mxu0 0
        %6943 = vmatpush2.bf16.msra.mxu0 0
        %6944 = vmatprep.mubr.bf16.mxu0 0
        %6945 = vmatmul.mubr.bf16.gmra.mxu0 %v6093
        %v6946 = vpop.f32.mrf.mxu0
        %v6947 = vadd.f32 0.0, %v6946
        %v6948 = vpop.f32.mrf.mxu0
        %v6949 = vpop.f32.mrf.mxu0
        %v6950 = vadd.f32 0.0, %v6949
        %v6951 = vpop.f32.mrf.mxu0
        %6952 = vmatprep.mubr.bf16.mxu0 0
        %6953 = vmatmul.mubr.bf16.gmra.mxu0 %v6096
        %v6954 = vpop.f32.mrf.mxu0
        %v6955 = vadd.f32 0.0, %v6954
        %v6956 = vpop.f32.mrf.mxu0
        %v6957 = vpop.f32.mrf.mxu0
        %v6958 = vadd.f32 0.0, %v6957
        %v6959 = vpop.f32.mrf.mxu0
        %6960 = vmatprep.mubr.bf16.mxu0 0
        %6961 = vmatmul.mubr.bf16.gmra.mxu0 %v6099
        %v6962 = vpop.f32.mrf.mxu0
        %v6963 = vadd.f32 0.0, %v6962
        %v6964 = vpop.f32.mrf.mxu0
        %v6965 = vpop.f32.mrf.mxu0
        %v6966 = vadd.f32 0.0, %v6965
        %v6967 = vpop.f32.mrf.mxu0
        %6968 = vmatprep.mubr.bf16.mxu0 0
        %6969 = vmatmul.mubr.bf16.gmra.mxu0 %v6102
        %v6970 = vpop.f32.mrf.mxu0
        %v6971 = vadd.f32 0.0, %v6970
        %v6972 = vpop.f32.mrf.mxu0
        %v6973 = vpop.f32.mrf.mxu0
        %v6974 = vadd.f32 0.0, %v6973
        %v6975 = vpop.f32.mrf.mxu0
        %6976 = vdwg.mxu0
        %v6977 = vadd.f32 %v6888, %v6947
        %v6978 = vadd.f32 %v6889, %v6950
        %v6979 = vadd.f32 %v6890, %v6955
        %v6980 = vadd.f32 %v6891, %v6958
        %v6981 = vadd.f32 %v6892, %v6963
        %v6982 = vadd.f32 %v6893, %v6966
        %v6983 = vadd.f32 %v6894, %v6971
        %v6984 = vadd.f32 %v6895, %v6974
        %v6985 = vld [vmem:[%s6070] sm:$0xf]
        %v6986 = vld [vmem:[%s6070 + $0x4] sm:$0xf]
        %v6987 = vld [vmem:[%s6070 + $0x8] sm:$0xf]
        %v6988 = vld [vmem:[%s6070 + $0xc] sm:$0xf]
        %v6989 = vunpack.c.l.b16 %v4902
        %v6990 = vpack.c.b16 %v6409, %v6408
        %v6991 = vpack.c.b16 %v6411, %v6410
        %v6992 = vpack.c.b16 %v6413, %v6412
        %v6993 = vpack.c.b16 %v6989, %v6414
        %v6998 = vunpack.c.l.b16 %v6985
        %v6999 = vunpack.c.l.b16 %v6986
        %v7000 = vunpack.c.l.b16 %v6987
        %v7001 = vunpack.c.l.b16 %v6988
        %v7002 = vpack.c.b16 %v6999, %v6998
        %v7003 = vpack.c.b16 %v7001, %v7000
        %v7007 = vsel %vm426, %v6990, 0
        %v7010 = vsel %vm426, %v6991, 0
        %v7013 = vsel %vm426, %v6992, 0
        %v7016 = vsel %vm426, %v6993, 0
        %7018 = vmatprep.subr.bf16.mxu0 0
        %7019 = vmatpush1.bf16.msra.mxu0 0
        %7020 = vmatprep.subr.bf16.mxu0 0
        %7021 = vmatpush1.bf16.msra.mxu0 0
        %7022 = vmatprep.subr.bf16.mxu0 0
        %7023 = vmatpush1.bf16.msra.mxu0 0
        %7024 = vmatprep.subr.bf16.mxu0 0
        %7025 = vmatpush1.bf16.msra.mxu0 0
        %7026 = vmatprep.subr.bf16.mxu0 0
        %7027 = vmatpush1.bf16.msra.mxu0 0
        %7028 = vmatprep.subr.bf16.mxu0 0
        %7029 = vmatpush1.bf16.msra.mxu0 0
        %7030 = vmatprep.subr.bf16.mxu0 0
        %7031 = vmatpush1.bf16.msra.mxu0 %v7003
        %7032 = vmatprep.subr.bf16.mxu0 0
        %7033 = vmatpush1.bf16.msra.mxu0 %v7002
        %7034 = vmatprep.subr.bf16.mxu0 0
        %7035 = vmatpush2.bf16.msra.mxu0 0
        %7036 = vmatprep.subr.bf16.mxu0 0
        %7037 = vmatpush2.bf16.msra.mxu0 0
        %7038 = vmatprep.subr.bf16.mxu0 0
        %7039 = vmatpush2.bf16.msra.mxu0 0
        %7040 = vmatprep.subr.bf16.mxu0 0
        %7041 = vmatpush2.bf16.msra.mxu0 0
        %7042 = vmatprep.subr.bf16.mxu0 0
        %7043 = vmatpush2.bf16.msra.mxu0 0
        %7044 = vmatprep.subr.bf16.mxu0 0
        %7045 = vmatpush2.bf16.msra.mxu0 0
        %7046 = vmatprep.subr.bf16.mxu0 0
        %7047 = vmatpush2.bf16.msra.mxu0 0
        %7048 = vmatprep.subr.bf16.mxu0 0
        %7049 = vmatpush2.bf16.msra.mxu0 0
        %7050 = vmatprep.mubr.bf16.mxu0 0
        %7051 = vmatmul.mubr.bf16.gmra.mxu0 %v7007
        %v7052 = vpop.f32.mrf.mxu0
        %v7053 = vadd.f32 0.0, %v7052
        %v7054 = vpop.f32.mrf.mxu0
        %v7055 = vpop.f32.mrf.mxu0
        %v7056 = vadd.f32 0.0, %v7055
        %v7057 = vpop.f32.mrf.mxu0
        %7058 = vmatprep.mubr.bf16.mxu0 0
        %7059 = vmatmul.mubr.bf16.gmra.mxu0 %v7010
        %v7060 = vpop.f32.mrf.mxu0
        %v7061 = vadd.f32 0.0, %v7060
        %v7062 = vpop.f32.mrf.mxu0
        %v7063 = vpop.f32.mrf.mxu0
        %v7064 = vadd.f32 0.0, %v7063
        %v7065 = vpop.f32.mrf.mxu0
        %7066 = vmatprep.mubr.bf16.mxu0 0
        %7067 = vmatmul.mubr.bf16.gmra.mxu0 %v7013
        %v7068 = vpop.f32.mrf.mxu0
        %v7069 = vadd.f32 0.0, %v7068
        %v7070 = vpop.f32.mrf.mxu0
        %v7071 = vpop.f32.mrf.mxu0
        %v7072 = vadd.f32 0.0, %v7071
        %v7073 = vpop.f32.mrf.mxu0
        %7074 = vmatprep.mubr.bf16.mxu0 0
        %7075 = vmatmul.mubr.bf16.gmra.mxu0 %v7016
        %v7076 = vpop.f32.mrf.mxu0
        %v7077 = vadd.f32 0.0, %v7076
        %v7078 = vpop.f32.mrf.mxu0
        %v7079 = vpop.f32.mrf.mxu0
        %v7080 = vadd.f32 0.0, %v7079
        %v7081 = vpop.f32.mrf.mxu0
        %7082 = vdwg.mxu0
        %v7083 = vadd.f32 %v6977, %v7053
        %v7084 = vadd.f32 %v6978, %v7056
        %v7085 = vadd.f32 %v6979, %v7061
        %v7086 = vadd.f32 %v6980, %v7064
        %v7087 = vadd.f32 %v6981, %v7069
        %v7088 = vadd.f32 %v6982, %v7072
        %v7089 = vadd.f32 %v6983, %v7077
        %v7090 = vadd.f32 %v6984, %v7080
        %v7091 = vld [vmem:[%s4] sm:$0x1]
        %v7093 = vlaneseq
        %v7094 = vshrl.u32 %v7093, 7
        %v7095 = vsub.s32 0, %v7094
        %v7096 = vrot.slane %v7091, %v7095
        %v7098 = vadd.f32 %v7083, %v7096
        %v7099 = vadd.f32 %v7084, %v7096
        %v7100 = vadd.f32 %v7085, %v7096
        %v7101 = vadd.f32 %v7086, %v7096
        %v7102 = vadd.f32 %v7087, %v7096
        %v7103 = vadd.f32 %v7088, %v7096
        %v7104 = vadd.f32 %v7089, %v7096
        %v7105 = vadd.f32 %v7090, %v7096
        %v7106 = vmax.f32 %v7098, 0.0
        %v7107 = vmax.f32 %v7099, 0.0
        %v7108 = vmax.f32 %v7100, 0.0
        %v7109 = vmax.f32 %v7101, 0.0
        %v7110 = vmax.f32 %v7102, 0.0
        %v7111 = vmax.f32 %v7103, 0.0
        %v7112 = vmax.f32 %v7104, 0.0
        %v7113 = vmax.f32 %v7105, 0.0
        %7122 = vrot.lane.b32.xlu0 %v7106, 16
        %v7123 = vpop.permute.xlu0 %7122
        %7124 = vrot.lane.b32.xlu0 %v7107, 16
        %v7125 = vpop.permute.xlu0 %7124
        %7126 = vrot.lane.b32.xlu0 %v7108, 16
        %v7127 = vpop.permute.xlu0 %7126
        %7128 = vrot.lane.b32.xlu0 %v7109, 16
        %v7129 = vpop.permute.xlu0 %7128
        %7130 = vrot.lane.b32.xlu0 %v7110, 16
        %v7131 = vpop.permute.xlu0 %7130
        %7132 = vrot.lane.b32.xlu0 %v7111, 16
        %v7133 = vpop.permute.xlu0 %7132
        %7134 = vrot.lane.b32.xlu0 %v7112, 16
        %v7135 = vpop.permute.xlu0 %7134
        %7136 = vrot.lane.b32.xlu0 %v7113, 16
        %v7137 = vpop.permute.xlu0 %7136
        %7146 = vst.msk [vmem:[%s2526 + $0x1] sm:$0xff] %vm6232, %v7123
        %7147 = vst.msk [vmem:[%s2526 + $0x11] sm:$0xff] %vm6232, %v7125
        %7148 = vst.msk [vmem:[%s2526 + $0x21] sm:$0xff] %vm6232, %v7127
        %7149 = vst.msk [vmem:[%s2526 + $0x31] sm:$0xff] %vm6232, %v7129
        %7150 = vst.msk [vmem:[%s2526 + $0x41] sm:$0xff] %vm6232, %v7131
        %7151 = vst.msk [vmem:[%s2526 + $0x51] sm:$0xff] %vm6232, %v7133
        %7152 = vst.msk [vmem:[%s2526 + $0x61] sm:$0xff] %vm6232, %v7135
        %7153 = vst.msk [vmem:[%s2526 + $0x71] sm:$0xff] %vm6232, %v7137
        %v7154 = vld [vmem:[%s3] sm:$0xf]
        %v7155 = vld [vmem:[%s3 + $0x4] sm:$0xf]
        %v7156 = vld [vmem:[%s3 + $0x8] sm:$0xf]
        %v7157 = vld [vmem:[%s3 + $0xc] sm:$0xf]
        %v7158 = vld [vmem:[%s5159] sm:$0xf]
        %v7159 = vld [vmem:[%s5159 + $0x4] sm:$0xf]
        %v7160 = vld [vmem:[%s5159 + $0x8] sm:$0xf]
        %v7161 = vld [vmem:[%s5159 + $0xc] sm:$0xf]
        %v7166 = vunpack.c.l.b16 %v7158
        %v7167 = vunpack.c.l.b16 %v7159
        %v7168 = vunpack.c.l.b16 %v7160
        %v7169 = vunpack.c.l.b16 %v7161
        %v7170 = vpack.c.b16 %v7167, %v7166
        %v7171 = vpack.c.b16 %v7169, %v7168
        %7174 = vmatprep.subr.bf16.mxu0 0
        %7175 = vmatpush1.bf16.msra.mxu0 0
        %7176 = vmatprep.subr.bf16.mxu0 0
        %7177 = vmatpush1.bf16.msra.mxu0 0
        %7178 = vmatprep.subr.bf16.mxu0 0
        %7179 = vmatpush1.bf16.msra.mxu0 0
        %7180 = vmatprep.subr.bf16.mxu0 0
        %7181 = vmatpush1.bf16.msra.mxu0 0
        %7182 = vmatprep.subr.bf16.mxu0 0
        %7183 = vmatpush1.bf16.msra.mxu0 0
        %7184 = vmatprep.subr.bf16.mxu0 0
        %7185 = vmatpush1.bf16.msra.mxu0 0
        %7186 = vmatprep.subr.bf16.mxu0 0
        %7187 = vmatpush1.bf16.msra.mxu0 %v7171
        %7188 = vmatprep.subr.bf16.mxu0 0
        %7189 = vmatpush1.bf16.msra.mxu0 %v7170
        %7190 = vmatprep.subr.bf16.mxu0 0
        %7191 = vmatpush2.bf16.msra.mxu0 0
        %7192 = vmatprep.subr.bf16.mxu0 0
        %7193 = vmatpush2.bf16.msra.mxu0 0
        %7194 = vmatprep.subr.bf16.mxu0 0
        %7195 = vmatpush2.bf16.msra.mxu0 0
        %7196 = vmatprep.subr.bf16.mxu0 0
        %7197 = vmatpush2.bf16.msra.mxu0 0
        %7198 = vmatprep.subr.bf16.mxu0 0
        %7199 = vmatpush2.bf16.msra.mxu0 0
        %7200 = vmatprep.subr.bf16.mxu0 0
        %7201 = vmatpush2.bf16.msra.mxu0 0
        %7202 = vmatprep.subr.bf16.mxu0 0
        %7203 = vmatpush2.bf16.msra.mxu0 0
        %7204 = vmatprep.subr.bf16.mxu0 0
        %7205 = vmatpush2.bf16.msra.mxu0 0
        %7206 = vmatprep.mubr.bf16.mxu0 0
        %7207 = vmatmul.mubr.bf16.gmra.mxu0 %v5656
        %v7208 = vpop.f32.mrf.mxu0
        %v7209 = vadd.f32 0.0, %v7208
        %v7210 = vpop.f32.mrf.mxu0
        %v7211 = vpop.f32.mrf.mxu0
        %v7212 = vadd.f32 0.0, %v7211
        %v7213 = vpop.f32.mrf.mxu0
        %7214 = vmatprep.mubr.bf16.mxu0 0
        %7215 = vmatmul.mubr.bf16.gmra.mxu0 %v5659
        %v7216 = vpop.f32.mrf.mxu0
        %v7217 = vadd.f32 0.0, %v7216
        %v7218 = vpop.f32.mrf.mxu0
        %v7219 = vpop.f32.mrf.mxu0
        %v7220 = vadd.f32 0.0, %v7219
        %v7221 = vpop.f32.mrf.mxu0
        %7222 = vmatprep.mubr.bf16.mxu0 0
        %7223 = vmatmul.mubr.bf16.gmra.mxu0 %v5662
        %v7224 = vpop.f32.mrf.mxu0
        %v7225 = vadd.f32 0.0, %v7224
        %v7226 = vpop.f32.mrf.mxu0
        %v7227 = vpop.f32.mrf.mxu0
        %v7228 = vadd.f32 0.0, %v7227
        %v7229 = vpop.f32.mrf.mxu0
        %7230 = vmatprep.mubr.bf16.mxu0 0
        %7231 = vmatmul.mubr.bf16.gmra.mxu0 %v5665
        %v7232 = vpop.f32.mrf.mxu0
        %v7233 = vadd.f32 0.0, %v7232
        %v7234 = vpop.f32.mrf.mxu0
        %v7235 = vpop.f32.mrf.mxu0
        %v7236 = vadd.f32 0.0, %v7235
        %v7237 = vpop.f32.mrf.mxu0
        %7238 = vdwg.mxu0
        %v7243 = vunpack.c.l.b16 %v7154
        %v7244 = vunpack.c.l.b16 %v7155
        %v7245 = vunpack.c.l.b16 %v7156
        %v7246 = vunpack.c.l.b16 %v7157
        %v7247 = vpack.c.b16 %v7244, %v7243
        %v7248 = vpack.c.b16 %v7246, %v7245
        %7251 = vmatprep.subr.bf16.mxu0 0
        %7252 = vmatpush1.bf16.msra.mxu0 0
        %7253 = vmatprep.subr.bf16.mxu0 0
        %7254 = vmatpush1.bf16.msra.mxu0 0
        %7255 = vmatprep.subr.bf16.mxu0 0
        %7256 = vmatpush1.bf16.msra.mxu0 0
        %7257 = vmatprep.subr.bf16.mxu0 0
        %7258 = vmatpush1.bf16.msra.mxu0 0
        %7259 = vmatprep.subr.bf16.mxu0 0
        %7260 = vmatpush1.bf16.msra.mxu0 0
        %7261 = vmatprep.subr.bf16.mxu0 0
        %7262 = vmatpush1.bf16.msra.mxu0 0
        %7263 = vmatprep.subr.bf16.mxu0 0
        %7264 = vmatpush1.bf16.msra.mxu0 %v7248
        %7265 = vmatprep.subr.bf16.mxu0 0
        %7266 = vmatpush1.bf16.msra.mxu0 %v7247
        %7267 = vmatprep.subr.bf16.mxu0 0
        %7268 = vmatpush2.bf16.msra.mxu0 0
        %7269 = vmatprep.subr.bf16.mxu0 0
        %7270 = vmatpush2.bf16.msra.mxu0 0
        %7271 = vmatprep.subr.bf16.mxu0 0
        %7272 = vmatpush2.bf16.msra.mxu0 0
        %7273 = vmatprep.subr.bf16.mxu0 0
        %7274 = vmatpush2.bf16.msra.mxu0 0
        %7275 = vmatprep.subr.bf16.mxu0 0
        %7276 = vmatpush2.bf16.msra.mxu0 0
        %7277 = vmatprep.subr.bf16.mxu0 0
        %7278 = vmatpush2.bf16.msra.mxu0 0
        %7279 = vmatprep.subr.bf16.mxu0 0
        %7280 = vmatpush2.bf16.msra.mxu0 0
        %7281 = vmatprep.subr.bf16.mxu0 0
        %7282 = vmatpush2.bf16.msra.mxu0 0
        %7283 = vmatprep.mubr.bf16.mxu0 0
        %7284 = vmatmul.mubr.bf16.gmra.mxu0 %v5534
        %v7285 = vpop.f32.mrf.mxu0
        %v7286 = vadd.f32 %v7209, %v7285
        %v7287 = vpop.f32.mrf.mxu0
        %v7288 = vpop.f32.mrf.mxu0
        %v7289 = vadd.f32 %v7212, %v7288
        %v7290 = vpop.f32.mrf.mxu0
        %7291 = vmatprep.mubr.bf16.mxu0 0
        %7292 = vmatmul.mubr.bf16.gmra.mxu0 %v5537
        %v7293 = vpop.f32.mrf.mxu0
        %v7294 = vadd.f32 %v7217, %v7293
        %v7295 = vpop.f32.mrf.mxu0
        %v7296 = vpop.f32.mrf.mxu0
        %v7297 = vadd.f32 %v7220, %v7296
        %v7298 = vpop.f32.mrf.mxu0
        %7299 = vmatprep.mubr.bf16.mxu0 0
        %7300 = vmatmul.mubr.bf16.gmra.mxu0 %v5540
        %v7301 = vpop.f32.mrf.mxu0
        %v7302 = vadd.f32 %v7225, %v7301
        %v7303 = vpop.f32.mrf.mxu0
        %v7304 = vpop.f32.mrf.mxu0
        %v7305 = vadd.f32 %v7228, %v7304
        %v7306 = vpop.f32.mrf.mxu0
        %7307 = vmatprep.mubr.bf16.mxu0 0
        %7308 = vmatmul.mubr.bf16.gmra.mxu0 %v5543
        %v7309 = vpop.f32.mrf.mxu0
        %v7310 = vadd.f32 %v7233, %v7309
        %v7311 = vpop.f32.mrf.mxu0
        %v7312 = vpop.f32.mrf.mxu0
        %v7313 = vadd.f32 %v7236, %v7312
        %v7314 = vpop.f32.mrf.mxu0
        %7315 = vdwg.mxu0
        %v7316 = vld [vmem:[%s5382] sm:$0xf]
        %v7317 = vld [vmem:[%s5382 + $0x4] sm:$0xf]
        %v7318 = vld [vmem:[%s5382 + $0x8] sm:$0xf]
        %v7319 = vld [vmem:[%s5382 + $0xc] sm:$0xf]
        %v7324 = vunpack.c.l.b16 %v7316
        %v7325 = vunpack.c.l.b16 %v7317
        %v7326 = vunpack.c.l.b16 %v7318
        %v7327 = vunpack.c.l.b16 %v7319
        %v7328 = vpack.c.b16 %v7325, %v7324
        %v7329 = vpack.c.b16 %v7327, %v7326
        %7332 = vmatprep.subr.bf16.mxu0 0
        %7333 = vmatpush1.bf16.msra.mxu0 0
        %7334 = vmatprep.subr.bf16.mxu0 0
        %7335 = vmatpush1.bf16.msra.mxu0 0
        %7336 = vmatprep.subr.bf16.mxu0 0
        %7337 = vmatpush1.bf16.msra.mxu0 0
        %7338 = vmatprep.subr.bf16.mxu0 0
        %7339 = vmatpush1.bf16.msra.mxu0 0
        %7340 = vmatprep.subr.bf16.mxu0 0
        %7341 = vmatpush1.bf16.msra.mxu0 0
        %7342 = vmatprep.subr.bf16.mxu0 0
        %7343 = vmatpush1.bf16.msra.mxu0 0
        %7344 = vmatprep.subr.bf16.mxu0 0
        %7345 = vmatpush1.bf16.msra.mxu0 %v7329
        %7346 = vmatprep.subr.bf16.mxu0 0
        %7347 = vmatpush1.bf16.msra.mxu0 %v7328
        %7348 = vmatprep.subr.bf16.mxu0 0
        %7349 = vmatpush2.bf16.msra.mxu0 0
        %7350 = vmatprep.subr.bf16.mxu0 0
        %7351 = vmatpush2.bf16.msra.mxu0 0
        %7352 = vmatprep.subr.bf16.mxu0 0
        %7353 = vmatpush2.bf16.msra.mxu0 0
        %7354 = vmatprep.subr.bf16.mxu0 0
        %7355 = vmatpush2.bf16.msra.mxu0 0
        %7356 = vmatprep.subr.bf16.mxu0 0
        %7357 = vmatpush2.bf16.msra.mxu0 0
        %7358 = vmatprep.subr.bf16.mxu0 0
        %7359 = vmatpush2.bf16.msra.mxu0 0
        %7360 = vmatprep.subr.bf16.mxu0 0
        %7361 = vmatpush2.bf16.msra.mxu0 0
        %7362 = vmatprep.subr.bf16.mxu0 0
        %7363 = vmatpush2.bf16.msra.mxu0 0
        %7364 = vmatprep.mubr.bf16.mxu0 0
        %7365 = vmatmul.mubr.bf16.gmra.mxu0 %v5770
        %v7366 = vpop.f32.mrf.mxu0
        %v7367 = vadd.f32 0.0, %v7366
        %v7368 = vpop.f32.mrf.mxu0
        %v7369 = vpop.f32.mrf.mxu0
        %v7370 = vadd.f32 0.0, %v7369
        %v7371 = vpop.f32.mrf.mxu0
        %7372 = vmatprep.mubr.bf16.mxu0 0
        %7373 = vmatmul.mubr.bf16.gmra.mxu0 %v5773
        %v7374 = vpop.f32.mrf.mxu0
        %v7375 = vadd.f32 0.0, %v7374
        %v7376 = vpop.f32.mrf.mxu0
        %v7377 = vpop.f32.mrf.mxu0
        %v7378 = vadd.f32 0.0, %v7377
        %v7379 = vpop.f32.mrf.mxu0
        %7380 = vmatprep.mubr.bf16.mxu0 0
        %7381 = vmatmul.mubr.bf16.gmra.mxu0 %v5776
        %v7382 = vpop.f32.mrf.mxu0
        %v7383 = vadd.f32 0.0, %v7382
        %v7384 = vpop.f32.mrf.mxu0
        %v7385 = vpop.f32.mrf.mxu0
        %v7386 = vadd.f32 0.0, %v7385
        %v7387 = vpop.f32.mrf.mxu0
        %7388 = vmatprep.mubr.bf16.mxu0 0
        %7389 = vmatmul.mubr.bf16.gmra.mxu0 %v5779
        %v7390 = vpop.f32.mrf.mxu0
        %v7391 = vadd.f32 0.0, %v7390
        %v7392 = vpop.f32.mrf.mxu0
        %v7393 = vpop.f32.mrf.mxu0
        %v7394 = vadd.f32 0.0, %v7393
        %v7395 = vpop.f32.mrf.mxu0
        %7396 = vdwg.mxu0
        %v7397 = vadd.f32 %v7286, %v7367
        %v7398 = vadd.f32 %v7289, %v7370
        %v7399 = vadd.f32 %v7294, %v7375
        %v7400 = vadd.f32 %v7297, %v7378
        %v7401 = vadd.f32 %v7302, %v7383
        %v7402 = vadd.f32 %v7305, %v7386
        %v7403 = vadd.f32 %v7310, %v7391
        %v7404 = vadd.f32 %v7313, %v7394
        %v7405 = vld [vmem:[%s5496] sm:$0xf]
        %v7406 = vld [vmem:[%s5496 + $0x4] sm:$0xf]
        %v7407 = vld [vmem:[%s5496 + $0x8] sm:$0xf]
        %v7408 = vld [vmem:[%s5496 + $0xc] sm:$0xf]
        %v7413 = vunpack.c.l.b16 %v7405
        %v7414 = vunpack.c.l.b16 %v7406
        %v7415 = vunpack.c.l.b16 %v7407
        %v7416 = vunpack.c.l.b16 %v7408
        %v7417 = vpack.c.b16 %v7414, %v7413
        %v7418 = vpack.c.b16 %v7416, %v7415
        %7421 = vmatprep.subr.bf16.mxu0 0
        %7422 = vmatpush1.bf16.msra.mxu0 0
        %7423 = vmatprep.subr.bf16.mxu0 0
        %7424 = vmatpush1.bf16.msra.mxu0 0
        %7425 = vmatprep.subr.bf16.mxu0 0
        %7426 = vmatpush1.bf16.msra.mxu0 0
        %7427 = vmatprep.subr.bf16.mxu0 0
        %7428 = vmatpush1.bf16.msra.mxu0 0
        %7429 = vmatprep.subr.bf16.mxu0 0
        %7430 = vmatpush1.bf16.msra.mxu0 0
        %7431 = vmatprep.subr.bf16.mxu0 0
        %7432 = vmatpush1.bf16.msra.mxu0 0
        %7433 = vmatprep.subr.bf16.mxu0 0
        %7434 = vmatpush1.bf16.msra.mxu0 %v7418
        %7435 = vmatprep.subr.bf16.mxu0 0
        %7436 = vmatpush1.bf16.msra.mxu0 %v7417
        %7437 = vmatprep.subr.bf16.mxu0 0
        %7438 = vmatpush2.bf16.msra.mxu0 0
        %7439 = vmatprep.subr.bf16.mxu0 0
        %7440 = vmatpush2.bf16.msra.mxu0 0
        %7441 = vmatprep.subr.bf16.mxu0 0
        %7442 = vmatpush2.bf16.msra.mxu0 0
        %7443 = vmatprep.subr.bf16.mxu0 0
        %7444 = vmatpush2.bf16.msra.mxu0 0
        %7445 = vmatprep.subr.bf16.mxu0 0
        %7446 = vmatpush2.bf16.msra.mxu0 0
        %7447 = vmatprep.subr.bf16.mxu0 0
        %7448 = vmatpush2.bf16.msra.mxu0 0
        %7449 = vmatprep.subr.bf16.mxu0 0
        %7450 = vmatpush2.bf16.msra.mxu0 0
        %7451 = vmatprep.subr.bf16.mxu0 0
        %7452 = vmatpush2.bf16.msra.mxu0 0
        %7453 = vmatprep.mubr.bf16.mxu0 0
        %7454 = vmatmul.mubr.bf16.gmra.mxu0 %v5878
        %v7455 = vpop.f32.mrf.mxu0
        %v7456 = vadd.f32 0.0, %v7455
        %v7457 = vpop.f32.mrf.mxu0
        %v7458 = vpop.f32.mrf.mxu0
        %v7459 = vadd.f32 0.0, %v7458
        %v7460 = vpop.f32.mrf.mxu0
        %7461 = vmatprep.mubr.bf16.mxu0 0
        %7462 = vmatmul.mubr.bf16.gmra.mxu0 %v5881
        %v7463 = vpop.f32.mrf.mxu0
        %v7464 = vadd.f32 0.0, %v7463
        %v7465 = vpop.f32.mrf.mxu0
        %v7466 = vpop.f32.mrf.mxu0
        %v7467 = vadd.f32 0.0, %v7466
        %v7468 = vpop.f32.mrf.mxu0
        %7469 = vmatprep.mubr.bf16.mxu0 0
        %7470 = vmatmul.mubr.bf16.gmra.mxu0 %v5884
        %v7471 = vpop.f32.mrf.mxu0
        %v7472 = vadd.f32 0.0, %v7471
        %v7473 = vpop.f32.mrf.mxu0
        %v7474 = vpop.f32.mrf.mxu0
        %v7475 = vadd.f32 0.0, %v7474
        %v7476 = vpop.f32.mrf.mxu0
        %7477 = vmatprep.mubr.bf16.mxu0 0
        %7478 = vmatmul.mubr.bf16.gmra.mxu0 %v5887
        %v7479 = vpop.f32.mrf.mxu0
        %v7480 = vadd.f32 0.0, %v7479
        %v7481 = vpop.f32.mrf.mxu0
        %v7482 = vpop.f32.mrf.mxu0
        %v7483 = vadd.f32 0.0, %v7482
        %v7484 = vpop.f32.mrf.mxu0
        %7485 = vdwg.mxu0
        %v7486 = vadd.f32 %v7397, %v7456
        %v7487 = vadd.f32 %v7398, %v7459
        %v7488 = vadd.f32 %v7399, %v7464
        %v7489 = vadd.f32 %v7400, %v7467
        %v7490 = vadd.f32 %v7401, %v7472
        %v7491 = vadd.f32 %v7402, %v7475
        %v7492 = vadd.f32 %v7403, %v7480
        %v7493 = vadd.f32 %v7404, %v7483
        %v7494 = vld [vmem:[%s5618] sm:$0xf]
        %v7495 = vld [vmem:[%s5618 + $0x4] sm:$0xf]
        %v7496 = vld [vmem:[%s5618 + $0x8] sm:$0xf]
        %v7497 = vld [vmem:[%s5618 + $0xc] sm:$0xf]
        %v7502 = vunpack.c.l.b16 %v7494
        %v7503 = vunpack.c.l.b16 %v7495
        %v7504 = vunpack.c.l.b16 %v7496
        %v7505 = vunpack.c.l.b16 %v7497
        %v7506 = vpack.c.b16 %v7503, %v7502
        %v7507 = vpack.c.b16 %v7505, %v7504
        %7510 = vmatprep.subr.bf16.mxu0 0
        %7511 = vmatpush1.bf16.msra.mxu0 0
        %7512 = vmatprep.subr.bf16.mxu0 0
        %7513 = vmatpush1.bf16.msra.mxu0 0
        %7514 = vmatprep.subr.bf16.mxu0 0
        %7515 = vmatpush1.bf16.msra.mxu0 0
        %7516 = vmatprep.subr.bf16.mxu0 0
        %7517 = vmatpush1.bf16.msra.mxu0 0
        %7518 = vmatprep.subr.bf16.mxu0 0
        %7519 = vmatpush1.bf16.msra.mxu0 0
        %7520 = vmatprep.subr.bf16.mxu0 0
        %7521 = vmatpush1.bf16.msra.mxu0 0
        %7522 = vmatprep.subr.bf16.mxu0 0
        %7523 = vmatpush1.bf16.msra.mxu0 %v7507
        %7524 = vmatprep.subr.bf16.mxu0 0
        %7525 = vmatpush1.bf16.msra.mxu0 %v7506
        %7526 = vmatprep.subr.bf16.mxu0 0
        %7527 = vmatpush2.bf16.msra.mxu0 0
        %7528 = vmatprep.subr.bf16.mxu0 0
        %7529 = vmatpush2.bf16.msra.mxu0 0
        %7530 = vmatprep.subr.bf16.mxu0 0
        %7531 = vmatpush2.bf16.msra.mxu0 0
        %7532 = vmatprep.subr.bf16.mxu0 0
        %7533 = vmatpush2.bf16.msra.mxu0 0
        %7534 = vmatprep.subr.bf16.mxu0 0
        %7535 = vmatpush2.bf16.msra.mxu0 0
        %7536 = vmatprep.subr.bf16.mxu0 0
        %7537 = vmatpush2.bf16.msra.mxu0 0
        %7538 = vmatprep.subr.bf16.mxu0 0
        %7539 = vmatpush2.bf16.msra.mxu0 0
        %7540 = vmatprep.subr.bf16.mxu0 0
        %7541 = vmatpush2.bf16.msra.mxu0 0
        %7542 = vmatprep.mubr.bf16.mxu0 0
        %7543 = vmatmul.mubr.bf16.gmra.mxu0 %v5986
        %v7544 = vpop.f32.mrf.mxu0
        %v7545 = vadd.f32 0.0, %v7544
        %v7546 = vpop.f32.mrf.mxu0
        %v7547 = vpop.f32.mrf.mxu0
        %v7548 = vadd.f32 0.0, %v7547
        %v7549 = vpop.f32.mrf.mxu0
        %7550 = vmatprep.mubr.bf16.mxu0 0
        %7551 = vmatmul.mubr.bf16.gmra.mxu0 %v5989
        %v7552 = vpop.f32.mrf.mxu0
        %v7553 = vadd.f32 0.0, %v7552
        %v7554 = vpop.f32.mrf.mxu0
        %v7555 = vpop.f32.mrf.mxu0
        %v7556 = vadd.f32 0.0, %v7555
        %v7557 = vpop.f32.mrf.mxu0
        %7558 = vmatprep.mubr.bf16.mxu0 0
        %7559 = vmatmul.mubr.bf16.gmra.mxu0 %v5992
        %v7560 = vpop.f32.mrf.mxu0
        %v7561 = vadd.f32 0.0, %v7560
        %v7562 = vpop.f32.mrf.mxu0
        %v7563 = vpop.f32.mrf.mxu0
        %v7564 = vadd.f32 0.0, %v7563
        %v7565 = vpop.f32.mrf.mxu0
        %7566 = vmatprep.mubr.bf16.mxu0 0
        %7567 = vmatmul.mubr.bf16.gmra.mxu0 %v5995
        %v7568 = vpop.f32.mrf.mxu0
        %v7569 = vadd.f32 0.0, %v7568
        %v7570 = vpop.f32.mrf.mxu0
        %v7571 = vpop.f32.mrf.mxu0
        %v7572 = vadd.f32 0.0, %v7571
        %v7573 = vpop.f32.mrf.mxu0
        %7574 = vdwg.mxu0
        %v7575 = vadd.f32 %v7486, %v7545
        %v7576 = vadd.f32 %v7487, %v7548
        %v7577 = vadd.f32 %v7488, %v7553
        %v7578 = vadd.f32 %v7489, %v7556
        %v7579 = vadd.f32 %v7490, %v7561
        %v7580 = vadd.f32 %v7491, %v7564
        %v7581 = vadd.f32 %v7492, %v7569
        %v7582 = vadd.f32 %v7493, %v7572
        %v7583 = vld [vmem:[%s5740] sm:$0xf]
        %v7584 = vld [vmem:[%s5740 + $0x4] sm:$0xf]
        %v7585 = vld [vmem:[%s5740 + $0x8] sm:$0xf]
        %v7586 = vld [vmem:[%s5740 + $0xc] sm:$0xf]
        %v7591 = vunpack.c.l.b16 %v7583
        %v7592 = vunpack.c.l.b16 %v7584
        %v7593 = vunpack.c.l.b16 %v7585
        %v7594 = vunpack.c.l.b16 %v7586
        %v7595 = vpack.c.b16 %v7592, %v7591
        %v7596 = vpack.c.b16 %v7594, %v7593
        %7599 = vmatprep.subr.bf16.mxu0 0
        %7600 = vmatpush1.bf16.msra.mxu0 0
        %7601 = vmatprep.subr.bf16.mxu0 0
        %7602 = vmatpush1.bf16.msra.mxu0 0
        %7603 = vmatprep.subr.bf16.mxu0 0
        %7604 = vmatpush1.bf16.msra.mxu0 0
        %7605 = vmatprep.subr.bf16.mxu0 0
        %7606 = vmatpush1.bf16.msra.mxu0 0
        %7607 = vmatprep.subr.bf16.mxu0 0
        %7608 = vmatpush1.bf16.msra.mxu0 0
        %7609 = vmatprep.subr.bf16.mxu0 0
        %7610 = vmatpush1.bf16.msra.mxu0 0
        %7611 = vmatprep.subr.bf16.mxu0 0
        %7612 = vmatpush1.bf16.msra.mxu0 %v7596
        %7613 = vmatprep.subr.bf16.mxu0 0
        %7614 = vmatpush1.bf16.msra.mxu0 %v7595
        %7615 = vmatprep.subr.bf16.mxu0 0
        %7616 = vmatpush2.bf16.msra.mxu0 0
        %7617 = vmatprep.subr.bf16.mxu0 0
        %7618 = vmatpush2.bf16.msra.mxu0 0
        %7619 = vmatprep.subr.bf16.mxu0 0
        %7620 = vmatpush2.bf16.msra.mxu0 0
        %7621 = vmatprep.subr.bf16.mxu0 0
        %7622 = vmatpush2.bf16.msra.mxu0 0
        %7623 = vmatprep.subr.bf16.mxu0 0
        %7624 = vmatpush2.bf16.msra.mxu0 0
        %7625 = vmatprep.subr.bf16.mxu0 0
        %7626 = vmatpush2.bf16.msra.mxu0 0
        %7627 = vmatprep.subr.bf16.mxu0 0
        %7628 = vmatpush2.bf16.msra.mxu0 0
        %7629 = vmatprep.subr.bf16.mxu0 0
        %7630 = vmatpush2.bf16.msra.mxu0 0
        %7631 = vmatprep.mubr.bf16.mxu0 0
        %7632 = vmatmul.mubr.bf16.gmra.mxu0 %v6093
        %v7633 = vpop.f32.mrf.mxu0
        %v7634 = vadd.f32 0.0, %v7633
        %v7635 = vpop.f32.mrf.mxu0
        %v7636 = vpop.f32.mrf.mxu0
        %v7637 = vadd.f32 0.0, %v7636
        %v7638 = vpop.f32.mrf.mxu0
        %7639 = vmatprep.mubr.bf16.mxu0 0
        %7640 = vmatmul.mubr.bf16.gmra.mxu0 %v6096
        %v7641 = vpop.f32.mrf.mxu0
        %v7642 = vadd.f32 0.0, %v7641
        %v7643 = vpop.f32.mrf.mxu0
        %v7644 = vpop.f32.mrf.mxu0
        %v7645 = vadd.f32 0.0, %v7644
        %v7646 = vpop.f32.mrf.mxu0
        %7647 = vmatprep.mubr.bf16.mxu0 0
        %7648 = vmatmul.mubr.bf16.gmra.mxu0 %v6099
        %v7649 = vpop.f32.mrf.mxu0
        %v7650 = vadd.f32 0.0, %v7649
        %v7651 = vpop.f32.mrf.mxu0
        %v7652 = vpop.f32.mrf.mxu0
        %v7653 = vadd.f32 0.0, %v7652
        %v7654 = vpop.f32.mrf.mxu0
        %7655 = vmatprep.mubr.bf16.mxu0 0
        %7656 = vmatmul.mubr.bf16.gmra.mxu0 %v6102
        %v7657 = vpop.f32.mrf.mxu0
        %v7658 = vadd.f32 0.0, %v7657
        %v7659 = vpop.f32.mrf.mxu0
        %v7660 = vpop.f32.mrf.mxu0
        %v7661 = vadd.f32 0.0, %v7660
        %v7662 = vpop.f32.mrf.mxu0
        %7663 = vdwg.mxu0
        %v7664 = vadd.f32 %v7575, %v7634
        %v7665 = vadd.f32 %v7576, %v7637
        %v7666 = vadd.f32 %v7577, %v7642
        %v7667 = vadd.f32 %v7578, %v7645
        %v7668 = vadd.f32 %v7579, %v7650
        %v7669 = vadd.f32 %v7580, %v7653
        %v7670 = vadd.f32 %v7581, %v7658
        %v7671 = vadd.f32 %v7582, %v7661
        %v7672 = vld [vmem:[%s5854] sm:$0xf]
        %v7673 = vld [vmem:[%s5854 + $0x4] sm:$0xf]
        %v7674 = vld [vmem:[%s5854 + $0x8] sm:$0xf]
        %v7675 = vld [vmem:[%s5854 + $0xc] sm:$0xf]
        %v7677 = vunpack.c.l.b16 %v4628
        %v7678 = vpack.c.b16 %v5511, %v5510
        %v7679 = vpack.c.b16 %v5513, %v5512
        %v7680 = vpack.c.b16 %v5515, %v5514
        %v7681 = vpack.c.b16 %v7677, %v5516
        %v7686 = vunpack.c.l.b16 %v7672
        %v7687 = vunpack.c.l.b16 %v7673
        %v7688 = vunpack.c.l.b16 %v7674
        %v7689 = vunpack.c.l.b16 %v7675
        %v7690 = vpack.c.b16 %v7687, %v7686
        %v7691 = vpack.c.b16 %v7689, %v7688
        %v7695 = vsel %vm426, %v7678, 0
        %v7698 = vsel %vm426, %v7679, 0
        %v7701 = vsel %vm426, %v7680, 0
        %v7704 = vsel %vm426, %v7681, 0
        %7706 = vmatprep.subr.bf16.mxu0 0
        %7707 = vmatpush1.bf16.msra.mxu0 0
        %7708 = vmatprep.subr.bf16.mxu0 0
        %7709 = vmatpush1.bf16.msra.mxu0 0
        %7710 = vmatprep.subr.bf16.mxu0 0
        %7711 = vmatpush1.bf16.msra.mxu0 0
        %7712 = vmatprep.subr.bf16.mxu0 0
        %7713 = vmatpush1.bf16.msra.mxu0 0
        %7714 = vmatprep.subr.bf16.mxu0 0
        %7715 = vmatpush1.bf16.msra.mxu0 0
        %7716 = vmatprep.subr.bf16.mxu0 0
        %7717 = vmatpush1.bf16.msra.mxu0 0
        %7718 = vmatprep.subr.bf16.mxu0 0
        %7719 = vmatpush1.bf16.msra.mxu0 %v7691
        %7720 = vmatprep.subr.bf16.mxu0 0
        %7721 = vmatpush1.bf16.msra.mxu0 %v7690
        %7722 = vmatprep.subr.bf16.mxu0 0
        %7723 = vmatpush2.bf16.msra.mxu0 0
        %7724 = vmatprep.subr.bf16.mxu0 0
        %7725 = vmatpush2.bf16.msra.mxu0 0
        %7726 = vmatprep.subr.bf16.mxu0 0
        %7727 = vmatpush2.bf16.msra.mxu0 0
        %7728 = vmatprep.subr.bf16.mxu0 0
        %7729 = vmatpush2.bf16.msra.mxu0 0
        %7730 = vmatprep.subr.bf16.mxu0 0
        %7731 = vmatpush2.bf16.msra.mxu0 0
        %7732 = vmatprep.subr.bf16.mxu0 0
        %7733 = vmatpush2.bf16.msra.mxu0 0
        %7734 = vmatprep.subr.bf16.mxu0 0
        %7735 = vmatpush2.bf16.msra.mxu0 0
        %7736 = vmatprep.subr.bf16.mxu0 0
        %7737 = vmatpush2.bf16.msra.mxu0 0
        %7738 = vmatprep.mubr.bf16.mxu0 0
        %7739 = vmatmul.mubr.bf16.gmra.mxu0 %v7695
        %v7740 = vpop.f32.mrf.mxu0
        %v7741 = vadd.f32 0.0, %v7740
        %v7742 = vpop.f32.mrf.mxu0
        %v7743 = vpop.f32.mrf.mxu0
        %v7744 = vadd.f32 0.0, %v7743
        %v7745 = vpop.f32.mrf.mxu0
        %7746 = vmatprep.mubr.bf16.mxu0 0
        %7747 = vmatmul.mubr.bf16.gmra.mxu0 %v7698
        %v7748 = vpop.f32.mrf.mxu0
        %v7749 = vadd.f32 0.0, %v7748
        %v7750 = vpop.f32.mrf.mxu0
        %v7751 = vpop.f32.mrf.mxu0
        %v7752 = vadd.f32 0.0, %v7751
        %v7753 = vpop.f32.mrf.mxu0
        %7754 = vmatprep.mubr.bf16.mxu0 0
        %7755 = vmatmul.mubr.bf16.gmra.mxu0 %v7701
        %v7756 = vpop.f32.mrf.mxu0
        %v7757 = vadd.f32 0.0, %v7756
        %v7758 = vpop.f32.mrf.mxu0
        %v7759 = vpop.f32.mrf.mxu0
        %v7760 = vadd.f32 0.0, %v7759
        %v7761 = vpop.f32.mrf.mxu0
        %7762 = vmatprep.mubr.bf16.mxu0 0
        %7763 = vmatmul.mubr.bf16.gmra.mxu0 %v7704
        %v7764 = vpop.f32.mrf.mxu0
        %v7765 = vadd.f32 0.0, %v7764
        %v7766 = vpop.f32.mrf.mxu0
        %v7767 = vpop.f32.mrf.mxu0
        %v7768 = vadd.f32 0.0, %v7767
        %v7769 = vpop.f32.mrf.mxu0
        %7770 = vdwg.mxu0
        %v7771 = vadd.f32 %v7664, %v7741
        %v7772 = vadd.f32 %v7665, %v7744
        %v7773 = vadd.f32 %v7666, %v7749
        %v7774 = vadd.f32 %v7667, %v7752
        %v7775 = vadd.f32 %v7668, %v7757
        %v7776 = vadd.f32 %v7669, %v7760
        %v7777 = vadd.f32 %v7670, %v7765
        %v7778 = vadd.f32 %v7671, %v7768
        %v7779 = vld [vmem:[%s5962] sm:$0xf]
        %v7780 = vld [vmem:[%s5962 + $0x4] sm:$0xf]
        %v7781 = vld [vmem:[%s5962 + $0x8] sm:$0xf]
        %v7782 = vld [vmem:[%s5962 + $0xc] sm:$0xf]
        %v7784 = vunpack.c.l.b16 %v4646
        %v7785 = vpack.c.b16 %v5633, %v5632
        %v7786 = vpack.c.b16 %v5635, %v5634
        %v7787 = vpack.c.b16 %v5637, %v5636
        %v7788 = vpack.c.b16 %v7784, %v5638
        %v7793 = vunpack.c.l.b16 %v7779
        %v7794 = vunpack.c.l.b16 %v7780
        %v7795 = vunpack.c.l.b16 %v7781
        %v7796 = vunpack.c.l.b16 %v7782
        %v7797 = vpack.c.b16 %v7794, %v7793
        %v7798 = vpack.c.b16 %v7796, %v7795
        %v7802 = vsel %vm426, %v7785, 0
        %v7805 = vsel %vm426, %v7786, 0
        %v7808 = vsel %vm426, %v7787, 0
        %v7811 = vsel %vm426, %v7788, 0
        %7813 = vmatprep.subr.bf16.mxu0 0
        %7814 = vmatpush1.bf16.msra.mxu0 0
        %7815 = vmatprep.subr.bf16.mxu0 0
        %7816 = vmatpush1.bf16.msra.mxu0 0
        %7817 = vmatprep.subr.bf16.mxu0 0
        %7818 = vmatpush1.bf16.msra.mxu0 0
        %7819 = vmatprep.subr.bf16.mxu0 0
        %7820 = vmatpush1.bf16.msra.mxu0 0
        %7821 = vmatprep.subr.bf16.mxu0 0
        %7822 = vmatpush1.bf16.msra.mxu0 0
        %7823 = vmatprep.subr.bf16.mxu0 0
        %7824 = vmatpush1.bf16.msra.mxu0 0
        %7825 = vmatprep.subr.bf16.mxu0 0
        %7826 = vmatpush1.bf16.msra.mxu0 %v7798
        %7827 = vmatprep.subr.bf16.mxu0 0
        %7828 = vmatpush1.bf16.msra.mxu0 %v7797
        %7829 = vmatprep.subr.bf16.mxu0 0
        %7830 = vmatpush2.bf16.msra.mxu0 0
        %7831 = vmatprep.subr.bf16.mxu0 0
        %7832 = vmatpush2.bf16.msra.mxu0 0
        %7833 = vmatprep.subr.bf16.mxu0 0
        %7834 = vmatpush2.bf16.msra.mxu0 0
        %7835 = vmatprep.subr.bf16.mxu0 0
        %7836 = vmatpush2.bf16.msra.mxu0 0
        %7837 = vmatprep.subr.bf16.mxu0 0
        %7838 = vmatpush2.bf16.msra.mxu0 0
        %7839 = vmatprep.subr.bf16.mxu0 0
        %7840 = vmatpush2.bf16.msra.mxu0 0
        %7841 = vmatprep.subr.bf16.mxu0 0
        %7842 = vmatpush2.bf16.msra.mxu0 0
        %7843 = vmatprep.subr.bf16.mxu0 0
        %7844 = vmatpush2.bf16.msra.mxu0 0
        %7845 = vmatprep.mubr.bf16.mxu0 0
        %7846 = vmatmul.mubr.bf16.gmra.mxu0 %v7802
        %v7847 = vpop.f32.mrf.mxu0
        %v7848 = vadd.f32 0.0, %v7847
        %v7849 = vpop.f32.mrf.mxu0
        %v7850 = vpop.f32.mrf.mxu0
        %v7851 = vadd.f32 0.0, %v7850
        %v7852 = vpop.f32.mrf.mxu0
        %7853 = vmatprep.mubr.bf16.mxu0 0
        %7854 = vmatmul.mubr.bf16.gmra.mxu0 %v7805
        %v7855 = vpop.f32.mrf.mxu0
        %v7856 = vadd.f32 0.0, %v7855
        %v7857 = vpop.f32.mrf.mxu0
        %v7858 = vpop.f32.mrf.mxu0
        %v7859 = vadd.f32 0.0, %v7858
        %v7860 = vpop.f32.mrf.mxu0
        %7861 = vmatprep.mubr.bf16.mxu0 0
        %7862 = vmatmul.mubr.bf16.gmra.mxu0 %v7808
        %v7863 = vpop.f32.mrf.mxu0
        %v7864 = vadd.f32 0.0, %v7863
        %v7865 = vpop.f32.mrf.mxu0
        %v7866 = vpop.f32.mrf.mxu0
        %v7867 = vadd.f32 0.0, %v7866
        %v7868 = vpop.f32.mrf.mxu0
        %7869 = vmatprep.mubr.bf16.mxu0 0
        %7870 = vmatmul.mubr.bf16.gmra.mxu0 %v7811
        %v7871 = vpop.f32.mrf.mxu0
        %v7872 = vadd.f32 0.0, %v7871
        %v7873 = vpop.f32.mrf.mxu0
        %v7874 = vpop.f32.mrf.mxu0
        %v7875 = vadd.f32 0.0, %v7874
        %v7876 = vpop.f32.mrf.mxu0
        %7877 = vdwg.mxu0
        %v7878 = vadd.f32 %v7771, %v7848
        %v7879 = vadd.f32 %v7772, %v7851
        %v7880 = vadd.f32 %v7773, %v7856
        %v7881 = vadd.f32 %v7774, %v7859
        %v7882 = vadd.f32 %v7775, %v7864
        %v7883 = vadd.f32 %v7776, %v7867
        %v7884 = vadd.f32 %v7777, %v7872
        %v7885 = vadd.f32 %v7778, %v7875
        %v7886 = vld [vmem:[%s6070] sm:$0xf]
        %v7887 = vld [vmem:[%s6070 + $0x4] sm:$0xf]
        %v7888 = vld [vmem:[%s6070 + $0x8] sm:$0xf]
        %v7889 = vld [vmem:[%s6070 + $0xc] sm:$0xf]
        %v7890 = vunpack.c.l.b16 %v5028
        %v7891 = vpack.c.b16 %v5747, %v5746
        %v7892 = vpack.c.b16 %v5749, %v5748
        %v7893 = vpack.c.b16 %v5751, %v5750
        %v7894 = vpack.c.b16 %v7890, %v5752
        %v7899 = vunpack.c.l.b16 %v7886
        %v7900 = vunpack.c.l.b16 %v7887
        %v7901 = vunpack.c.l.b16 %v7888
        %v7902 = vunpack.c.l.b16 %v7889
        %v7903 = vpack.c.b16 %v7900, %v7899
        %v7904 = vpack.c.b16 %v7902, %v7901
        %v7908 = vsel %vm426, %v7891, 0
        %v7911 = vsel %vm426, %v7892, 0
        %v7914 = vsel %vm426, %v7893, 0
        %v7917 = vsel %vm426, %v7894, 0
        %7919 = vmatprep.subr.bf16.mxu0 0
        %7920 = vmatpush1.bf16.msra.mxu0 0
        %7921 = vmatprep.subr.bf16.mxu0 0
        %7922 = vmatpush1.bf16.msra.mxu0 0
        %7923 = vmatprep.subr.bf16.mxu0 0
        %7924 = vmatpush1.bf16.msra.mxu0 0
        %7925 = vmatprep.subr.bf16.mxu0 0
        %7926 = vmatpush1.bf16.msra.mxu0 0
        %7927 = vmatprep.subr.bf16.mxu0 0
        %7928 = vmatpush1.bf16.msra.mxu0 0
        %7929 = vmatprep.subr.bf16.mxu0 0
        %7930 = vmatpush1.bf16.msra.mxu0 0
        %7931 = vmatprep.subr.bf16.mxu0 0
        %7932 = vmatpush1.bf16.msra.mxu0 %v7904
        %7933 = vmatprep.subr.bf16.mxu0 0
        %7934 = vmatpush1.bf16.msra.mxu0 %v7903
        %7935 = vmatprep.subr.bf16.mxu0 0
        %7936 = vmatpush2.bf16.msra.mxu0 0
        %7937 = vmatprep.subr.bf16.mxu0 0
        %7938 = vmatpush2.bf16.msra.mxu0 0
        %7939 = vmatprep.subr.bf16.mxu0 0
        %7940 = vmatpush2.bf16.msra.mxu0 0
        %7941 = vmatprep.subr.bf16.mxu0 0
        %7942 = vmatpush2.bf16.msra.mxu0 0
        %7943 = vmatprep.subr.bf16.mxu0 0
        %7944 = vmatpush2.bf16.msra.mxu0 0
        %7945 = vmatprep.subr.bf16.mxu0 0
        %7946 = vmatpush2.bf16.msra.mxu0 0
        %7947 = vmatprep.subr.bf16.mxu0 0
        %7948 = vmatpush2.bf16.msra.mxu0 0
        %7949 = vmatprep.subr.bf16.mxu0 0
        %7950 = vmatpush2.bf16.msra.mxu0 0
        %7951 = vmatprep.mubr.bf16.mxu0 0
        %7952 = vmatmul.mubr.bf16.gmra.mxu0 %v7908
        %v7953 = vpop.f32.mrf.mxu0
        %v7954 = vadd.f32 0.0, %v7953
        %v7955 = vpop.f32.mrf.mxu0
        %v7956 = vpop.f32.mrf.mxu0
        %v7957 = vadd.f32 0.0, %v7956
        %v7958 = vpop.f32.mrf.mxu0
        %7959 = vmatprep.mubr.bf16.mxu0 0
        %7960 = vmatmul.mubr.bf16.gmra.mxu0 %v7911
        %v7961 = vpop.f32.mrf.mxu0
        %v7962 = vadd.f32 0.0, %v7961
        %v7963 = vpop.f32.mrf.mxu0
        %v7964 = vpop.f32.mrf.mxu0
        %v7965 = vadd.f32 0.0, %v7964
        %v7966 = vpop.f32.mrf.mxu0
        %7967 = vmatprep.mubr.bf16.mxu0 0
        %7968 = vmatmul.mubr.bf16.gmra.mxu0 %v7914
        %v7969 = vpop.f32.mrf.mxu0
        %v7970 = vadd.f32 0.0, %v7969
        %v7971 = vpop.f32.mrf.mxu0
        %v7972 = vpop.f32.mrf.mxu0
        %v7973 = vadd.f32 0.0, %v7972
        %v7974 = vpop.f32.mrf.mxu0
        %7975 = vmatprep.mubr.bf16.mxu0 0
        %7976 = vmatmul.mubr.bf16.gmra.mxu0 %v7917
        %v7977 = vpop.f32.mrf.mxu0
        %v7978 = vadd.f32 0.0, %v7977
        %v7979 = vpop.f32.mrf.mxu0
        %v7980 = vpop.f32.mrf.mxu0
        %v7981 = vadd.f32 0.0, %v7980
        %v7982 = vpop.f32.mrf.mxu0
        %7983 = vdwg.mxu0
        %v7984 = vadd.f32 %v7878, %v7954
        %v7985 = vadd.f32 %v7879, %v7957
        %v7986 = vadd.f32 %v7880, %v7962
        %v7987 = vadd.f32 %v7881, %v7965
        %v7988 = vadd.f32 %v7882, %v7970
        %v7989 = vadd.f32 %v7883, %v7973
        %v7990 = vadd.f32 %v7884, %v7978
        %v7991 = vadd.f32 %v7885, %v7981
        %v7992 = vld [vmem:[%s4] sm:$0x1]
        %v7994 = vlaneseq
        %v7995 = vshrl.u32 %v7994, 7
        %v7996 = vsub.s32 0, %v7995
        %v7997 = vrot.slane %v7992, %v7996
        %v7999 = vadd.f32 %v7984, %v7997
        %v8000 = vadd.f32 %v7985, %v7997
        %v8001 = vadd.f32 %v7986, %v7997
        %v8002 = vadd.f32 %v7987, %v7997
        %v8003 = vadd.f32 %v7988, %v7997
        %v8004 = vadd.f32 %v7989, %v7997
        %v8005 = vadd.f32 %v7990, %v7997
        %v8006 = vadd.f32 %v7991, %v7997
        %v8007 = vmax.f32 %v7999, 0.0
        %v8008 = vmax.f32 %v8000, 0.0
        %v8009 = vmax.f32 %v8001, 0.0
        %v8010 = vmax.f32 %v8002, 0.0
        %v8011 = vmax.f32 %v8003, 0.0
        %v8012 = vmax.f32 %v8004, 0.0
        %v8013 = vmax.f32 %v8005, 0.0
        %v8014 = vmax.f32 %v8006, 0.0
        %8023 = vrot.lane.b32.xlu0 %v8007, 16
        %v8024 = vpop.permute.xlu0 %8023
        %8025 = vrot.lane.b32.xlu0 %v8008, 16
        %v8026 = vpop.permute.xlu0 %8025
        %8027 = vrot.lane.b32.xlu0 %v8009, 16
        %v8028 = vpop.permute.xlu0 %8027
        %8029 = vrot.lane.b32.xlu0 %v8010, 16
        %v8030 = vpop.permute.xlu0 %8029
        %8031 = vrot.lane.b32.xlu0 %v8011, 16
        %v8032 = vpop.permute.xlu0 %8031
        %8033 = vrot.lane.b32.xlu0 %v8012, 16
        %v8034 = vpop.permute.xlu0 %8033
        %8035 = vrot.lane.b32.xlu0 %v8013, 16
        %v8036 = vpop.permute.xlu0 %8035
        %8037 = vrot.lane.b32.xlu0 %v8014, 16
        %v8038 = vpop.permute.xlu0 %8037
        %8047 = vst.msk [vmem:[%s3507] sm:$0xff] %vm6232, %v8024
        %8048 = vst.msk [vmem:[%s3507 + $0x10] sm:$0xff] %vm6232, %v8026
        %8049 = vst.msk [vmem:[%s3507 + $0x20] sm:$0xff] %vm6232, %v8028
        %8050 = vst.msk [vmem:[%s3507 + $0x30] sm:$0xff] %vm6232, %v8030
        %8051 = vst.msk [vmem:[%s3507 + $0x40] sm:$0xff] %vm6232, %v8032
        %8052 = vst.msk [vmem:[%s3507 + $0x50] sm:$0xff] %vm6232, %v8034
        %8053 = vst.msk [vmem:[%s3507 + $0x60] sm:$0xff] %vm6232, %v8036
        %8054 = vst.msk [vmem:[%s3507 + $0x70] sm:$0xff] %vm6232, %v8038
        %v8055 = vld [vmem:[%s3] sm:$0xf]
        %v8056 = vld [vmem:[%s3 + $0x4] sm:$0xf]
        %v8057 = vld [vmem:[%s3 + $0x8] sm:$0xf]
        %v8058 = vld [vmem:[%s3 + $0xc] sm:$0xf]
        %v8059 = vld [vmem:[%s5159] sm:$0xf]
        %v8060 = vld [vmem:[%s5159 + $0x4] sm:$0xf]
        %v8061 = vld [vmem:[%s5159 + $0x8] sm:$0xf]
        %v8062 = vld [vmem:[%s5159 + $0xc] sm:$0xf]
        %v8067 = vunpack.c.l.b16 %v8059
        %v8068 = vunpack.c.l.b16 %v8060
        %v8069 = vunpack.c.l.b16 %v8061
        %v8070 = vunpack.c.l.b16 %v8062
        %v8071 = vpack.c.b16 %v8068, %v8067
        %v8072 = vpack.c.b16 %v8070, %v8069
        %8075 = vmatprep.subr.bf16.mxu0 0
        %8076 = vmatpush1.bf16.msra.mxu0 0
        %8077 = vmatprep.subr.bf16.mxu0 0
        %8078 = vmatpush1.bf16.msra.mxu0 0
        %8079 = vmatprep.subr.bf16.mxu0 0
        %8080 = vmatpush1.bf16.msra.mxu0 0
        %8081 = vmatprep.subr.bf16.mxu0 0
        %8082 = vmatpush1.bf16.msra.mxu0 0
        %8083 = vmatprep.subr.bf16.mxu0 0
        %8084 = vmatpush1.bf16.msra.mxu0 0
        %8085 = vmatprep.subr.bf16.mxu0 0
        %8086 = vmatpush1.bf16.msra.mxu0 0
        %8087 = vmatprep.subr.bf16.mxu0 0
        %8088 = vmatpush1.bf16.msra.mxu0 %v8072
        %8089 = vmatprep.subr.bf16.mxu0 0
        %8090 = vmatpush1.bf16.msra.mxu0 %v8071
        %8091 = vmatprep.subr.bf16.mxu0 0
        %8092 = vmatpush2.bf16.msra.mxu0 0
        %8093 = vmatprep.subr.bf16.mxu0 0
        %8094 = vmatpush2.bf16.msra.mxu0 0
        %8095 = vmatprep.subr.bf16.mxu0 0
        %8096 = vmatpush2.bf16.msra.mxu0 0
        %8097 = vmatprep.subr.bf16.mxu0 0
        %8098 = vmatpush2.bf16.msra.mxu0 0
        %8099 = vmatprep.subr.bf16.mxu0 0
        %8100 = vmatpush2.bf16.msra.mxu0 0
        %8101 = vmatprep.subr.bf16.mxu0 0
        %8102 = vmatpush2.bf16.msra.mxu0 0
        %8103 = vmatprep.subr.bf16.mxu0 0
        %8104 = vmatpush2.bf16.msra.mxu0 0
        %8105 = vmatprep.subr.bf16.mxu0 0
        %8106 = vmatpush2.bf16.msra.mxu0 0
        %8107 = vmatprep.mubr.bf16.mxu0 0
        %8108 = vmatmul.mubr.bf16.gmra.mxu0 %v5770
        %v8109 = vpop.f32.mrf.mxu0
        %v8110 = vadd.f32 0.0, %v8109
        %v8111 = vpop.f32.mrf.mxu0
        %v8112 = vpop.f32.mrf.mxu0
        %v8113 = vadd.f32 0.0, %v8112
        %v8114 = vpop.f32.mrf.mxu0
        %8115 = vmatprep.mubr.bf16.mxu0 0
        %8116 = vmatmul.mubr.bf16.gmra.mxu0 %v5773
        %v8117 = vpop.f32.mrf.mxu0
        %v8118 = vadd.f32 0.0, %v8117
        %v8119 = vpop.f32.mrf.mxu0
        %v8120 = vpop.f32.mrf.mxu0
        %v8121 = vadd.f32 0.0, %v8120
        %v8122 = vpop.f32.mrf.mxu0
        %8123 = vmatprep.mubr.bf16.mxu0 0
        %8124 = vmatmul.mubr.bf16.gmra.mxu0 %v5776
        %v8125 = vpop.f32.mrf.mxu0
        %v8126 = vadd.f32 0.0, %v8125
        %v8127 = vpop.f32.mrf.mxu0
        %v8128 = vpop.f32.mrf.mxu0
        %v8129 = vadd.f32 0.0, %v8128
        %v8130 = vpop.f32.mrf.mxu0
        %8131 = vmatprep.mubr.bf16.mxu0 0
        %8132 = vmatmul.mubr.bf16.gmra.mxu0 %v5779
        %v8133 = vpop.f32.mrf.mxu0
        %v8134 = vadd.f32 0.0, %v8133
        %v8135 = vpop.f32.mrf.mxu0
        %v8136 = vpop.f32.mrf.mxu0
        %v8137 = vadd.f32 0.0, %v8136
        %v8138 = vpop.f32.mrf.mxu0
        %8139 = vdwg.mxu0
        %v8144 = vunpack.c.l.b16 %v8055
        %v8145 = vunpack.c.l.b16 %v8056
        %v8146 = vunpack.c.l.b16 %v8057
        %v8147 = vunpack.c.l.b16 %v8058
        %v8148 = vpack.c.b16 %v8145, %v8144
        %v8149 = vpack.c.b16 %v8147, %v8146
        %8152 = vmatprep.subr.bf16.mxu0 0
        %8153 = vmatpush1.bf16.msra.mxu0 0
        %8154 = vmatprep.subr.bf16.mxu0 0
        %8155 = vmatpush1.bf16.msra.mxu0 0
        %8156 = vmatprep.subr.bf16.mxu0 0
        %8157 = vmatpush1.bf16.msra.mxu0 0
        %8158 = vmatprep.subr.bf16.mxu0 0
        %8159 = vmatpush1.bf16.msra.mxu0 0
        %8160 = vmatprep.subr.bf16.mxu0 0
        %8161 = vmatpush1.bf16.msra.mxu0 0
        %8162 = vmatprep.subr.bf16.mxu0 0
        %8163 = vmatpush1.bf16.msra.mxu0 0
        %8164 = vmatprep.subr.bf16.mxu0 0
        %8165 = vmatpush1.bf16.msra.mxu0 %v8149
        %8166 = vmatprep.subr.bf16.mxu0 0
        %8167 = vmatpush1.bf16.msra.mxu0 %v8148
        %8168 = vmatprep.subr.bf16.mxu0 0
        %8169 = vmatpush2.bf16.msra.mxu0 0
        %8170 = vmatprep.subr.bf16.mxu0 0
        %8171 = vmatpush2.bf16.msra.mxu0 0
        %8172 = vmatprep.subr.bf16.mxu0 0
        %8173 = vmatpush2.bf16.msra.mxu0 0
        %8174 = vmatprep.subr.bf16.mxu0 0
        %8175 = vmatpush2.bf16.msra.mxu0 0
        %8176 = vmatprep.subr.bf16.mxu0 0
        %8177 = vmatpush2.bf16.msra.mxu0 0
        %8178 = vmatprep.subr.bf16.mxu0 0
        %8179 = vmatpush2.bf16.msra.mxu0 0
        %8180 = vmatprep.subr.bf16.mxu0 0
        %8181 = vmatpush2.bf16.msra.mxu0 0
        %8182 = vmatprep.subr.bf16.mxu0 0
        %8183 = vmatpush2.bf16.msra.mxu0 0
        %8184 = vmatprep.mubr.bf16.mxu0 0
        %8185 = vmatmul.mubr.bf16.gmra.mxu0 %v5656
        %v8186 = vpop.f32.mrf.mxu0
        %v8187 = vadd.f32 %v8110, %v8186
        %v8188 = vpop.f32.mrf.mxu0
        %v8189 = vpop.f32.mrf.mxu0
        %v8190 = vadd.f32 %v8113, %v8189
        %v8191 = vpop.f32.mrf.mxu0
        %8192 = vmatprep.mubr.bf16.mxu0 0
        %8193 = vmatmul.mubr.bf16.gmra.mxu0 %v5659
        %v8194 = vpop.f32.mrf.mxu0
        %v8195 = vadd.f32 %v8118, %v8194
        %v8196 = vpop.f32.mrf.mxu0
        %v8197 = vpop.f32.mrf.mxu0
        %v8198 = vadd.f32 %v8121, %v8197
        %v8199 = vpop.f32.mrf.mxu0
        %8200 = vmatprep.mubr.bf16.mxu0 0
        %8201 = vmatmul.mubr.bf16.gmra.mxu0 %v5662
        %v8202 = vpop.f32.mrf.mxu0
        %v8203 = vadd.f32 %v8126, %v8202
        %v8204 = vpop.f32.mrf.mxu0
        %v8205 = vpop.f32.mrf.mxu0
        %v8206 = vadd.f32 %v8129, %v8205
        %v8207 = vpop.f32.mrf.mxu0
        %8208 = vmatprep.mubr.bf16.mxu0 0
        %8209 = vmatmul.mubr.bf16.gmra.mxu0 %v5665
        %v8210 = vpop.f32.mrf.mxu0
        %v8211 = vadd.f32 %v8134, %v8210
        %v8212 = vpop.f32.mrf.mxu0
        %v8213 = vpop.f32.mrf.mxu0
        %v8214 = vadd.f32 %v8137, %v8213
        %v8215 = vpop.f32.mrf.mxu0
        %8216 = vdwg.mxu0
        %v8217 = vld [vmem:[%s5382] sm:$0xf]
        %v8218 = vld [vmem:[%s5382 + $0x4] sm:$0xf]
        %v8219 = vld [vmem:[%s5382 + $0x8] sm:$0xf]
        %v8220 = vld [vmem:[%s5382 + $0xc] sm:$0xf]
        %v8225 = vunpack.c.l.b16 %v8217
        %v8226 = vunpack.c.l.b16 %v8218
        %v8227 = vunpack.c.l.b16 %v8219
        %v8228 = vunpack.c.l.b16 %v8220
        %v8229 = vpack.c.b16 %v8226, %v8225
        %v8230 = vpack.c.b16 %v8228, %v8227
        %8233 = vmatprep.subr.bf16.mxu0 0
        %8234 = vmatpush1.bf16.msra.mxu0 0
        %8235 = vmatprep.subr.bf16.mxu0 0
        %8236 = vmatpush1.bf16.msra.mxu0 0
        %8237 = vmatprep.subr.bf16.mxu0 0
        %8238 = vmatpush1.bf16.msra.mxu0 0
        %8239 = vmatprep.subr.bf16.mxu0 0
        %8240 = vmatpush1.bf16.msra.mxu0 0
        %8241 = vmatprep.subr.bf16.mxu0 0
        %8242 = vmatpush1.bf16.msra.mxu0 0
        %8243 = vmatprep.subr.bf16.mxu0 0
        %8244 = vmatpush1.bf16.msra.mxu0 0
        %8245 = vmatprep.subr.bf16.mxu0 0
        %8246 = vmatpush1.bf16.msra.mxu0 %v8230
        %8247 = vmatprep.subr.bf16.mxu0 0
        %8248 = vmatpush1.bf16.msra.mxu0 %v8229
        %8249 = vmatprep.subr.bf16.mxu0 0
        %8250 = vmatpush2.bf16.msra.mxu0 0
        %8251 = vmatprep.subr.bf16.mxu0 0
        %8252 = vmatpush2.bf16.msra.mxu0 0
        %8253 = vmatprep.subr.bf16.mxu0 0
        %8254 = vmatpush2.bf16.msra.mxu0 0
        %8255 = vmatprep.subr.bf16.mxu0 0
        %8256 = vmatpush2.bf16.msra.mxu0 0
        %8257 = vmatprep.subr.bf16.mxu0 0
        %8258 = vmatpush2.bf16.msra.mxu0 0
        %8259 = vmatprep.subr.bf16.mxu0 0
        %8260 = vmatpush2.bf16.msra.mxu0 0
        %8261 = vmatprep.subr.bf16.mxu0 0
        %8262 = vmatpush2.bf16.msra.mxu0 0
        %8263 = vmatprep.subr.bf16.mxu0 0
        %8264 = vmatpush2.bf16.msra.mxu0 0
        %8265 = vmatprep.mubr.bf16.mxu0 0
        %8266 = vmatmul.mubr.bf16.gmra.mxu0 %v6723
        %v8267 = vpop.f32.mrf.mxu0
        %v8268 = vadd.f32 0.0, %v8267
        %v8269 = vpop.f32.mrf.mxu0
        %v8270 = vpop.f32.mrf.mxu0
        %v8271 = vadd.f32 0.0, %v8270
        %v8272 = vpop.f32.mrf.mxu0
        %8273 = vmatprep.mubr.bf16.mxu0 0
        %8274 = vmatmul.mubr.bf16.gmra.mxu0 %v6726
        %v8275 = vpop.f32.mrf.mxu0
        %v8276 = vadd.f32 0.0, %v8275
        %v8277 = vpop.f32.mrf.mxu0
        %v8278 = vpop.f32.mrf.mxu0
        %v8279 = vadd.f32 0.0, %v8278
        %v8280 = vpop.f32.mrf.mxu0
        %8281 = vmatprep.mubr.bf16.mxu0 0
        %8282 = vmatmul.mubr.bf16.gmra.mxu0 %v6729
        %v8283 = vpop.f32.mrf.mxu0
        %v8284 = vadd.f32 0.0, %v8283
        %v8285 = vpop.f32.mrf.mxu0
        %v8286 = vpop.f32.mrf.mxu0
        %v8287 = vadd.f32 0.0, %v8286
        %v8288 = vpop.f32.mrf.mxu0
        %8289 = vmatprep.mubr.bf16.mxu0 0
        %8290 = vmatmul.mubr.bf16.gmra.mxu0 %v6732
        %v8291 = vpop.f32.mrf.mxu0
        %v8292 = vadd.f32 0.0, %v8291
        %v8293 = vpop.f32.mrf.mxu0
        %v8294 = vpop.f32.mrf.mxu0
        %v8295 = vadd.f32 0.0, %v8294
        %v8296 = vpop.f32.mrf.mxu0
        %8297 = vdwg.mxu0
        %v8298 = vadd.f32 %v8187, %v8268
        %v8299 = vadd.f32 %v8190, %v8271
        %v8300 = vadd.f32 %v8195, %v8276
        %v8301 = vadd.f32 %v8198, %v8279
        %v8302 = vadd.f32 %v8203, %v8284
        %v8303 = vadd.f32 %v8206, %v8287
        %v8304 = vadd.f32 %v8211, %v8292
        %v8305 = vadd.f32 %v8214, %v8295
        %v8306 = vld [vmem:[%s5496] sm:$0xf]
        %v8307 = vld [vmem:[%s5496 + $0x4] sm:$0xf]
        %v8308 = vld [vmem:[%s5496 + $0x8] sm:$0xf]
        %v8309 = vld [vmem:[%s5496 + $0xc] sm:$0xf]
        %v8314 = vunpack.c.l.b16 %v8306
        %v8315 = vunpack.c.l.b16 %v8307
        %v8316 = vunpack.c.l.b16 %v8308
        %v8317 = vunpack.c.l.b16 %v8309
        %v8318 = vpack.c.b16 %v8315, %v8314
        %v8319 = vpack.c.b16 %v8317, %v8316
        %8322 = vmatprep.subr.bf16.mxu0 0
        %8323 = vmatpush1.bf16.msra.mxu0 0
        %8324 = vmatprep.subr.bf16.mxu0 0
        %8325 = vmatpush1.bf16.msra.mxu0 0
        %8326 = vmatprep.subr.bf16.mxu0 0
        %8327 = vmatpush1.bf16.msra.mxu0 0
        %8328 = vmatprep.subr.bf16.mxu0 0
        %8329 = vmatpush1.bf16.msra.mxu0 0
        %8330 = vmatprep.subr.bf16.mxu0 0
        %8331 = vmatpush1.bf16.msra.mxu0 0
        %8332 = vmatprep.subr.bf16.mxu0 0
        %8333 = vmatpush1.bf16.msra.mxu0 0
        %8334 = vmatprep.subr.bf16.mxu0 0
        %8335 = vmatpush1.bf16.msra.mxu0 %v8319
        %8336 = vmatprep.subr.bf16.mxu0 0
        %8337 = vmatpush1.bf16.msra.mxu0 %v8318
        %8338 = vmatprep.subr.bf16.mxu0 0
        %8339 = vmatpush2.bf16.msra.mxu0 0
        %8340 = vmatprep.subr.bf16.mxu0 0
        %8341 = vmatpush2.bf16.msra.mxu0 0
        %8342 = vmatprep.subr.bf16.mxu0 0
        %8343 = vmatpush2.bf16.msra.mxu0 0
        %8344 = vmatprep.subr.bf16.mxu0 0
        %8345 = vmatpush2.bf16.msra.mxu0 0
        %8346 = vmatprep.subr.bf16.mxu0 0
        %8347 = vmatpush2.bf16.msra.mxu0 0
        %8348 = vmatprep.subr.bf16.mxu0 0
        %8349 = vmatpush2.bf16.msra.mxu0 0
        %8350 = vmatprep.subr.bf16.mxu0 0
        %8351 = vmatpush2.bf16.msra.mxu0 0
        %8352 = vmatprep.subr.bf16.mxu0 0
        %8353 = vmatpush2.bf16.msra.mxu0 0
        %8354 = vmatprep.mubr.bf16.mxu0 0
        %8355 = vmatmul.mubr.bf16.gmra.mxu0 %v5986
        %v8356 = vpop.f32.mrf.mxu0
        %v8357 = vadd.f32 0.0, %v8356
        %v8358 = vpop.f32.mrf.mxu0
        %v8359 = vpop.f32.mrf.mxu0
        %v8360 = vadd.f32 0.0, %v8359
        %v8361 = vpop.f32.mrf.mxu0
        %8362 = vmatprep.mubr.bf16.mxu0 0
        %8363 = vmatmul.mubr.bf16.gmra.mxu0 %v5989
        %v8364 = vpop.f32.mrf.mxu0
        %v8365 = vadd.f32 0.0, %v8364
        %v8366 = vpop.f32.mrf.mxu0
        %v8367 = vpop.f32.mrf.mxu0
        %v8368 = vadd.f32 0.0, %v8367
        %v8369 = vpop.f32.mrf.mxu0
        %8370 = vmatprep.mubr.bf16.mxu0 0
        %8371 = vmatmul.mubr.bf16.gmra.mxu0 %v5992
        %v8372 = vpop.f32.mrf.mxu0
        %v8373 = vadd.f32 0.0, %v8372
        %v8374 = vpop.f32.mrf.mxu0
        %v8375 = vpop.f32.mrf.mxu0
        %v8376 = vadd.f32 0.0, %v8375
        %v8377 = vpop.f32.mrf.mxu0
        %8378 = vmatprep.mubr.bf16.mxu0 0
        %8379 = vmatmul.mubr.bf16.gmra.mxu0 %v5995
        %v8380 = vpop.f32.mrf.mxu0
        %v8381 = vadd.f32 0.0, %v8380
        %v8382 = vpop.f32.mrf.mxu0
        %v8383 = vpop.f32.mrf.mxu0
        %v8384 = vadd.f32 0.0, %v8383
        %v8385 = vpop.f32.mrf.mxu0
        %8386 = vdwg.mxu0
        %v8387 = vadd.f32 %v8298, %v8357
        %v8388 = vadd.f32 %v8299, %v8360
        %v8389 = vadd.f32 %v8300, %v8365
        %v8390 = vadd.f32 %v8301, %v8368
        %v8391 = vadd.f32 %v8302, %v8373
        %v8392 = vadd.f32 %v8303, %v8376
        %v8393 = vadd.f32 %v8304, %v8381
        %v8394 = vadd.f32 %v8305, %v8384
        %v8395 = vld [vmem:[%s5618] sm:$0xf]
        %v8396 = vld [vmem:[%s5618 + $0x4] sm:$0xf]
        %v8397 = vld [vmem:[%s5618 + $0x8] sm:$0xf]
        %v8398 = vld [vmem:[%s5618 + $0xc] sm:$0xf]
        %v8403 = vunpack.c.l.b16 %v8395
        %v8404 = vunpack.c.l.b16 %v8396
        %v8405 = vunpack.c.l.b16 %v8397
        %v8406 = vunpack.c.l.b16 %v8398
        %v8407 = vpack.c.b16 %v8404, %v8403
        %v8408 = vpack.c.b16 %v8406, %v8405
        %8411 = vmatprep.subr.bf16.mxu0 0
        %8412 = vmatpush1.bf16.msra.mxu0 0
        %8413 = vmatprep.subr.bf16.mxu0 0
        %8414 = vmatpush1.bf16.msra.mxu0 0
        %8415 = vmatprep.subr.bf16.mxu0 0
        %8416 = vmatpush1.bf16.msra.mxu0 0
        %8417 = vmatprep.subr.bf16.mxu0 0
        %8418 = vmatpush1.bf16.msra.mxu0 0
        %8419 = vmatprep.subr.bf16.mxu0 0
        %8420 = vmatpush1.bf16.msra.mxu0 0
        %8421 = vmatprep.subr.bf16.mxu0 0
        %8422 = vmatpush1.bf16.msra.mxu0 0
        %8423 = vmatprep.subr.bf16.mxu0 0
        %8424 = vmatpush1.bf16.msra.mxu0 %v8408
        %8425 = vmatprep.subr.bf16.mxu0 0
        %8426 = vmatpush1.bf16.msra.mxu0 %v8407
        %8427 = vmatprep.subr.bf16.mxu0 0
        %8428 = vmatpush2.bf16.msra.mxu0 0
        %8429 = vmatprep.subr.bf16.mxu0 0
        %8430 = vmatpush2.bf16.msra.mxu0 0
        %8431 = vmatprep.subr.bf16.mxu0 0
        %8432 = vmatpush2.bf16.msra.mxu0 0
        %8433 = vmatprep.subr.bf16.mxu0 0
        %8434 = vmatpush2.bf16.msra.mxu0 0
        %8435 = vmatprep.subr.bf16.mxu0 0
        %8436 = vmatpush2.bf16.msra.mxu0 0
        %8437 = vmatprep.subr.bf16.mxu0 0
        %8438 = vmatpush2.bf16.msra.mxu0 0
        %8439 = vmatprep.subr.bf16.mxu0 0
        %8440 = vmatpush2.bf16.msra.mxu0 0
        %8441 = vmatprep.subr.bf16.mxu0 0
        %8442 = vmatpush2.bf16.msra.mxu0 0
        %8443 = vmatprep.mubr.bf16.mxu0 0
        %8444 = vmatmul.mubr.bf16.gmra.mxu0 %v6093
        %v8445 = vpop.f32.mrf.mxu0
        %v8446 = vadd.f32 0.0, %v8445
        %v8447 = vpop.f32.mrf.mxu0
        %v8448 = vpop.f32.mrf.mxu0
        %v8449 = vadd.f32 0.0, %v8448
        %v8450 = vpop.f32.mrf.mxu0
        %8451 = vmatprep.mubr.bf16.mxu0 0
        %8452 = vmatmul.mubr.bf16.gmra.mxu0 %v6096
        %v8453 = vpop.f32.mrf.mxu0
        %v8454 = vadd.f32 0.0, %v8453
        %v8455 = vpop.f32.mrf.mxu0
        %v8456 = vpop.f32.mrf.mxu0
        %v8457 = vadd.f32 0.0, %v8456
        %v8458 = vpop.f32.mrf.mxu0
        %8459 = vmatprep.mubr.bf16.mxu0 0
        %8460 = vmatmul.mubr.bf16.gmra.mxu0 %v6099
        %v8461 = vpop.f32.mrf.mxu0
        %v8462 = vadd.f32 0.0, %v8461
        %v8463 = vpop.f32.mrf.mxu0
        %v8464 = vpop.f32.mrf.mxu0
        %v8465 = vadd.f32 0.0, %v8464
        %v8466 = vpop.f32.mrf.mxu0
        %8467 = vmatprep.mubr.bf16.mxu0 0
        %8468 = vmatmul.mubr.bf16.gmra.mxu0 %v6102
        %v8469 = vpop.f32.mrf.mxu0
        %v8470 = vadd.f32 0.0, %v8469
        %v8471 = vpop.f32.mrf.mxu0
        %v8472 = vpop.f32.mrf.mxu0
        %v8473 = vadd.f32 0.0, %v8472
        %v8474 = vpop.f32.mrf.mxu0
        %8475 = vdwg.mxu0
        %v8476 = vadd.f32 %v8387, %v8446
        %v8477 = vadd.f32 %v8388, %v8449
        %v8478 = vadd.f32 %v8389, %v8454
        %v8479 = vadd.f32 %v8390, %v8457
        %v8480 = vadd.f32 %v8391, %v8462
        %v8481 = vadd.f32 %v8392, %v8465
        %v8482 = vadd.f32 %v8393, %v8470
        %v8483 = vadd.f32 %v8394, %v8473
        %v8484 = vld [vmem:[%s5740] sm:$0xf]
        %v8485 = vld [vmem:[%s5740 + $0x4] sm:$0xf]
        %v8486 = vld [vmem:[%s5740 + $0x8] sm:$0xf]
        %v8487 = vld [vmem:[%s5740 + $0xc] sm:$0xf]
        %v8492 = vunpack.c.l.b16 %v8484
        %v8493 = vunpack.c.l.b16 %v8485
        %v8494 = vunpack.c.l.b16 %v8486
        %v8495 = vunpack.c.l.b16 %v8487
        %v8496 = vpack.c.b16 %v8493, %v8492
        %v8497 = vpack.c.b16 %v8495, %v8494
        %8500 = vmatprep.subr.bf16.mxu0 0
        %8501 = vmatpush1.bf16.msra.mxu0 0
        %8502 = vmatprep.subr.bf16.mxu0 0
        %8503 = vmatpush1.bf16.msra.mxu0 0
        %8504 = vmatprep.subr.bf16.mxu0 0
        %8505 = vmatpush1.bf16.msra.mxu0 0
        %8506 = vmatprep.subr.bf16.mxu0 0
        %8507 = vmatpush1.bf16.msra.mxu0 0
        %8508 = vmatprep.subr.bf16.mxu0 0
        %8509 = vmatpush1.bf16.msra.mxu0 0
        %8510 = vmatprep.subr.bf16.mxu0 0
        %8511 = vmatpush1.bf16.msra.mxu0 0
        %8512 = vmatprep.subr.bf16.mxu0 0
        %8513 = vmatpush1.bf16.msra.mxu0 %v8497
        %8514 = vmatprep.subr.bf16.mxu0 0
        %8515 = vmatpush1.bf16.msra.mxu0 %v8496
        %8516 = vmatprep.subr.bf16.mxu0 0
        %8517 = vmatpush2.bf16.msra.mxu0 0
        %8518 = vmatprep.subr.bf16.mxu0 0
        %8519 = vmatpush2.bf16.msra.mxu0 0
        %8520 = vmatprep.subr.bf16.mxu0 0
        %8521 = vmatpush2.bf16.msra.mxu0 0
        %8522 = vmatprep.subr.bf16.mxu0 0
        %8523 = vmatpush2.bf16.msra.mxu0 0
        %8524 = vmatprep.subr.bf16.mxu0 0
        %8525 = vmatpush2.bf16.msra.mxu0 0
        %8526 = vmatprep.subr.bf16.mxu0 0
        %8527 = vmatpush2.bf16.msra.mxu0 0
        %8528 = vmatprep.subr.bf16.mxu0 0
        %8529 = vmatpush2.bf16.msra.mxu0 0
        %8530 = vmatprep.subr.bf16.mxu0 0
        %8531 = vmatpush2.bf16.msra.mxu0 0
        %8532 = vmatprep.mubr.bf16.mxu0 0
        %8533 = vmatmul.mubr.bf16.gmra.mxu0 %v7007
        %v8534 = vpop.f32.mrf.mxu0
        %v8535 = vadd.f32 0.0, %v8534
        %v8536 = vpop.f32.mrf.mxu0
        %v8537 = vpop.f32.mrf.mxu0
        %v8538 = vadd.f32 0.0, %v8537
        %v8539 = vpop.f32.mrf.mxu0
        %8540 = vmatprep.mubr.bf16.mxu0 0
        %8541 = vmatmul.mubr.bf16.gmra.mxu0 %v7010
        %v8542 = vpop.f32.mrf.mxu0
        %v8543 = vadd.f32 0.0, %v8542
        %v8544 = vpop.f32.mrf.mxu0
        %v8545 = vpop.f32.mrf.mxu0
        %v8546 = vadd.f32 0.0, %v8545
        %v8547 = vpop.f32.mrf.mxu0
        %8548 = vmatprep.mubr.bf16.mxu0 0
        %8549 = vmatmul.mubr.bf16.gmra.mxu0 %v7013
        %v8550 = vpop.f32.mrf.mxu0
        %v8551 = vadd.f32 0.0, %v8550
        %v8552 = vpop.f32.mrf.mxu0
        %v8553 = vpop.f32.mrf.mxu0
        %v8554 = vadd.f32 0.0, %v8553
        %v8555 = vpop.f32.mrf.mxu0
        %8556 = vmatprep.mubr.bf16.mxu0 0
        %8557 = vmatmul.mubr.bf16.gmra.mxu0 %v7016
        %v8558 = vpop.f32.mrf.mxu0
        %v8559 = vadd.f32 0.0, %v8558
        %v8560 = vpop.f32.mrf.mxu0
        %v8561 = vpop.f32.mrf.mxu0
        %v8562 = vadd.f32 0.0, %v8561
        %v8563 = vpop.f32.mrf.mxu0
        %8564 = vdwg.mxu0
        %v8565 = vadd.f32 %v8476, %v8535
        %v8566 = vadd.f32 %v8477, %v8538
        %v8567 = vadd.f32 %v8478, %v8543
        %v8568 = vadd.f32 %v8479, %v8546
        %v8569 = vadd.f32 %v8480, %v8551
        %v8570 = vadd.f32 %v8481, %v8554
        %v8571 = vadd.f32 %v8482, %v8559
        %v8572 = vadd.f32 %v8483, %v8562
        %v8573 = vld [vmem:[%s5854] sm:$0xf]
        %v8574 = vld [vmem:[%s5854 + $0x4] sm:$0xf]
        %v8575 = vld [vmem:[%s5854 + $0x8] sm:$0xf]
        %v8576 = vld [vmem:[%s5854 + $0xc] sm:$0xf]
        %v8581 = vunpack.c.l.b16 %v8573
        %v8582 = vunpack.c.l.b16 %v8574
        %v8583 = vunpack.c.l.b16 %v8575
        %v8584 = vunpack.c.l.b16 %v8576
        %v8585 = vpack.c.b16 %v8582, %v8581
        %v8586 = vpack.c.b16 %v8584, %v8583
        %8589 = vmatprep.subr.bf16.mxu0 0
        %8590 = vmatpush1.bf16.msra.mxu0 0
        %8591 = vmatprep.subr.bf16.mxu0 0
        %8592 = vmatpush1.bf16.msra.mxu0 0
        %8593 = vmatprep.subr.bf16.mxu0 0
        %8594 = vmatpush1.bf16.msra.mxu0 0
        %8595 = vmatprep.subr.bf16.mxu0 0
        %8596 = vmatpush1.bf16.msra.mxu0 0
        %8597 = vmatprep.subr.bf16.mxu0 0
        %8598 = vmatpush1.bf16.msra.mxu0 0
        %8599 = vmatprep.subr.bf16.mxu0 0
        %8600 = vmatpush1.bf16.msra.mxu0 0
        %8601 = vmatprep.subr.bf16.mxu0 0
        %8602 = vmatpush1.bf16.msra.mxu0 %v8586
        %8603 = vmatprep.subr.bf16.mxu0 0
        %8604 = vmatpush1.bf16.msra.mxu0 %v8585
        %8605 = vmatprep.subr.bf16.mxu0 0
        %8606 = vmatpush2.bf16.msra.mxu0 0
        %8607 = vmatprep.subr.bf16.mxu0 0
        %8608 = vmatpush2.bf16.msra.mxu0 0
        %8609 = vmatprep.subr.bf16.mxu0 0
        %8610 = vmatpush2.bf16.msra.mxu0 0
        %8611 = vmatprep.subr.bf16.mxu0 0
        %8612 = vmatpush2.bf16.msra.mxu0 0
        %8613 = vmatprep.subr.bf16.mxu0 0
        %8614 = vmatpush2.bf16.msra.mxu0 0
        %8615 = vmatprep.subr.bf16.mxu0 0
        %8616 = vmatpush2.bf16.msra.mxu0 0
        %8617 = vmatprep.subr.bf16.mxu0 0
        %8618 = vmatpush2.bf16.msra.mxu0 0
        %8619 = vmatprep.subr.bf16.mxu0 0
        %8620 = vmatpush2.bf16.msra.mxu0 0
        %8621 = vmatprep.mubr.bf16.mxu0 0
        %8622 = vmatmul.mubr.bf16.gmra.mxu0 %v7802
        %v8623 = vpop.f32.mrf.mxu0
        %v8624 = vadd.f32 0.0, %v8623
        %v8625 = vpop.f32.mrf.mxu0
        %v8626 = vpop.f32.mrf.mxu0
        %v8627 = vadd.f32 0.0, %v8626
        %v8628 = vpop.f32.mrf.mxu0
        %8629 = vmatprep.mubr.bf16.mxu0 0
        %8630 = vmatmul.mubr.bf16.gmra.mxu0 %v7805
        %v8631 = vpop.f32.mrf.mxu0
        %v8632 = vadd.f32 0.0, %v8631
        %v8633 = vpop.f32.mrf.mxu0
        %v8634 = vpop.f32.mrf.mxu0
        %v8635 = vadd.f32 0.0, %v8634
        %v8636 = vpop.f32.mrf.mxu0
        %8637 = vmatprep.mubr.bf16.mxu0 0
        %8638 = vmatmul.mubr.bf16.gmra.mxu0 %v7808
        %v8639 = vpop.f32.mrf.mxu0
        %v8640 = vadd.f32 0.0, %v8639
        %v8641 = vpop.f32.mrf.mxu0
        %v8642 = vpop.f32.mrf.mxu0
        %v8643 = vadd.f32 0.0, %v8642
        %v8644 = vpop.f32.mrf.mxu0
        %8645 = vmatprep.mubr.bf16.mxu0 0
        %8646 = vmatmul.mubr.bf16.gmra.mxu0 %v7811
        %v8647 = vpop.f32.mrf.mxu0
        %v8648 = vadd.f32 0.0, %v8647
        %v8649 = vpop.f32.mrf.mxu0
        %v8650 = vpop.f32.mrf.mxu0
        %v8651 = vadd.f32 0.0, %v8650
        %v8652 = vpop.f32.mrf.mxu0
        %8653 = vdwg.mxu0
        %v8654 = vadd.f32 %v8565, %v8624
        %v8655 = vadd.f32 %v8566, %v8627
        %v8656 = vadd.f32 %v8567, %v8632
        %v8657 = vadd.f32 %v8568, %v8635
        %v8658 = vadd.f32 %v8569, %v8640
        %v8659 = vadd.f32 %v8570, %v8643
        %v8660 = vadd.f32 %v8571, %v8648
        %v8661 = vadd.f32 %v8572, %v8651
        %v8662 = vld [vmem:[%s5962] sm:$0xf]
        %v8663 = vld [vmem:[%s5962 + $0x4] sm:$0xf]
        %v8664 = vld [vmem:[%s5962 + $0x8] sm:$0xf]
        %v8665 = vld [vmem:[%s5962 + $0xc] sm:$0xf]
        %v8670 = vunpack.c.l.b16 %v8662
        %v8671 = vunpack.c.l.b16 %v8663
        %v8672 = vunpack.c.l.b16 %v8664
        %v8673 = vunpack.c.l.b16 %v8665
        %v8674 = vpack.c.b16 %v8671, %v8670
        %v8675 = vpack.c.b16 %v8673, %v8672
        %8678 = vmatprep.subr.bf16.mxu0 0
        %8679 = vmatpush1.bf16.msra.mxu0 0
        %8680 = vmatprep.subr.bf16.mxu0 0
        %8681 = vmatpush1.bf16.msra.mxu0 0
        %8682 = vmatprep.subr.bf16.mxu0 0
        %8683 = vmatpush1.bf16.msra.mxu0 0
        %8684 = vmatprep.subr.bf16.mxu0 0
        %8685 = vmatpush1.bf16.msra.mxu0 0
        %8686 = vmatprep.subr.bf16.mxu0 0
        %8687 = vmatpush1.bf16.msra.mxu0 0
        %8688 = vmatprep.subr.bf16.mxu0 0
        %8689 = vmatpush1.bf16.msra.mxu0 0
        %8690 = vmatprep.subr.bf16.mxu0 0
        %8691 = vmatpush1.bf16.msra.mxu0 %v8675
        %8692 = vmatprep.subr.bf16.mxu0 0
        %8693 = vmatpush1.bf16.msra.mxu0 %v8674
        %8694 = vmatprep.subr.bf16.mxu0 0
        %8695 = vmatpush2.bf16.msra.mxu0 0
        %8696 = vmatprep.subr.bf16.mxu0 0
        %8697 = vmatpush2.bf16.msra.mxu0 0
        %8698 = vmatprep.subr.bf16.mxu0 0
        %8699 = vmatpush2.bf16.msra.mxu0 0
        %8700 = vmatprep.subr.bf16.mxu0 0
        %8701 = vmatpush2.bf16.msra.mxu0 0
        %8702 = vmatprep.subr.bf16.mxu0 0
        %8703 = vmatpush2.bf16.msra.mxu0 0
        %8704 = vmatprep.subr.bf16.mxu0 0
        %8705 = vmatpush2.bf16.msra.mxu0 0
        %8706 = vmatprep.subr.bf16.mxu0 0
        %8707 = vmatpush2.bf16.msra.mxu0 0
        %8708 = vmatprep.subr.bf16.mxu0 0
        %8709 = vmatpush2.bf16.msra.mxu0 0
        %8710 = vmatprep.mubr.bf16.mxu0 0
        %8711 = vmatmul.mubr.bf16.gmra.mxu0 %v7908
        %v8712 = vpop.f32.mrf.mxu0
        %v8713 = vadd.f32 0.0, %v8712
        %v8714 = vpop.f32.mrf.mxu0
        %v8715 = vpop.f32.mrf.mxu0
        %v8716 = vadd.f32 0.0, %v8715
        %v8717 = vpop.f32.mrf.mxu0
        %8718 = vmatprep.mubr.bf16.mxu0 0
        %8719 = vmatmul.mubr.bf16.gmra.mxu0 %v7911
        %v8720 = vpop.f32.mrf.mxu0
        %v8721 = vadd.f32 0.0, %v8720
        %v8722 = vpop.f32.mrf.mxu0
        %v8723 = vpop.f32.mrf.mxu0
        %v8724 = vadd.f32 0.0, %v8723
        %v8725 = vpop.f32.mrf.mxu0
        %8726 = vmatprep.mubr.bf16.mxu0 0
        %8727 = vmatmul.mubr.bf16.gmra.mxu0 %v7914
        %v8728 = vpop.f32.mrf.mxu0
        %v8729 = vadd.f32 0.0, %v8728
        %v8730 = vpop.f32.mrf.mxu0
        %v8731 = vpop.f32.mrf.mxu0
        %v8732 = vadd.f32 0.0, %v8731
        %v8733 = vpop.f32.mrf.mxu0
        %8734 = vmatprep.mubr.bf16.mxu0 0
        %8735 = vmatmul.mubr.bf16.gmra.mxu0 %v7917
        %v8736 = vpop.f32.mrf.mxu0
        %v8737 = vadd.f32 0.0, %v8736
        %v8738 = vpop.f32.mrf.mxu0
        %v8739 = vpop.f32.mrf.mxu0
        %v8740 = vadd.f32 0.0, %v8739
        %v8741 = vpop.f32.mrf.mxu0
        %8742 = vdwg.mxu0
        %v8743 = vadd.f32 %v8654, %v8713
        %v8744 = vadd.f32 %v8655, %v8716
        %v8745 = vadd.f32 %v8656, %v8721
        %v8746 = vadd.f32 %v8657, %v8724
        %v8747 = vadd.f32 %v8658, %v8729
        %v8748 = vadd.f32 %v8659, %v8732
        %v8749 = vadd.f32 %v8660, %v8737
        %v8750 = vadd.f32 %v8661, %v8740
        %v8751 = vld [vmem:[%s6070] sm:$0xf]
        %v8752 = vld [vmem:[%s6070 + $0x4] sm:$0xf]
        %v8753 = vld [vmem:[%s6070 + $0x8] sm:$0xf]
        %v8754 = vld [vmem:[%s6070 + $0xc] sm:$0xf]
        %v8755 = vunpack.c.l.b16 %v5154
        %v8756 = vpack.c.b16 %v6700, %v6699
        %v8757 = vpack.c.b16 %v6702, %v6701
        %v8758 = vpack.c.b16 %v6704, %v6703
        %v8759 = vpack.c.b16 %v8755, %v6705
        %v8764 = vunpack.c.l.b16 %v8751
        %v8765 = vunpack.c.l.b16 %v8752
        %v8766 = vunpack.c.l.b16 %v8753
        %v8767 = vunpack.c.l.b16 %v8754
        %v8768 = vpack.c.b16 %v8765, %v8764
        %v8769 = vpack.c.b16 %v8767, %v8766
        %v8773 = vsel %vm426, %v8756, 0
        %v8776 = vsel %vm426, %v8757, 0
        %v8779 = vsel %vm426, %v8758, 0
        %v8782 = vsel %vm426, %v8759, 0
        %8784 = vmatprep.subr.bf16.mxu0 0
        %8785 = vmatpush1.bf16.msra.mxu0 0
        %8786 = vmatprep.subr.bf16.mxu0 0
        %8787 = vmatpush1.bf16.msra.mxu0 0
        %8788 = vmatprep.subr.bf16.mxu0 0
        %8789 = vmatpush1.bf16.msra.mxu0 0
        %8790 = vmatprep.subr.bf16.mxu0 0
        %8791 = vmatpush1.bf16.msra.mxu0 0
        %8792 = vmatprep.subr.bf16.mxu0 0
        %8793 = vmatpush1.bf16.msra.mxu0 0
        %8794 = vmatprep.subr.bf16.mxu0 0
        %8795 = vmatpush1.bf16.msra.mxu0 0
        %8796 = vmatprep.subr.bf16.mxu0 0
        %8797 = vmatpush1.bf16.msra.mxu0 %v8769
        %8798 = vmatprep.subr.bf16.mxu0 0
        %8799 = vmatpush1.bf16.msra.mxu0 %v8768
        %8800 = vmatprep.subr.bf16.mxu0 0
        %8801 = vmatpush2.bf16.msra.mxu0 0
        %8802 = vmatprep.subr.bf16.mxu0 0
        %8803 = vmatpush2.bf16.msra.mxu0 0
        %8804 = vmatprep.subr.bf16.mxu0 0
        %8805 = vmatpush2.bf16.msra.mxu0 0
        %8806 = vmatprep.subr.bf16.mxu0 0
        %8807 = vmatpush2.bf16.msra.mxu0 0
        %8808 = vmatprep.subr.bf16.mxu0 0
        %8809 = vmatpush2.bf16.msra.mxu0 0
        %8810 = vmatprep.subr.bf16.mxu0 0
        %8811 = vmatpush2.bf16.msra.mxu0 0
        %8812 = vmatprep.subr.bf16.mxu0 0
        %8813 = vmatpush2.bf16.msra.mxu0 0
        %8814 = vmatprep.subr.bf16.mxu0 0
        %8815 = vmatpush2.bf16.msra.mxu0 0
        %8816 = vmatprep.mubr.bf16.mxu0 0
        %8817 = vmatmul.mubr.bf16.gmra.mxu0 %v8773
        %v8818 = vpop.f32.mrf.mxu0
        %v8819 = vadd.f32 0.0, %v8818
        %v8820 = vpop.f32.mrf.mxu0
        %v8821 = vpop.f32.mrf.mxu0
        %v8822 = vadd.f32 0.0, %v8821
        %v8823 = vpop.f32.mrf.mxu0
        %8824 = vmatprep.mubr.bf16.mxu0 0
        %8825 = vmatmul.mubr.bf16.gmra.mxu0 %v8776
        %v8826 = vpop.f32.mrf.mxu0
        %v8827 = vadd.f32 0.0, %v8826
        %v8828 = vpop.f32.mrf.mxu0
        %v8829 = vpop.f32.mrf.mxu0
        %v8830 = vadd.f32 0.0, %v8829
        %v8831 = vpop.f32.mrf.mxu0
        %8832 = vmatprep.mubr.bf16.mxu0 0
        %8833 = vmatmul.mubr.bf16.gmra.mxu0 %v8779
        %v8834 = vpop.f32.mrf.mxu0
        %v8835 = vadd.f32 0.0, %v8834
        %v8836 = vpop.f32.mrf.mxu0
        %v8837 = vpop.f32.mrf.mxu0
        %v8838 = vadd.f32 0.0, %v8837
        %v8839 = vpop.f32.mrf.mxu0
        %8840 = vmatprep.mubr.bf16.mxu0 0
        %8841 = vmatmul.mubr.bf16.gmra.mxu0 %v8782
        %v8842 = vpop.f32.mrf.mxu0
        %v8843 = vadd.f32 0.0, %v8842
        %v8844 = vpop.f32.mrf.mxu0
        %v8845 = vpop.f32.mrf.mxu0
        %v8846 = vadd.f32 0.0, %v8845
        %v8847 = vpop.f32.mrf.mxu0
        %8848 = vdwg.mxu0
        %v8849 = vadd.f32 %v8743, %v8819
        %v8850 = vadd.f32 %v8744, %v8822
        %v8851 = vadd.f32 %v8745, %v8827
        %v8852 = vadd.f32 %v8746, %v8830
        %v8853 = vadd.f32 %v8747, %v8835
        %v8854 = vadd.f32 %v8748, %v8838
        %v8855 = vadd.f32 %v8749, %v8843
        %v8856 = vadd.f32 %v8750, %v8846
        %v8857 = vld [vmem:[%s4] sm:$0x1]
        %v8859 = vlaneseq
        %v8860 = vshrl.u32 %v8859, 7
        %v8861 = vsub.s32 0, %v8860
        %v8862 = vrot.slane %v8857, %v8861
        %v8864 = vadd.f32 %v8849, %v8862
        %v8865 = vadd.f32 %v8850, %v8862
        %v8866 = vadd.f32 %v8851, %v8862
        %v8867 = vadd.f32 %v8852, %v8862
        %v8868 = vadd.f32 %v8853, %v8862
        %v8869 = vadd.f32 %v8854, %v8862
        %v8870 = vadd.f32 %v8855, %v8862
        %v8871 = vadd.f32 %v8856, %v8862
        %v8872 = vmax.f32 %v8864, 0.0
        %v8873 = vmax.f32 %v8865, 0.0
        %v8874 = vmax.f32 %v8866, 0.0
        %v8875 = vmax.f32 %v8867, 0.0
        %v8876 = vmax.f32 %v8868, 0.0
        %v8877 = vmax.f32 %v8869, 0.0
        %v8878 = vmax.f32 %v8870, 0.0
        %v8879 = vmax.f32 %v8871, 0.0
        %8888 = vrot.lane.b32.xlu0 %v8872, 16
        %v8889 = vpop.permute.xlu0 %8888
        %8890 = vrot.lane.b32.xlu0 %v8873, 16
        %v8891 = vpop.permute.xlu0 %8890
        %8892 = vrot.lane.b32.xlu0 %v8874, 16
        %v8893 = vpop.permute.xlu0 %8892
        %8894 = vrot.lane.b32.xlu0 %v8875, 16
        %v8895 = vpop.permute.xlu0 %8894
        %8896 = vrot.lane.b32.xlu0 %v8876, 16
        %v8897 = vpop.permute.xlu0 %8896
        %8898 = vrot.lane.b32.xlu0 %v8877, 16
        %v8899 = vpop.permute.xlu0 %8898
        %8900 = vrot.lane.b32.xlu0 %v8878, 16
        %v8901 = vpop.permute.xlu0 %8900
        %8902 = vrot.lane.b32.xlu0 %v8879, 16
        %v8903 = vpop.permute.xlu0 %8902
        %8912 = vst.msk [vmem:[%s4333 + $0x1] sm:$0xff] %vm6232, %v8889
        %8913 = vst.msk [vmem:[%s4333 + $0x11] sm:$0xff] %vm6232, %v8891
        %8914 = vst.msk [vmem:[%s4333 + $0x21] sm:$0xff] %vm6232, %v8893
        %8915 = vst.msk [vmem:[%s4333 + $0x31] sm:$0xff] %vm6232, %v8895
        %8916 = vst.msk [vmem:[%s4333 + $0x41] sm:$0xff] %vm6232, %v8897
        %8917 = vst.msk [vmem:[%s4333 + $0x51] sm:$0xff] %vm6232, %v8899
        %8918 = vst.msk [vmem:[%s4333 + $0x61] sm:$0xff] %vm6232, %v8901
        %8919 = vst.msk [vmem:[%s4333 + $0x71] sm:$0xff] %vm6232, %v8903
        %v8920 = vld [vmem:[#allocation3] sm:$0xff]
        %v8921 = vld [vmem:[#allocation3 + $0x8] sm:$0x1]
        %v8922 = vld [vmem:[#allocation3 + $0x10] sm:$0xff]
        %v8923 = vld [vmem:[#allocation3 + $0x18] sm:$0x1]
        %v8924 = vld [vmem:[#allocation3 + $0x20] sm:$0xff]
        %v8925 = vld [vmem:[#allocation3 + $0x28] sm:$0x1]
        %v8926 = vld [vmem:[#allocation3 + $0x30] sm:$0xff]
        %v8927 = vld [vmem:[#allocation3 + $0x38] sm:$0x1]
        %v8928 = vld [vmem:[#allocation3 + $0x40] sm:$0xff]
        %v8929 = vld [vmem:[#allocation3 + $0x48] sm:$0x1]
        %v8930 = vld [vmem:[#allocation3 + $0x50] sm:$0xff]
        %v8931 = vld [vmem:[#allocation3 + $0x58] sm:$0x1]
        %v8932 = vld [vmem:[#allocation3 + $0x60] sm:$0xff]
        %v8933 = vld [vmem:[#allocation3 + $0x68] sm:$0x1]
        %v8934 = vld [vmem:[#allocation3 + $0x70] sm:$0xff]
        %v8935 = vld [vmem:[#allocation3 + $0x78] sm:$0x1]
        %v8936 = vld [vmem:[#allocation3 + $0x80] sm:$0xff]
        %v8937 = vld [vmem:[#allocation3 + $0x88] sm:$0x1]
        %s8938 = scalar_lea.vmem [#allocation3], 144
        %v8939 = vld [vmem:[%s8938] sm:$0xff]
        %v8940 = vld [vmem:[%s8938 + $0x10] sm:$0xff]
        %v8941 = vld [vmem:[%s8938 + $0x20] sm:$0xff]
        %v8942 = vld [vmem:[%s8938 + $0x30] sm:$0xff]
        %v8943 = vld [vmem:[%s8938 + $0x40] sm:$0xff]
        %v8944 = vld [vmem:[%s8938 + $0x50] sm:$0xff]
        %v8945 = vld [vmem:[%s8938 + $0x60] sm:$0xff]
        %v8946 = vld [vmem:[%s8938 + $0x70] sm:$0xff]
        %v8947 = vld [vmem:[%s8938 + $0x80] sm:$0xff]
        %v8948 = vld [vmem:[%s2526] sm:$0xff]
        %v8949 = vld [vmem:[%s2526 + $0x8] sm:$0x1]
        %v8950 = vld [vmem:[%s2526 + $0x10] sm:$0xff]
        %v8951 = vld [vmem:[%s2526 + $0x18] sm:$0x1]
        %v8952 = vld [vmem:[%s2526 + $0x20] sm:$0xff]
        %v8953 = vld [vmem:[%s2526 + $0x28] sm:$0x1]
        %v8954 = vld [vmem:[%s2526 + $0x30] sm:$0xff]
        %v8955 = vld [vmem:[%s2526 + $0x38] sm:$0x1]
        %v8956 = vld [vmem:[%s2526 + $0x40] sm:$0xff]
        %v8957 = vld [vmem:[%s2526 + $0x48] sm:$0x1]
        %v8958 = vld [vmem:[%s2526 + $0x50] sm:$0xff]
        %v8959 = vld [vmem:[%s2526 + $0x58] sm:$0x1]
        %v8960 = vld [vmem:[%s2526 + $0x60] sm:$0xff]
        %v8961 = vld [vmem:[%s2526 + $0x68] sm:$0x1]
        %v8962 = vld [vmem:[%s2526 + $0x70] sm:$0xff]
        %v8963 = vld [vmem:[%s2526 + $0x78] sm:$0x1]
        %v8964 = vld [vmem:[%s1674] sm:$0xff]
        %v8965 = vld [vmem:[%s1674 + $0x10] sm:$0xff]
        %v8966 = vld [vmem:[%s1674 + $0x20] sm:$0xff]
        %v8967 = vld [vmem:[%s1674 + $0x30] sm:$0xff]
        %v8968 = vld [vmem:[%s1674 + $0x40] sm:$0xff]
        %v8969 = vld [vmem:[%s1674 + $0x50] sm:$0xff]
        %v8970 = vld [vmem:[%s1674 + $0x60] sm:$0xff]
        %v8971 = vld [vmem:[%s1674 + $0x70] sm:$0xff]
        %v8972 = vmax.f32 %v8920, %v8939
        %v8973 = vmax.f32 %v8922, %v8940
        %v8974 = vmax.f32 %v8924, %v8941
        %v8975 = vmax.f32 %v8926, %v8942
        %v8976 = vmax.f32 %v8928, %v8943
        %v8977 = vmax.f32 %v8930, %v8944
        %v8978 = vmax.f32 %v8932, %v8945
        %v8979 = vmax.f32 %v8934, %v8946
        %v8980 = vadd.f32 %v8920, %v8939
        %v8981 = vadd.f32 %v8922, %v8940
        %v8982 = vadd.f32 %v8924, %v8941
        %v8983 = vadd.f32 %v8926, %v8942
        %v8984 = vadd.f32 %v8928, %v8943
        %v8985 = vadd.f32 %v8930, %v8944
        %v8986 = vadd.f32 %v8932, %v8945
        %v8987 = vadd.f32 %v8934, %v8946
        %v9004 = vrot.slane %v8920, 1
        %v9005 = vrot.slane %v8921, 1
        %v9006 = vsel %vm595, %v9004, %v9005
        %v9007 = vrot.slane %v8922, 1
        %v9008 = vrot.slane %v8923, 1
        %v9009 = vsel %vm595, %v9007, %v9008
        %v9010 = vrot.slane %v8924, 1
        %v9011 = vrot.slane %v8925, 1
        %v9012 = vsel %vm595, %v9010, %v9011
        %v9013 = vrot.slane %v8926, 1
        %v9014 = vrot.slane %v8927, 1
        %v9015 = vsel %vm595, %v9013, %v9014
        %v9016 = vrot.slane %v8928, 1
        %v9017 = vrot.slane %v8929, 1
        %v9018 = vsel %vm595, %v9016, %v9017
        %v9019 = vrot.slane %v8930, 1
        %v9020 = vrot.slane %v8931, 1
        %v9021 = vsel %vm595, %v9019, %v9020
        %v9022 = vrot.slane %v8932, 1
        %v9023 = vrot.slane %v8933, 1
        %v9024 = vsel %vm595, %v9022, %v9023
        %v9025 = vrot.slane %v8934, 1
        %v9026 = vrot.slane %v8935, 1
        %v9027 = vsel %vm595, %v9025, %v9026
        %v9036 = vmax.f32 %v8972, %v9006
        %v9037 = vmax.f32 %v8973, %v9009
        %v9038 = vmax.f32 %v8974, %v9012
        %v9039 = vmax.f32 %v8975, %v9015
        %v9040 = vmax.f32 %v8976, %v9018
        %v9041 = vmax.f32 %v8977, %v9021
        %v9042 = vmax.f32 %v8978, %v9024
        %v9043 = vmax.f32 %v8979, %v9027
        %v9044 = vadd.f32 %v8980, %v9006
        %v9045 = vadd.f32 %v8981, %v9009
        %v9046 = vadd.f32 %v8982, %v9012
        %v9047 = vadd.f32 %v8983, %v9015
        %v9048 = vadd.f32 %v8984, %v9018
        %v9049 = vadd.f32 %v8985, %v9021
        %v9050 = vadd.f32 %v8986, %v9024
        %v9051 = vadd.f32 %v8987, %v9027
        %v9052 = vmax.f32 %v9036, %v8948
        %v9053 = vmax.f32 %v9037, %v8950
        %v9054 = vmax.f32 %v9038, %v8952
        %v9055 = vmax.f32 %v9039, %v8954
        %v9056 = vmax.f32 %v9040, %v8956
        %v9057 = vmax.f32 %v9041, %v8958
        %v9058 = vmax.f32 %v9042, %v8960
        %v9059 = vmax.f32 %v9043, %v8962
        %v9060 = vadd.f32 %v9044, %v8948
        %v9061 = vadd.f32 %v9045, %v8950
        %v9062 = vadd.f32 %v9046, %v8952
        %v9063 = vadd.f32 %v9047, %v8954
        %v9064 = vadd.f32 %v9048, %v8956
        %v9065 = vadd.f32 %v9049, %v8958
        %v9066 = vadd.f32 %v9050, %v8960
        %v9067 = vadd.f32 %v9051, %v8962
        %v9068 = vmax.f32 %v9052, %v8964
        %v9069 = vmax.f32 %v9053, %v8965
        %v9070 = vmax.f32 %v9054, %v8966
        %v9071 = vmax.f32 %v9055, %v8967
        %v9072 = vmax.f32 %v9056, %v8968
        %v9073 = vmax.f32 %v9057, %v8969
        %v9074 = vmax.f32 %v9058, %v8970
        %v9075 = vmax.f32 %v9059, %v8971
        %v9076 = vadd.f32 %v9060, %v8964
        %v9077 = vadd.f32 %v9061, %v8965
        %v9078 = vadd.f32 %v9062, %v8966
        %v9079 = vadd.f32 %v9063, %v8967
        %v9080 = vadd.f32 %v9064, %v8968
        %v9081 = vadd.f32 %v9065, %v8969
        %v9082 = vadd.f32 %v9066, %v8970
        %v9083 = vadd.f32 %v9067, %v8971
        %v9100 = vrot.slane %v8948, 1
        %v9101 = vrot.slane %v8949, 1
        %v9102 = vsel %vm595, %v9100, %v9101
        %v9103 = vrot.slane %v8950, 1
        %v9104 = vrot.slane %v8951, 1
        %v9105 = vsel %vm595, %v9103, %v9104
        %v9106 = vrot.slane %v8952, 1
        %v9107 = vrot.slane %v8953, 1
        %v9108 = vsel %vm595, %v9106, %v9107
        %v9109 = vrot.slane %v8954, 1
        %v9110 = vrot.slane %v8955, 1
        %v9111 = vsel %vm595, %v9109, %v9110
        %v9112 = vrot.slane %v8956, 1
        %v9113 = vrot.slane %v8957, 1
        %v9114 = vsel %vm595, %v9112, %v9113
        %v9115 = vrot.slane %v8958, 1
        %v9116 = vrot.slane %v8959, 1
        %v9117 = vsel %vm595, %v9115, %v9116
        %v9118 = vrot.slane %v8960, 1
        %v9119 = vrot.slane %v8961, 1
        %v9120 = vsel %vm595, %v9118, %v9119
        %v9121 = vrot.slane %v8962, 1
        %v9122 = vrot.slane %v8963, 1
        %v9123 = vsel %vm595, %v9121, %v9122
        %v9132 = vmax.f32 %v9068, %v9102
        %v9133 = vmax.f32 %v9069, %v9105
        %v9134 = vmax.f32 %v9070, %v9108
        %v9135 = vmax.f32 %v9071, %v9111
        %v9136 = vmax.f32 %v9072, %v9114
        %v9137 = vmax.f32 %v9073, %v9117
        %v9138 = vmax.f32 %v9074, %v9120
        %v9139 = vmax.f32 %v9075, %v9123
        %v9140 = vadd.f32 %v9076, %v9102
        %v9141 = vadd.f32 %v9077, %v9105
        %v9142 = vadd.f32 %v9078, %v9108
        %v9143 = vadd.f32 %v9079, %v9111
        %v9144 = vadd.f32 %v9080, %v9114
        %v9145 = vadd.f32 %v9081, %v9117
        %v9146 = vadd.f32 %v9082, %v9120
        %v9147 = vadd.f32 %v9083, %v9123
        %v9148 = vmax.f32 %v9132, %v8922
        %v9149 = vmax.f32 %v9133, %v8924
        %v9150 = vmax.f32 %v9134, %v8926
        %v9151 = vmax.f32 %v9135, %v8928
        %v9152 = vmax.f32 %v9136, %v8930
        %v9153 = vmax.f32 %v9137, %v8932
        %v9154 = vmax.f32 %v9138, %v8934
        %v9155 = vmax.f32 %v9139, %v8936
        %v9156 = vadd.f32 %v9140, %v8922
        %v9157 = vadd.f32 %v9141, %v8924
        %v9158 = vadd.f32 %v9142, %v8926
        %v9159 = vadd.f32 %v9143, %v8928
        %v9160 = vadd.f32 %v9144, %v8930
        %v9161 = vadd.f32 %v9145, %v8932
        %v9162 = vadd.f32 %v9146, %v8934
        %v9163 = vadd.f32 %v9147, %v8936
        %v9164 = vmax.f32 %v9148, %v8940
        %v9165 = vmax.f32 %v9149, %v8941
        %v9166 = vmax.f32 %v9150, %v8942
        %v9167 = vmax.f32 %v9151, %v8943
        %v9168 = vmax.f32 %v9152, %v8944
        %v9169 = vmax.f32 %v9153, %v8945
        %v9170 = vmax.f32 %v9154, %v8946
        %v9171 = vmax.f32 %v9155, %v8947
        %v9172 = vadd.f32 %v9156, %v8940
        %v9173 = vadd.f32 %v9157, %v8941
        %v9174 = vadd.f32 %v9158, %v8942
        %v9175 = vadd.f32 %v9159, %v8943
        %v9176 = vadd.f32 %v9160, %v8944
        %v9177 = vadd.f32 %v9161, %v8945
        %v9178 = vadd.f32 %v9162, %v8946
        %v9179 = vadd.f32 %v9163, %v8947
        %v9182 = vrot.slane %v8936, 1
        %v9183 = vrot.slane %v8937, 1
        %v9184 = vsel %vm595, %v9182, %v9183
        %v9186 = vmax.f32 %v9164, %v9009
        %v9187 = vmax.f32 %v9165, %v9012
        %v9188 = vmax.f32 %v9166, %v9015
        %v9189 = vmax.f32 %v9167, %v9018
        %v9190 = vmax.f32 %v9168, %v9021
        %v9191 = vmax.f32 %v9169, %v9024
        %v9192 = vmax.f32 %v9170, %v9027
        %v9193 = vmax.f32 %v9171, %v9184
        %v9194 = vadd.f32 %v9172, %v9009
        %v9195 = vadd.f32 %v9173, %v9012
        %v9196 = vadd.f32 %v9174, %v9015
        %v9197 = vadd.f32 %v9175, %v9018
        %v9198 = vadd.f32 %v9176, %v9021
        %v9199 = vadd.f32 %v9177, %v9024
        %v9200 = vadd.f32 %v9178, %v9027
        %v9201 = vadd.f32 %v9179, %v9184
        %v9202 = vlaneseq
        %v9203 = vand.u32 %v9202, 127
        %vm9204 = vcmp.lt.s32.totalorder %v9203, 24
        %v9205 = vmul.f32 %v9194, 0.11111111
        %v9206 = vmul.f32 %v9195, 0.11111111
        %v9207 = vmul.f32 %v9196, 0.11111111
        %v9208 = vmul.f32 %v9197, 0.11111111
        %v9209 = vmul.f32 %v9198, 0.11111111
        %v9210 = vmul.f32 %v9199, 0.11111111
        %v9211 = vmul.f32 %v9200, 0.11111111
        %v9212 = vmul.f32 %v9201, 0.11111111
        %v9213 = vsel %vm9204, %v9186, %v9205
        %v9214 = vsel %vm9204, %v9187, %v9206
        %v9215 = vsel %vm9204, %v9188, %v9207
        %v9216 = vsel %vm9204, %v9189, %v9208
        %v9217 = vsel %vm9204, %v9190, %v9209
        %v9218 = vsel %vm9204, %v9191, %v9210
        %v9219 = vsel %vm9204, %v9192, %v9211
        %v9220 = vsel %vm9204, %v9193, %v9212
        %v9221 = vld [vmem:[%s5] sm:$0xf]
        %v9222 = vld [vmem:[%s6] sm:$0x1]
        %v9224 = vlaneseq
        %v9225 = vshrl.u32 %v9224, 7
        %v9226 = vsub.s32 0, %v9225
        %v9227 = vrot.slane %v9222, %v9226
        %v9229 = vsel %vm859, %v557, 0
        %v9231 = vsel %vm859, %v559, 0
        %v9233 = vsel %vm859, %v561, 0
        %v9235 = vsel %vm859, %v563, 0
        %v9237 = vsel %vm859, %v565, 0
        %v9239 = vsel %vm859, %v567, 0
        %v9241 = vsel %vm859, %v569, 0
        %v9243 = vsel %vm859, %v571, 0
        %vm9245 = vcmask 1043456
        %v9247 = vsel %vm9245, %v9221, 0
        %9249 = vmatprep.subr.mxu0 0.0
        %9250 = vmatpush1.msra.mxu0 0.0
        %9251 = vmatprep.subr.mxu0 0.0
        %9252 = vmatpush1.msra.mxu0 0.0
        %9253 = vmatprep.subr.mxu0 0.0
        %9254 = vmatpush1.msra.mxu0 0.0
        %9255 = vmatprep.subr.mxu0 0.0
        %9256 = vmatpush1.msra.mxu0 0.0
        %9257 = vmatprep.subr.mxu0 0.0
        %9258 = vmatpush1.msra.mxu0 0.0
        %9259 = vmatprep.subr.mxu0 0.0
        %9260 = vmatpush1.msra.mxu0 0.0
        %9261 = vmatprep.subr.mxu0 0.0
        %9262 = vmatpush1.msra.mxu0 0.0
        %9263 = vmatprep.subr.mxu0 0.0
        %9264 = vmatpush1.msra.mxu0 0.0
        %9265 = vmatprep.subr.mxu0 0.0
        %9266 = vmatpush1.msra.mxu0 0.0
        %9267 = vmatprep.subr.mxu0 0.0
        %9268 = vmatpush1.msra.mxu0 0.0
        %9269 = vmatprep.subr.mxu0 0.0
        %9270 = vmatpush1.msra.mxu0 0.0
        %9271 = vmatprep.subr.mxu0 0.0
        %9272 = vmatpush1.msra.mxu0 0.0
        %9273 = vmatprep.subr.mxu0 0.0
        %9274 = vmatpush1.msra.mxu0 0.0
        %9275 = vmatprep.subr.mxu0 0.0
        %9276 = vmatpush1.msra.mxu0 0.0
        %9277 = vmatprep.subr.mxu0 0.0
        %9278 = vmatpush1.msra.mxu0 0.0
        %9279 = vmatprep.subr.mxu0 0.0
        %9280 = vmatpush1.msra.mxu0 %v9247
        %9281 = vmatprep.subr.mxu0 0.0
        %9282 = vmatpush2.msra.mxu0 0.0
        %9283 = vmatprep.subr.mxu0 0.0
        %9284 = vmatpush2.msra.mxu0 0.0
        %9285 = vmatprep.subr.mxu0 0.0
        %9286 = vmatpush2.msra.mxu0 0.0
        %9287 = vmatprep.subr.mxu0 0.0
        %9288 = vmatpush2.msra.mxu0 0.0
        %9289 = vmatprep.subr.mxu0 0.0
        %9290 = vmatpush2.msra.mxu0 0.0
        %9291 = vmatprep.subr.mxu0 0.0
        %9292 = vmatpush2.msra.mxu0 0.0
        %9293 = vmatprep.subr.mxu0 0.0
        %9294 = vmatpush2.msra.mxu0 0.0
        %9295 = vmatprep.subr.mxu0 0.0
        %9296 = vmatpush2.msra.mxu0 0.0
        %9297 = vmatprep.subr.mxu0 0.0
        %9298 = vmatpush2.msra.mxu0 0.0
        %9299 = vmatprep.subr.mxu0 0.0
        %9300 = vmatpush2.msra.mxu0 0.0
        %9301 = vmatprep.subr.mxu0 0.0
        %9302 = vmatpush2.msra.mxu0 0.0
        %9303 = vmatprep.subr.mxu0 0.0
        %9304 = vmatpush2.msra.mxu0 0.0
        %9305 = vmatprep.subr.mxu0 0.0
        %9306 = vmatpush2.msra.mxu0 0.0
        %9307 = vmatprep.subr.mxu0 0.0
        %9308 = vmatpush2.msra.mxu0 0.0
        %9309 = vmatprep.subr.mxu0 0.0
        %9310 = vmatpush2.msra.mxu0 0.0
        %9311 = vmatprep.subr.mxu0 0.0
        %9312 = vmatpush2.msra.mxu0 0.0
        %9313 = vmatprep.mubr.f32.mxu0 0.0
        %9314 = vmatmul.mubr.f32.gmra.mxu0 %v9229
        %v9315 = vpop.f32.mrf.mxu0
        %v9316 = vadd.f32 %v9227, %v9315
        %v9317 = vpop.f32.mrf.mxu0
        %9318 = vmatprep.mubr.f32.mxu0 0.0
        %9319 = vmatmul.mubr.f32.gmra.mxu0 %v9231
        %v9320 = vpop.f32.mrf.mxu0
        %v9321 = vadd.f32 %v9227, %v9320
        %v9322 = vpop.f32.mrf.mxu0
        %9323 = vmatprep.mubr.f32.mxu0 0.0
        %9324 = vmatmul.mubr.f32.gmra.mxu0 %v9233
        %v9325 = vpop.f32.mrf.mxu0
        %v9326 = vadd.f32 %v9227, %v9325
        %v9327 = vpop.f32.mrf.mxu0
        %9328 = vmatprep.mubr.f32.mxu0 0.0
        %9329 = vmatmul.mubr.f32.gmra.mxu0 %v9235
        %v9330 = vpop.f32.mrf.mxu0
        %v9331 = vadd.f32 %v9227, %v9330
        %v9332 = vpop.f32.mrf.mxu0
        %9333 = vmatprep.mubr.f32.mxu0 0.0
        %9334 = vmatmul.mubr.f32.gmra.mxu0 %v9237
        %v9335 = vpop.f32.mrf.mxu0
        %v9336 = vadd.f32 %v9227, %v9335
        %v9337 = vpop.f32.mrf.mxu0
        %9338 = vmatprep.mubr.f32.mxu0 0.0
        %9339 = vmatmul.mubr.f32.gmra.mxu0 %v9239
        %v9340 = vpop.f32.mrf.mxu0
        %v9341 = vadd.f32 %v9227, %v9340
        %v9342 = vpop.f32.mrf.mxu0
        %9343 = vmatprep.mubr.f32.mxu0 0.0
        %9344 = vmatmul.mubr.f32.gmra.mxu0 %v9241
        %v9345 = vpop.f32.mrf.mxu0
        %v9346 = vadd.f32 %v9227, %v9345
        %v9347 = vpop.f32.mrf.mxu0
        %9348 = vmatprep.mubr.f32.mxu0 0.0
        %9349 = vmatmul.mubr.f32.gmra.mxu0 %v9243
        %v9350 = vpop.f32.mrf.mxu0
        %v9351 = vadd.f32 %v9227, %v9350
        %v9352 = vpop.f32.mrf.mxu0
        %9353 = vdwg.mxu0
        %v9354 = vadd.f32 %v9213, %v9316
        %v9355 = vadd.f32 %v9214, %v9321
        %v9356 = vadd.f32 %v9215, %v9326
        %v9357 = vadd.f32 %v9216, %v9331
        %v9358 = vadd.f32 %v9217, %v9336
        %v9359 = vadd.f32 %v9218, %v9341
        %v9360 = vadd.f32 %v9219, %v9346
        %v9361 = vadd.f32 %v9220, %v9351
        %9362 = vst.msk [vmem:[%s271] sm:$0xff] %vm426, %v9354
        %9363 = vst.msk [vmem:[%s271 + $0x8] sm:$0xff] %vm426, %v9355
        %9364 = vst.msk [vmem:[%s271 + $0x10] sm:$0xff] %vm426, %v9356
        %9365 = vst.msk [vmem:[%s271 + $0x18] sm:$0xff] %vm426, %v9357
        %9366 = vst.msk [vmem:[%s271 + $0x20] sm:$0xff] %vm426, %v9358
        %9367 = vst.msk [vmem:[%s271 + $0x28] sm:$0xff] %vm426, %v9359
        %9368 = vst.msk [vmem:[%s271 + $0x30] sm:$0xff] %vm426, %v9360
        %9369 = vst.msk [vmem:[%s271 + $0x38] sm:$0xff] %vm426, %v9361
        %s9370 = sand.u32 %s181, 1
        %s9371 = scalar_lea.sflag [#allocation5], %s9370
        %s9372 = sand.u32 %s181, 1
        %s9373 = smul.addr %s9372, 64
        %s9374 = scalar_lea.vmem [#allocation4], %s9373
        // Predicated region
        $region49: #{inception_a_1_1_res_forward.1} parent=47 // pred_check
          %p9375 = pneg %p191
        $region50: #{inception_a_1_1_res_forward.1} parent=47 // pred_check_branch
          %9377 = sbr.rel (%p9375) target = $region52
        $region51: #{inception_a_1_1_res_forward.1} parent=47 // pred_region
          %s9379 = ssub.s32 1024, 1024
          %9380 = vsyncadd %s9371, %s9379
          %s9381 = smul.addr %s21, 8
          %s9382 = smul.addr %s9381, 128
          %s9383 = scalar_lea.hbm %s7, %s9382
          %s9384 = sshll.u32 %s9374, 4
          %s9385 = int_to_ptr.vmem [resolvable:$true] %s9384
          %9390 = dma.vmem_to_hbm [thread:$0]  %s9385, 1024, %s9383, %s9371, 128, 128, 8
        $region52: #{inception_a_1_1_res_forward.1} parent=47 // pred_fallthru
          _
      $region48: #{inception_a_1_1_res_forward.1} parent=5 // pred_fallthru
        _
      %p9391 = scmp.le.s32.totalorder 2, %s16
      // Predicated region
      $region53: #{inception_a_1_1_res_forward.1} parent=5 // pred_check
        %p9392 = pneg %p9391
      $region54: #{inception_a_1_1_res_forward.1} parent=5 // pred_check_branch
        %9394 = sbr.rel (%p9392) target = $region56
      $region55: #{inception_a_1_1_res_forward.1} parent=5 // pred_region
        %s9395 = ssub.s32 %s16, 2
        // Predicated region
        $region57: #{inception_a_1_1_res_forward.1} parent=55 // pred_check
          %p9396 = pneg %p197
        $region58: #{inception_a_1_1_res_forward.1} parent=55 // pred_check_branch
          %9398 = sbr.rel (%p9396) target = $region60
        $region59: #{inception_a_1_1_res_forward.1} parent=55 // pred_region
          %s9399 = sand.u32 %s182, 1
          %s9400 = scalar_lea.sflag [#allocation5], %s9399
          %s9401 = sand.u32 %s182, 1
          %s9402 = smul.addr %s9401, 64
          %s9403 = scalar_lea.vmem [#allocation4], %s9402
          %9404 = dma.done %s9400, 1024
        $region60: #{inception_a_1_1_res_forward.1} parent=55 // pred_fallthru
          _
      $region56: #{inception_a_1_1_res_forward.1} parent=5 // pred_fallthru
        _
    $region6: #{inception_a_1_1_res_forward.1} parent=1 // loop_footer
      %s20 = sadd.s32 1, %s16
    $region7: #{inception_a_1_1_res_forward.1} parent=1 // loop_footer_branch
      %15 = sbr.rel target = $region3
    $region8: #{inception_a_1_1_res_forward.1} parent=1 // loop_exit
      _
    %9405 = vsyncpa [#allocation5], 1
    %s9406 = scalar_lea.sflag [#allocation5], 1
    %9407 = vsyncpa %s9406, 1

</llo_original>
